<compile_context>
chip_gen: v5e
topology: v5e:2x2
jax: 0.10.0
libtpu: 0.0.40
codegen_flags: <defaults>
</compile_context>

<pallas_src>
import functools

import jax
import jax.numpy as jnp
from jax import lax
from jax.experimental import pallas as pl
from jax.experimental.pallas import tpu as pltpu

# ---------------- small, self-consistent hyper-parameters ----------------
DIM        = 32
DEPTH      = 2
HEADS      = 2
DIM_HEAD   = 16
HD         = HEADS * DIM_HEAD          # 32
FF_INNER   = 64
NUM_MEM_KV = 4
CTX_DIM    = 48
MAX_SEQ    = 16
PAD_ID     = -1
QK_SCALE   = 10.0                      # x_transformers default scale when attn_qk_norm=True

# tokenizer-derived index layout (synthetic values, ordering preserved)
BLOCK_SIZE   = 2
OFFSET_SIZE  = 4
NUM_DISCRETE = BLOCK_SIZE * OFFSET_SIZE
IND_I0       = 3
IND_I1       = 3 + 4
IND_OUT      = 3 + 8
IND_BLOCK    = 3 + 12
IND_OFFSET   = IND_BLOCK + BLOCK_SIZE ** 3        # 23
VOCAB        = 30                                 # ind_eos
EOS_ID       = VOCAB
PAD_IN_TABLE = VOCAB + 1
N_TOKENS     = VOCAB + 2                          # 32
V_PAD        = 128                                # lane-dense logits width
NEG_INF      = -1e9

NORM_BASE = 8            # row in const32 slab where LN gains/biases start (rows 0..7 = special)


# ---------------------- exact-erf GELU (torch F.gelu parity) ----------------------
_SQRT1_2 = 0.7071067811865476


def _erf_poly(x):
    # Abramowitz & Stegun 7.1.26, |abs err| < 1.5e-7.  Uses only exp (EUP) + VPU ops so it
    # does not rely on a Mosaic erf lowering.
    a1, a2, a3, a4, a5 = 0.254829592, -0.284496736, 1.421413741, -1.453152027, 1.061405429
    p = 0.3275911
    sgn = jnp.where(x >= 0.0, 1.0, -1.0)
    ax = jnp.abs(x)
    t = 1.0 / (1.0 + p * ax)
    poly = ((((a5 * t + a4) * t + a3) * t + a2) * t + a1) * t
    return sgn * (1.0 - poly * jnp.exp(-ax * ax))


def _gelu_exact(x):
    return 0.5 * x * (1.0 + _erf_poly(x * _SQRT1_2))


# ============================ fused Pallas kernel ============================

def _make_kernel(R, Rc, S_pad, Nc_pad, Nc):
    """Fused forward kernel for one batch chunk of R = Bc*S_pad flattened rows."""
    log2_s = S_pad.bit_length() - 1          # S_pad / Nc_pad are powers of two
    log2_c = Nc_pad.bit_length() - 1
    f32 = jnp.float32

    def kernel(base_ref, mlab_ref, ctx_ref,
               const32_ref, w_dim128_ref, w_kv_c_ref, w_o_all_ref,
               mem_kT_ref, mem_v_ref, w_ff2_ref, biases_ref, w_logits_ref,
               out_ref):

        def ln(v, gi):                       # LN gain at const32 row NORM_BASE+gi, bias at +1
            g = const32_ref[pl.ds(NORM_BASE + gi, 1), :]
            b = const32_ref[pl.ds(NORM_BASE + gi + 1, 1), :]
            mu = jnp.mean(v, axis=-1, keepdims=True)
            var = jnp.mean((v - mu) ** 2, axis=-1, keepdims=True)
            return (v - mu) * lax.rsqrt(var + 1e-5) * g + b

        def l2n(t):
            return t * lax.rsqrt(jnp.sum(t * t, axis=-1, keepdims=True) + 1e-8)

        # ---- attention biases built in-kernel (saves 2 DMAs + 2 VMEM tiles; VPU has slack) ----
        ri = lax.broadcasted_iota(jnp.int32, (R, R), 0)
        ci = lax.broadcasted_iota(jnp.int32, (R, R), 1)
        bias_self = jnp.where(((ri >> log2_s) == (ci >> log2_s)) &
                              ((ci & (S_pad - 1)) <= (ri & (S_pad - 1))),
                              0.0, NEG_INF)                       # block-diag causal
        rc = lax.broadcasted_iota(jnp.int32, (R, Rc), 0)
        cc = lax.broadcasted_iota(jnp.int32, (R, Rc), 1)
        bias_cross = jnp.where(((rc >> log2_s) == (cc >> log2_c)) &
                               ((cc & (Nc_pad - 1)) < Nc),
                               0.0, NEG_INF)                      # block-diag, ctx-valid

        # ---- embed assembly: (tok + pos [+ sos]) + masks @ special  (one MXU dot) ----
        mlab = mlab_ref[0]                                        # (R, 8) = 5 masks | 0 | 0 | label
        x = base_ref[0] + jnp.dot(mlab, const32_ref[pl.ds(0, 8), :],
                                  preferred_element_type=f32)     # label column hits a zero row
        ctx = ctx_ref[0]                                          # (Rc, CTX_DIM)

        def attend(q_src, kv, bias, wo, mem_base):
            # q_src: (R, H*Dh) projected queries;  kv: (*, 2*H*Dh) projected [k_h.. | v_h..].
            # Heads unrolled; mem-KV is a separate score block (no K/V concat);
            # qk-l2-norm scale folded into q; mem_k pre-normalized / pre-transposed host-side.
            outs = []
            for hh in range(HEADS):
                q = l2n(q_src[:, hh * DIM_HEAD:(hh + 1) * DIM_HEAD]) * QK_SCALE
                k = l2n(kv[:, hh * DIM_HEAD:(hh + 1) * DIM_HEAD])
                v = kv[:, (HEADS + hh) * DIM_HEAD:(HEADS + hh + 1) * DIM_HEAD]
                s_mem = jnp.dot(q, mem_kT_ref[mem_base + hh],
                                preferred_element_type=f32)        # (R, NUM_MEM_KV)
                # TODO(synk): if the bundle shows a vxpose feeding this rhs-minor contraction,
                # switch to a pre-transposed sequence-K path.
                s_seq = lax.dot_general(q, k, (((1,), (1,)), ((), ())),
                                        preferred_element_type=f32) + bias
                m = jnp.maximum(jnp.max(s_mem, axis=-1, keepdims=True),
                                jnp.max(s_seq, axis=-1, keepdims=True))
                p_mem = jnp.exp(s_mem - m)
                p_seq = jnp.exp(s_seq - m)
                denom = (jnp.sum(p_mem, axis=-1, keepdims=True) +
                         jnp.sum(p_seq, axis=-1, keepdims=True))
                o = (jnp.dot(p_mem, mem_v_ref[mem_base + hh],
                             preferred_element_type=f32) +
                     jnp.dot(p_seq, v, preferred_element_type=f32))
                # approx reciprocal runs on the EUP slot; ~1e-4 rel-err vs exact divide.
                outs.append(o * pl.reciprocal(denom, approx=True))
            o_all = jnp.concatenate(outs, axis=-1)                  # (R, H*Dh)
            return jnp.dot(o_all, wo, preferred_element_type=f32)   # single out-proj dot

        for l in range(DEPTH):
            w_attn = w_dim128_ref[l]             # (DIM,128): [q_h.. | k_h.. | v_h.. | crossq_h..]

            # ---- self attention (block-diag causal, qk-l2-norm, num_mem_kv=4) ----
            h = ln(x, 6 * l + 0)
            proj = jnp.dot(h, w_attn, preferred_element_type=f32)   # one fused QKV dot
            x = x + attend(proj[:, 0:HD], proj[:, HD:3 * HD],
                           bias_self, w_o_all_ref[l], l * HEADS)

            # ---- cross attention on point-cloud condition embeds ----
            h = ln(x, 6 * l + 2)
            q_c = jnp.dot(h, w_attn, preferred_element_type=f32)[:, 3 * HD:4 * HD]
            kv_c = jnp.dot(ctx, w_kv_c_ref[l], preferred_element_type=f32)   # fused K|V dot
            x = x + attend(q_c, kv_c, bias_cross,
                           w_o_all_ref[DEPTH + l], (DEPTH + l) * HEADS)

            # ---- GEGLU feed-forward (value|gate fused into one 128-lane dot) ----
            h = ln(x, 6 * l + 4)
            h1 = (jnp.dot(h, w_dim128_ref[DEPTH + l], preferred_element_type=f32)
                  + biases_ref[pl.ds(2 * l, 1), :])
            ff = h1[:, :FF_INNER] * _gelu_exact(h1[:, FF_INNER:])
            x = x + (jnp.dot(ff, w_ff2_ref[l], preferred_element_type=f32)
                     + biases_ref[pl.ds(2 * l + 1, 1), :][:, :DIM])

        # ---- final norm + logits + per-token CE, one lane-dense (R,128) store ----
        h = ln(x, 6 * DEPTH)
        logits = (jnp.dot(h, w_logits_ref[...], preferred_element_type=f32)
                  + biases_ref[pl.ds(2 * DEPTH, 1), :])
        col = lax.broadcasted_iota(jnp.int32, (R, V_PAD), 1)
        lg = jnp.where(col < N_TOKENS, logits, NEG_INF)
        m = jnp.max(lg, axis=-1, keepdims=True)
        lse = m + jnp.log(jnp.sum(jnp.exp(lg - m), axis=-1, keepdims=True))
        lab = mlab[:, 7:8].astype(jnp.int32)                 # labels folded into the mask slab
        picked = jnp.sum(jnp.where(col == lab, lg, 0.0), axis=-1, keepdims=True)
        nll = jnp.where(lab != PAD_ID, lse - picked, 0.0)
        # nll stored in the unused padded lane V_PAD-1 -> no lane-1 vst.msk output.
        out_ref[0] = jnp.where(col == V_PAD - 1, nll, logits)

    return kernel


# ============================ kernel wrapper ============================

def fused_forward(params, base, mlab, ctx, *, S_pad, Nc_pad, Nc):
    num_chunks, R, _ = base.shape
    Rc = ctx.shape[1]
    kernel = _make_kernel(R=R, Rc=Rc, S_pad=S_pad, Nc_pad=Nc_pad, Nc=Nc)

    batched = [base, mlab, ctx]
    shared = [params[k] for k in ("const32", "w_dim128", "w_kv_c", "w_o_all",
                                  "mem_kT", "mem_v", "w_ff2", "biases", "w_logits")]

    def bspec(a):
        nd = a.ndim
        return pl.BlockSpec((1,) + a.shape[1:], lambda c, _n=nd: (c,) + (0,) * (_n - 1))

    def sspec(a):
        nd = a.ndim
        return pl.BlockSpec(a.shape, lambda c, _n=nd: (0,) * _n)

    return pl.pallas_call(
        kernel,
        out_shape=jax.ShapeDtypeStruct((num_chunks, R, V_PAD), jnp.float32),
        grid=(num_chunks,),
        in_specs=[bspec(a) for a in batched] + [sspec(a) for a in shared],
        out_specs=pl.BlockSpec((1, R, V_PAD), lambda c: (c, 0, 0)),
        compiler_params=pltpu.CompilerParams(
            dimension_semantics=("parallel",)),          # chunk per TensorCore on v7x
    )(*batched, *shared)


def _num_batch_chunks(batch):
    """One grid step per TensorCore: 1 on v5e/v6e (single TC), 2 on v7x when B splits evenly."""
    try:
        kind = jax.devices()[0].device_kind.lower()
    except Exception:
        kind = ""
    if batch >= 2 and batch % 2 == 0 and "v7" in kind:
        return 2
    return 1


# ============================ parameters (packed slabs) ============================

def init_params(key):
    ks = iter(jax.random.split(key, 128))

    def nrm(shape, scale=0.02):
        return (scale * jax.random.normal(next(ks), shape)).astype(jnp.float32)

    ones_d = jnp.ones((DIM,), jnp.float32)
    zeros_d = jnp.zeros((DIM,), jnp.float32)

    # const32 slab: rows 0..7 special-token embeds (5 used, 3 zero), rows 8..21 LN gains/biases
    # (per layer: sa_g, sa_b, ca_g, ca_b, ff_g, ff_b; then final g, b), rows 22..23 pad.
    special = jnp.zeros((8, DIM), jnp.float32).at[:5].set(nrm((5, DIM), 1.0))
    norm_rows = []
    for _ in range(DEPTH):
        norm_rows += [ones_d, zeros_d, ones_d, zeros_d, ones_d, zeros_d]
    norm_rows += [ones_d, zeros_d]
    norms = jnp.stack(norm_rows)                                   # (6*DEPTH+2, DIM)
    pad_rows = (-(8 + norms.shape[0])) % 8
    const32 = jnp.concatenate(
        [special, norms, jnp.zeros((pad_rows, DIM), jnp.float32)], axis=0)

    # w_dim128: (2*DEPTH, DIM, 128).  [l]   = [q_h0,q_h1,k_h0,k_h1,v_h0,v_h1,qc_h0,qc_h1]
    #                                 [D+l] = [FF value (64) | FF gate (64)]
    attn_slabs = []
    for _ in range(DEPTH):
        qs = [nrm((DIM, DIM_HEAD)) for _ in range(HEADS)]
        kss = [nrm((DIM, DIM_HEAD)) for _ in range(HEADS)]
        vs = [nrm((DIM, DIM_HEAD)) for _ in range(HEADS)]
        qcs = [nrm((DIM, DIM_HEAD)) for _ in range(HEADS)]
        attn_slabs.append(jnp.concatenate(qs + kss + vs + qcs, axis=1))
    ff_slabs = [jnp.concatenate([nrm((DIM, FF_INNER)), nrm((DIM, FF_INNER))], axis=1)
                for _ in range(DEPTH)]
    w_dim128 = jnp.stack(attn_slabs + ff_slabs)

    # cross-attention K|V slab: (DEPTH, CTX_DIM, 64) = [k_h0,k_h1,v_h0,v_h1]
    w_kv_c = jnp.stack([
        jnp.concatenate([nrm((CTX_DIM, DIM_HEAD)) for _ in range(2 * HEADS)], axis=1)
        for _ in range(DEPTH)])

    # out projections: (2*DEPTH, H*Dh, DIM) -- self layers first, then cross layers.
    w_o_all = jnp.stack([nrm((HD, DIM)) for _ in range(2 * DEPTH)])

    # memory KV: pre-l2-normalized + transposed K, raw V.  Index = layer*HEADS + head
    # (self: layers 0..DEPTH-1; cross: layers DEPTH..2*DEPTH-1).
    mem_kT_rows, mem_v_rows = [], []
    for _ in range(2 * DEPTH * HEADS):
        mk = nrm((NUM_MEM_KV, DIM_HEAD))
        mkn = mk * lax.rsqrt(jnp.sum(mk * mk, axis=-1, keepdims=True) + 1e-8)
        mem_kT_rows.append(mkn.T)                                  # (Dh, NUM_MEM_KV)
        mem_v_rows.append(nrm((NUM_MEM_KV, DIM_HEAD)))
    mem_kT = jnp.stack(mem_kT_rows)
    mem_v = jnp.stack(mem_v_rows)

    w_ff2 = jnp.stack([nrm((FF_INNER, DIM)) for _ in range(DEPTH)])

    # bias slab (8,128): row 2l = FF1 bias (value|gate), row 2l+1 = FF2 bias (first DIM lanes),
    # row 2*DEPTH = logits bias; zeros (matches previous toy init).
    biases = jnp.zeros((8, 128), jnp.float32)

    w_logits = jnp.zeros((DIM, V_PAD), jnp.float32).at[:, :N_TOKENS].set(nrm((DIM, N_TOKENS)))

    return {
        "token_embed": nrm((N_TOKENS, DIM), 1.0),      # nn.Embedding ~ N(0,1)
        "abs_pos_emb": nrm((MAX_SEQ, DIM), 1.0),
        "sos":         nrm((DIM,), 1.0),
        "const32": const32, "w_dim128": w_dim128, "w_kv_c": w_kv_c, "w_o_all": w_o_all,
        "mem_kT": mem_kT, "mem_v": mem_v, "w_ff2": w_ff2, "biases": biases,
        "w_logits": w_logits,
    }


# ============================ forward pass ============================

def forward_on_codes(params, codes, cond_embeds, num_chunks=1):
    """codes: (B, N) int32; cond_embeds: (B, Nc, CTX_DIM).  Returns (ce_loss, logits)."""
    B, N = codes.shape
    assert B % num_chunks == 0
    S = N + 1
    S_pad = max(8, pl.next_power_of_2(S))            # power of two -> shift/mask bias math
    Nc = cond_embeds.shape[1]
    Nc_pad = max(8, pl.next_power_of_2(Nc))

    # ---- index-range masks on the ORIGINAL codes (before eos append / slicing) ----
    def rng_mask(lo, hi):
        return ((codes >= lo) & (codes < hi)).astype(jnp.float32)

    masks = jnp.stack([
        rng_mask(IND_BLOCK, IND_OFFSET),    # block
        rng_mask(IND_OFFSET, EOS_ID),       # offset
        rng_mask(IND_I0, IND_I1),           # I0
        rng_mask(IND_I1, IND_OUT),          # I1
        rng_mask(IND_OUT, IND_BLOCK),       # Out
    ], axis=-1)                             # (B, N, 5)

    # ---- append_eos ----
    code_lens = jnp.sum(
        (jnp.cumsum((codes == PAD_ID).astype(jnp.int32), axis=-1) == 0).astype(jnp.int32),
        axis=-1)
    codes_p = jnp.pad(codes, ((0, 0), (0, 1)), constant_values=PAD_ID)
    codes_p = codes_p.at[jnp.arange(B), code_lens].set(EOS_ID)

    labels = codes_p                         # (B, S)
    codes_in = codes_p[:, :-1]               # (B, N)  return_loss path
    codes_in = jnp.where(codes_in == PAD_ID, PAD_IN_TABLE, codes_in)

    tok = jnp.take(params["token_embed"], codes_in, axis=0)       # (B, N, D)
    pos = params["abs_pos_emb"][:N]                               # (N, D)
    sos = jnp.broadcast_to(params["sos"], (B, 1, DIM))
    base = jnp.concatenate([sos, tok + pos[None]], axis=1)        # (B, S, D)

    # masks padded to 8 columns; column 7 carries the per-token label (values in [-1, 31],
    # exactly representable in f32) -> one fewer lane-sparse input ref.
    masks_full = jnp.concatenate([jnp.zeros((B, 1, 5), jnp.float32), masks], axis=1)
    masks_full = jnp.pad(masks_full, ((0, 0), (0, S_pad - S), (0, 3)))       # (B, S_pad, 8)
    labels_p = jnp.pad(labels, ((0, 0), (0, S_pad - S)), constant_values=PAD_ID)
    masks_full = masks_full.at[:, :, 7].set(labels_p.astype(jnp.float32))

    base = jnp.pad(base, ((0, 0), (0, S_pad - S), (0, 0)))                   # (B, S_pad, D)
    ctx = jnp.pad(cond_embeds.astype(jnp.float32),
                  ((0, 0), (0, Nc_pad - Nc), (0, 0)))                        # (B, Nc_pad, C)

    # ---- flatten batch chunks into the row axis (more rows per MXU push) ----
    Bc = B // num_chunks
    R = Bc * S_pad
    Rc = Bc * Nc_pad
    base_c = base.reshape(num_chunks, R, DIM)
    mlab_c = masks_full.reshape(num_chunks, R, 8)
    ctx_c = ctx.reshape(num_chunks, Rc, CTX_DIM)

    out = fused_forward(params, base_c, mlab_c, ctx_c,
                        S_pad=S_pad, Nc_pad=Nc_pad, Nc=Nc)        # (chunks, R, V_PAD)
    out = out.reshape(B, S_pad, V_PAD)

    logits = out[:, :S, :N_TOKENS]
    nll = out[:, :, V_PAD - 1]                                    # per-token CE (0 where PAD)
    n_valid = jnp.sum((labels != PAD_ID).astype(jnp.float32))
    ce_loss = jnp.sum(nll) / jnp.maximum(n_valid, 1.0)
    return ce_loss, logits


# ============================ main ============================

if __name__ == "__main__":
    key = jax.random.PRNGKey(0)
    k_param, k_codes, k_ctx = jax.random.split(key, 3)

    params = init_params(k_param)

    B, N, Nc = 2, 8, 6
    codes = jax.random.randint(k_codes, (B, N), 0, VOCAB, dtype=jnp.int32)
    codes = codes.at[1, N - 2:].set(PAD_ID)                       # exercise padding path
    cond_embeds = jax.random.normal(k_ctx, (B, Nc, CTX_DIM), dtype=jnp.float32)

    num_chunks = _num_batch_chunks(B)
    fwd = jax.jit(functools.partial(forward_on_codes, num_chunks=num_chunks))
    loss, logits = fwd(params, codes, cond_embeds)
    jax.block_until_ready(loss)
    jax.block_until_ready(logits)

    assert logits.shape == (B, N + 1, N_TOKENS)
    assert bool(jnp.isfinite(loss))
    print("KERNEL_OK")
</pallas_src>

<mosaic_0001>
module attributes {stable_mosaic.version = 11 : i64} {
  func.func @kernel(%arg0: i32, %arg1: memref<1x32x32xf32, #tpu.memory_space<vmem>>, %arg2: memref<1x32x8xf32, #tpu.memory_space<vmem>>, %arg3: memref<1x16x48xf32, #tpu.memory_space<vmem>>, %arg4: memref<24x32xf32, #tpu.memory_space<vmem>>, %arg5: memref<4x32x128xf32, #tpu.memory_space<vmem>>, %arg6: memref<2x48x64xf32, #tpu.memory_space<vmem>>, %arg7: memref<4x32x32xf32, #tpu.memory_space<vmem>>, %arg8: memref<8x16x4xf32, #tpu.memory_space<vmem>>, %arg9: memref<8x4x16xf32, #tpu.memory_space<vmem>>, %arg10: memref<2x64x32xf32, #tpu.memory_space<vmem>>, %arg11: memref<8x128xf32, #tpu.memory_space<vmem>>, %arg12: memref<32x128xf32, #tpu.memory_space<vmem>>, %arg13: memref<1x32x128xf32, #tpu.memory_space<vmem>>) attributes {dimension_semantics = [#tpu.dimension_semantics<parallel>], iteration_bounds = array<i64: 1>, scalar_prefetch = 0 : i64, scratch_operands = 0 : i64, tpu.core_type = #tpu.core_type<tc>, window_params = [{transform_indices = @transform_0, window_bounds = array<i64: 1, 32, 32>}, {transform_indices = @transform_1, window_bounds = array<i64: 1, 32, 8>}, {transform_indices = @transform_2, window_bounds = array<i64: 1, 16, 48>}, {pipeline_mode = #tpu.pipeline_mode<synchronous>, transform_indices = @transform_3, window_bounds = array<i64: 24, 32>}, {pipeline_mode = #tpu.pipeline_mode<synchronous>, transform_indices = @transform_4, window_bounds = array<i64: 4, 32, 128>}, {pipeline_mode = #tpu.pipeline_mode<synchronous>, transform_indices = @transform_5, window_bounds = array<i64: 2, 48, 64>}, {pipeline_mode = #tpu.pipeline_mode<synchronous>, transform_indices = @transform_6, window_bounds = array<i64: 4, 32, 32>}, {pipeline_mode = #tpu.pipeline_mode<synchronous>, transform_indices = @transform_7, window_bounds = array<i64: 8, 16, 4>}, {pipeline_mode = #tpu.pipeline_mode<synchronous>, transform_indices = @transform_8, window_bounds = array<i64: 8, 4, 16>}, {pipeline_mode = #tpu.pipeline_mode<synchronous>, transform_indices = @transform_9, window_bounds = array<i64: 2, 64, 32>}, {pipeline_mode = #tpu.pipeline_mode<synchronous>, transform_indices = @transform_10, window_bounds = array<i64: 8, 128>}, {pipeline_mode = #tpu.pipeline_mode<synchronous>, transform_indices = @transform_11, window_bounds = array<i64: 32, 128>}, {transform_indices = @transform_12, window_bounds = array<i64: 1, 32, 128>}]} {
    %0 = tpu.iota {dimensions = array<i32: 0>} : vector<32x32xi32>
    %1 = tpu.iota {dimensions = array<i32: 1>} : vector<32x32xi32>
    %c4_i32 = arith.constant 4 : i32
    %2 = vector.broadcast %c4_i32 : i32 to vector<32x32xi32>
    %3 = arith.shrsi %0, %2 : vector<32x32xi32>
    %c4_i32_0 = arith.constant 4 : i32
    %4 = vector.broadcast %c4_i32_0 : i32 to vector<32x32xi32>
    %5 = arith.shrsi %1, %4 : vector<32x32xi32>
    %6 = arith.cmpi eq, %3, %5 : vector<32x32xi32>
    %c15_i32 = arith.constant 15 : i32
    %7 = vector.broadcast %c15_i32 : i32 to vector<32x32xi32>
    %8 = arith.andi %1, %7 : vector<32x32xi32>
    %c15_i32_1 = arith.constant 15 : i32
    %9 = vector.broadcast %c15_i32_1 : i32 to vector<32x32xi32>
    %10 = arith.andi %0, %9 : vector<32x32xi32>
    %11 = arith.cmpi sle, %8, %10 : vector<32x32xi32>
    %12 = arith.andi %6, %11 : vector<32x32xi1>
    %cst = arith.constant 0.000000e+00 : f32
    %cst_2 = arith.constant -1.000000e+09 : f32
    %13 = vector.broadcast %cst : f32 to vector<32x32xf32>
    %14 = vector.broadcast %cst_2 : f32 to vector<32x32xf32>
    %15 = arith.select %12, %13, %14 : vector<32x32xi1>, vector<32x32xf32>
    %16 = tpu.iota {dimensions = array<i32: 0>} : vector<32x16xi32>
    %17 = tpu.iota {dimensions = array<i32: 1>} : vector<32x16xi32>
    %c4_i32_3 = arith.constant 4 : i32
    %18 = vector.broadcast %c4_i32_3 : i32 to vector<32x16xi32>
    %19 = arith.shrsi %16, %18 : vector<32x16xi32>
    %c3_i32 = arith.constant 3 : i32
    %20 = vector.broadcast %c3_i32 : i32 to vector<32x16xi32>
    %21 = arith.shrsi %17, %20 : vector<32x16xi32>
    %22 = arith.cmpi eq, %19, %21 : vector<32x16xi32>
    %c7_i32 = arith.constant 7 : i32
    %23 = vector.broadcast %c7_i32 : i32 to vector<32x16xi32>
    %24 = arith.andi %17, %23 : vector<32x16xi32>
    %c6_i32 = arith.constant 6 : i32
    %25 = vector.broadcast %c6_i32 : i32 to vector<32x16xi32>
    %26 = arith.cmpi slt, %24, %25 : vector<32x16xi32>
    %27 = arith.andi %22, %26 : vector<32x16xi1>
    %cst_4 = arith.constant 0.000000e+00 : f32
    %cst_5 = arith.constant -1.000000e+09 : f32
    %28 = vector.broadcast %cst_4 : f32 to vector<32x16xf32>
    %29 = vector.broadcast %cst_5 : f32 to vector<32x16xf32>
    %30 = arith.select %27, %28, %29 : vector<32x16xi1>, vector<32x16xf32>
    %c0 = arith.constant 0 : index
    %c0_6 = arith.constant 0 : index
    %c0_7 = arith.constant 0 : index
    %31 = vector.load %arg2[%c0, %c0_6, %c0_7] : memref<1x32x8xf32, #tpu.memory_space<vmem>>, vector<1x32x8xf32>
    %32 = vector.shape_cast %31 : vector<1x32x8xf32> to vector<32x8xf32>
    %c0_8 = arith.constant 0 : index
    %c0_9 = arith.constant 0 : index
    %c0_10 = arith.constant 0 : index
    %33 = vector.load %arg1[%c0_8, %c0_9, %c0_10] : memref<1x32x32xf32, #tpu.memory_space<vmem>>, vector<1x32x32xf32>
    %34 = vector.shape_cast %33 : vector<1x32x32xf32> to vector<32x32xf32>
    %c0_11 = arith.constant 0 : index
    %c0_12 = arith.constant 0 : index
    %35 = vector.load %arg4[%c0_11, %c0_12] : memref<24x32xf32, #tpu.memory_space<vmem>>, vector<8x32xf32>
    %cst_13 = arith.constant dense<0.000000e+00> : vector<32x32xf32>
    %36 = tpu.matmul %32, %35, %cst_13 {dimension_numbers = #tpu.dot_dimension_numbers<[1], [0], [0], [1], [0, 0, 1, 1], [], []>} : vector<32x8xf32>, vector<8x32xf32>, vector<32x32xf32> -> vector<32x32xf32>
    %37 = arith.addf %34, %36 : vector<32x32xf32>
    %c0_14 = arith.constant 0 : index
    %c0_15 = arith.constant 0 : index
    %c0_16 = arith.constant 0 : index
    %38 = vector.load %arg3[%c0_14, %c0_15, %c0_16] : memref<1x16x48xf32, #tpu.memory_space<vmem>>, vector<1x16x48xf32>
    %39 = vector.shape_cast %38 : vector<1x16x48xf32> to vector<16x48xf32>
    %c0_17 = arith.constant 0 : index
    %c0_18 = arith.constant 0 : index
    %c0_19 = arith.constant 0 : index
    %40 = vector.load %arg5[%c0_17, %c0_18, %c0_19] : memref<4x32x128xf32, #tpu.memory_space<vmem>>, vector<1x32x128xf32>
    %41 = vector.shape_cast %40 : vector<1x32x128xf32> to vector<32x128xf32>
    %c8 = arith.constant 8 : index
    %c0_20 = arith.constant 0 : index
    %42 = vector.load %arg4[%c8, %c0_20] : memref<24x32xf32, #tpu.memory_space<vmem>>, vector<1x32xf32>
    %c9 = arith.constant 9 : index
    %c0_21 = arith.constant 0 : index
    %43 = vector.load %arg4[%c9, %c0_21] : memref<24x32xf32, #tpu.memory_space<vmem>>, vector<1x32xf32>
    %cst_22 = arith.constant dense<0.000000e+00> : vector<32xf32>
    %44 = vector.multi_reduction <add>, %37, %cst_22 [1] : vector<32x32xf32> to vector<32xf32>
    %45 = vector.shape_cast %44 : vector<32xf32> to vector<32x1xf32>
    %cst_23 = arith.constant 3.200000e+01 : f32
    %46 = vector.broadcast %cst_23 : f32 to vector<32x1xf32>
    %47 = arith.divf %45, %46 : vector<32x1xf32>
    %48 = vector.broadcast %47 : vector<32x1xf32> to vector<32x32xf32>
    %49 = arith.subf %37, %48 : vector<32x32xf32>
    %50 = arith.mulf %49, %49 : vector<32x32xf32>
    %cst_24 = arith.constant dense<0.000000e+00> : vector<32xf32>
    %51 = vector.multi_reduction <add>, %50, %cst_24 [1] : vector<32x32xf32> to vector<32xf32>
    %52 = vector.shape_cast %51 : vector<32xf32> to vector<32x1xf32>
    %cst_25 = arith.constant 3.200000e+01 : f32
    %53 = vector.broadcast %cst_25 : f32 to vector<32x1xf32>
    %54 = arith.divf %52, %53 : vector<32x1xf32>
    %55 = vector.broadcast %47 : vector<32x1xf32> to vector<32x32xf32>
    %56 = arith.subf %37, %55 : vector<32x32xf32>
    %cst_26 = arith.constant 9.99999974E-6 : f32
    %57 = vector.broadcast %cst_26 : f32 to vector<32x1xf32>
    %58 = arith.addf %54, %57 : vector<32x1xf32>
    %59 = math.rsqrt %58 : vector<32x1xf32>
    %60 = vector.broadcast %59 : vector<32x1xf32> to vector<32x32xf32>
    %61 = arith.mulf %56, %60 : vector<32x32xf32>
    %62 = vector.broadcast %42 : vector<1x32xf32> to vector<32x32xf32>
    %63 = arith.mulf %61, %62 : vector<32x32xf32>
    %64 = vector.broadcast %43 : vector<1x32xf32> to vector<32x32xf32>
    %65 = arith.addf %63, %64 : vector<32x32xf32>
    %cst_27 = arith.constant dense<0.000000e+00> : vector<32x128xf32>
    %66 = tpu.matmul %65, %41, %cst_27 {dimension_numbers = #tpu.dot_dimension_numbers<[1], [0], [0], [1], [0, 0, 1, 1], [], []>} : vector<32x32xf32>, vector<32x128xf32>, vector<32x128xf32> -> vector<32x128xf32>
    %67 = vector.extract_strided_slice %66 {offsets = [0, 0], sizes = [32, 32], strides = [1, 1]} : vector<32x128xf32> to vector<32x32xf32>
    %68 = vector.extract_strided_slice %66 {offsets = [0, 32], sizes = [32, 64], strides = [1, 1]} : vector<32x128xf32> to vector<32x64xf32>
    %c0_28 = arith.constant 0 : index
    %c0_29 = arith.constant 0 : index
    %c0_30 = arith.constant 0 : index
    %69 = vector.load %arg7[%c0_28, %c0_29, %c0_30] : memref<4x32x32xf32, #tpu.memory_space<vmem>>, vector<1x32x32xf32>
    %70 = vector.shape_cast %69 : vector<1x32x32xf32> to vector<32x32xf32>
    %71 = vector.extract_strided_slice %67 {offsets = [0, 0], sizes = [32, 16], strides = [1, 1]} : vector<32x32xf32> to vector<32x16xf32>
    %72 = arith.mulf %71, %71 : vector<32x16xf32>
    %cst_31 = arith.constant dense<0.000000e+00> : vector<32xf32>
    %73 = vector.multi_reduction <add>, %72, %cst_31 [1] : vector<32x16xf32> to vector<32xf32>
    %74 = vector.shape_cast %73 : vector<32xf32> to vector<32x1xf32>
    %cst_32 = arith.constant 9.99999993E-9 : f32
    %75 = vector.broadcast %cst_32 : f32 to vector<32x1xf32>
    %76 = arith.addf %74, %75 : vector<32x1xf32>
    %77 = math.rsqrt %76 : vector<32x1xf32>
    %78 = vector.broadcast %77 : vector<32x1xf32> to vector<32x16xf32>
    %79 = arith.mulf %71, %78 : vector<32x16xf32>
    %cst_33 = arith.constant 1.000000e+01 : f32
    %80 = vector.broadcast %cst_33 : f32 to vector<32x16xf32>
    %81 = arith.mulf %79, %80 : vector<32x16xf32>
    %82 = vector.extract_strided_slice %68 {offsets = [0, 0], sizes = [32, 16], strides = [1, 1]} : vector<32x64xf32> to vector<32x16xf32>
    %83 = arith.mulf %82, %82 : vector<32x16xf32>
    %cst_34 = arith.constant dense<0.000000e+00> : vector<32xf32>
    %84 = vector.multi_reduction <add>, %83, %cst_34 [1] : vector<32x16xf32> to vector<32xf32>
    %85 = vector.shape_cast %84 : vector<32xf32> to vector<32x1xf32>
    %cst_35 = arith.constant 9.99999993E-9 : f32
    %86 = vector.broadcast %cst_35 : f32 to vector<32x1xf32>
    %87 = arith.addf %85, %86 : vector<32x1xf32>
    %88 = math.rsqrt %87 : vector<32x1xf32>
    %89 = vector.broadcast %88 : vector<32x1xf32> to vector<32x16xf32>
    %90 = arith.mulf %82, %89 : vector<32x16xf32>
    %91 = vector.extract_strided_slice %68 {offsets = [0, 32], sizes = [32, 16], strides = [1, 1]} : vector<32x64xf32> to vector<32x16xf32>
    %c0_36 = arith.constant 0 : index
    %c0_37 = arith.constant 0 : index
    %c0_38 = arith.constant 0 : index
    %92 = vector.load %arg8[%c0_36, %c0_37, %c0_38] : memref<8x16x4xf32, #tpu.memory_space<vmem>>, vector<1x16x4xf32>
    %93 = vector.shape_cast %92 : vector<1x16x4xf32> to vector<16x4xf32>
    %cst_39 = arith.constant dense<0.000000e+00> : vector<32x4xf32>
    %94 = tpu.matmul %81, %93, %cst_39 {dimension_numbers = #tpu.dot_dimension_numbers<[1], [0], [0], [1], [0, 0, 1, 1], [], []>} : vector<32x16xf32>, vector<16x4xf32>, vector<32x4xf32> -> vector<32x4xf32>
    %cst_40 = arith.constant dense<0.000000e+00> : vector<32x32xf32>
    %95 = tpu.matmul %81, %90, %cst_40 {dimension_numbers = #tpu.dot_dimension_numbers<[1], [1], [0], [0], [0, 0, 1, 0], [], []>} : vector<32x16xf32>, vector<32x16xf32>, vector<32x32xf32> -> vector<32x32xf32>
    %96 = arith.addf %95, %15 : vector<32x32xf32>
    %cst_41 = arith.constant dense<0xFF800000> : vector<32xf32>
    %97 = vector.multi_reduction <maximumf>, %94, %cst_41 [1] : vector<32x4xf32> to vector<32xf32>
    %98 = vector.shape_cast %97 : vector<32xf32> to vector<32x1xf32>
    %cst_42 = arith.constant dense<0xFF800000> : vector<32xf32>
    %99 = vector.multi_reduction <maximumf>, %96, %cst_42 [1] : vector<32x32xf32> to vector<32xf32>
    %100 = vector.shape_cast %99 : vector<32xf32> to vector<32x1xf32>
    %101 = arith.maximumf %98, %100 : vector<32x1xf32>
    %102 = vector.broadcast %101 : vector<32x1xf32> to vector<32x4xf32>
    %103 = arith.subf %94, %102 : vector<32x4xf32>
    %104 = math.exp %103 : vector<32x4xf32>
    %105 = vector.broadcast %101 : vector<32x1xf32> to vector<32x32xf32>
    %106 = arith.subf %96, %105 : vector<32x32xf32>
    %107 = math.exp %106 : vector<32x32xf32>
    %cst_43 = arith.constant dense<0.000000e+00> : vector<32xf32>
    %108 = vector.multi_reduction <add>, %104, %cst_43 [1] : vector<32x4xf32> to vector<32xf32>
    %109 = vector.shape_cast %108 : vector<32xf32> to vector<32x1xf32>
    %cst_44 = arith.constant dense<0.000000e+00> : vector<32xf32>
    %110 = vector.multi_reduction <add>, %107, %cst_44 [1] : vector<32x32xf32> to vector<32xf32>
    %111 = vector.shape_cast %110 : vector<32xf32> to vector<32x1xf32>
    %112 = arith.addf %109, %111 : vector<32x1xf32>
    %c0_45 = arith.constant 0 : index
    %c0_46 = arith.constant 0 : index
    %c0_47 = arith.constant 0 : index
    %113 = vector.load %arg9[%c0_45, %c0_46, %c0_47] : memref<8x4x16xf32, #tpu.memory_space<vmem>>, vector<1x4x16xf32>
    %114 = vector.shape_cast %113 : vector<1x4x16xf32> to vector<4x16xf32>
    %cst_48 = arith.constant dense<0.000000e+00> : vector<32x16xf32>
    %115 = tpu.matmul %104, %114, %cst_48 {dimension_numbers = #tpu.dot_dimension_numbers<[1], [0], [0], [1], [0, 0, 1, 1], [], []>} : vector<32x4xf32>, vector<4x16xf32>, vector<32x16xf32> -> vector<32x16xf32>
    %cst_49 = arith.constant dense<0.000000e+00> : vector<32x16xf32>
    %116 = tpu.matmul %107, %91, %cst_49 {dimension_numbers = #tpu.dot_dimension_numbers<[1], [0], [0], [1], [0, 0, 1, 1], [], []>} : vector<32x32xf32>, vector<32x16xf32>, vector<32x16xf32> -> vector<32x16xf32>
    %117 = arith.addf %115, %116 : vector<32x16xf32>
    %118 = tpu.reciprocal %112 {approx = true} : vector<32x1xf32> -> vector<32x1xf32>
    %119 = vector.broadcast %118 : vector<32x1xf32> to vector<32x16xf32>
    %120 = arith.mulf %117, %119 : vector<32x16xf32>
    %121 = vector.extract_strided_slice %67 {offsets = [0, 16], sizes = [32, 16], strides = [1, 1]} : vector<32x32xf32> to vector<32x16xf32>
    %122 = arith.mulf %121, %121 : vector<32x16xf32>
    %cst_50 = arith.constant dense<0.000000e+00> : vector<32xf32>
    %123 = vector.multi_reduction <add>, %122, %cst_50 [1] : vector<32x16xf32> to vector<32xf32>
    %124 = vector.shape_cast %123 : vector<32xf32> to vector<32x1xf32>
    %cst_51 = arith.constant 9.99999993E-9 : f32
    %125 = vector.broadcast %cst_51 : f32 to vector<32x1xf32>
    %126 = arith.addf %124, %125 : vector<32x1xf32>
    %127 = math.rsqrt %126 : vector<32x1xf32>
    %128 = vector.broadcast %127 : vector<32x1xf32> to vector<32x16xf32>
    %129 = arith.mulf %121, %128 : vector<32x16xf32>
    %cst_52 = arith.constant 1.000000e+01 : f32
    %130 = vector.broadcast %cst_52 : f32 to vector<32x16xf32>
    %131 = arith.mulf %129, %130 : vector<32x16xf32>
    %132 = vector.extract_strided_slice %68 {offsets = [0, 16], sizes = [32, 16], strides = [1, 1]} : vector<32x64xf32> to vector<32x16xf32>
    %133 = arith.mulf %132, %132 : vector<32x16xf32>
    %cst_53 = arith.constant dense<0.000000e+00> : vector<32xf32>
    %134 = vector.multi_reduction <add>, %133, %cst_53 [1] : vector<32x16xf32> to vector<32xf32>
    %135 = vector.shape_cast %134 : vector<32xf32> to vector<32x1xf32>
    %cst_54 = arith.constant 9.99999993E-9 : f32
    %136 = vector.broadcast %cst_54 : f32 to vector<32x1xf32>
    %137 = arith.addf %135, %136 : vector<32x1xf32>
    %138 = math.rsqrt %137 : vector<32x1xf32>
    %139 = vector.broadcast %138 : vector<32x1xf32> to vector<32x16xf32>
    %140 = arith.mulf %132, %139 : vector<32x16xf32>
    %141 = vector.extract_strided_slice %68 {offsets = [0, 48], sizes = [32, 16], strides = [1, 1]} : vector<32x64xf32> to vector<32x16xf32>
    %c1 = arith.constant 1 : index
    %c0_55 = arith.constant 0 : index
    %c0_56 = arith.constant 0 : index
    %142 = vector.load %arg8[%c1, %c0_55, %c0_56] : memref<8x16x4xf32, #tpu.memory_space<vmem>>, vector<1x16x4xf32>
    %143 = vector.shape_cast %142 : vector<1x16x4xf32> to vector<16x4xf32>
    %cst_57 = arith.constant dense<0.000000e+00> : vector<32x4xf32>
    %144 = tpu.matmul %131, %143, %cst_57 {dimension_numbers = #tpu.dot_dimension_numbers<[1], [0], [0], [1], [0, 0, 1, 1], [], []>} : vector<32x16xf32>, vector<16x4xf32>, vector<32x4xf32> -> vector<32x4xf32>
    %cst_58 = arith.constant dense<0.000000e+00> : vector<32x32xf32>
    %145 = tpu.matmul %131, %140, %cst_58 {dimension_numbers = #tpu.dot_dimension_numbers<[1], [1], [0], [0], [0, 0, 1, 0], [], []>} : vector<32x16xf32>, vector<32x16xf32>, vector<32x32xf32> -> vector<32x32xf32>
    %146 = arith.addf %145, %15 : vector<32x32xf32>
    %cst_59 = arith.constant dense<0xFF800000> : vector<32xf32>
    %147 = vector.multi_reduction <maximumf>, %144, %cst_59 [1] : vector<32x4xf32> to vector<32xf32>
    %148 = vector.shape_cast %147 : vector<32xf32> to vector<32x1xf32>
    %cst_60 = arith.constant dense<0xFF800000> : vector<32xf32>
    %149 = vector.multi_reduction <maximumf>, %146, %cst_60 [1] : vector<32x32xf32> to vector<32xf32>
    %150 = vector.shape_cast %149 : vector<32xf32> to vector<32x1xf32>
    %151 = arith.maximumf %148, %150 : vector<32x1xf32>
    %152 = vector.broadcast %151 : vector<32x1xf32> to vector<32x4xf32>
    %153 = arith.subf %144, %152 : vector<32x4xf32>
    %154 = math.exp %153 : vector<32x4xf32>
    %155 = vector.broadcast %151 : vector<32x1xf32> to vector<32x32xf32>
    %156 = arith.subf %146, %155 : vector<32x32xf32>
    %157 = math.exp %156 : vector<32x32xf32>
    %cst_61 = arith.constant dense<0.000000e+00> : vector<32xf32>
    %158 = vector.multi_reduction <add>, %154, %cst_61 [1] : vector<32x4xf32> to vector<32xf32>
    %159 = vector.shape_cast %158 : vector<32xf32> to vector<32x1xf32>
    %cst_62 = arith.constant dense<0.000000e+00> : vector<32xf32>
    %160 = vector.multi_reduction <add>, %157, %cst_62 [1] : vector<32x32xf32> to vector<32xf32>
    %161 = vector.shape_cast %160 : vector<32xf32> to vector<32x1xf32>
    %162 = arith.addf %159, %161 : vector<32x1xf32>
    %c1_63 = arith.constant 1 : index
    %c0_64 = arith.constant 0 : index
    %c0_65 = arith.constant 0 : index
    %163 = vector.load %arg9[%c1_63, %c0_64, %c0_65] : memref<8x4x16xf32, #tpu.memory_space<vmem>>, vector<1x4x16xf32>
    %164 = vector.shape_cast %163 : vector<1x4x16xf32> to vector<4x16xf32>
    %cst_66 = arith.constant dense<0.000000e+00> : vector<32x16xf32>
    %165 = tpu.matmul %154, %164, %cst_66 {dimension_numbers = #tpu.dot_dimension_numbers<[1], [0], [0], [1], [0, 0, 1, 1], [], []>} : vector<32x4xf32>, vector<4x16xf32>, vector<32x16xf32> -> vector<32x16xf32>
    %cst_67 = arith.constant dense<0.000000e+00> : vector<32x16xf32>
    %166 = tpu.matmul %157, %141, %cst_67 {dimension_numbers = #tpu.dot_dimension_numbers<[1], [0], [0], [1], [0, 0, 1, 1], [], []>} : vector<32x32xf32>, vector<32x16xf32>, vector<32x16xf32> -> vector<32x16xf32>
    %167 = arith.addf %165, %166 : vector<32x16xf32>
    %168 = tpu.reciprocal %162 {approx = true} : vector<32x1xf32> -> vector<32x1xf32>
    %169 = vector.broadcast %168 : vector<32x1xf32> to vector<32x16xf32>
    %170 = arith.mulf %167, %169 : vector<32x16xf32>
    %171 = tpu.concatenate %120, %170 in 1 : vector<32x16xf32>, vector<32x16xf32> -> vector<32x32xf32>
    %cst_68 = arith.constant dense<0.000000e+00> : vector<32x32xf32>
    %172 = tpu.matmul %171, %70, %cst_68 {dimension_numbers = #tpu.dot_dimension_numbers<[1], [0], [0], [1], [0, 0, 1, 1], [], []>} : vector<32x32xf32>, vector<32x32xf32>, vector<32x32xf32> -> vector<32x32xf32>
    %173 = arith.addf %37, %172 : vector<32x32xf32>
    %c10 = arith.constant 10 : index
    %c0_69 = arith.constant 0 : index
    %174 = vector.load %arg4[%c10, %c0_69] : memref<24x32xf32, #tpu.memory_space<vmem>>, vector<1x32xf32>
    %c11 = arith.constant 11 : index
    %c0_70 = arith.constant 0 : index
    %175 = vector.load %arg4[%c11, %c0_70] : memref<24x32xf32, #tpu.memory_space<vmem>>, vector<1x32xf32>
    %cst_71 = arith.constant dense<0.000000e+00> : vector<32xf32>
    %176 = vector.multi_reduction <add>, %173, %cst_71 [1] : vector<32x32xf32> to vector<32xf32>
    %177 = vector.shape_cast %176 : vector<32xf32> to vector<32x1xf32>
    %cst_72 = arith.constant 3.200000e+01 : f32
    %178 = vector.broadcast %cst_72 : f32 to vector<32x1xf32>
    %179 = arith.divf %177, %178 : vector<32x1xf32>
    %180 = vector.broadcast %179 : vector<32x1xf32> to vector<32x32xf32>
    %181 = arith.subf %173, %180 : vector<32x32xf32>
    %182 = arith.mulf %181, %181 : vector<32x32xf32>
    %cst_73 = arith.constant dense<0.000000e+00> : vector<32xf32>
    %183 = vector.multi_reduction <add>, %182, %cst_73 [1] : vector<32x32xf32> to vector<32xf32>
    %184 = vector.shape_cast %183 : vector<32xf32> to vector<32x1xf32>
    %cst_74 = arith.constant 3.200000e+01 : f32
    %185 = vector.broadcast %cst_74 : f32 to vector<32x1xf32>
    %186 = arith.divf %184, %185 : vector<32x1xf32>
    %187 = vector.broadcast %179 : vector<32x1xf32> to vector<32x32xf32>
    %188 = arith.subf %173, %187 : vector<32x32xf32>
    %cst_75 = arith.constant 9.99999974E-6 : f32
    %189 = vector.broadcast %cst_75 : f32 to vector<32x1xf32>
    %190 = arith.addf %186, %189 : vector<32x1xf32>
    %191 = math.rsqrt %190 : vector<32x1xf32>
    %192 = vector.broadcast %191 : vector<32x1xf32> to vector<32x32xf32>
    %193 = arith.mulf %188, %192 : vector<32x32xf32>
    %194 = vector.broadcast %174 : vector<1x32xf32> to vector<32x32xf32>
    %195 = arith.mulf %193, %194 : vector<32x32xf32>
    %196 = vector.broadcast %175 : vector<1x32xf32> to vector<32x32xf32>
    %197 = arith.addf %195, %196 : vector<32x32xf32>
    %cst_76 = arith.constant dense<0.000000e+00> : vector<32x128xf32>
    %198 = tpu.matmul %197, %41, %cst_76 {dimension_numbers = #tpu.dot_dimension_numbers<[1], [0], [0], [1], [0, 0, 1, 1], [], []>} : vector<32x32xf32>, vector<32x128xf32>, vector<32x128xf32> -> vector<32x128xf32>
    %199 = vector.extract_strided_slice %198 {offsets = [0, 96], sizes = [32, 32], strides = [1, 1]} : vector<32x128xf32> to vector<32x32xf32>
    %c0_77 = arith.constant 0 : index
    %c0_78 = arith.constant 0 : index
    %c0_79 = arith.constant 0 : index
    %200 = vector.load %arg6[%c0_77, %c0_78, %c0_79] : memref<2x48x64xf32, #tpu.memory_space<vmem>>, vector<1x48x64xf32>
    %201 = vector.shape_cast %200 : vector<1x48x64xf32> to vector<48x64xf32>
    %cst_80 = arith.constant dense<0.000000e+00> : vector<16x64xf32>
    %202 = tpu.matmul %39, %201, %cst_80 {dimension_numbers = #tpu.dot_dimension_numbers<[1], [0], [0], [1], [0, 0, 1, 1], [], []>} : vector<16x48xf32>, vector<48x64xf32>, vector<16x64xf32> -> vector<16x64xf32>
    %c2 = arith.constant 2 : index
    %c0_81 = arith.constant 0 : index
    %c0_82 = arith.constant 0 : index
    %203 = vector.load %arg7[%c2, %c0_81, %c0_82] : memref<4x32x32xf32, #tpu.memory_space<vmem>>, vector<1x32x32xf32>
    %204 = vector.shape_cast %203 : vector<1x32x32xf32> to vector<32x32xf32>
    %205 = vector.extract_strided_slice %199 {offsets = [0, 0], sizes = [32, 16], strides = [1, 1]} : vector<32x32xf32> to vector<32x16xf32>
    %206 = arith.mulf %205, %205 : vector<32x16xf32>
    %cst_83 = arith.constant dense<0.000000e+00> : vector<32xf32>
    %207 = vector.multi_reduction <add>, %206, %cst_83 [1] : vector<32x16xf32> to vector<32xf32>
    %208 = vector.shape_cast %207 : vector<32xf32> to vector<32x1xf32>
    %cst_84 = arith.constant 9.99999993E-9 : f32
    %209 = vector.broadcast %cst_84 : f32 to vector<32x1xf32>
    %210 = arith.addf %208, %209 : vector<32x1xf32>
    %211 = math.rsqrt %210 : vector<32x1xf32>
    %212 = vector.broadcast %211 : vector<32x1xf32> to vector<32x16xf32>
    %213 = arith.mulf %205, %212 : vector<32x16xf32>
    %cst_85 = arith.constant 1.000000e+01 : f32
    %214 = vector.broadcast %cst_85 : f32 to vector<32x16xf32>
    %215 = arith.mulf %213, %214 : vector<32x16xf32>
    %216 = vector.extract_strided_slice %202 {offsets = [0, 0], sizes = [16, 16], strides = [1, 1]} : vector<16x64xf32> to vector<16x16xf32>
    %217 = arith.mulf %216, %216 : vector<16x16xf32>
    %cst_86 = arith.constant dense<0.000000e+00> : vector<16xf32>
    %218 = vector.multi_reduction <add>, %217, %cst_86 [1] : vector<16x16xf32> to vector<16xf32>
    %219 = vector.shape_cast %218 : vector<16xf32> to vector<16x1xf32>
    %cst_87 = arith.constant 9.99999993E-9 : f32
    %220 = vector.broadcast %cst_87 : f32 to vector<16x1xf32>
    %221 = arith.addf %219, %220 : vector<16x1xf32>
    %222 = math.rsqrt %221 : vector<16x1xf32>
    %223 = vector.broadcast %222 : vector<16x1xf32> to vector<16x16xf32>
    %224 = arith.mulf %216, %223 : vector<16x16xf32>
    %225 = vector.extract_strided_slice %202 {offsets = [0, 32], sizes = [16, 16], strides = [1, 1]} : vector<16x64xf32> to vector<16x16xf32>
    %c4 = arith.constant 4 : index
    %c0_88 = arith.constant 0 : index
    %c0_89 = arith.constant 0 : index
    %226 = vector.load %arg8[%c4, %c0_88, %c0_89] : memref<8x16x4xf32, #tpu.memory_space<vmem>>, vector<1x16x4xf32>
    %227 = vector.shape_cast %226 : vector<1x16x4xf32> to vector<16x4xf32>
    %cst_90 = arith.constant dense<0.000000e+00> : vector<32x4xf32>
    %228 = tpu.matmul %215, %227, %cst_90 {dimension_numbers = #tpu.dot_dimension_numbers<[1], [0], [0], [1], [0, 0, 1, 1], [], []>} : vector<32x16xf32>, vector<16x4xf32>, vector<32x4xf32> -> vector<32x4xf32>
    %cst_91 = arith.constant dense<0.000000e+00> : vector<32x16xf32>
    %229 = tpu.matmul %215, %224, %cst_91 {dimension_numbers = #tpu.dot_dimension_numbers<[1], [1], [0], [0], [0, 0, 1, 0], [], []>} : vector<32x16xf32>, vector<16x16xf32>, vector<32x16xf32> -> vector<32x16xf32>
    %230 = arith.addf %229, %30 : vector<32x16xf32>
    %cst_92 = arith.constant dense<0xFF800000> : vector<32xf32>
    %231 = vector.multi_reduction <maximumf>, %228, %cst_92 [1] : vector<32x4xf32> to vector<32xf32>
    %232 = vector.shape_cast %231 : vector<32xf32> to vector<32x1xf32>
    %cst_93 = arith.constant dense<0xFF800000> : vector<32xf32>
    %233 = vector.multi_reduction <maximumf>, %230, %cst_93 [1] : vector<32x16xf32> to vector<32xf32>
    %234 = vector.shape_cast %233 : vector<32xf32> to vector<32x1xf32>
    %235 = arith.maximumf %232, %234 : vector<32x1xf32>
    %236 = vector.broadcast %235 : vector<32x1xf32> to vector<32x4xf32>
    %237 = arith.subf %228, %236 : vector<32x4xf32>
    %238 = math.exp %237 : vector<32x4xf32>
    %239 = vector.broadcast %235 : vector<32x1xf32> to vector<32x16xf32>
    %240 = arith.subf %230, %239 : vector<32x16xf32>
    %241 = math.exp %240 : vector<32x16xf32>
    %cst_94 = arith.constant dense<0.000000e+00> : vector<32xf32>
    %242 = vector.multi_reduction <add>, %238, %cst_94 [1] : vector<32x4xf32> to vector<32xf32>
    %243 = vector.shape_cast %242 : vector<32xf32> to vector<32x1xf32>
    %cst_95 = arith.constant dense<0.000000e+00> : vector<32xf32>
    %244 = vector.multi_reduction <add>, %241, %cst_95 [1] : vector<32x16xf32> to vector<32xf32>
    %245 = vector.shape_cast %244 : vector<32xf32> to vector<32x1xf32>
    %246 = arith.addf %243, %245 : vector<32x1xf32>
    %c4_96 = arith.constant 4 : index
    %c0_97 = arith.constant 0 : index
    %c0_98 = arith.constant 0 : index
    %247 = vector.load %arg9[%c4_96, %c0_97, %c0_98] : memref<8x4x16xf32, #tpu.memory_space<vmem>>, vector<1x4x16xf32>
    %248 = vector.shape_cast %247 : vector<1x4x16xf32> to vector<4x16xf32>
    %cst_99 = arith.constant dense<0.000000e+00> : vector<32x16xf32>
    %249 = tpu.matmul %238, %248, %cst_99 {dimension_numbers = #tpu.dot_dimension_numbers<[1], [0], [0], [1], [0, 0, 1, 1], [], []>} : vector<32x4xf32>, vector<4x16xf32>, vector<32x16xf32> -> vector<32x16xf32>
    %cst_100 = arith.constant dense<0.000000e+00> : vector<32x16xf32>
    %250 = tpu.matmul %241, %225, %cst_100 {dimension_numbers = #tpu.dot_dimension_numbers<[1], [0], [0], [1], [0, 0, 1, 1], [], []>} : vector<32x16xf32>, vector<16x16xf32>, vector<32x16xf32> -> vector<32x16xf32>
    %251 = arith.addf %249, %250 : vector<32x16xf32>
    %252 = tpu.reciprocal %246 {approx = true} : vector<32x1xf32> -> vector<32x1xf32>
    %253 = vector.broadcast %252 : vector<32x1xf32> to vector<32x16xf32>
    %254 = arith.mulf %251, %253 : vector<32x16xf32>
    %255 = vector.extract_strided_slice %199 {offsets = [0, 16], sizes = [32, 16], strides = [1, 1]} : vector<32x32xf32> to vector<32x16xf32>
    %256 = arith.mulf %255, %255 : vector<32x16xf32>
    %cst_101 = arith.constant dense<0.000000e+00> : vector<32xf32>
    %257 = vector.multi_reduction <add>, %256, %cst_101 [1] : vector<32x16xf32> to vector<32xf32>
    %258 = vector.shape_cast %257 : vector<32xf32> to vector<32x1xf32>
    %cst_102 = arith.constant 9.99999993E-9 : f32
    %259 = vector.broadcast %cst_102 : f32 to vector<32x1xf32>
    %260 = arith.addf %258, %259 : vector<32x1xf32>
    %261 = math.rsqrt %260 : vector<32x1xf32>
    %262 = vector.broadcast %261 : vector<32x1xf32> to vector<32x16xf32>
    %263 = arith.mulf %255, %262 : vector<32x16xf32>
    %cst_103 = arith.constant 1.000000e+01 : f32
    %264 = vector.broadcast %cst_103 : f32 to vector<32x16xf32>
    %265 = arith.mulf %263, %264 : vector<32x16xf32>
    %266 = vector.extract_strided_slice %202 {offsets = [0, 16], sizes = [16, 16], strides = [1, 1]} : vector<16x64xf32> to vector<16x16xf32>
    %267 = arith.mulf %266, %266 : vector<16x16xf32>
    %cst_104 = arith.constant dense<0.000000e+00> : vector<16xf32>
    %268 = vector.multi_reduction <add>, %267, %cst_104 [1] : vector<16x16xf32> to vector<16xf32>
    %269 = vector.shape_cast %268 : vector<16xf32> to vector<16x1xf32>
    %cst_105 = arith.constant 9.99999993E-9 : f32
    %270 = vector.broadcast %cst_105 : f32 to vector<16x1xf32>
    %271 = arith.addf %269, %270 : vector<16x1xf32>
    %272 = math.rsqrt %271 : vector<16x1xf32>
    %273 = vector.broadcast %272 : vector<16x1xf32> to vector<16x16xf32>
    %274 = arith.mulf %266, %273 : vector<16x16xf32>
    %275 = vector.extract_strided_slice %202 {offsets = [0, 48], sizes = [16, 16], strides = [1, 1]} : vector<16x64xf32> to vector<16x16xf32>
    %c5 = arith.constant 5 : index
    %c0_106 = arith.constant 0 : index
    %c0_107 = arith.constant 0 : index
    %276 = vector.load %arg8[%c5, %c0_106, %c0_107] : memref<8x16x4xf32, #tpu.memory_space<vmem>>, vector<1x16x4xf32>
    %277 = vector.shape_cast %276 : vector<1x16x4xf32> to vector<16x4xf32>
    %cst_108 = arith.constant dense<0.000000e+00> : vector<32x4xf32>
    %278 = tpu.matmul %265, %277, %cst_108 {dimension_numbers = #tpu.dot_dimension_numbers<[1], [0], [0], [1], [0, 0, 1, 1], [], []>} : vector<32x16xf32>, vector<16x4xf32>, vector<32x4xf32> -> vector<32x4xf32>
    %cst_109 = arith.constant dense<0.000000e+00> : vector<32x16xf32>
    %279 = tpu.matmul %265, %274, %cst_109 {dimension_numbers = #tpu.dot_dimension_numbers<[1], [1], [0], [0], [0, 0, 1, 0], [], []>} : vector<32x16xf32>, vector<16x16xf32>, vector<32x16xf32> -> vector<32x16xf32>
    %280 = arith.addf %279, %30 : vector<32x16xf32>
    %cst_110 = arith.constant dense<0xFF800000> : vector<32xf32>
    %281 = vector.multi_reduction <maximumf>, %278, %cst_110 [1] : vector<32x4xf32> to vector<32xf32>
    %282 = vector.shape_cast %281 : vector<32xf32> to vector<32x1xf32>
    %cst_111 = arith.constant dense<0xFF800000> : vector<32xf32>
    %283 = vector.multi_reduction <maximumf>, %280, %cst_111 [1] : vector<32x16xf32> to vector<32xf32>
    %284 = vector.shape_cast %283 : vector<32xf32> to vector<32x1xf32>
    %285 = arith.maximumf %282, %284 : vector<32x1xf32>
    %286 = vector.broadcast %285 : vector<32x1xf32> to vector<32x4xf32>
    %287 = arith.subf %278, %286 : vector<32x4xf32>
    %288 = math.exp %287 : vector<32x4xf32>
    %289 = vector.broadcast %285 : vector<32x1xf32> to vector<32x16xf32>
    %290 = arith.subf %280, %289 : vector<32x16xf32>
    %291 = math.exp %290 : vector<32x16xf32>
    %cst_112 = arith.constant dense<0.000000e+00> : vector<32xf32>
    %292 = vector.multi_reduction <add>, %288, %cst_112 [1] : vector<32x4xf32> to vector<32xf32>
    %293 = vector.shape_cast %292 : vector<32xf32> to vector<32x1xf32>
    %cst_113 = arith.constant dense<0.000000e+00> : vector<32xf32>
    %294 = vector.multi_reduction <add>, %291, %cst_113 [1] : vector<32x16xf32> to vector<32xf32>
    %295 = vector.shape_cast %294 : vector<32xf32> to vector<32x1xf32>
    %296 = arith.addf %293, %295 : vector<32x1xf32>
    %c5_114 = arith.constant 5 : index
    %c0_115 = arith.constant 0 : index
    %c0_116 = arith.constant 0 : index
    %297 = vector.load %arg9[%c5_114, %c0_115, %c0_116] : memref<8x4x16xf32, #tpu.memory_space<vmem>>, vector<1x4x16xf32>
    %298 = vector.shape_cast %297 : vector<1x4x16xf32> to vector<4x16xf32>
    %cst_117 = arith.constant dense<0.000000e+00> : vector<32x16xf32>
    %299 = tpu.matmul %288, %298, %cst_117 {dimension_numbers = #tpu.dot_dimension_numbers<[1], [0], [0], [1], [0, 0, 1, 1], [], []>} : vector<32x4xf32>, vector<4x16xf32>, vector<32x16xf32> -> vector<32x16xf32>
    %cst_118 = arith.constant dense<0.000000e+00> : vector<32x16xf32>
    %300 = tpu.matmul %291, %275, %cst_118 {dimension_numbers = #tpu.dot_dimension_numbers<[1], [0], [0], [1], [0, 0, 1, 1], [], []>} : vector<32x16xf32>, vector<16x16xf32>, vector<32x16xf32> -> vector<32x16xf32>
    %301 = arith.addf %299, %300 : vector<32x16xf32>
    %302 = tpu.reciprocal %296 {approx = true} : vector<32x1xf32> -> vector<32x1xf32>
    %303 = vector.broadcast %302 : vector<32x1xf32> to vector<32x16xf32>
    %304 = arith.mulf %301, %303 : vector<32x16xf32>
    %305 = tpu.concatenate %254, %304 in 1 : vector<32x16xf32>, vector<32x16xf32> -> vector<32x32xf32>
    %cst_119 = arith.constant dense<0.000000e+00> : vector<32x32xf32>
    %306 = tpu.matmul %305, %204, %cst_119 {dimension_numbers = #tpu.dot_dimension_numbers<[1], [0], [0], [1], [0, 0, 1, 1], [], []>} : vector<32x32xf32>, vector<32x32xf32>, vector<32x32xf32> -> vector<32x32xf32>
    %307 = arith.addf %173, %306 : vector<32x32xf32>
    %c12 = arith.constant 12 : index
    %c0_120 = arith.constant 0 : index
    %308 = vector.load %arg4[%c12, %c0_120] : memref<24x32xf32, #tpu.memory_space<vmem>>, vector<1x32xf32>
    %c13 = arith.constant 13 : index
    %c0_121 = arith.constant 0 : index
    %309 = vector.load %arg4[%c13, %c0_121] : memref<24x32xf32, #tpu.memory_space<vmem>>, vector<1x32xf32>
    %cst_122 = arith.constant dense<0.000000e+00> : vector<32xf32>
    %310 = vector.multi_reduction <add>, %307, %cst_122 [1] : vector<32x32xf32> to vector<32xf32>
    %311 = vector.shape_cast %310 : vector<32xf32> to vector<32x1xf32>
    %cst_123 = arith.constant 3.200000e+01 : f32
    %312 = vector.broadcast %cst_123 : f32 to vector<32x1xf32>
    %313 = arith.divf %311, %312 : vector<32x1xf32>
    %314 = vector.broadcast %313 : vector<32x1xf32> to vector<32x32xf32>
    %315 = arith.subf %307, %314 : vector<32x32xf32>
    %316 = arith.mulf %315, %315 : vector<32x32xf32>
    %cst_124 = arith.constant dense<0.000000e+00> : vector<32xf32>
    %317 = vector.multi_reduction <add>, %316, %cst_124 [1] : vector<32x32xf32> to vector<32xf32>
    %318 = vector.shape_cast %317 : vector<32xf32> to vector<32x1xf32>
    %cst_125 = arith.constant 3.200000e+01 : f32
    %319 = vector.broadcast %cst_125 : f32 to vector<32x1xf32>
    %320 = arith.divf %318, %319 : vector<32x1xf32>
    %321 = vector.broadcast %313 : vector<32x1xf32> to vector<32x32xf32>
    %322 = arith.subf %307, %321 : vector<32x32xf32>
    %cst_126 = arith.constant 9.99999974E-6 : f32
    %323 = vector.broadcast %cst_126 : f32 to vector<32x1xf32>
    %324 = arith.addf %320, %323 : vector<32x1xf32>
    %325 = math.rsqrt %324 : vector<32x1xf32>
    %326 = vector.broadcast %325 : vector<32x1xf32> to vector<32x32xf32>
    %327 = arith.mulf %322, %326 : vector<32x32xf32>
    %328 = vector.broadcast %308 : vector<1x32xf32> to vector<32x32xf32>
    %329 = arith.mulf %327, %328 : vector<32x32xf32>
    %330 = vector.broadcast %309 : vector<1x32xf32> to vector<32x32xf32>
    %331 = arith.addf %329, %330 : vector<32x32xf32>
    %c2_127 = arith.constant 2 : index
    %c0_128 = arith.constant 0 : index
    %c0_129 = arith.constant 0 : index
    %332 = vector.load %arg5[%c2_127, %c0_128, %c0_129] : memref<4x32x128xf32, #tpu.memory_space<vmem>>, vector<1x32x128xf32>
    %333 = vector.shape_cast %332 : vector<1x32x128xf32> to vector<32x128xf32>
    %cst_130 = arith.constant dense<0.000000e+00> : vector<32x128xf32>
    %334 = tpu.matmul %331, %333, %cst_130 {dimension_numbers = #tpu.dot_dimension_numbers<[1], [0], [0], [1], [0, 0, 1, 1], [], []>} : vector<32x32xf32>, vector<32x128xf32>, vector<32x128xf32> -> vector<32x128xf32>
    %c0_131 = arith.constant 0 : index
    %c0_132 = arith.constant 0 : index
    %335 = vector.load %arg11[%c0_131, %c0_132] : memref<8x128xf32, #tpu.memory_space<vmem>>, vector<1x128xf32>
    %336 = vector.broadcast %335 : vector<1x128xf32> to vector<32x128xf32>
    %337 = arith.addf %334, %336 : vector<32x128xf32>
    %338 = vector.extract_strided_slice %337 {offsets = [0, 0], sizes = [32, 64], strides = [1, 1]} : vector<32x128xf32> to vector<32x64xf32>
    %339 = vector.extract_strided_slice %337 {offsets = [0, 64], sizes = [32, 64], strides = [1, 1]} : vector<32x128xf32> to vector<32x64xf32>
    %cst_133 = arith.constant 5.000000e-01 : f32
    %340 = vector.broadcast %cst_133 : f32 to vector<32x64xf32>
    %341 = arith.mulf %340, %339 : vector<32x64xf32>
    %cst_134 = arith.constant 0.707106769 : f32
    %342 = vector.broadcast %cst_134 : f32 to vector<32x64xf32>
    %343 = arith.mulf %339, %342 : vector<32x64xf32>
    %cst_135 = arith.constant 0.000000e+00 : f32
    %344 = vector.broadcast %cst_135 : f32 to vector<32x64xf32>
    %345 = arith.cmpf oge, %343, %344 : vector<32x64xf32>
    %cst_136 = arith.constant 1.000000e+00 : f32
    %cst_137 = arith.constant -1.000000e+00 : f32
    %346 = vector.broadcast %cst_136 : f32 to vector<32x64xf32>
    %347 = vector.broadcast %cst_137 : f32 to vector<32x64xf32>
    %348 = arith.select %345, %346, %347 : vector<32x64xi1>, vector<32x64xf32>
    %349 = math.absf %343 : vector<32x64xf32>
    %cst_138 = arith.constant 0.327591091 : f32
    %350 = vector.broadcast %cst_138 : f32 to vector<32x64xf32>
    %351 = arith.mulf %350, %349 : vector<32x64xf32>
    %cst_139 = arith.constant 1.000000e+00 : f32
    %352 = vector.broadcast %cst_139 : f32 to vector<32x64xf32>
    %353 = arith.addf %352, %351 : vector<32x64xf32>
    %cst_140 = arith.constant 1.000000e+00 : f32
    %354 = vector.broadcast %cst_140 : f32 to vector<32x64xf32>
    %355 = arith.divf %354, %353 : vector<32x64xf32>
    %cst_141 = arith.constant 1.06140542 : f32
    %356 = vector.broadcast %cst_141 : f32 to vector<32x64xf32>
    %357 = arith.mulf %356, %355 : vector<32x64xf32>
    %cst_142 = arith.constant -1.45315206 : f32
    %358 = vector.broadcast %cst_142 : f32 to vector<32x64xf32>
    %359 = arith.addf %357, %358 : vector<32x64xf32>
    %360 = arith.mulf %359, %355 : vector<32x64xf32>
    %cst_143 = arith.constant 1.42141378 : f32
    %361 = vector.broadcast %cst_143 : f32 to vector<32x64xf32>
    %362 = arith.addf %360, %361 : vector<32x64xf32>
    %363 = arith.mulf %362, %355 : vector<32x64xf32>
    %cst_144 = arith.constant -0.284496725 : f32
    %364 = vector.broadcast %cst_144 : f32 to vector<32x64xf32>
    %365 = arith.addf %363, %364 : vector<32x64xf32>
    %366 = arith.mulf %365, %355 : vector<32x64xf32>
    %cst_145 = arith.constant 0.254829586 : f32
    %367 = vector.broadcast %cst_145 : f32 to vector<32x64xf32>
    %368 = arith.addf %366, %367 : vector<32x64xf32>
    %369 = arith.mulf %368, %355 : vector<32x64xf32>
    %cst_146 = arith.constant 0.000000e+00 : f32
    %370 = vector.broadcast %cst_146 : f32 to vector<32x64xf32>
    %371 = arith.subf %370, %349 : vector<32x64xf32>
    %372 = arith.mulf %371, %349 : vector<32x64xf32>
    %373 = math.exp %372 : vector<32x64xf32>
    %374 = arith.mulf %369, %373 : vector<32x64xf32>
    %cst_147 = arith.constant 1.000000e+00 : f32
    %375 = vector.broadcast %cst_147 : f32 to vector<32x64xf32>
    %376 = arith.subf %375, %374 : vector<32x64xf32>
    %377 = arith.mulf %348, %376 : vector<32x64xf32>
    %cst_148 = arith.constant 1.000000e+00 : f32
    %378 = vector.broadcast %cst_148 : f32 to vector<32x64xf32>
    %379 = arith.addf %378, %377 : vector<32x64xf32>
    %380 = arith.mulf %341, %379 : vector<32x64xf32>
    %381 = arith.mulf %338, %380 : vector<32x64xf32>
    %c0_149 = arith.constant 0 : index
    %c0_150 = arith.constant 0 : index
    %c0_151 = arith.constant 0 : index
    %382 = vector.load %arg10[%c0_149, %c0_150, %c0_151] : memref<2x64x32xf32, #tpu.memory_space<vmem>>, vector<1x64x32xf32>
    %383 = vector.shape_cast %382 : vector<1x64x32xf32> to vector<64x32xf32>
    %cst_152 = arith.constant dense<0.000000e+00> : vector<32x32xf32>
    %384 = tpu.matmul %381, %383, %cst_152 {dimension_numbers = #tpu.dot_dimension_numbers<[1], [0], [0], [1], [0, 0, 1, 1], [], []>} : vector<32x64xf32>, vector<64x32xf32>, vector<32x32xf32> -> vector<32x32xf32>
    %c1_153 = arith.constant 1 : index
    %c0_154 = arith.constant 0 : index
    %385 = vector.load %arg11[%c1_153, %c0_154] : memref<8x128xf32, #tpu.memory_space<vmem>>, vector<1x128xf32>
    %386 = vector.extract_strided_slice %385 {offsets = [0, 0], sizes = [1, 32], strides = [1, 1]} : vector<1x128xf32> to vector<1x32xf32>
    %387 = vector.broadcast %386 : vector<1x32xf32> to vector<32x32xf32>
    %388 = arith.addf %384, %387 : vector<32x32xf32>
    %389 = arith.addf %307, %388 : vector<32x32xf32>
    %c1_155 = arith.constant 1 : index
    %c0_156 = arith.constant 0 : index
    %c0_157 = arith.constant 0 : index
    %390 = vector.load %arg5[%c1_155, %c0_156, %c0_157] : memref<4x32x128xf32, #tpu.memory_space<vmem>>, vector<1x32x128xf32>
    %391 = vector.shape_cast %390 : vector<1x32x128xf32> to vector<32x128xf32>
    %c14 = arith.constant 14 : index
    %c0_158 = arith.constant 0 : index
    %392 = vector.load %arg4[%c14, %c0_158] : memref<24x32xf32, #tpu.memory_space<vmem>>, vector<1x32xf32>
    %c15 = arith.constant 15 : index
    %c0_159 = arith.constant 0 : index
    %393 = vector.load %arg4[%c15, %c0_159] : memref<24x32xf32, #tpu.memory_space<vmem>>, vector<1x32xf32>
    %cst_160 = arith.constant dense<0.000000e+00> : vector<32xf32>
    %394 = vector.multi_reduction <add>, %389, %cst_160 [1] : vector<32x32xf32> to vector<32xf32>
    %395 = vector.shape_cast %394 : vector<32xf32> to vector<32x1xf32>
    %cst_161 = arith.constant 3.200000e+01 : f32
    %396 = vector.broadcast %cst_161 : f32 to vector<32x1xf32>
    %397 = arith.divf %395, %396 : vector<32x1xf32>
    %398 = vector.broadcast %397 : vector<32x1xf32> to vector<32x32xf32>
    %399 = arith.subf %389, %398 : vector<32x32xf32>
    %400 = arith.mulf %399, %399 : vector<32x32xf32>
    %cst_162 = arith.constant dense<0.000000e+00> : vector<32xf32>
    %401 = vector.multi_reduction <add>, %400, %cst_162 [1] : vector<32x32xf32> to vector<32xf32>
    %402 = vector.shape_cast %401 : vector<32xf32> to vector<32x1xf32>
    %cst_163 = arith.constant 3.200000e+01 : f32
    %403 = vector.broadcast %cst_163 : f32 to vector<32x1xf32>
    %404 = arith.divf %402, %403 : vector<32x1xf32>
    %405 = vector.broadcast %397 : vector<32x1xf32> to vector<32x32xf32>
    %406 = arith.subf %389, %405 : vector<32x32xf32>
    %cst_164 = arith.constant 9.99999974E-6 : f32
    %407 = vector.broadcast %cst_164 : f32 to vector<32x1xf32>
    %408 = arith.addf %404, %407 : vector<32x1xf32>
    %409 = math.rsqrt %408 : vector<32x1xf32>
    %410 = vector.broadcast %409 : vector<32x1xf32> to vector<32x32xf32>
    %411 = arith.mulf %406, %410 : vector<32x32xf32>
    %412 = vector.broadcast %392 : vector<1x32xf32> to vector<32x32xf32>
    %413 = arith.mulf %411, %412 : vector<32x32xf32>
    %414 = vector.broadcast %393 : vector<1x32xf32> to vector<32x32xf32>
    %415 = arith.addf %413, %414 : vector<32x32xf32>
    %cst_165 = arith.constant dense<0.000000e+00> : vector<32x128xf32>
    %416 = tpu.matmul %415, %391, %cst_165 {dimension_numbers = #tpu.dot_dimension_numbers<[1], [0], [0], [1], [0, 0, 1, 1], [], []>} : vector<32x32xf32>, vector<32x128xf32>, vector<32x128xf32> -> vector<32x128xf32>
    %417 = vector.extract_strided_slice %416 {offsets = [0, 0], sizes = [32, 32], strides = [1, 1]} : vector<32x128xf32> to vector<32x32xf32>
    %418 = vector.extract_strided_slice %416 {offsets = [0, 32], sizes = [32, 64], strides = [1, 1]} : vector<32x128xf32> to vector<32x64xf32>
    %c1_166 = arith.constant 1 : index
    %c0_167 = arith.constant 0 : index
    %c0_168 = arith.constant 0 : index
    %419 = vector.load %arg7[%c1_166, %c0_167, %c0_168] : memref<4x32x32xf32, #tpu.memory_space<vmem>>, vector<1x32x32xf32>
    %420 = vector.shape_cast %419 : vector<1x32x32xf32> to vector<32x32xf32>
    %421 = vector.extract_strided_slice %417 {offsets = [0, 0], sizes = [32, 16], strides = [1, 1]} : vector<32x32xf32> to vector<32x16xf32>
    %422 = arith.mulf %421, %421 : vector<32x16xf32>
    %cst_169 = arith.constant dense<0.000000e+00> : vector<32xf32>
    %423 = vector.multi_reduction <add>, %422, %cst_169 [1] : vector<32x16xf32> to vector<32xf32>
    %424 = vector.shape_cast %423 : vector<32xf32> to vector<32x1xf32>
    %cst_170 = arith.constant 9.99999993E-9 : f32
    %425 = vector.broadcast %cst_170 : f32 to vector<32x1xf32>
    %426 = arith.addf %424, %425 : vector<32x1xf32>
    %427 = math.rsqrt %426 : vector<32x1xf32>
    %428 = vector.broadcast %427 : vector<32x1xf32> to vector<32x16xf32>
    %429 = arith.mulf %421, %428 : vector<32x16xf32>
    %cst_171 = arith.constant 1.000000e+01 : f32
    %430 = vector.broadcast %cst_171 : f32 to vector<32x16xf32>
    %431 = arith.mulf %429, %430 : vector<32x16xf32>
    %432 = vector.extract_strided_slice %418 {offsets = [0, 0], sizes = [32, 16], strides = [1, 1]} : vector<32x64xf32> to vector<32x16xf32>
    %433 = arith.mulf %432, %432 : vector<32x16xf32>
    %cst_172 = arith.constant dense<0.000000e+00> : vector<32xf32>
    %434 = vector.multi_reduction <add>, %433, %cst_172 [1] : vector<32x16xf32> to vector<32xf32>
    %435 = vector.shape_cast %434 : vector<32xf32> to vector<32x1xf32>
    %cst_173 = arith.constant 9.99999993E-9 : f32
    %436 = vector.broadcast %cst_173 : f32 to vector<32x1xf32>
    %437 = arith.addf %435, %436 : vector<32x1xf32>
    %438 = math.rsqrt %437 : vector<32x1xf32>
    %439 = vector.broadcast %438 : vector<32x1xf32> to vector<32x16xf32>
    %440 = arith.mulf %432, %439 : vector<32x16xf32>
    %441 = vector.extract_strided_slice %418 {offsets = [0, 32], sizes = [32, 16], strides = [1, 1]} : vector<32x64xf32> to vector<32x16xf32>
    %c2_174 = arith.constant 2 : index
    %c0_175 = arith.constant 0 : index
    %c0_176 = arith.constant 0 : index
    %442 = vector.load %arg8[%c2_174, %c0_175, %c0_176] : memref<8x16x4xf32, #tpu.memory_space<vmem>>, vector<1x16x4xf32>
    %443 = vector.shape_cast %442 : vector<1x16x4xf32> to vector<16x4xf32>
    %cst_177 = arith.constant dense<0.000000e+00> : vector<32x4xf32>
    %444 = tpu.matmul %431, %443, %cst_177 {dimension_numbers = #tpu.dot_dimension_numbers<[1], [0], [0], [1], [0, 0, 1, 1], [], []>} : vector<32x16xf32>, vector<16x4xf32>, vector<32x4xf32> -> vector<32x4xf32>
    %cst_178 = arith.constant dense<0.000000e+00> : vector<32x32xf32>
    %445 = tpu.matmul %431, %440, %cst_178 {dimension_numbers = #tpu.dot_dimension_numbers<[1], [1], [0], [0], [0, 0, 1, 0], [], []>} : vector<32x16xf32>, vector<32x16xf32>, vector<32x32xf32> -> vector<32x32xf32>
    %446 = arith.addf %445, %15 : vector<32x32xf32>
    %cst_179 = arith.constant dense<0xFF800000> : vector<32xf32>
    %447 = vector.multi_reduction <maximumf>, %444, %cst_179 [1] : vector<32x4xf32> to vector<32xf32>
    %448 = vector.shape_cast %447 : vector<32xf32> to vector<32x1xf32>
    %cst_180 = arith.constant dense<0xFF800000> : vector<32xf32>
    %449 = vector.multi_reduction <maximumf>, %446, %cst_180 [1] : vector<32x32xf32> to vector<32xf32>
    %450 = vector.shape_cast %449 : vector<32xf32> to vector<32x1xf32>
    %451 = arith.maximumf %448, %450 : vector<32x1xf32>
    %452 = vector.broadcast %451 : vector<32x1xf32> to vector<32x4xf32>
    %453 = arith.subf %444, %452 : vector<32x4xf32>
    %454 = math.exp %453 : vector<32x4xf32>
    %455 = vector.broadcast %451 : vector<32x1xf32> to vector<32x32xf32>
    %456 = arith.subf %446, %455 : vector<32x32xf32>
    %457 = math.exp %456 : vector<32x32xf32>
    %cst_181 = arith.constant dense<0.000000e+00> : vector<32xf32>
    %458 = vector.multi_reduction <add>, %454, %cst_181 [1] : vector<32x4xf32> to vector<32xf32>
    %459 = vector.shape_cast %458 : vector<32xf32> to vector<32x1xf32>
    %cst_182 = arith.constant dense<0.000000e+00> : vector<32xf32>
    %460 = vector.multi_reduction <add>, %457, %cst_182 [1] : vector<32x32xf32> to vector<32xf32>
    %461 = vector.shape_cast %460 : vector<32xf32> to vector<32x1xf32>
    %462 = arith.addf %459, %461 : vector<32x1xf32>
    %c2_183 = arith.constant 2 : index
    %c0_184 = arith.constant 0 : index
    %c0_185 = arith.constant 0 : index
    %463 = vector.load %arg9[%c2_183, %c0_184, %c0_185] : memref<8x4x16xf32, #tpu.memory_space<vmem>>, vector<1x4x16xf32>
    %464 = vector.shape_cast %463 : vector<1x4x16xf32> to vector<4x16xf32>
    %cst_186 = arith.constant dense<0.000000e+00> : vector<32x16xf32>
    %465 = tpu.matmul %454, %464, %cst_186 {dimension_numbers = #tpu.dot_dimension_numbers<[1], [0], [0], [1], [0, 0, 1, 1], [], []>} : vector<32x4xf32>, vector<4x16xf32>, vector<32x16xf32> -> vector<32x16xf32>
    %cst_187 = arith.constant dense<0.000000e+00> : vector<32x16xf32>
    %466 = tpu.matmul %457, %441, %cst_187 {dimension_numbers = #tpu.dot_dimension_numbers<[1], [0], [0], [1], [0, 0, 1, 1], [], []>} : vector<32x32xf32>, vector<32x16xf32>, vector<32x16xf32> -> vector<32x16xf32>
    %467 = arith.addf %465, %466 : vector<32x16xf32>
    %468 = tpu.reciprocal %462 {approx = true} : vector<32x1xf32> -> vector<32x1xf32>
    %469 = vector.broadcast %468 : vector<32x1xf32> to vector<32x16xf32>
    %470 = arith.mulf %467, %469 : vector<32x16xf32>
    %471 = vector.extract_strided_slice %417 {offsets = [0, 16], sizes = [32, 16], strides = [1, 1]} : vector<32x32xf32> to vector<32x16xf32>
    %472 = arith.mulf %471, %471 : vector<32x16xf32>
    %cst_188 = arith.constant dense<0.000000e+00> : vector<32xf32>
    %473 = vector.multi_reduction <add>, %472, %cst_188 [1] : vector<32x16xf32> to vector<32xf32>
    %474 = vector.shape_cast %473 : vector<32xf32> to vector<32x1xf32>
    %cst_189 = arith.constant 9.99999993E-9 : f32
    %475 = vector.broadcast %cst_189 : f32 to vector<32x1xf32>
    %476 = arith.addf %474, %475 : vector<32x1xf32>
    %477 = math.rsqrt %476 : vector<32x1xf32>
    %478 = vector.broadcast %477 : vector<32x1xf32> to vector<32x16xf32>
    %479 = arith.mulf %471, %478 : vector<32x16xf32>
    %cst_190 = arith.constant 1.000000e+01 : f32
    %480 = vector.broadcast %cst_190 : f32 to vector<32x16xf32>
    %481 = arith.mulf %479, %480 : vector<32x16xf32>
    %482 = vector.extract_strided_slice %418 {offsets = [0, 16], sizes = [32, 16], strides = [1, 1]} : vector<32x64xf32> to vector<32x16xf32>
    %483 = arith.mulf %482, %482 : vector<32x16xf32>
    %cst_191 = arith.constant dense<0.000000e+00> : vector<32xf32>
    %484 = vector.multi_reduction <add>, %483, %cst_191 [1] : vector<32x16xf32> to vector<32xf32>
    %485 = vector.shape_cast %484 : vector<32xf32> to vector<32x1xf32>
    %cst_192 = arith.constant 9.99999993E-9 : f32
    %486 = vector.broadcast %cst_192 : f32 to vector<32x1xf32>
    %487 = arith.addf %485, %486 : vector<32x1xf32>
    %488 = math.rsqrt %487 : vector<32x1xf32>
    %489 = vector.broadcast %488 : vector<32x1xf32> to vector<32x16xf32>
    %490 = arith.mulf %482, %489 : vector<32x16xf32>
    %491 = vector.extract_strided_slice %418 {offsets = [0, 48], sizes = [32, 16], strides = [1, 1]} : vector<32x64xf32> to vector<32x16xf32>
    %c3 = arith.constant 3 : index
    %c0_193 = arith.constant 0 : index
    %c0_194 = arith.constant 0 : index
    %492 = vector.load %arg8[%c3, %c0_193, %c0_194] : memref<8x16x4xf32, #tpu.memory_space<vmem>>, vector<1x16x4xf32>
    %493 = vector.shape_cast %492 : vector<1x16x4xf32> to vector<16x4xf32>
    %cst_195 = arith.constant dense<0.000000e+00> : vector<32x4xf32>
    %494 = tpu.matmul %481, %493, %cst_195 {dimension_numbers = #tpu.dot_dimension_numbers<[1], [0], [0], [1], [0, 0, 1, 1], [], []>} : vector<32x16xf32>, vector<16x4xf32>, vector<32x4xf32> -> vector<32x4xf32>
    %cst_196 = arith.constant dense<0.000000e+00> : vector<32x32xf32>
    %495 = tpu.matmul %481, %490, %cst_196 {dimension_numbers = #tpu.dot_dimension_numbers<[1], [1], [0], [0], [0, 0, 1, 0], [], []>} : vector<32x16xf32>, vector<32x16xf32>, vector<32x32xf32> -> vector<32x32xf32>
    %496 = arith.addf %495, %15 : vector<32x32xf32>
    %cst_197 = arith.constant dense<0xFF800000> : vector<32xf32>
    %497 = vector.multi_reduction <maximumf>, %494, %cst_197 [1] : vector<32x4xf32> to vector<32xf32>
    %498 = vector.shape_cast %497 : vector<32xf32> to vector<32x1xf32>
    %cst_198 = arith.constant dense<0xFF800000> : vector<32xf32>
    %499 = vector.multi_reduction <maximumf>, %496, %cst_198 [1] : vector<32x32xf32> to vector<32xf32>
    %500 = vector.shape_cast %499 : vector<32xf32> to vector<32x1xf32>
    %501 = arith.maximumf %498, %500 : vector<32x1xf32>
    %502 = vector.broadcast %501 : vector<32x1xf32> to vector<32x4xf32>
    %503 = arith.subf %494, %502 : vector<32x4xf32>
    %504 = math.exp %503 : vector<32x4xf32>
    %505 = vector.broadcast %501 : vector<32x1xf32> to vector<32x32xf32>
    %506 = arith.subf %496, %505 : vector<32x32xf32>
    %507 = math.exp %506 : vector<32x32xf32>
    %cst_199 = arith.constant dense<0.000000e+00> : vector<32xf32>
    %508 = vector.multi_reduction <add>, %504, %cst_199 [1] : vector<32x4xf32> to vector<32xf32>
    %509 = vector.shape_cast %508 : vector<32xf32> to vector<32x1xf32>
    %cst_200 = arith.constant dense<0.000000e+00> : vector<32xf32>
    %510 = vector.multi_reduction <add>, %507, %cst_200 [1] : vector<32x32xf32> to vector<32xf32>
    %511 = vector.shape_cast %510 : vector<32xf32> to vector<32x1xf32>
    %512 = arith.addf %509, %511 : vector<32x1xf32>
    %c3_201 = arith.constant 3 : index
    %c0_202 = arith.constant 0 : index
    %c0_203 = arith.constant 0 : index
    %513 = vector.load %arg9[%c3_201, %c0_202, %c0_203] : memref<8x4x16xf32, #tpu.memory_space<vmem>>, vector<1x4x16xf32>
    %514 = vector.shape_cast %513 : vector<1x4x16xf32> to vector<4x16xf32>
    %cst_204 = arith.constant dense<0.000000e+00> : vector<32x16xf32>
    %515 = tpu.matmul %504, %514, %cst_204 {dimension_numbers = #tpu.dot_dimension_numbers<[1], [0], [0], [1], [0, 0, 1, 1], [], []>} : vector<32x4xf32>, vector<4x16xf32>, vector<32x16xf32> -> vector<32x16xf32>
    %cst_205 = arith.constant dense<0.000000e+00> : vector<32x16xf32>
    %516 = tpu.matmul %507, %491, %cst_205 {dimension_numbers = #tpu.dot_dimension_numbers<[1], [0], [0], [1], [0, 0, 1, 1], [], []>} : vector<32x32xf32>, vector<32x16xf32>, vector<32x16xf32> -> vector<32x16xf32>
    %517 = arith.addf %515, %516 : vector<32x16xf32>
    %518 = tpu.reciprocal %512 {approx = true} : vector<32x1xf32> -> vector<32x1xf32>
    %519 = vector.broadcast %518 : vector<32x1xf32> to vector<32x16xf32>
    %520 = arith.mulf %517, %519 : vector<32x16xf32>
    %521 = tpu.concatenate %470, %520 in 1 : vector<32x16xf32>, vector<32x16xf32> -> vector<32x32xf32>
    %cst_206 = arith.constant dense<0.000000e+00> : vector<32x32xf32>
    %522 = tpu.matmul %521, %420, %cst_206 {dimension_numbers = #tpu.dot_dimension_numbers<[1], [0], [0], [1], [0, 0, 1, 1], [], []>} : vector<32x32xf32>, vector<32x32xf32>, vector<32x32xf32> -> vector<32x32xf32>
    %523 = arith.addf %389, %522 : vector<32x32xf32>
    %c16 = arith.constant 16 : index
    %c0_207 = arith.constant 0 : index
    %524 = vector.load %arg4[%c16, %c0_207] : memref<24x32xf32, #tpu.memory_space<vmem>>, vector<1x32xf32>
    %c17 = arith.constant 17 : index
    %c0_208 = arith.constant 0 : index
    %525 = vector.load %arg4[%c17, %c0_208] : memref<24x32xf32, #tpu.memory_space<vmem>>, vector<1x32xf32>
    %cst_209 = arith.constant dense<0.000000e+00> : vector<32xf32>
    %526 = vector.multi_reduction <add>, %523, %cst_209 [1] : vector<32x32xf32> to vector<32xf32>
    %527 = vector.shape_cast %526 : vector<32xf32> to vector<32x1xf32>
    %cst_210 = arith.constant 3.200000e+01 : f32
    %528 = vector.broadcast %cst_210 : f32 to vector<32x1xf32>
    %529 = arith.divf %527, %528 : vector<32x1xf32>
    %530 = vector.broadcast %529 : vector<32x1xf32> to vector<32x32xf32>
    %531 = arith.subf %523, %530 : vector<32x32xf32>
    %532 = arith.mulf %531, %531 : vector<32x32xf32>
    %cst_211 = arith.constant dense<0.000000e+00> : vector<32xf32>
    %533 = vector.multi_reduction <add>, %532, %cst_211 [1] : vector<32x32xf32> to vector<32xf32>
    %534 = vector.shape_cast %533 : vector<32xf32> to vector<32x1xf32>
    %cst_212 = arith.constant 3.200000e+01 : f32
    %535 = vector.broadcast %cst_212 : f32 to vector<32x1xf32>
    %536 = arith.divf %534, %535 : vector<32x1xf32>
    %537 = vector.broadcast %529 : vector<32x1xf32> to vector<32x32xf32>
    %538 = arith.subf %523, %537 : vector<32x32xf32>
    %cst_213 = arith.constant 9.99999974E-6 : f32
    %539 = vector.broadcast %cst_213 : f32 to vector<32x1xf32>
    %540 = arith.addf %536, %539 : vector<32x1xf32>
    %541 = math.rsqrt %540 : vector<32x1xf32>
    %542 = vector.broadcast %541 : vector<32x1xf32> to vector<32x32xf32>
    %543 = arith.mulf %538, %542 : vector<32x32xf32>
    %544 = vector.broadcast %524 : vector<1x32xf32> to vector<32x32xf32>
    %545 = arith.mulf %543, %544 : vector<32x32xf32>
    %546 = vector.broadcast %525 : vector<1x32xf32> to vector<32x32xf32>
    %547 = arith.addf %545, %546 : vector<32x32xf32>
    %cst_214 = arith.constant dense<0.000000e+00> : vector<32x128xf32>
    %548 = tpu.matmul %547, %391, %cst_214 {dimension_numbers = #tpu.dot_dimension_numbers<[1], [0], [0], [1], [0, 0, 1, 1], [], []>} : vector<32x32xf32>, vector<32x128xf32>, vector<32x128xf32> -> vector<32x128xf32>
    %549 = vector.extract_strided_slice %548 {offsets = [0, 96], sizes = [32, 32], strides = [1, 1]} : vector<32x128xf32> to vector<32x32xf32>
    %c1_215 = arith.constant 1 : index
    %c0_216 = arith.constant 0 : index
    %c0_217 = arith.constant 0 : index
    %550 = vector.load %arg6[%c1_215, %c0_216, %c0_217] : memref<2x48x64xf32, #tpu.memory_space<vmem>>, vector<1x48x64xf32>
    %551 = vector.shape_cast %550 : vector<1x48x64xf32> to vector<48x64xf32>
    %cst_218 = arith.constant dense<0.000000e+00> : vector<16x64xf32>
    %552 = tpu.matmul %39, %551, %cst_218 {dimension_numbers = #tpu.dot_dimension_numbers<[1], [0], [0], [1], [0, 0, 1, 1], [], []>} : vector<16x48xf32>, vector<48x64xf32>, vector<16x64xf32> -> vector<16x64xf32>
    %c3_219 = arith.constant 3 : index
    %c0_220 = arith.constant 0 : index
    %c0_221 = arith.constant 0 : index
    %553 = vector.load %arg7[%c3_219, %c0_220, %c0_221] : memref<4x32x32xf32, #tpu.memory_space<vmem>>, vector<1x32x32xf32>
    %554 = vector.shape_cast %553 : vector<1x32x32xf32> to vector<32x32xf32>
    %555 = vector.extract_strided_slice %549 {offsets = [0, 0], sizes = [32, 16], strides = [1, 1]} : vector<32x32xf32> to vector<32x16xf32>
    %556 = arith.mulf %555, %555 : vector<32x16xf32>
    %cst_222 = arith.constant dense<0.000000e+00> : vector<32xf32>
    %557 = vector.multi_reduction <add>, %556, %cst_222 [1] : vector<32x16xf32> to vector<32xf32>
    %558 = vector.shape_cast %557 : vector<32xf32> to vector<32x1xf32>
    %cst_223 = arith.constant 9.99999993E-9 : f32
    %559 = vector.broadcast %cst_223 : f32 to vector<32x1xf32>
    %560 = arith.addf %558, %559 : vector<32x1xf32>
    %561 = math.rsqrt %560 : vector<32x1xf32>
    %562 = vector.broadcast %561 : vector<32x1xf32> to vector<32x16xf32>
    %563 = arith.mulf %555, %562 : vector<32x16xf32>
    %cst_224 = arith.constant 1.000000e+01 : f32
    %564 = vector.broadcast %cst_224 : f32 to vector<32x16xf32>
    %565 = arith.mulf %563, %564 : vector<32x16xf32>
    %566 = vector.extract_strided_slice %552 {offsets = [0, 0], sizes = [16, 16], strides = [1, 1]} : vector<16x64xf32> to vector<16x16xf32>
    %567 = arith.mulf %566, %566 : vector<16x16xf32>
    %cst_225 = arith.constant dense<0.000000e+00> : vector<16xf32>
    %568 = vector.multi_reduction <add>, %567, %cst_225 [1] : vector<16x16xf32> to vector<16xf32>
    %569 = vector.shape_cast %568 : vector<16xf32> to vector<16x1xf32>
    %cst_226 = arith.constant 9.99999993E-9 : f32
    %570 = vector.broadcast %cst_226 : f32 to vector<16x1xf32>
    %571 = arith.addf %569, %570 : vector<16x1xf32>
    %572 = math.rsqrt %571 : vector<16x1xf32>
    %573 = vector.broadcast %572 : vector<16x1xf32> to vector<16x16xf32>
    %574 = arith.mulf %566, %573 : vector<16x16xf32>
    %575 = vector.extract_strided_slice %552 {offsets = [0, 32], sizes = [16, 16], strides = [1, 1]} : vector<16x64xf32> to vector<16x16xf32>
    %c6 = arith.constant 6 : index
    %c0_227 = arith.constant 0 : index
    %c0_228 = arith.constant 0 : index
    %576 = vector.load %arg8[%c6, %c0_227, %c0_228] : memref<8x16x4xf32, #tpu.memory_space<vmem>>, vector<1x16x4xf32>
    %577 = vector.shape_cast %576 : vector<1x16x4xf32> to vector<16x4xf32>
    %cst_229 = arith.constant dense<0.000000e+00> : vector<32x4xf32>
    %578 = tpu.matmul %565, %577, %cst_229 {dimension_numbers = #tpu.dot_dimension_numbers<[1], [0], [0], [1], [0, 0, 1, 1], [], []>} : vector<32x16xf32>, vector<16x4xf32>, vector<32x4xf32> -> vector<32x4xf32>
    %cst_230 = arith.constant dense<0.000000e+00> : vector<32x16xf32>
    %579 = tpu.matmul %565, %574, %cst_230 {dimension_numbers = #tpu.dot_dimension_numbers<[1], [1], [0], [0], [0, 0, 1, 0], [], []>} : vector<32x16xf32>, vector<16x16xf32>, vector<32x16xf32> -> vector<32x16xf32>
    %580 = arith.addf %579, %30 : vector<32x16xf32>
    %cst_231 = arith.constant dense<0xFF800000> : vector<32xf32>
    %581 = vector.multi_reduction <maximumf>, %578, %cst_231 [1] : vector<32x4xf32> to vector<32xf32>
    %582 = vector.shape_cast %581 : vector<32xf32> to vector<32x1xf32>
    %cst_232 = arith.constant dense<0xFF800000> : vector<32xf32>
    %583 = vector.multi_reduction <maximumf>, %580, %cst_232 [1] : vector<32x16xf32> to vector<32xf32>
    %584 = vector.shape_cast %583 : vector<32xf32> to vector<32x1xf32>
    %585 = arith.maximumf %582, %584 : vector<32x1xf32>
    %586 = vector.broadcast %585 : vector<32x1xf32> to vector<32x4xf32>
    %587 = arith.subf %578, %586 : vector<32x4xf32>
    %588 = math.exp %587 : vector<32x4xf32>
    %589 = vector.broadcast %585 : vector<32x1xf32> to vector<32x16xf32>
    %590 = arith.subf %580, %589 : vector<32x16xf32>
    %591 = math.exp %590 : vector<32x16xf32>
    %cst_233 = arith.constant dense<0.000000e+00> : vector<32xf32>
    %592 = vector.multi_reduction <add>, %588, %cst_233 [1] : vector<32x4xf32> to vector<32xf32>
    %593 = vector.shape_cast %592 : vector<32xf32> to vector<32x1xf32>
    %cst_234 = arith.constant dense<0.000000e+00> : vector<32xf32>
    %594 = vector.multi_reduction <add>, %591, %cst_234 [1] : vector<32x16xf32> to vector<32xf32>
    %595 = vector.shape_cast %594 : vector<32xf32> to vector<32x1xf32>
    %596 = arith.addf %593, %595 : vector<32x1xf32>
    %c6_235 = arith.constant 6 : index
    %c0_236 = arith.constant 0 : index
    %c0_237 = arith.constant 0 : index
    %597 = vector.load %arg9[%c6_235, %c0_236, %c0_237] : memref<8x4x16xf32, #tpu.memory_space<vmem>>, vector<1x4x16xf32>
    %598 = vector.shape_cast %597 : vector<1x4x16xf32> to vector<4x16xf32>
    %cst_238 = arith.constant dense<0.000000e+00> : vector<32x16xf32>
    %599 = tpu.matmul %588, %598, %cst_238 {dimension_numbers = #tpu.dot_dimension_numbers<[1], [0], [0], [1], [0, 0, 1, 1], [], []>} : vector<32x4xf32>, vector<4x16xf32>, vector<32x16xf32> -> vector<32x16xf32>
    %cst_239 = arith.constant dense<0.000000e+00> : vector<32x16xf32>
    %600 = tpu.matmul %591, %575, %cst_239 {dimension_numbers = #tpu.dot_dimension_numbers<[1], [0], [0], [1], [0, 0, 1, 1], [], []>} : vector<32x16xf32>, vector<16x16xf32>, vector<32x16xf32> -> vector<32x16xf32>
    %601 = arith.addf %599, %600 : vector<32x16xf32>
    %602 = tpu.reciprocal %596 {approx = true} : vector<32x1xf32> -> vector<32x1xf32>
    %603 = vector.broadcast %602 : vector<32x1xf32> to vector<32x16xf32>
    %604 = arith.mulf %601, %603 : vector<32x16xf32>
    %605 = vector.extract_strided_slice %549 {offsets = [0, 16], sizes = [32, 16], strides = [1, 1]} : vector<32x32xf32> to vector<32x16xf32>
    %606 = arith.mulf %605, %605 : vector<32x16xf32>
    %cst_240 = arith.constant dense<0.000000e+00> : vector<32xf32>
    %607 = vector.multi_reduction <add>, %606, %cst_240 [1] : vector<32x16xf32> to vector<32xf32>
    %608 = vector.shape_cast %607 : vector<32xf32> to vector<32x1xf32>
    %cst_241 = arith.constant 9.99999993E-9 : f32
    %609 = vector.broadcast %cst_241 : f32 to vector<32x1xf32>
    %610 = arith.addf %608, %609 : vector<32x1xf32>
    %611 = math.rsqrt %610 : vector<32x1xf32>
    %612 = vector.broadcast %611 : vector<32x1xf32> to vector<32x16xf32>
    %613 = arith.mulf %605, %612 : vector<32x16xf32>
    %cst_242 = arith.constant 1.000000e+01 : f32
    %614 = vector.broadcast %cst_242 : f32 to vector<32x16xf32>
    %615 = arith.mulf %613, %614 : vector<32x16xf32>
    %616 = vector.extract_strided_slice %552 {offsets = [0, 16], sizes = [16, 16], strides = [1, 1]} : vector<16x64xf32> to vector<16x16xf32>
    %617 = arith.mulf %616, %616 : vector<16x16xf32>
    %cst_243 = arith.constant dense<0.000000e+00> : vector<16xf32>
    %618 = vector.multi_reduction <add>, %617, %cst_243 [1] : vector<16x16xf32> to vector<16xf32>
    %619 = vector.shape_cast %618 : vector<16xf32> to vector<16x1xf32>
    %cst_244 = arith.constant 9.99999993E-9 : f32
    %620 = vector.broadcast %cst_244 : f32 to vector<16x1xf32>
    %621 = arith.addf %619, %620 : vector<16x1xf32>
    %622 = math.rsqrt %621 : vector<16x1xf32>
    %623 = vector.broadcast %622 : vector<16x1xf32> to vector<16x16xf32>
    %624 = arith.mulf %616, %623 : vector<16x16xf32>
    %625 = vector.extract_strided_slice %552 {offsets = [0, 48], sizes = [16, 16], strides = [1, 1]} : vector<16x64xf32> to vector<16x16xf32>
    %c7 = arith.constant 7 : index
    %c0_245 = arith.constant 0 : index
    %c0_246 = arith.constant 0 : index
    %626 = vector.load %arg8[%c7, %c0_245, %c0_246] : memref<8x16x4xf32, #tpu.memory_space<vmem>>, vector<1x16x4xf32>
    %627 = vector.shape_cast %626 : vector<1x16x4xf32> to vector<16x4xf32>
    %cst_247 = arith.constant dense<0.000000e+00> : vector<32x4xf32>
    %628 = tpu.matmul %615, %627, %cst_247 {dimension_numbers = #tpu.dot_dimension_numbers<[1], [0], [0], [1], [0, 0, 1, 1], [], []>} : vector<32x16xf32>, vector<16x4xf32>, vector<32x4xf32> -> vector<32x4xf32>
    %cst_248 = arith.constant dense<0.000000e+00> : vector<32x16xf32>
    %629 = tpu.matmul %615, %624, %cst_248 {dimension_numbers = #tpu.dot_dimension_numbers<[1], [1], [0], [0], [0, 0, 1, 0], [], []>} : vector<32x16xf32>, vector<16x16xf32>, vector<32x16xf32> -> vector<32x16xf32>
    %630 = arith.addf %629, %30 : vector<32x16xf32>
    %cst_249 = arith.constant dense<0xFF800000> : vector<32xf32>
    %631 = vector.multi_reduction <maximumf>, %628, %cst_249 [1] : vector<32x4xf32> to vector<32xf32>
    %632 = vector.shape_cast %631 : vector<32xf32> to vector<32x1xf32>
    %cst_250 = arith.constant dense<0xFF800000> : vector<32xf32>
    %633 = vector.multi_reduction <maximumf>, %630, %cst_250 [1] : vector<32x16xf32> to vector<32xf32>
    %634 = vector.shape_cast %633 : vector<32xf32> to vector<32x1xf32>
    %635 = arith.maximumf %632, %634 : vector<32x1xf32>
    %636 = vector.broadcast %635 : vector<32x1xf32> to vector<32x4xf32>
    %637 = arith.subf %628, %636 : vector<32x4xf32>
    %638 = math.exp %637 : vector<32x4xf32>
    %639 = vector.broadcast %635 : vector<32x1xf32> to vector<32x16xf32>
    %640 = arith.subf %630, %639 : vector<32x16xf32>
    %641 = math.exp %640 : vector<32x16xf32>
    %cst_251 = arith.constant dense<0.000000e+00> : vector<32xf32>
    %642 = vector.multi_reduction <add>, %638, %cst_251 [1] : vector<32x4xf32> to vector<32xf32>
    %643 = vector.shape_cast %642 : vector<32xf32> to vector<32x1xf32>
    %cst_252 = arith.constant dense<0.000000e+00> : vector<32xf32>
    %644 = vector.multi_reduction <add>, %641, %cst_252 [1] : vector<32x16xf32> to vector<32xf32>
    %645 = vector.shape_cast %644 : vector<32xf32> to vector<32x1xf32>
    %646 = arith.addf %643, %645 : vector<32x1xf32>
    %c7_253 = arith.constant 7 : index
    %c0_254 = arith.constant 0 : index
    %c0_255 = arith.constant 0 : index
    %647 = vector.load %arg9[%c7_253, %c0_254, %c0_255] : memref<8x4x16xf32, #tpu.memory_space<vmem>>, vector<1x4x16xf32>
    %648 = vector.shape_cast %647 : vector<1x4x16xf32> to vector<4x16xf32>
    %cst_256 = arith.constant dense<0.000000e+00> : vector<32x16xf32>
    %649 = tpu.matmul %638, %648, %cst_256 {dimension_numbers = #tpu.dot_dimension_numbers<[1], [0], [0], [1], [0, 0, 1, 1], [], []>} : vector<32x4xf32>, vector<4x16xf32>, vector<32x16xf32> -> vector<32x16xf32>
    %cst_257 = arith.constant dense<0.000000e+00> : vector<32x16xf32>
    %650 = tpu.matmul %641, %625, %cst_257 {dimension_numbers = #tpu.dot_dimension_numbers<[1], [0], [0], [1], [0, 0, 1, 1], [], []>} : vector<32x16xf32>, vector<16x16xf32>, vector<32x16xf32> -> vector<32x16xf32>
    %651 = arith.addf %649, %650 : vector<32x16xf32>
    %652 = tpu.reciprocal %646 {approx = true} : vector<32x1xf32> -> vector<32x1xf32>
    %653 = vector.broadcast %652 : vector<32x1xf32> to vector<32x16xf32>
    %654 = arith.mulf %651, %653 : vector<32x16xf32>
    %655 = tpu.concatenate %604, %654 in 1 : vector<32x16xf32>, vector<32x16xf32> -> vector<32x32xf32>
    %cst_258 = arith.constant dense<0.000000e+00> : vector<32x32xf32>
    %656 = tpu.matmul %655, %554, %cst_258 {dimension_numbers = #tpu.dot_dimension_numbers<[1], [0], [0], [1], [0, 0, 1, 1], [], []>} : vector<32x32xf32>, vector<32x32xf32>, vector<32x32xf32> -> vector<32x32xf32>
    %657 = arith.addf %523, %656 : vector<32x32xf32>
    %c18 = arith.constant 18 : index
    %c0_259 = arith.constant 0 : index
    %658 = vector.load %arg4[%c18, %c0_259] : memref<24x32xf32, #tpu.memory_space<vmem>>, vector<1x32xf32>
    %c19 = arith.constant 19 : index
    %c0_260 = arith.constant 0 : index
    %659 = vector.load %arg4[%c19, %c0_260] : memref<24x32xf32, #tpu.memory_space<vmem>>, vector<1x32xf32>
    %cst_261 = arith.constant dense<0.000000e+00> : vector<32xf32>
    %660 = vector.multi_reduction <add>, %657, %cst_261 [1] : vector<32x32xf32> to vector<32xf32>
    %661 = vector.shape_cast %660 : vector<32xf32> to vector<32x1xf32>
    %cst_262 = arith.constant 3.200000e+01 : f32
    %662 = vector.broadcast %cst_262 : f32 to vector<32x1xf32>
    %663 = arith.divf %661, %662 : vector<32x1xf32>
    %664 = vector.broadcast %663 : vector<32x1xf32> to vector<32x32xf32>
    %665 = arith.subf %657, %664 : vector<32x32xf32>
    %666 = arith.mulf %665, %665 : vector<32x32xf32>
    %cst_263 = arith.constant dense<0.000000e+00> : vector<32xf32>
    %667 = vector.multi_reduction <add>, %666, %cst_263 [1] : vector<32x32xf32> to vector<32xf32>
    %668 = vector.shape_cast %667 : vector<32xf32> to vector<32x1xf32>
    %cst_264 = arith.constant 3.200000e+01 : f32
    %669 = vector.broadcast %cst_264 : f32 to vector<32x1xf32>
    %670 = arith.divf %668, %669 : vector<32x1xf32>
    %671 = vector.broadcast %663 : vector<32x1xf32> to vector<32x32xf32>
    %672 = arith.subf %657, %671 : vector<32x32xf32>
    %cst_265 = arith.constant 9.99999974E-6 : f32
    %673 = vector.broadcast %cst_265 : f32 to vector<32x1xf32>
    %674 = arith.addf %670, %673 : vector<32x1xf32>
    %675 = math.rsqrt %674 : vector<32x1xf32>
    %676 = vector.broadcast %675 : vector<32x1xf32> to vector<32x32xf32>
    %677 = arith.mulf %672, %676 : vector<32x32xf32>
    %678 = vector.broadcast %658 : vector<1x32xf32> to vector<32x32xf32>
    %679 = arith.mulf %677, %678 : vector<32x32xf32>
    %680 = vector.broadcast %659 : vector<1x32xf32> to vector<32x32xf32>
    %681 = arith.addf %679, %680 : vector<32x32xf32>
    %c3_266 = arith.constant 3 : index
    %c0_267 = arith.constant 0 : index
    %c0_268 = arith.constant 0 : index
    %682 = vector.load %arg5[%c3_266, %c0_267, %c0_268] : memref<4x32x128xf32, #tpu.memory_space<vmem>>, vector<1x32x128xf32>
    %683 = vector.shape_cast %682 : vector<1x32x128xf32> to vector<32x128xf32>
    %cst_269 = arith.constant dense<0.000000e+00> : vector<32x128xf32>
    %684 = tpu.matmul %681, %683, %cst_269 {dimension_numbers = #tpu.dot_dimension_numbers<[1], [0], [0], [1], [0, 0, 1, 1], [], []>} : vector<32x32xf32>, vector<32x128xf32>, vector<32x128xf32> -> vector<32x128xf32>
    %c2_270 = arith.constant 2 : index
    %c0_271 = arith.constant 0 : index
    %685 = vector.load %arg11[%c2_270, %c0_271] : memref<8x128xf32, #tpu.memory_space<vmem>>, vector<1x128xf32>
    %686 = vector.broadcast %685 : vector<1x128xf32> to vector<32x128xf32>
    %687 = arith.addf %684, %686 : vector<32x128xf32>
    %688 = vector.extract_strided_slice %687 {offsets = [0, 0], sizes = [32, 64], strides = [1, 1]} : vector<32x128xf32> to vector<32x64xf32>
    %689 = vector.extract_strided_slice %687 {offsets = [0, 64], sizes = [32, 64], strides = [1, 1]} : vector<32x128xf32> to vector<32x64xf32>
    %cst_272 = arith.constant 5.000000e-01 : f32
    %690 = vector.broadcast %cst_272 : f32 to vector<32x64xf32>
    %691 = arith.mulf %690, %689 : vector<32x64xf32>
    %cst_273 = arith.constant 0.707106769 : f32
    %692 = vector.broadcast %cst_273 : f32 to vector<32x64xf32>
    %693 = arith.mulf %689, %692 : vector<32x64xf32>
    %cst_274 = arith.constant 0.000000e+00 : f32
    %694 = vector.broadcast %cst_274 : f32 to vector<32x64xf32>
    %695 = arith.cmpf oge, %693, %694 : vector<32x64xf32>
    %cst_275 = arith.constant 1.000000e+00 : f32
    %cst_276 = arith.constant -1.000000e+00 : f32
    %696 = vector.broadcast %cst_275 : f32 to vector<32x64xf32>
    %697 = vector.broadcast %cst_276 : f32 to vector<32x64xf32>
    %698 = arith.select %695, %696, %697 : vector<32x64xi1>, vector<32x64xf32>
    %699 = math.absf %693 : vector<32x64xf32>
    %cst_277 = arith.constant 0.327591091 : f32
    %700 = vector.broadcast %cst_277 : f32 to vector<32x64xf32>
    %701 = arith.mulf %700, %699 : vector<32x64xf32>
    %cst_278 = arith.constant 1.000000e+00 : f32
    %702 = vector.broadcast %cst_278 : f32 to vector<32x64xf32>
    %703 = arith.addf %702, %701 : vector<32x64xf32>
    %cst_279 = arith.constant 1.000000e+00 : f32
    %704 = vector.broadcast %cst_279 : f32 to vector<32x64xf32>
    %705 = arith.divf %704, %703 : vector<32x64xf32>
    %cst_280 = arith.constant 1.06140542 : f32
    %706 = vector.broadcast %cst_280 : f32 to vector<32x64xf32>
    %707 = arith.mulf %706, %705 : vector<32x64xf32>
    %cst_281 = arith.constant -1.45315206 : f32
    %708 = vector.broadcast %cst_281 : f32 to vector<32x64xf32>
    %709 = arith.addf %707, %708 : vector<32x64xf32>
    %710 = arith.mulf %709, %705 : vector<32x64xf32>
    %cst_282 = arith.constant 1.42141378 : f32
    %711 = vector.broadcast %cst_282 : f32 to vector<32x64xf32>
    %712 = arith.addf %710, %711 : vector<32x64xf32>
    %713 = arith.mulf %712, %705 : vector<32x64xf32>
    %cst_283 = arith.constant -0.284496725 : f32
    %714 = vector.broadcast %cst_283 : f32 to vector<32x64xf32>
    %715 = arith.addf %713, %714 : vector<32x64xf32>
    %716 = arith.mulf %715, %705 : vector<32x64xf32>
    %cst_284 = arith.constant 0.254829586 : f32
    %717 = vector.broadcast %cst_284 : f32 to vector<32x64xf32>
    %718 = arith.addf %716, %717 : vector<32x64xf32>
    %719 = arith.mulf %718, %705 : vector<32x64xf32>
    %cst_285 = arith.constant 0.000000e+00 : f32
    %720 = vector.broadcast %cst_285 : f32 to vector<32x64xf32>
    %721 = arith.subf %720, %699 : vector<32x64xf32>
    %722 = arith.mulf %721, %699 : vector<32x64xf32>
    %723 = math.exp %722 : vector<32x64xf32>
    %724 = arith.mulf %719, %723 : vector<32x64xf32>
    %cst_286 = arith.constant 1.000000e+00 : f32
    %725 = vector.broadcast %cst_286 : f32 to vector<32x64xf32>
    %726 = arith.subf %725, %724 : vector<32x64xf32>
    %727 = arith.mulf %698, %726 : vector<32x64xf32>
    %cst_287 = arith.constant 1.000000e+00 : f32
    %728 = vector.broadcast %cst_287 : f32 to vector<32x64xf32>
    %729 = arith.addf %728, %727 : vector<32x64xf32>
    %730 = arith.mulf %691, %729 : vector<32x64xf32>
    %731 = arith.mulf %688, %730 : vector<32x64xf32>
    %c1_288 = arith.constant 1 : index
    %c0_289 = arith.constant 0 : index
    %c0_290 = arith.constant 0 : index
    %732 = vector.load %arg10[%c1_288, %c0_289, %c0_290] : memref<2x64x32xf32, #tpu.memory_space<vmem>>, vector<1x64x32xf32>
    %733 = vector.shape_cast %732 : vector<1x64x32xf32> to vector<64x32xf32>
    %cst_291 = arith.constant dense<0.000000e+00> : vector<32x32xf32>
    %734 = tpu.matmul %731, %733, %cst_291 {dimension_numbers = #tpu.dot_dimension_numbers<[1], [0], [0], [1], [0, 0, 1, 1], [], []>} : vector<32x64xf32>, vector<64x32xf32>, vector<32x32xf32> -> vector<32x32xf32>
    %c3_292 = arith.constant 3 : index
    %c0_293 = arith.constant 0 : index
    %735 = vector.load %arg11[%c3_292, %c0_293] : memref<8x128xf32, #tpu.memory_space<vmem>>, vector<1x128xf32>
    %736 = vector.extract_strided_slice %735 {offsets = [0, 0], sizes = [1, 32], strides = [1, 1]} : vector<1x128xf32> to vector<1x32xf32>
    %737 = vector.broadcast %736 : vector<1x32xf32> to vector<32x32xf32>
    %738 = arith.addf %734, %737 : vector<32x32xf32>
    %739 = arith.addf %657, %738 : vector<32x32xf32>
    %c20 = arith.constant 20 : index
    %c0_294 = arith.constant 0 : index
    %740 = vector.load %arg4[%c20, %c0_294] : memref<24x32xf32, #tpu.memory_space<vmem>>, vector<1x32xf32>
    %c21 = arith.constant 21 : index
    %c0_295 = arith.constant 0 : index
    %741 = vector.load %arg4[%c21, %c0_295] : memref<24x32xf32, #tpu.memory_space<vmem>>, vector<1x32xf32>
    %cst_296 = arith.constant dense<0.000000e+00> : vector<32xf32>
    %742 = vector.multi_reduction <add>, %739, %cst_296 [1] : vector<32x32xf32> to vector<32xf32>
    %743 = vector.shape_cast %742 : vector<32xf32> to vector<32x1xf32>
    %cst_297 = arith.constant 3.200000e+01 : f32
    %744 = vector.broadcast %cst_297 : f32 to vector<32x1xf32>
    %745 = arith.divf %743, %744 : vector<32x1xf32>
    %746 = vector.broadcast %745 : vector<32x1xf32> to vector<32x32xf32>
    %747 = arith.subf %739, %746 : vector<32x32xf32>
    %748 = arith.mulf %747, %747 : vector<32x32xf32>
    %cst_298 = arith.constant dense<0.000000e+00> : vector<32xf32>
    %749 = vector.multi_reduction <add>, %748, %cst_298 [1] : vector<32x32xf32> to vector<32xf32>
    %750 = vector.shape_cast %749 : vector<32xf32> to vector<32x1xf32>
    %cst_299 = arith.constant 3.200000e+01 : f32
    %751 = vector.broadcast %cst_299 : f32 to vector<32x1xf32>
    %752 = arith.divf %750, %751 : vector<32x1xf32>
    %753 = vector.broadcast %745 : vector<32x1xf32> to vector<32x32xf32>
    %754 = arith.subf %739, %753 : vector<32x32xf32>
    %cst_300 = arith.constant 9.99999974E-6 : f32
    %755 = vector.broadcast %cst_300 : f32 to vector<32x1xf32>
    %756 = arith.addf %752, %755 : vector<32x1xf32>
    %757 = math.rsqrt %756 : vector<32x1xf32>
    %758 = vector.broadcast %757 : vector<32x1xf32> to vector<32x32xf32>
    %759 = arith.mulf %754, %758 : vector<32x32xf32>
    %760 = vector.broadcast %740 : vector<1x32xf32> to vector<32x32xf32>
    %761 = arith.mulf %759, %760 : vector<32x32xf32>
    %762 = vector.broadcast %741 : vector<1x32xf32> to vector<32x32xf32>
    %763 = arith.addf %761, %762 : vector<32x32xf32>
    %c0_301 = arith.constant 0 : index
    %c0_302 = arith.constant 0 : index
    %764 = vector.load %arg12[%c0_301, %c0_302] : memref<32x128xf32, #tpu.memory_space<vmem>>, vector<32x128xf32>
    %cst_303 = arith.constant dense<0.000000e+00> : vector<32x128xf32>
    %765 = tpu.matmul %763, %764, %cst_303 {dimension_numbers = #tpu.dot_dimension_numbers<[1], [0], [0], [1], [0, 0, 1, 1], [], []>} : vector<32x32xf32>, vector<32x128xf32>, vector<32x128xf32> -> vector<32x128xf32>
    %c4_304 = arith.constant 4 : index
    %c0_305 = arith.constant 0 : index
    %766 = vector.load %arg11[%c4_304, %c0_305] : memref<8x128xf32, #tpu.memory_space<vmem>>, vector<1x128xf32>
    %767 = vector.broadcast %766 : vector<1x128xf32> to vector<32x128xf32>
    %768 = arith.addf %765, %767 : vector<32x128xf32>
    %769 = tpu.iota {dimensions = array<i32: 1>} : vector<32x128xi32>
    %c32_i32 = arith.constant 32 : i32
    %770 = vector.broadcast %c32_i32 : i32 to vector<32x128xi32>
    %771 = arith.cmpi slt, %769, %770 : vector<32x128xi32>
    %cst_306 = arith.constant -1.000000e+09 : f32
    %772 = vector.broadcast %cst_306 : f32 to vector<32x128xf32>
    %773 = arith.select %771, %768, %772 : vector<32x128xi1>, vector<32x128xf32>
    %cst_307 = arith.constant dense<0xFF800000> : vector<32xf32>
    %774 = vector.multi_reduction <maximumf>, %773, %cst_307 [1] : vector<32x128xf32> to vector<32xf32>
    %775 = vector.shape_cast %774 : vector<32xf32> to vector<32x1xf32>
    %776 = vector.broadcast %775 : vector<32x1xf32> to vector<32x128xf32>
    %777 = arith.subf %773, %776 : vector<32x128xf32>
    %778 = math.exp %777 : vector<32x128xf32>
    %cst_308 = arith.constant dense<0.000000e+00> : vector<32xf32>
    %779 = vector.multi_reduction <add>, %778, %cst_308 [1] : vector<32x128xf32> to vector<32xf32>
    %780 = vector.shape_cast %779 : vector<32xf32> to vector<32x1xf32>
    %781 = math.log %780 : vector<32x1xf32>
    %782 = arith.addf %775, %781 : vector<32x1xf32>
    %783 = vector.extract_strided_slice %32 {offsets = [0, 7], sizes = [32, 1], strides = [1, 1]} : vector<32x8xf32> to vector<32x1xf32>
    %784 = arith.fptosi %783 : vector<32x1xf32> to vector<32x1xi32>
    %785 = vector.broadcast %784 : vector<32x1xi32> to vector<32x128xi32>
    %786 = arith.cmpi eq, %769, %785 : vector<32x128xi32>
    %cst_309 = arith.constant 0.000000e+00 : f32
    %787 = vector.broadcast %cst_309 : f32 to vector<32x128xf32>
    %788 = arith.select %786, %773, %787 : vector<32x128xi1>, vector<32x128xf32>
    %cst_310 = arith.constant dense<0.000000e+00> : vector<32xf32>
    %789 = vector.multi_reduction <add>, %788, %cst_310 [1] : vector<32x128xf32> to vector<32xf32>
    %790 = vector.shape_cast %789 : vector<32xf32> to vector<32x1xf32>
    %c-1_i32 = arith.constant -1 : i32
    %791 = vector.broadcast %c-1_i32 : i32 to vector<32x1xi32>
    %792 = arith.cmpi ne, %784, %791 : vector<32x1xi32>
    %793 = arith.subf %782, %790 : vector<32x1xf32>
    %cst_311 = arith.constant 0.000000e+00 : f32
    %794 = vector.broadcast %cst_311 : f32 to vector<32x1xf32>
    %795 = arith.select %792, %793, %794 : vector<32x1xi1>, vector<32x1xf32>
    %c127_i32 = arith.constant 127 : i32
    %796 = vector.broadcast %c127_i32 : i32 to vector<32x128xi32>
    %797 = arith.cmpi eq, %769, %796 : vector<32x128xi32>
    %798 = vector.shape_cast %795 : vector<32x1xf32> to vector<32x1xf32>
    %799 = vector.broadcast %798 : vector<32x1xf32> to vector<32x128xf32>
    %800 = arith.select %797, %799, %768 : vector<32x128xi1>, vector<32x128xf32>
    %c0_312 = arith.constant 0 : index
    %c0_313 = arith.constant 0 : index
    %c0_314 = arith.constant 0 : index
    %801 = vector.load %arg13[%c0_312, %c0_313, %c0_314] : memref<1x32x128xf32, #tpu.memory_space<vmem>>, vector<1x32x128xf32>
    %802 = vector.shape_cast %801 : vector<1x32x128xf32> to vector<32x128xf32>
    %803 = vector.shape_cast %800 : vector<32x128xf32> to vector<1x32x128xf32>
    tpu.vector_store %arg13[%c0_312, %c0_313, %c0_314], %803 {strides = array<i32>} : memref<1x32x128xf32, #tpu.memory_space<vmem>>, vector<1x32x128xf32>,
    return
  }
  func.func @transform_0(%arg0: i32) -> (i32, i32, i32) {
    %c0_i32 = arith.constant 0 : i32
    %c0_i32_0 = arith.constant 0 : i32
    %c0_i32_1 = arith.constant 0 : i32
    return %arg0, %c0_i32, %c0_i32_0 : i32, i32, i32
  }
  func.func @transform_1(%arg0: i32) -> (i32, i32, i32) {
    %c0_i32 = arith.constant 0 : i32
    %c0_i32_0 = arith.constant 0 : i32
    %c0_i32_1 = arith.constant 0 : i32
    return %arg0, %c0_i32, %c0_i32_0 : i32, i32, i32
  }
  func.func @transform_2(%arg0: i32) -> (i32, i32, i32) {
    %c0_i32 = arith.constant 0 : i32
    %c0_i32_0 = arith.constant 0 : i32
    %c0_i32_1 = arith.constant 0 : i32
    return %arg0, %c0_i32, %c0_i32_0 : i32, i32, i32
  }
  func.func @transform_3(%arg0: i32) -> (i32, i32) {
    %c0_i32 = arith.constant 0 : i32
    %c0_i32_0 = arith.constant 0 : i32
    %c0_i32_1 = arith.constant 0 : i32
    return %c0_i32, %c0_i32_0 : i32, i32
  }
  func.func @transform_4(%arg0: i32) -> (i32, i32, i32) {
    %c0_i32 = arith.constant 0 : i32
    %c0_i32_0 = arith.constant 0 : i32
    %c0_i32_1 = arith.constant 0 : i32
    %c0_i32_2 = arith.constant 0 : i32
    return %c0_i32, %c0_i32_0, %c0_i32_1 : i32, i32, i32
  }
  func.func @transform_5(%arg0: i32) -> (i32, i32, i32) {
    %c0_i32 = arith.constant 0 : i32
    %c0_i32_0 = arith.constant 0 : i32
    %c0_i32_1 = arith.constant 0 : i32
    %c0_i32_2 = arith.constant 0 : i32
    return %c0_i32, %c0_i32_0, %c0_i32_1 : i32, i32, i32
  }
  func.func @transform_6(%arg0: i32) -> (i32, i32, i32) {
    %c0_i32 = arith.constant 0 : i32
    %c0_i32_0 = arith.constant 0 : i32
    %c0_i32_1 = arith.constant 0 : i32
    %c0_i32_2 = arith.constant 0 : i32
    return %c0_i32, %c0_i32_0, %c0_i32_1 : i32, i32, i32
  }
  func.func @transform_7(%arg0: i32) -> (i32, i32, i32) {
    %c0_i32 = arith.constant 0 : i32
    %c0_i32_0 = arith.constant 0 : i32
    %c0_i32_1 = arith.constant 0 : i32
    %c0_i32_2 = arith.constant 0 : i32
    return %c0_i32, %c0_i32_0, %c0_i32_1 : i32, i32, i32
  }
  func.func @transform_8(%arg0: i32) -> (i32, i32, i32) {
    %c0_i32 = arith.constant 0 : i32
    %c0_i32_0 = arith.constant 0 : i32
    %c0_i32_1 = arith.constant 0 : i32
    %c0_i32_2 = arith.constant 0 : i32
    return %c0_i32, %c0_i32_0, %c0_i32_1 : i32, i32, i32
  }
  func.func @transform_9(%arg0: i32) -> (i32, i32, i32) {
    %c0_i32 = arith.constant 0 : i32
    %c0_i32_0 = arith.constant 0 : i32
    %c0_i32_1 = arith.constant 0 : i32
    %c0_i32_2 = arith.constant 0 : i32
    return %c0_i32, %c0_i32_0, %c0_i32_1 : i32, i32, i32
  }
  func.func @transform_10(%arg0: i32) -> (i32, i32) {
    %c0_i32 = arith.constant 0 : i32
    %c0_i32_0 = arith.constant 0 : i32
    %c0_i32_1 = arith.constant 0 : i32
    return %c0_i32, %c0_i32_0 : i32, i32
  }
  func.func @transform_11(%arg0: i32) -> (i32, i32) {
    %c0_i32 = arith.constant 0 : i32
    %c0_i32_0 = arith.constant 0 : i32
    %c0_i32_1 = arith.constant 0 : i32
    return %c0_i32, %c0_i32_0 : i32, i32
  }
  func.func @transform_12(%arg0: i32) -> (i32, i32, i32) {
    %c0_i32 = arith.constant 0 : i32
    %c0_i32_0 = arith.constant 0 : i32
    %c0_i32_1 = arith.constant 0 : i32
    return %arg0, %c0_i32, %c0_i32_0 : i32, i32, i32
  }
}

</mosaic_0001>

<llo_original>
// kernel: forward_on_codes.1
$region0: #{forward_on_codes.1}
  #allocation0 [shape = 'u32[]', space=smem, size = 0x4, offset = 0x4, fixed_abs, tag = 'smem constant byte address 0x4 - core index']
  #allocation1 [shape = 'u32[72,128]{1,0:T(1,128)}', space=vmem, size = 0x9000, scoped, tag = 'internal scratch']
  %s0 = inlined_call_operand.vmem [shape: f32[1,32,32], index: 0, kind: input, shape index: {}]
  %s1 = inlined_call_operand.vmem [shape: f32[1,32,8], index: 1, kind: input, shape index: {}]
  %s2 = inlined_call_operand.vmem [shape: f32[1,16,48], index: 2, kind: input, shape index: {}]
  %s3 = inlined_call_operand.vmem [shape: f32[24,32], index: 3, kind: input, shape index: {}]
  %s4 = inlined_call_operand.vmem [shape: f32[4,32,128], index: 4, kind: input, shape index: {}]
  %s5 = inlined_call_operand.vmem [shape: f32[2,48,64], index: 5, kind: input, shape index: {}]
  %s6 = inlined_call_operand.vmem [shape: f32[4,32,32], index: 6, kind: input, shape index: {}]
  %s7 = inlined_call_operand.vmem [shape: f32[8,16,4], index: 7, kind: input, shape index: {}]
  %s8 = inlined_call_operand.vmem [shape: f32[8,4,16], index: 8, kind: input, shape index: {}]
  %s9 = inlined_call_operand.vmem [shape: f32[2,64,32], index: 9, kind: input, shape index: {}]
  %s10 = inlined_call_operand.vmem [shape: f32[8,128], index: 10, kind: input, shape index: {}]
  %s11 = inlined_call_operand.vmem [shape: f32[32,128], index: 11, kind: input, shape index: {}]
  %s12 = inlined_call_operand.vmem [shape: f32[1,32,128], index: 12, kind: output, shape index: {}]
  %s13 = sld [smem:[#allocation0]]
  $region58: #{forward_on_codes.1} parent=0
    _
  %s15 = ssub.s32 1, %s13
  %s16 = scalar_select 0, %s15, %s13
  // Predicated region
  $region2: #{forward_on_codes.1} parent=0 // pred_check
    _
  $region3: #{forward_on_codes.1} parent=0 // pred_check_branch
    %18 = sbr.rel (0) target = $region5
  $region4: #{forward_on_codes.1} parent=0 // pred_region
    _
  $region5: #{forward_on_codes.1} parent=0 // pred_fallthru
    _
  // Predicated region
  $region6: #{forward_on_codes.1} parent=0 // pred_check
    _
  $region7: #{forward_on_codes.1} parent=0 // pred_check_branch
    %20 = sbr.rel (0) target = $region9
  $region8: #{forward_on_codes.1} parent=0 // pred_region
    _
  $region9: #{forward_on_codes.1} parent=0 // pred_fallthru
    _
  // Predicated region
  $region10: #{forward_on_codes.1} parent=0 // pred_check
    _
  $region11: #{forward_on_codes.1} parent=0 // pred_check_branch
    %22 = sbr.rel (0) target = $region13
  $region12: #{forward_on_codes.1} parent=0 // pred_region
    _
  $region13: #{forward_on_codes.1} parent=0 // pred_fallthru
    _
  // Predicated region
  $region14: #{forward_on_codes.1} parent=0 // pred_check
    _
  $region15: #{forward_on_codes.1} parent=0 // pred_check_branch
    %24 = sbr.rel (0) target = $region17
  $region16: #{forward_on_codes.1} parent=0 // pred_region
    _
  $region17: #{forward_on_codes.1} parent=0 // pred_fallthru
    _
  // Predicated region
  $region18: #{forward_on_codes.1} parent=0 // pred_check
    _
  $region19: #{forward_on_codes.1} parent=0 // pred_check_branch
    %26 = sbr.rel (0) target = $region21
  $region20: #{forward_on_codes.1} parent=0 // pred_region
    _
  $region21: #{forward_on_codes.1} parent=0 // pred_fallthru
    _
  // Predicated region
  $region22: #{forward_on_codes.1} parent=0 // pred_check
    _
  $region23: #{forward_on_codes.1} parent=0 // pred_check_branch
    %28 = sbr.rel (0) target = $region25
  $region24: #{forward_on_codes.1} parent=0 // pred_region
    _
  $region25: #{forward_on_codes.1} parent=0 // pred_fallthru
    _
  // Predicated region
  $region26: #{forward_on_codes.1} parent=0 // pred_check
    _
  $region27: #{forward_on_codes.1} parent=0 // pred_check_branch
    %30 = sbr.rel (0) target = $region29
  $region28: #{forward_on_codes.1} parent=0 // pred_region
    _
  $region29: #{forward_on_codes.1} parent=0 // pred_fallthru
    _
  // Predicated region
  $region30: #{forward_on_codes.1} parent=0 // pred_check
    _
  $region31: #{forward_on_codes.1} parent=0 // pred_check_branch
    %32 = sbr.rel (0) target = $region33
  $region32: #{forward_on_codes.1} parent=0 // pred_region
    _
  $region33: #{forward_on_codes.1} parent=0 // pred_fallthru
    _
  // Predicated region
  $region34: #{forward_on_codes.1} parent=0 // pred_check
    _
  $region35: #{forward_on_codes.1} parent=0 // pred_check_branch
    %34 = sbr.rel (0) target = $region37
  $region36: #{forward_on_codes.1} parent=0 // pred_region
    _
  $region37: #{forward_on_codes.1} parent=0 // pred_fallthru
    _
  // Predicated region
  $region38: #{forward_on_codes.1} parent=0 // pred_check
    _
  $region39: #{forward_on_codes.1} parent=0 // pred_check_branch
    %36 = sbr.rel (0) target = $region41
  $region40: #{forward_on_codes.1} parent=0 // pred_region
    _
  $region41: #{forward_on_codes.1} parent=0 // pred_fallthru
    _
  // Predicated region
  $region42: #{forward_on_codes.1} parent=0 // pred_check
    _
  $region43: #{forward_on_codes.1} parent=0 // pred_check_branch
    %38 = sbr.rel (0) target = $region45
  $region44: #{forward_on_codes.1} parent=0 // pred_region
    _
  $region45: #{forward_on_codes.1} parent=0 // pred_fallthru
    _
  // Predicated region
  $region46: #{forward_on_codes.1} parent=0 // pred_check
    _
  $region47: #{forward_on_codes.1} parent=0 // pred_check_branch
    %40 = sbr.rel (0) target = $region49
  $region48: #{forward_on_codes.1} parent=0 // pred_region
    _
  $region49: #{forward_on_codes.1} parent=0 // pred_fallthru
    _
  %v41 = vlaneseq
  %v42 = vshrl.u32 %v41, 7
  %v43 = vadd.s32 %v42, 8
  %v44 = vadd.s32 %v42, 16
  %v45 = vadd.s32 %v42, 24
  %v46 = vlaneseq
  %v47 = vand.u32 %v46, 127
  %v48 = vshra.s32 %v42, 4
  %v49 = vshra.s32 %v43, 4
  %v50 = vshra.s32 %v44, 4
  %v51 = vshra.s32 %v45, 4
  %v52 = vshra.s32 %v47, 4
  %vm53 = vcmp.eq.s32.totalorder %v48, %v52
  %vm54 = vcmp.eq.s32.totalorder %v49, %v52
  %vm55 = vcmp.eq.s32.totalorder %v50, %v52
  %vm56 = vcmp.eq.s32.totalorder %v51, %v52
  %v57 = vand.u32 %v47, 15
  %v58 = vand.u32 %v42, 15
  %v59 = vand.u32 %v43, 15
  %v60 = vand.u32 %v44, 15
  %v61 = vand.u32 %v45, 15
  %vm62 = vcmp.le.s32.totalorder %v57, %v58
  %vm63 = vcmp.le.s32.totalorder %v57, %v59
  %vm64 = vcmp.le.s32.totalorder %v57, %v60
  %vm65 = vcmp.le.s32.totalorder %v57, %v61
  %vm66 = vmand %vm53, %vm62
  %vm67 = vmand %vm54, %vm63
  %vm68 = vmand %vm55, %vm64
  %vm69 = vmand %vm56, %vm65
  %v70 = vsel %vm66, 0.0, -1e+09
  %v71 = vsel %vm67, 0.0, -1e+09
  %v72 = vsel %vm68, 0.0, -1e+09
  %v73 = vsel %vm69, 0.0, -1e+09
  %v74 = vshra.s32 %v47, 3
  %vm75 = vcmp.eq.s32.totalorder %v48, %v74
  %vm76 = vcmp.eq.s32.totalorder %v49, %v74
  %vm77 = vcmp.eq.s32.totalorder %v50, %v74
  %vm78 = vcmp.eq.s32.totalorder %v51, %v74
  %v79 = vand.u32 %v47, 7
  %vm80 = vcmp.lt.s32.totalorder %v79, 6
  %vm81 = vmand %vm75, %vm80
  %vm82 = vmand %vm76, %vm80
  %vm83 = vmand %vm77, %vm80
  %vm84 = vmand %vm78, %vm80
  %v85 = vsel %vm81, 0.0, -1e+09
  %v86 = vsel %vm82, 0.0, -1e+09
  %v87 = vsel %vm83, 0.0, -1e+09
  %v88 = vsel %vm84, 0.0, -1e+09
  %v89 = vld [vmem:[%s1] sm:$0xff]
  %v90 = vld [vmem:[%s1 + $0x8] sm:$0xff]
  %v91 = vld [vmem:[%s1 + $0x10] sm:$0xff]
  %v92 = vld [vmem:[%s1 + $0x18] sm:$0xff]
  %v93 = vld [vmem:[%s0] sm:$0xff]
  %v94 = vld [vmem:[%s0 + $0x8] sm:$0xff]
  %v95 = vld [vmem:[%s0 + $0x10] sm:$0xff]
  %v96 = vld [vmem:[%s0 + $0x18] sm:$0xff]
  %v97 = vld [vmem:[%s3] sm:$0xff]
  %vm98 = vcmask 64512
  %v100 = vsel %vm98, %v89, 0
  %v103 = vsel %vm98, %v90, 0
  %v106 = vsel %vm98, %v91, 0
  %v109 = vsel %vm98, %v92, 0
  %111 = vmatpush.msra.mxu0 0.0
  %112 = vmatpush.msra.mxu0 0.0
  %113 = vmatpush.msra.mxu0 0.0
  %114 = vmatpush.msra.mxu0 0.0
  %115 = vmatpush.msra.mxu0 0.0
  %116 = vmatpush.msra.mxu0 0.0
  %117 = vmatpush.msra.mxu0 0.0
  %118 = vmatpush.msra.mxu0 0.0
  %119 = vmatpush.msra.mxu0 0.0
  %120 = vmatpush.msra.mxu0 0.0
  %121 = vmatpush.msra.mxu0 0.0
  %122 = vmatpush.msra.mxu0 0.0
  %123 = vmatpush.msra.mxu0 0.0
  %124 = vmatpush.msra.mxu0 0.0
  %125 = vmatpush.msra.mxu0 0.0
  %126 = vmatpush.msra.mxu0 %v97
  %127 = vmatmul.f32.gmra.mxu0 %v100
  %v128 = vpop.f32.mrf.mxu0
  %v129 = vadd.f32 0.0, %v128
  %130 = vmatmul.f32.gmra.mxu0 %v103
  %v131 = vpop.f32.mrf.mxu0
  %v132 = vadd.f32 0.0, %v131
  %133 = vmatmul.f32.gmra.mxu0 %v106
  %v134 = vpop.f32.mrf.mxu0
  %v135 = vadd.f32 0.0, %v134
  %136 = vmatmul.f32.gmra.mxu0 %v109
  %v137 = vpop.f32.mrf.mxu0
  %v138 = vadd.f32 0.0, %v137
  %139 = vdwg.mxu0
  %v140 = vadd.f32 %v93, %v129
  %v141 = vadd.f32 %v94, %v132
  %v142 = vadd.f32 %v95, %v135
  %v143 = vadd.f32 %v96, %v138
  %v144 = vld [vmem:[%s2] sm:$0xff]
  %v145 = vld [vmem:[%s2 + $0x8] sm:$0xff]
  %v146 = vld [vmem:[%s4] sm:$0xff]
  %v147 = vld [vmem:[%s4 + $0x8] sm:$0xff]
  %v148 = vld [vmem:[%s4 + $0x10] sm:$0xff]
  %v149 = vld [vmem:[%s4 + $0x18] sm:$0xff]
  %v150 = vld [vmem:[%s3 + $0x8] sm:$0x1]
  %v151 = vld [vmem:[%s3 + $0x9] sm:$0x1]
  %vm152 = vcmask 261120
  %v153 = vsel %vm152, %v140, 0.0
  %154 = vadd.xlane.f32.xlu0 %v153
  %v155 = vpop.xlane.xlu0 %154
  %v156 = vsel %vm152, %v141, 0.0
  %157 = vadd.xlane.f32.xlu0 %v156
  %v158 = vpop.xlane.xlu0 %157
  %v159 = vsel %vm152, %v142, 0.0
  %160 = vadd.xlane.f32.xlu0 %v159
  %v161 = vpop.xlane.xlu0 %160
  %v162 = vsel %vm152, %v143, 0.0
  %163 = vadd.xlane.f32.xlu0 %v162
  %v164 = vpop.xlane.xlu0 %163
  %v165 = vrcp.pop 32.0
  %v166 = vmul.f32 32.0, %v165
  %v167 = vsub.f32 1.0, %v166
  %v168 = vmul.f32 %v165, %v167
  %v169 = vadd.f32 %v165, %v168
  %vm170 = vweird.f32 %v165
  %v171 = vsel %vm170, %v165, %v169
  %v172 = vmul.f32 %v155, %v171
  %v173 = vmul.f32 %v158, %v171
  %v174 = vmul.f32 %v161, %v171
  %v175 = vmul.f32 %v164, %v171
  %v176 = vsub.f32 %v140, %v172
  %v177 = vsub.f32 %v141, %v173
  %v178 = vsub.f32 %v142, %v174
  %v179 = vsub.f32 %v143, %v175
  %v180 = vmul.f32 %v176, %v176
  %v181 = vmul.f32 %v177, %v177
  %v182 = vmul.f32 %v178, %v178
  %v183 = vmul.f32 %v179, %v179
  %v184 = vsel %vm152, %v180, 0.0
  %185 = vadd.xlane.f32.xlu0 %v184
  %v186 = vpop.xlane.xlu0 %185
  %v187 = vsel %vm152, %v181, 0.0
  %188 = vadd.xlane.f32.xlu0 %v187
  %v189 = vpop.xlane.xlu0 %188
  %v190 = vsel %vm152, %v182, 0.0
  %191 = vadd.xlane.f32.xlu0 %v190
  %v192 = vpop.xlane.xlu0 %191
  %v193 = vsel %vm152, %v183, 0.0
  %194 = vadd.xlane.f32.xlu0 %v193
  %v195 = vpop.xlane.xlu0 %194
  %v196 = vmul.f32 %v186, %v171
  %v197 = vmul.f32 %v189, %v171
  %v198 = vmul.f32 %v192, %v171
  %v199 = vmul.f32 %v195, %v171
  %v200 = vadd.f32 %v196, 1e-05
  %v201 = vadd.f32 %v197, 1e-05
  %v202 = vadd.f32 %v198, 1e-05
  %v203 = vadd.f32 %v199, 1e-05
  %v204 = vrsqrt.pop %v200
  %v205 = vmul.f32 %v204, %v200
  %v206 = vmul.f32 %v205, %v204
  %v207 = vmul.f32 0.5, %v206
  %v208 = vsub.f32 1.5, %v207
  %v209 = vmul.f32 %v204, %v208
  %vm210 = vweird.f32 %v200
  %vm211 = vweird.f32 %v204
  %vm212 = vmor %vm210, %vm211
  %v213 = vsel %vm212, %v204, %v209
  %v214 = vrsqrt.pop %v201
  %v215 = vmul.f32 %v214, %v201
  %v216 = vmul.f32 %v215, %v214
  %v217 = vmul.f32 0.5, %v216
  %v218 = vsub.f32 1.5, %v217
  %v219 = vmul.f32 %v214, %v218
  %vm220 = vweird.f32 %v201
  %vm221 = vweird.f32 %v214
  %vm222 = vmor %vm220, %vm221
  %v223 = vsel %vm222, %v214, %v219
  %v224 = vrsqrt.pop %v202
  %v225 = vmul.f32 %v224, %v202
  %v226 = vmul.f32 %v225, %v224
  %v227 = vmul.f32 0.5, %v226
  %v228 = vsub.f32 1.5, %v227
  %v229 = vmul.f32 %v224, %v228
  %vm230 = vweird.f32 %v202
  %vm231 = vweird.f32 %v224
  %vm232 = vmor %vm230, %vm231
  %v233 = vsel %vm232, %v224, %v229
  %v234 = vrsqrt.pop %v203
  %v235 = vmul.f32 %v234, %v203
  %v236 = vmul.f32 %v235, %v234
  %v237 = vmul.f32 0.5, %v236
  %v238 = vsub.f32 1.5, %v237
  %v239 = vmul.f32 %v234, %v238
  %vm240 = vweird.f32 %v203
  %vm241 = vweird.f32 %v234
  %vm242 = vmor %vm240, %vm241
  %v243 = vsel %vm242, %v234, %v239
  %v244 = vmul.f32 %v176, %v213
  %v245 = vmul.f32 %v177, %v223
  %v246 = vmul.f32 %v178, %v233
  %v247 = vmul.f32 %v179, %v243
  %v248 = vperm.slane %v150, 0
  %v249 = vmul.f32 %v244, %v248
  %v250 = vmul.f32 %v245, %v248
  %v251 = vmul.f32 %v246, %v248
  %v252 = vmul.f32 %v247, %v248
  %v253 = vperm.slane %v151, 0
  %v254 = vadd.f32 %v249, %v253
  %v255 = vadd.f32 %v250, %v253
  %v256 = vadd.f32 %v251, %v253
  %v257 = vadd.f32 %v252, %v253
  %v259 = vsel %vm152, %v254, 0
  %v262 = vsel %vm152, %v255, 0
  %v265 = vsel %vm152, %v256, 0
  %v268 = vsel %vm152, %v257, 0
  %270 = vmatpush.msra.mxu0 0.0
  %271 = vmatpush.msra.mxu0 0.0
  %272 = vmatpush.msra.mxu0 0.0
  %273 = vmatpush.msra.mxu0 0.0
  %274 = vmatpush.msra.mxu0 0.0
  %275 = vmatpush.msra.mxu0 0.0
  %276 = vmatpush.msra.mxu0 0.0
  %277 = vmatpush.msra.mxu0 0.0
  %278 = vmatpush.msra.mxu0 0.0
  %279 = vmatpush.msra.mxu0 0.0
  %280 = vmatpush.msra.mxu0 0.0
  %281 = vmatpush.msra.mxu0 0.0
  %282 = vmatpush.msra.mxu0 %v149
  %283 = vmatpush.msra.mxu0 %v148
  %284 = vmatpush.msra.mxu0 %v147
  %285 = vmatpush.msra.mxu0 %v146
  %286 = vmatmul.f32.gmra.mxu0 %v259
  %v287 = vpop.f32.mrf.mxu0
  %v288 = vadd.f32 0.0, %v287
  %289 = vmatmul.f32.gmra.mxu0 %v262
  %v290 = vpop.f32.mrf.mxu0
  %v291 = vadd.f32 0.0, %v290
  %292 = vmatmul.f32.gmra.mxu0 %v265
  %v293 = vpop.f32.mrf.mxu0
  %v294 = vadd.f32 0.0, %v293
  %295 = vmatmul.f32.gmra.mxu0 %v268
  %v296 = vpop.f32.mrf.mxu0
  %v297 = vadd.f32 0.0, %v296
  %298 = vdwg.mxu0
  %v299 = vld [vmem:[%s6] sm:$0xff]
  %v300 = vld [vmem:[%s6 + $0x8] sm:$0xff]
  %v301 = vld [vmem:[%s6 + $0x10] sm:$0xff]
  %v302 = vld [vmem:[%s6 + $0x18] sm:$0xff]
  %v303 = vmul.f32 %v288, %v288
  %v304 = vmul.f32 %v291, %v291
  %v305 = vmul.f32 %v294, %v294
  %v306 = vmul.f32 %v297, %v297
  %vm307 = vcmask 130048
  %v308 = vsel %vm307, %v303, 0.0
  %309 = vadd.xlane.f32.xlu0 %v308
  %v310 = vpop.xlane.xlu0 %309
  %v311 = vsel %vm307, %v304, 0.0
  %312 = vadd.xlane.f32.xlu0 %v311
  %v313 = vpop.xlane.xlu0 %312
  %v314 = vsel %vm307, %v305, 0.0
  %315 = vadd.xlane.f32.xlu0 %v314
  %v316 = vpop.xlane.xlu0 %315
  %v317 = vsel %vm307, %v306, 0.0
  %318 = vadd.xlane.f32.xlu0 %v317
  %v319 = vpop.xlane.xlu0 %318
  %v320 = vadd.f32 %v310, 1e-08
  %v321 = vadd.f32 %v313, 1e-08
  %v322 = vadd.f32 %v316, 1e-08
  %v323 = vadd.f32 %v319, 1e-08
  %v324 = vrsqrt.pop %v320
  %v325 = vmul.f32 %v324, %v320
  %v326 = vmul.f32 %v325, %v324
  %v327 = vmul.f32 0.5, %v326
  %v328 = vsub.f32 1.5, %v327
  %v329 = vmul.f32 %v324, %v328
  %vm330 = vweird.f32 %v320
  %vm331 = vweird.f32 %v324
  %vm332 = vmor %vm330, %vm331
  %v333 = vsel %vm332, %v324, %v329
  %v334 = vrsqrt.pop %v321
  %v335 = vmul.f32 %v334, %v321
  %v336 = vmul.f32 %v335, %v334
  %v337 = vmul.f32 0.5, %v336
  %v338 = vsub.f32 1.5, %v337
  %v339 = vmul.f32 %v334, %v338
  %vm340 = vweird.f32 %v321
  %vm341 = vweird.f32 %v334
  %vm342 = vmor %vm340, %vm341
  %v343 = vsel %vm342, %v334, %v339
  %v344 = vrsqrt.pop %v322
  %v345 = vmul.f32 %v344, %v322
  %v346 = vmul.f32 %v345, %v344
  %v347 = vmul.f32 0.5, %v346
  %v348 = vsub.f32 1.5, %v347
  %v349 = vmul.f32 %v344, %v348
  %vm350 = vweird.f32 %v322
  %vm351 = vweird.f32 %v344
  %vm352 = vmor %vm350, %vm351
  %v353 = vsel %vm352, %v344, %v349
  %v354 = vrsqrt.pop %v323
  %v355 = vmul.f32 %v354, %v323
  %v356 = vmul.f32 %v355, %v354
  %v357 = vmul.f32 0.5, %v356
  %v358 = vsub.f32 1.5, %v357
  %v359 = vmul.f32 %v354, %v358
  %vm360 = vweird.f32 %v323
  %vm361 = vweird.f32 %v354
  %vm362 = vmor %vm360, %vm361
  %v363 = vsel %vm362, %v354, %v359
  %v364 = vmul.f32 %v288, %v333
  %v365 = vmul.f32 %v291, %v343
  %v366 = vmul.f32 %v294, %v353
  %v367 = vmul.f32 %v297, %v363
  %v368 = vmul.f32 %v364, 10.0
  %v369 = vmul.f32 %v365, 10.0
  %v370 = vmul.f32 %v366, 10.0
  %v371 = vmul.f32 %v367, 10.0
  %376 = vrot.lane.b32.xlu0 %v303, 96
  %v377 = vpop.permute.xlu0 %376
  %378 = vrot.lane.b32.xlu0 %v304, 96
  %v379 = vpop.permute.xlu0 %378
  %380 = vrot.lane.b32.xlu0 %v305, 96
  %v381 = vpop.permute.xlu0 %380
  %382 = vrot.lane.b32.xlu0 %v306, 96
  %v383 = vpop.permute.xlu0 %382
  %v388 = vsel %vm307, %v377, 0.0
  %389 = vadd.xlane.f32.xlu0 %v388
  %v390 = vpop.xlane.xlu0 %389
  %v391 = vsel %vm307, %v379, 0.0
  %392 = vadd.xlane.f32.xlu0 %v391
  %v393 = vpop.xlane.xlu0 %392
  %v394 = vsel %vm307, %v381, 0.0
  %395 = vadd.xlane.f32.xlu0 %v394
  %v396 = vpop.xlane.xlu0 %395
  %v397 = vsel %vm307, %v383, 0.0
  %398 = vadd.xlane.f32.xlu0 %v397
  %v399 = vpop.xlane.xlu0 %398
  %v400 = vadd.f32 %v390, 1e-08
  %v401 = vadd.f32 %v393, 1e-08
  %v402 = vadd.f32 %v396, 1e-08
  %v403 = vadd.f32 %v399, 1e-08
  %v404 = vrsqrt.pop %v400
  %v405 = vmul.f32 %v404, %v400
  %v406 = vmul.f32 %v405, %v404
  %v407 = vmul.f32 0.5, %v406
  %v408 = vsub.f32 1.5, %v407
  %v409 = vmul.f32 %v404, %v408
  %vm410 = vweird.f32 %v400
  %vm411 = vweird.f32 %v404
  %vm412 = vmor %vm410, %vm411
  %v413 = vsel %vm412, %v404, %v409
  %v414 = vrsqrt.pop %v401
  %v415 = vmul.f32 %v414, %v401
  %v416 = vmul.f32 %v415, %v414
  %v417 = vmul.f32 0.5, %v416
  %v418 = vsub.f32 1.5, %v417
  %v419 = vmul.f32 %v414, %v418
  %vm420 = vweird.f32 %v401
  %vm421 = vweird.f32 %v414
  %vm422 = vmor %vm420, %vm421
  %v423 = vsel %vm422, %v414, %v419
  %v424 = vrsqrt.pop %v402
  %v425 = vmul.f32 %v424, %v402
  %v426 = vmul.f32 %v425, %v424
  %v427 = vmul.f32 0.5, %v426
  %v428 = vsub.f32 1.5, %v427
  %v429 = vmul.f32 %v424, %v428
  %vm430 = vweird.f32 %v402
  %vm431 = vweird.f32 %v424
  %vm432 = vmor %vm430, %vm431
  %v433 = vsel %vm432, %v424, %v429
  %v434 = vrsqrt.pop %v403
  %v435 = vmul.f32 %v434, %v403
  %v436 = vmul.f32 %v435, %v434
  %v437 = vmul.f32 0.5, %v436
  %v438 = vsub.f32 1.5, %v437
  %v439 = vmul.f32 %v434, %v438
  %vm440 = vweird.f32 %v403
  %vm441 = vweird.f32 %v434
  %vm442 = vmor %vm440, %vm441
  %v443 = vsel %vm442, %v434, %v439
  %v444 = vmul.f32 %v288, %v413
  %v445 = vmul.f32 %v291, %v423
  %v446 = vmul.f32 %v294, %v433
  %v447 = vmul.f32 %v297, %v443
  %v448 = vld [vmem:[%s7] sm:$0xff]
  %v449 = vld [vmem:[%s7 + $0x8] sm:$0xff]
  %v451 = vsel %vm307, %v368, 0
  %v454 = vsel %vm307, %v369, 0
  %v457 = vsel %vm307, %v370, 0
  %v460 = vsel %vm307, %v371, 0
  %462 = vmatpush.msra.mxu0 0.0
  %463 = vmatpush.msra.mxu0 0.0
  %464 = vmatpush.msra.mxu0 0.0
  %465 = vmatpush.msra.mxu0 0.0
  %466 = vmatpush.msra.mxu0 0.0
  %467 = vmatpush.msra.mxu0 0.0
  %468 = vmatpush.msra.mxu0 0.0
  %469 = vmatpush.msra.mxu0 0.0
  %470 = vmatpush.msra.mxu0 0.0
  %471 = vmatpush.msra.mxu0 0.0
  %472 = vmatpush.msra.mxu0 0.0
  %473 = vmatpush.msra.mxu0 0.0
  %474 = vmatpush.msra.mxu0 0.0
  %475 = vmatpush.msra.mxu0 0.0
  %476 = vmatpush.msra.mxu0 %v449
  %477 = vmatpush.msra.mxu0 %v448
  %478 = vmatmul.f32.gmra.mxu0 %v451
  %v479 = vpop.f32.mrf.mxu0
  %v480 = vadd.f32 0.0, %v479
  %481 = vmatmul.f32.gmra.mxu0 %v454
  %v482 = vpop.f32.mrf.mxu0
  %v483 = vadd.f32 0.0, %v482
  %484 = vmatmul.f32.gmra.mxu0 %v457
  %v485 = vpop.f32.mrf.mxu0
  %v486 = vadd.f32 0.0, %v485
  %487 = vmatmul.f32.gmra.mxu0 %v460
  %v488 = vpop.f32.mrf.mxu0
  %v489 = vadd.f32 0.0, %v488
  %490 = vdwg.mxu0
  %495 = vrot.lane.b32.xlu0 %v444, 96
  %v496 = vpop.permute.xlu0 %495
  %497 = vrot.lane.b32.xlu0 %v445, 96
  %v498 = vpop.permute.xlu0 %497
  %499 = vrot.lane.b32.xlu0 %v446, 96
  %v500 = vpop.permute.xlu0 %499
  %501 = vrot.lane.b32.xlu0 %v447, 96
  %v502 = vpop.permute.xlu0 %501
  %v503 = vsel %vm307, %v496, 0
  %v505 = vsel %vm307, %v498, 0
  %v507 = vsel %vm307, %v500, 0
  %v509 = vsel %vm307, %v502, 0
  %511 = vmatpush.xpose.msra.mxu0 0.0
  %512 = vmatpush.xpose.msra.mxu0 0.0
  %513 = vmatpush.xpose.msra.mxu0 0.0
  %514 = vmatpush.xpose.msra.mxu0 0.0
  %515 = vmatpush.xpose.msra.mxu0 0.0
  %516 = vmatpush.xpose.msra.mxu0 0.0
  %517 = vmatpush.xpose.msra.mxu0 0.0
  %518 = vmatpush.xpose.msra.mxu0 0.0
  %519 = vmatpush.xpose.msra.mxu0 0.0
  %520 = vmatpush.xpose.msra.mxu0 0.0
  %521 = vmatpush.xpose.msra.mxu0 0.0
  %522 = vmatpush.xpose.msra.mxu0 0.0
  %523 = vmatpush.xpose.msra.mxu0 %v509
  %524 = vmatpush.xpose.msra.mxu0 %v507
  %525 = vmatpush.xpose.msra.mxu0 %v505
  %526 = vmatpush.xpose.msra.mxu0 %v503
  %527 = vmatmul.f32.gmra.mxu0 %v451
  %v528 = vpop.f32.mrf.mxu0
  %v529 = vadd.f32 %v70, %v528
  %530 = vmatmul.f32.gmra.mxu0 %v454
  %v531 = vpop.f32.mrf.mxu0
  %v532 = vadd.f32 %v71, %v531
  %533 = vmatmul.f32.gmra.mxu0 %v457
  %v534 = vpop.f32.mrf.mxu0
  %v535 = vadd.f32 %v72, %v534
  %536 = vmatmul.f32.gmra.mxu0 %v460
  %v537 = vpop.f32.mrf.mxu0
  %v538 = vadd.f32 %v73, %v537
  %539 = vdwg.mxu0
  %vm540 = vcmask 31744
  %v541 = vsel %vm540, %v480, -inf
  %542 = vmax.xlane.f32.xlu0 %v541
  %v543 = vpop.xlane.xlu0 %542
  %v544 = vsel %vm540, %v483, -inf
  %545 = vmax.xlane.f32.xlu0 %v544
  %v546 = vpop.xlane.xlu0 %545
  %v547 = vsel %vm540, %v486, -inf
  %548 = vmax.xlane.f32.xlu0 %v547
  %v549 = vpop.xlane.xlu0 %548
  %v550 = vsel %vm540, %v489, -inf
  %551 = vmax.xlane.f32.xlu0 %v550
  %v552 = vpop.xlane.xlu0 %551
  %v553 = vsel %vm152, %v529, -inf
  %554 = vmax.xlane.f32.xlu0 %v553
  %v555 = vpop.xlane.xlu0 %554
  %v556 = vsel %vm152, %v532, -inf
  %557 = vmax.xlane.f32.xlu0 %v556
  %v558 = vpop.xlane.xlu0 %557
  %v559 = vsel %vm152, %v535, -inf
  %560 = vmax.xlane.f32.xlu0 %v559
  %v561 = vpop.xlane.xlu0 %560
  %v562 = vsel %vm152, %v538, -inf
  %563 = vmax.xlane.f32.xlu0 %v562
  %v564 = vpop.xlane.xlu0 %563
  %v565 = vmax.f32 %v543, %v555
  %v566 = vmax.f32 %v546, %v558
  %v567 = vmax.f32 %v549, %v561
  %v568 = vmax.f32 %v552, %v564
  %v569 = vsub.f32 %v480, %v565
  %v570 = vsub.f32 %v483, %v566
  %v571 = vsub.f32 %v486, %v567
  %v572 = vsub.f32 %v489, %v568
  %v573 = vmul.f32 %v569, 1.442695
  %v574 = vpow.pop %v573
  %v575 = vmul.f32 %v570, 1.442695
  %v576 = vpow.pop %v575
  %v577 = vmul.f32 %v571, 1.442695
  %v578 = vpow.pop %v577
  %v579 = vmul.f32 %v572, 1.442695
  %v580 = vpow.pop %v579
  %v581 = vsub.f32 %v529, %v565
  %v582 = vsub.f32 %v532, %v566
  %v583 = vsub.f32 %v535, %v567
  %v584 = vsub.f32 %v538, %v568
  %v585 = vmul.f32 %v581, 1.442695
  %v586 = vpow.pop %v585
  %v587 = vmul.f32 %v582, 1.442695
  %v588 = vpow.pop %v587
  %v589 = vmul.f32 %v583, 1.442695
  %v590 = vpow.pop %v589
  %v591 = vmul.f32 %v584, 1.442695
  %v592 = vpow.pop %v591
  %v593 = vsel %vm540, %v574, 0.0
  %594 = vadd.xlane.f32.xlu0 %v593
  %v595 = vpop.xlane.xlu0 %594
  %v596 = vsel %vm540, %v576, 0.0
  %597 = vadd.xlane.f32.xlu0 %v596
  %v598 = vpop.xlane.xlu0 %597
  %v599 = vsel %vm540, %v578, 0.0
  %600 = vadd.xlane.f32.xlu0 %v599
  %v601 = vpop.xlane.xlu0 %600
  %v602 = vsel %vm540, %v580, 0.0
  %603 = vadd.xlane.f32.xlu0 %v602
  %v604 = vpop.xlane.xlu0 %603
  %v605 = vsel %vm152, %v586, 0.0
  %606 = vadd.xlane.f32.xlu0 %v605
  %v607 = vpop.xlane.xlu0 %606
  %v608 = vsel %vm152, %v588, 0.0
  %609 = vadd.xlane.f32.xlu0 %v608
  %v610 = vpop.xlane.xlu0 %609
  %v611 = vsel %vm152, %v590, 0.0
  %612 = vadd.xlane.f32.xlu0 %v611
  %v613 = vpop.xlane.xlu0 %612
  %v614 = vsel %vm152, %v592, 0.0
  %615 = vadd.xlane.f32.xlu0 %v614
  %v616 = vpop.xlane.xlu0 %615
  %v617 = vadd.f32 %v595, %v607
  %v618 = vadd.f32 %v598, %v610
  %v619 = vadd.f32 %v601, %v613
  %v620 = vadd.f32 %v604, %v616
  %v621 = vld [vmem:[%s8] sm:$0xf]
  %626 = vrot.lane.b32.xlu0 %v288, 64
  %v627 = vpop.permute.xlu0 %626
  %628 = vrot.lane.b32.xlu0 %v291, 64
  %v629 = vpop.permute.xlu0 %628
  %630 = vrot.lane.b32.xlu0 %v294, 64
  %v631 = vpop.permute.xlu0 %630
  %632 = vrot.lane.b32.xlu0 %v297, 64
  %v633 = vpop.permute.xlu0 %632
  %v639 = vsel %vm152, %v586, 0
  %v642 = vsel %vm152, %v588, 0
  %v645 = vsel %vm152, %v590, 0
  %v648 = vsel %vm152, %v592, 0
  %650 = vmatpush.msra.mxu0 0.0
  %651 = vmatpush.msra.mxu0 0.0
  %652 = vmatpush.msra.mxu0 0.0
  %653 = vmatpush.msra.mxu0 0.0
  %654 = vmatpush.msra.mxu0 0.0
  %655 = vmatpush.msra.mxu0 0.0
  %656 = vmatpush.msra.mxu0 0.0
  %657 = vmatpush.msra.mxu0 0.0
  %658 = vmatpush.msra.mxu0 0.0
  %659 = vmatpush.msra.mxu0 0.0
  %660 = vmatpush.msra.mxu0 0.0
  %661 = vmatpush.msra.mxu0 0.0
  %662 = vmatpush.msra.mxu0 %v633
  %663 = vmatpush.msra.mxu0 %v631
  %664 = vmatpush.msra.mxu0 %v629
  %665 = vmatpush.msra.mxu0 %v627
  %666 = vmatmul.f32.gmra.mxu0 %v639
  %v667 = vpop.f32.mrf.mxu0
  %v668 = vadd.f32 0.0, %v667
  %669 = vmatmul.f32.gmra.mxu0 %v642
  %v670 = vpop.f32.mrf.mxu0
  %v671 = vadd.f32 0.0, %v670
  %672 = vmatmul.f32.gmra.mxu0 %v645
  %v673 = vpop.f32.mrf.mxu0
  %v674 = vadd.f32 0.0, %v673
  %675 = vmatmul.f32.gmra.mxu0 %v648
  %v676 = vpop.f32.mrf.mxu0
  %v677 = vadd.f32 0.0, %v676
  %678 = vdwg.mxu0
  %v680 = vsel %vm540, %v574, 0
  %v683 = vsel %vm540, %v576, 0
  %v686 = vsel %vm540, %v578, 0
  %v689 = vsel %vm540, %v580, 0
  %vm691 = vcmask 1043456
  %v693 = vsel %vm691, %v621, 0
  %695 = vmatpush.msra.mxu0 0.0
  %696 = vmatpush.msra.mxu0 0.0
  %697 = vmatpush.msra.mxu0 0.0
  %698 = vmatpush.msra.mxu0 0.0
  %699 = vmatpush.msra.mxu0 0.0
  %700 = vmatpush.msra.mxu0 0.0
  %701 = vmatpush.msra.mxu0 0.0
  %702 = vmatpush.msra.mxu0 0.0
  %703 = vmatpush.msra.mxu0 0.0
  %704 = vmatpush.msra.mxu0 0.0
  %705 = vmatpush.msra.mxu0 0.0
  %706 = vmatpush.msra.mxu0 0.0
  %707 = vmatpush.msra.mxu0 0.0
  %708 = vmatpush.msra.mxu0 0.0
  %709 = vmatpush.msra.mxu0 0.0
  %710 = vmatpush.msra.mxu0 %v693
  %711 = vmatmul.f32.gmra.mxu0 %v680
  %v712 = vpop.f32.mrf.mxu0
  %v713 = vadd.f32 %v668, %v712
  %714 = vmatmul.f32.gmra.mxu0 %v683
  %v715 = vpop.f32.mrf.mxu0
  %v716 = vadd.f32 %v671, %v715
  %717 = vmatmul.f32.gmra.mxu0 %v686
  %v718 = vpop.f32.mrf.mxu0
  %v719 = vadd.f32 %v674, %v718
  %720 = vmatmul.f32.gmra.mxu0 %v689
  %v721 = vpop.f32.mrf.mxu0
  %v722 = vadd.f32 %v677, %v721
  %723 = vdwg.mxu0
  %v724 = vrcp.pop %v617
  %v725 = vrcp.pop %v618
  %v726 = vrcp.pop %v619
  %v727 = vrcp.pop %v620
  %v728 = vmul.f32 %v713, %v724
  %v729 = vmul.f32 %v716, %v725
  %v730 = vmul.f32 %v719, %v726
  %v731 = vmul.f32 %v722, %v727
  %732 = vrot.lane.b32.xlu0 %v303, 112
  %v733 = vpop.permute.xlu0 %732
  %734 = vrot.lane.b32.xlu0 %v304, 112
  %v735 = vpop.permute.xlu0 %734
  %736 = vrot.lane.b32.xlu0 %v305, 112
  %v737 = vpop.permute.xlu0 %736
  %738 = vrot.lane.b32.xlu0 %v306, 112
  %v739 = vpop.permute.xlu0 %738
  %v744 = vsel %vm307, %v733, 0.0
  %745 = vadd.xlane.f32.xlu0 %v744
  %v746 = vpop.xlane.xlu0 %745
  %v747 = vsel %vm307, %v735, 0.0
  %748 = vadd.xlane.f32.xlu0 %v747
  %v749 = vpop.xlane.xlu0 %748
  %v750 = vsel %vm307, %v737, 0.0
  %751 = vadd.xlane.f32.xlu0 %v750
  %v752 = vpop.xlane.xlu0 %751
  %v753 = vsel %vm307, %v739, 0.0
  %754 = vadd.xlane.f32.xlu0 %v753
  %v755 = vpop.xlane.xlu0 %754
  %v756 = vadd.f32 %v746, 1e-08
  %v757 = vadd.f32 %v749, 1e-08
  %v758 = vadd.f32 %v752, 1e-08
  %v759 = vadd.f32 %v755, 1e-08
  %v760 = vrsqrt.pop %v756
  %v761 = vmul.f32 %v760, %v756
  %v762 = vmul.f32 %v761, %v760
  %v763 = vmul.f32 0.5, %v762
  %v764 = vsub.f32 1.5, %v763
  %v765 = vmul.f32 %v760, %v764
  %vm766 = vweird.f32 %v756
  %vm767 = vweird.f32 %v760
  %vm768 = vmor %vm766, %vm767
  %v769 = vsel %vm768, %v760, %v765
  %v770 = vrsqrt.pop %v757
  %v771 = vmul.f32 %v770, %v757
  %v772 = vmul.f32 %v771, %v770
  %v773 = vmul.f32 0.5, %v772
  %v774 = vsub.f32 1.5, %v773
  %v775 = vmul.f32 %v770, %v774
  %vm776 = vweird.f32 %v757
  %vm777 = vweird.f32 %v770
  %vm778 = vmor %vm776, %vm777
  %v779 = vsel %vm778, %v770, %v775
  %v780 = vrsqrt.pop %v758
  %v781 = vmul.f32 %v780, %v758
  %v782 = vmul.f32 %v781, %v780
  %v783 = vmul.f32 0.5, %v782
  %v784 = vsub.f32 1.5, %v783
  %v785 = vmul.f32 %v780, %v784
  %vm786 = vweird.f32 %v758
  %vm787 = vweird.f32 %v780
  %vm788 = vmor %vm786, %vm787
  %v789 = vsel %vm788, %v780, %v785
  %v790 = vrsqrt.pop %v759
  %v791 = vmul.f32 %v790, %v759
  %v792 = vmul.f32 %v791, %v790
  %v793 = vmul.f32 0.5, %v792
  %v794 = vsub.f32 1.5, %v793
  %v795 = vmul.f32 %v790, %v794
  %vm796 = vweird.f32 %v759
  %vm797 = vweird.f32 %v790
  %vm798 = vmor %vm796, %vm797
  %v799 = vsel %vm798, %v790, %v795
  %v800 = vmul.f32 %v288, %v769
  %v801 = vmul.f32 %v291, %v779
  %v802 = vmul.f32 %v294, %v789
  %v803 = vmul.f32 %v297, %v799
  %v804 = vmul.f32 %v800, 10.0
  %v805 = vmul.f32 %v801, 10.0
  %v806 = vmul.f32 %v802, 10.0
  %v807 = vmul.f32 %v803, 10.0
  %808 = vrot.lane.b32.xlu0 %v303, 80
  %v809 = vpop.permute.xlu0 %808
  %810 = vrot.lane.b32.xlu0 %v304, 80
  %v811 = vpop.permute.xlu0 %810
  %812 = vrot.lane.b32.xlu0 %v305, 80
  %v813 = vpop.permute.xlu0 %812
  %814 = vrot.lane.b32.xlu0 %v306, 80
  %v815 = vpop.permute.xlu0 %814
  %v820 = vsel %vm307, %v809, 0.0
  %821 = vadd.xlane.f32.xlu0 %v820
  %v822 = vpop.xlane.xlu0 %821
  %v823 = vsel %vm307, %v811, 0.0
  %824 = vadd.xlane.f32.xlu0 %v823
  %v825 = vpop.xlane.xlu0 %824
  %v826 = vsel %vm307, %v813, 0.0
  %827 = vadd.xlane.f32.xlu0 %v826
  %v828 = vpop.xlane.xlu0 %827
  %v829 = vsel %vm307, %v815, 0.0
  %830 = vadd.xlane.f32.xlu0 %v829
  %v831 = vpop.xlane.xlu0 %830
  %v832 = vadd.f32 %v822, 1e-08
  %v833 = vadd.f32 %v825, 1e-08
  %v834 = vadd.f32 %v828, 1e-08
  %v835 = vadd.f32 %v831, 1e-08
  %v836 = vrsqrt.pop %v832
  %v837 = vmul.f32 %v836, %v832
  %v838 = vmul.f32 %v837, %v836
  %v839 = vmul.f32 0.5, %v838
  %v840 = vsub.f32 1.5, %v839
  %v841 = vmul.f32 %v836, %v840
  %vm842 = vweird.f32 %v832
  %vm843 = vweird.f32 %v836
  %vm844 = vmor %vm842, %vm843
  %v845 = vsel %vm844, %v836, %v841
  %v846 = vrsqrt.pop %v833
  %v847 = vmul.f32 %v846, %v833
  %v848 = vmul.f32 %v847, %v846
  %v849 = vmul.f32 0.5, %v848
  %v850 = vsub.f32 1.5, %v849
  %v851 = vmul.f32 %v846, %v850
  %vm852 = vweird.f32 %v833
  %vm853 = vweird.f32 %v846
  %vm854 = vmor %vm852, %vm853
  %v855 = vsel %vm854, %v846, %v851
  %v856 = vrsqrt.pop %v834
  %v857 = vmul.f32 %v856, %v834
  %v858 = vmul.f32 %v857, %v856
  %v859 = vmul.f32 0.5, %v858
  %v860 = vsub.f32 1.5, %v859
  %v861 = vmul.f32 %v856, %v860
  %vm862 = vweird.f32 %v834
  %vm863 = vweird.f32 %v856
  %vm864 = vmor %vm862, %vm863
  %v865 = vsel %vm864, %v856, %v861
  %v866 = vrsqrt.pop %v835
  %v867 = vmul.f32 %v866, %v835
  %v868 = vmul.f32 %v867, %v866
  %v869 = vmul.f32 0.5, %v868
  %v870 = vsub.f32 1.5, %v869
  %v871 = vmul.f32 %v866, %v870
  %vm872 = vweird.f32 %v835
  %vm873 = vweird.f32 %v866
  %vm874 = vmor %vm872, %vm873
  %v875 = vsel %vm874, %v866, %v871
  %v876 = vmul.f32 %v288, %v845
  %v877 = vmul.f32 %v291, %v855
  %v878 = vmul.f32 %v294, %v865
  %v879 = vmul.f32 %v297, %v875
  %s880 = scalar_lea.vmem %s7, 16
  %v881 = vld [vmem:[%s880] sm:$0xff]
  %v882 = vld [vmem:[%s880 + $0x8] sm:$0xff]
  %887 = vrot.lane.b32.xlu0 %v804, 112
  %v888 = vpop.permute.xlu0 %887
  %889 = vrot.lane.b32.xlu0 %v805, 112
  %v890 = vpop.permute.xlu0 %889
  %891 = vrot.lane.b32.xlu0 %v806, 112
  %v892 = vpop.permute.xlu0 %891
  %893 = vrot.lane.b32.xlu0 %v807, 112
  %v894 = vpop.permute.xlu0 %893
  %v895 = vsel %vm307, %v888, 0
  %v897 = vsel %vm307, %v890, 0
  %v899 = vsel %vm307, %v892, 0
  %v901 = vsel %vm307, %v894, 0
  %903 = vmatpush.msra.mxu0 0.0
  %904 = vmatpush.msra.mxu0 0.0
  %905 = vmatpush.msra.mxu0 0.0
  %906 = vmatpush.msra.mxu0 0.0
  %907 = vmatpush.msra.mxu0 0.0
  %908 = vmatpush.msra.mxu0 0.0
  %909 = vmatpush.msra.mxu0 0.0
  %910 = vmatpush.msra.mxu0 0.0
  %911 = vmatpush.msra.mxu0 0.0
  %912 = vmatpush.msra.mxu0 0.0
  %913 = vmatpush.msra.mxu0 0.0
  %914 = vmatpush.msra.mxu0 0.0
  %915 = vmatpush.msra.mxu0 0.0
  %916 = vmatpush.msra.mxu0 0.0
  %917 = vmatpush.msra.mxu0 %v882
  %918 = vmatpush.msra.mxu0 %v881
  %919 = vmatmul.f32.gmra.mxu0 %v895
  %v920 = vpop.f32.mrf.mxu0
  %v921 = vadd.f32 0.0, %v920
  %922 = vmatmul.f32.gmra.mxu0 %v897
  %v923 = vpop.f32.mrf.mxu0
  %v924 = vadd.f32 0.0, %v923
  %925 = vmatmul.f32.gmra.mxu0 %v899
  %v926 = vpop.f32.mrf.mxu0
  %v927 = vadd.f32 0.0, %v926
  %928 = vmatmul.f32.gmra.mxu0 %v901
  %v929 = vpop.f32.mrf.mxu0
  %v930 = vadd.f32 0.0, %v929
  %931 = vdwg.mxu0
  %936 = vrot.lane.b32.xlu0 %v876, 80
  %v937 = vpop.permute.xlu0 %936
  %938 = vrot.lane.b32.xlu0 %v877, 80
  %v939 = vpop.permute.xlu0 %938
  %940 = vrot.lane.b32.xlu0 %v878, 80
  %v941 = vpop.permute.xlu0 %940
  %942 = vrot.lane.b32.xlu0 %v879, 80
  %v943 = vpop.permute.xlu0 %942
  %v944 = vsel %vm307, %v937, 0
  %v946 = vsel %vm307, %v939, 0
  %v948 = vsel %vm307, %v941, 0
  %v950 = vsel %vm307, %v943, 0
  %952 = vmatpush.xpose.msra.mxu0 0.0
  %953 = vmatpush.xpose.msra.mxu0 0.0
  %954 = vmatpush.xpose.msra.mxu0 0.0
  %955 = vmatpush.xpose.msra.mxu0 0.0
  %956 = vmatpush.xpose.msra.mxu0 0.0
  %957 = vmatpush.xpose.msra.mxu0 0.0
  %958 = vmatpush.xpose.msra.mxu0 0.0
  %959 = vmatpush.xpose.msra.mxu0 0.0
  %960 = vmatpush.xpose.msra.mxu0 0.0
  %961 = vmatpush.xpose.msra.mxu0 0.0
  %962 = vmatpush.xpose.msra.mxu0 0.0
  %963 = vmatpush.xpose.msra.mxu0 0.0
  %964 = vmatpush.xpose.msra.mxu0 %v950
  %965 = vmatpush.xpose.msra.mxu0 %v948
  %966 = vmatpush.xpose.msra.mxu0 %v946
  %967 = vmatpush.xpose.msra.mxu0 %v944
  %968 = vmatmul.f32.gmra.mxu0 %v895
  %v969 = vpop.f32.mrf.mxu0
  %v970 = vadd.f32 %v70, %v969
  %971 = vmatmul.f32.gmra.mxu0 %v897
  %v972 = vpop.f32.mrf.mxu0
  %v973 = vadd.f32 %v71, %v972
  %974 = vmatmul.f32.gmra.mxu0 %v899
  %v975 = vpop.f32.mrf.mxu0
  %v976 = vadd.f32 %v72, %v975
  %977 = vmatmul.f32.gmra.mxu0 %v901
  %v978 = vpop.f32.mrf.mxu0
  %v979 = vadd.f32 %v73, %v978
  %980 = vdwg.mxu0
  %v981 = vsel %vm540, %v921, -inf
  %982 = vmax.xlane.f32.xlu0 %v981
  %v983 = vpop.xlane.xlu0 %982
  %v984 = vsel %vm540, %v924, -inf
  %985 = vmax.xlane.f32.xlu0 %v984
  %v986 = vpop.xlane.xlu0 %985
  %v987 = vsel %vm540, %v927, -inf
  %988 = vmax.xlane.f32.xlu0 %v987
  %v989 = vpop.xlane.xlu0 %988
  %v990 = vsel %vm540, %v930, -inf
  %991 = vmax.xlane.f32.xlu0 %v990
  %v992 = vpop.xlane.xlu0 %991
  %v993 = vsel %vm152, %v970, -inf
  %994 = vmax.xlane.f32.xlu0 %v993
  %v995 = vpop.xlane.xlu0 %994
  %v996 = vsel %vm152, %v973, -inf
  %997 = vmax.xlane.f32.xlu0 %v996
  %v998 = vpop.xlane.xlu0 %997
  %v999 = vsel %vm152, %v976, -inf
  %1000 = vmax.xlane.f32.xlu0 %v999
  %v1001 = vpop.xlane.xlu0 %1000
  %v1002 = vsel %vm152, %v979, -inf
  %1003 = vmax.xlane.f32.xlu0 %v1002
  %v1004 = vpop.xlane.xlu0 %1003
  %v1005 = vmax.f32 %v983, %v995
  %v1006 = vmax.f32 %v986, %v998
  %v1007 = vmax.f32 %v989, %v1001
  %v1008 = vmax.f32 %v992, %v1004
  %v1009 = vsub.f32 %v921, %v1005
  %v1010 = vsub.f32 %v924, %v1006
  %v1011 = vsub.f32 %v927, %v1007
  %v1012 = vsub.f32 %v930, %v1008
  %v1013 = vmul.f32 %v1009, 1.442695
  %v1014 = vpow.pop %v1013
  %v1015 = vmul.f32 %v1010, 1.442695
  %v1016 = vpow.pop %v1015
  %v1017 = vmul.f32 %v1011, 1.442695
  %v1018 = vpow.pop %v1017
  %v1019 = vmul.f32 %v1012, 1.442695
  %v1020 = vpow.pop %v1019
  %v1021 = vsub.f32 %v970, %v1005
  %v1022 = vsub.f32 %v973, %v1006
  %v1023 = vsub.f32 %v976, %v1007
  %v1024 = vsub.f32 %v979, %v1008
  %v1025 = vmul.f32 %v1021, 1.442695
  %v1026 = vpow.pop %v1025
  %v1027 = vmul.f32 %v1022, 1.442695
  %v1028 = vpow.pop %v1027
  %v1029 = vmul.f32 %v1023, 1.442695
  %v1030 = vpow.pop %v1029
  %v1031 = vmul.f32 %v1024, 1.442695
  %v1032 = vpow.pop %v1031
  %v1033 = vsel %vm540, %v1014, 0.0
  %1034 = vadd.xlane.f32.xlu0 %v1033
  %v1035 = vpop.xlane.xlu0 %1034
  %v1036 = vsel %vm540, %v1016, 0.0
  %1037 = vadd.xlane.f32.xlu0 %v1036
  %v1038 = vpop.xlane.xlu0 %1037
  %v1039 = vsel %vm540, %v1018, 0.0
  %1040 = vadd.xlane.f32.xlu0 %v1039
  %v1041 = vpop.xlane.xlu0 %1040
  %v1042 = vsel %vm540, %v1020, 0.0
  %1043 = vadd.xlane.f32.xlu0 %v1042
  %v1044 = vpop.xlane.xlu0 %1043
  %v1045 = vsel %vm152, %v1026, 0.0
  %1046 = vadd.xlane.f32.xlu0 %v1045
  %v1047 = vpop.xlane.xlu0 %1046
  %v1048 = vsel %vm152, %v1028, 0.0
  %1049 = vadd.xlane.f32.xlu0 %v1048
  %v1050 = vpop.xlane.xlu0 %1049
  %v1051 = vsel %vm152, %v1030, 0.0
  %1052 = vadd.xlane.f32.xlu0 %v1051
  %v1053 = vpop.xlane.xlu0 %1052
  %v1054 = vsel %vm152, %v1032, 0.0
  %1055 = vadd.xlane.f32.xlu0 %v1054
  %v1056 = vpop.xlane.xlu0 %1055
  %v1057 = vadd.f32 %v1035, %v1047
  %v1058 = vadd.f32 %v1038, %v1050
  %v1059 = vadd.f32 %v1041, %v1053
  %v1060 = vadd.f32 %v1044, %v1056
  %s1061 = scalar_lea.vmem %s8, 4
  %v1062 = vld [vmem:[%s1061] sm:$0xf]
  %1063 = vrot.lane.b32.xlu0 %v288, 48
  %v1064 = vpop.permute.xlu0 %1063
  %1065 = vrot.lane.b32.xlu0 %v291, 48
  %v1066 = vpop.permute.xlu0 %1065
  %1067 = vrot.lane.b32.xlu0 %v294, 48
  %v1068 = vpop.permute.xlu0 %1067
  %1069 = vrot.lane.b32.xlu0 %v297, 48
  %v1070 = vpop.permute.xlu0 %1069
  %v1076 = vsel %vm152, %v1026, 0
  %v1079 = vsel %vm152, %v1028, 0
  %v1082 = vsel %vm152, %v1030, 0
  %v1085 = vsel %vm152, %v1032, 0
  %1087 = vmatpush.msra.mxu0 0.0
  %1088 = vmatpush.msra.mxu0 0.0
  %1089 = vmatpush.msra.mxu0 0.0
  %1090 = vmatpush.msra.mxu0 0.0
  %1091 = vmatpush.msra.mxu0 0.0
  %1092 = vmatpush.msra.mxu0 0.0
  %1093 = vmatpush.msra.mxu0 0.0
  %1094 = vmatpush.msra.mxu0 0.0
  %1095 = vmatpush.msra.mxu0 0.0
  %1096 = vmatpush.msra.mxu0 0.0
  %1097 = vmatpush.msra.mxu0 0.0
  %1098 = vmatpush.msra.mxu0 0.0
  %1099 = vmatpush.msra.mxu0 %v1070
  %1100 = vmatpush.msra.mxu0 %v1068
  %1101 = vmatpush.msra.mxu0 %v1066
  %1102 = vmatpush.msra.mxu0 %v1064
  %1103 = vmatmul.f32.gmra.mxu0 %v1076
  %v1104 = vpop.f32.mrf.mxu0
  %v1105 = vadd.f32 0.0, %v1104
  %1106 = vmatmul.f32.gmra.mxu0 %v1079
  %v1107 = vpop.f32.mrf.mxu0
  %v1108 = vadd.f32 0.0, %v1107
  %1109 = vmatmul.f32.gmra.mxu0 %v1082
  %v1110 = vpop.f32.mrf.mxu0
  %v1111 = vadd.f32 0.0, %v1110
  %1112 = vmatmul.f32.gmra.mxu0 %v1085
  %v1113 = vpop.f32.mrf.mxu0
  %v1114 = vadd.f32 0.0, %v1113
  %1115 = vdwg.mxu0
  %v1117 = vsel %vm540, %v1014, 0
  %v1120 = vsel %vm540, %v1016, 0
  %v1123 = vsel %vm540, %v1018, 0
  %v1126 = vsel %vm540, %v1020, 0
  %v1129 = vsel %vm691, %v1062, 0
  %1131 = vmatpush.msra.mxu0 0.0
  %1132 = vmatpush.msra.mxu0 0.0
  %1133 = vmatpush.msra.mxu0 0.0
  %1134 = vmatpush.msra.mxu0 0.0
  %1135 = vmatpush.msra.mxu0 0.0
  %1136 = vmatpush.msra.mxu0 0.0
  %1137 = vmatpush.msra.mxu0 0.0
  %1138 = vmatpush.msra.mxu0 0.0
  %1139 = vmatpush.msra.mxu0 0.0
  %1140 = vmatpush.msra.mxu0 0.0
  %1141 = vmatpush.msra.mxu0 0.0
  %1142 = vmatpush.msra.mxu0 0.0
  %1143 = vmatpush.msra.mxu0 0.0
  %1144 = vmatpush.msra.mxu0 0.0
  %1145 = vmatpush.msra.mxu0 0.0
  %1146 = vmatpush.msra.mxu0 %v1129
  %1147 = vmatmul.f32.gmra.mxu0 %v1117
  %v1148 = vpop.f32.mrf.mxu0
  %v1149 = vadd.f32 %v1105, %v1148
  %1150 = vmatmul.f32.gmra.mxu0 %v1120
  %v1151 = vpop.f32.mrf.mxu0
  %v1152 = vadd.f32 %v1108, %v1151
  %1153 = vmatmul.f32.gmra.mxu0 %v1123
  %v1154 = vpop.f32.mrf.mxu0
  %v1155 = vadd.f32 %v1111, %v1154
  %1156 = vmatmul.f32.gmra.mxu0 %v1126
  %v1157 = vpop.f32.mrf.mxu0
  %v1158 = vadd.f32 %v1114, %v1157
  %1159 = vdwg.mxu0
  %v1160 = vrcp.pop %v1057
  %v1161 = vrcp.pop %v1058
  %v1162 = vrcp.pop %v1059
  %v1163 = vrcp.pop %v1060
  %v1164 = vmul.f32 %v1149, %v1160
  %v1165 = vmul.f32 %v1152, %v1161
  %v1166 = vmul.f32 %v1155, %v1162
  %v1167 = vmul.f32 %v1158, %v1163
  %1172 = vrot.lane.b32.xlu0 %v1164, 16
  %v1173 = vpop.permute.xlu0 %1172
  %1174 = vrot.lane.b32.xlu0 %v1165, 16
  %v1175 = vpop.permute.xlu0 %1174
  %1176 = vrot.lane.b32.xlu0 %v1166, 16
  %v1177 = vpop.permute.xlu0 %1176
  %1178 = vrot.lane.b32.xlu0 %v1167, 16
  %v1179 = vpop.permute.xlu0 %1178
  %v1184 = vsel %vm307, %v728, %v1173
  %v1185 = vsel %vm307, %v729, %v1175
  %v1186 = vsel %vm307, %v730, %v1177
  %v1187 = vsel %vm307, %v731, %v1179
  %v1189 = vsel %vm152, %v1184, 0
  %v1192 = vsel %vm152, %v1185, 0
  %v1195 = vsel %vm152, %v1186, 0
  %v1198 = vsel %vm152, %v1187, 0
  %1200 = vmatpush.msra.mxu0 0.0
  %1201 = vmatpush.msra.mxu0 0.0
  %1202 = vmatpush.msra.mxu0 0.0
  %1203 = vmatpush.msra.mxu0 0.0
  %1204 = vmatpush.msra.mxu0 0.0
  %1205 = vmatpush.msra.mxu0 0.0
  %1206 = vmatpush.msra.mxu0 0.0
  %1207 = vmatpush.msra.mxu0 0.0
  %1208 = vmatpush.msra.mxu0 0.0
  %1209 = vmatpush.msra.mxu0 0.0
  %1210 = vmatpush.msra.mxu0 0.0
  %1211 = vmatpush.msra.mxu0 0.0
  %1212 = vmatpush.msra.mxu0 %v302
  %1213 = vmatpush.msra.mxu0 %v301
  %1214 = vmatpush.msra.mxu0 %v300
  %1215 = vmatpush.msra.mxu0 %v299
  %1216 = vmatmul.f32.gmra.mxu0 %v1189
  %v1217 = vpop.f32.mrf.mxu0
  %v1218 = vadd.f32 0.0, %v1217
  %1219 = vmatmul.f32.gmra.mxu0 %v1192
  %v1220 = vpop.f32.mrf.mxu0
  %v1221 = vadd.f32 0.0, %v1220
  %1222 = vmatmul.f32.gmra.mxu0 %v1195
  %v1223 = vpop.f32.mrf.mxu0
  %v1224 = vadd.f32 0.0, %v1223
  %1225 = vmatmul.f32.gmra.mxu0 %v1198
  %v1226 = vpop.f32.mrf.mxu0
  %v1227 = vadd.f32 0.0, %v1226
  %1228 = vdwg.mxu0
  %v1229 = vadd.f32 %v140, %v1218
  %v1230 = vadd.f32 %v141, %v1221
  %v1231 = vadd.f32 %v142, %v1224
  %v1232 = vadd.f32 %v143, %v1227
  %v1233 = vld [vmem:[%s3 + $0xa] sm:$0x1]
  %v1234 = vld [vmem:[%s3 + $0xb] sm:$0x1]
  %v1235 = vsel %vm152, %v1229, 0.0
  %1236 = vadd.xlane.f32.xlu0 %v1235
  %v1237 = vpop.xlane.xlu0 %1236
  %v1238 = vsel %vm152, %v1230, 0.0
  %1239 = vadd.xlane.f32.xlu0 %v1238
  %v1240 = vpop.xlane.xlu0 %1239
  %v1241 = vsel %vm152, %v1231, 0.0
  %1242 = vadd.xlane.f32.xlu0 %v1241
  %v1243 = vpop.xlane.xlu0 %1242
  %v1244 = vsel %vm152, %v1232, 0.0
  %1245 = vadd.xlane.f32.xlu0 %v1244
  %v1246 = vpop.xlane.xlu0 %1245
  %v1247 = vmul.f32 %v1237, %v171
  %v1248 = vmul.f32 %v1240, %v171
  %v1249 = vmul.f32 %v1243, %v171
  %v1250 = vmul.f32 %v1246, %v171
  %v1251 = vsub.f32 %v1229, %v1247
  %v1252 = vsub.f32 %v1230, %v1248
  %v1253 = vsub.f32 %v1231, %v1249
  %v1254 = vsub.f32 %v1232, %v1250
  %v1255 = vmul.f32 %v1251, %v1251
  %v1256 = vmul.f32 %v1252, %v1252
  %v1257 = vmul.f32 %v1253, %v1253
  %v1258 = vmul.f32 %v1254, %v1254
  %v1259 = vsel %vm152, %v1255, 0.0
  %1260 = vadd.xlane.f32.xlu0 %v1259
  %v1261 = vpop.xlane.xlu0 %1260
  %v1262 = vsel %vm152, %v1256, 0.0
  %1263 = vadd.xlane.f32.xlu0 %v1262
  %v1264 = vpop.xlane.xlu0 %1263
  %v1265 = vsel %vm152, %v1257, 0.0
  %1266 = vadd.xlane.f32.xlu0 %v1265
  %v1267 = vpop.xlane.xlu0 %1266
  %v1268 = vsel %vm152, %v1258, 0.0
  %1269 = vadd.xlane.f32.xlu0 %v1268
  %v1270 = vpop.xlane.xlu0 %1269
  %v1271 = vmul.f32 %v1261, %v171
  %v1272 = vmul.f32 %v1264, %v171
  %v1273 = vmul.f32 %v1267, %v171
  %v1274 = vmul.f32 %v1270, %v171
  %v1275 = vadd.f32 %v1271, 1e-05
  %v1276 = vadd.f32 %v1272, 1e-05
  %v1277 = vadd.f32 %v1273, 1e-05
  %v1278 = vadd.f32 %v1274, 1e-05
  %v1279 = vrsqrt.pop %v1275
  %v1280 = vmul.f32 %v1279, %v1275
  %v1281 = vmul.f32 %v1280, %v1279
  %v1282 = vmul.f32 0.5, %v1281
  %v1283 = vsub.f32 1.5, %v1282
  %v1284 = vmul.f32 %v1279, %v1283
  %vm1285 = vweird.f32 %v1275
  %vm1286 = vweird.f32 %v1279
  %vm1287 = vmor %vm1285, %vm1286
  %v1288 = vsel %vm1287, %v1279, %v1284
  %v1289 = vrsqrt.pop %v1276
  %v1290 = vmul.f32 %v1289, %v1276
  %v1291 = vmul.f32 %v1290, %v1289
  %v1292 = vmul.f32 0.5, %v1291
  %v1293 = vsub.f32 1.5, %v1292
  %v1294 = vmul.f32 %v1289, %v1293
  %vm1295 = vweird.f32 %v1276
  %vm1296 = vweird.f32 %v1289
  %vm1297 = vmor %vm1295, %vm1296
  %v1298 = vsel %vm1297, %v1289, %v1294
  %v1299 = vrsqrt.pop %v1277
  %v1300 = vmul.f32 %v1299, %v1277
  %v1301 = vmul.f32 %v1300, %v1299
  %v1302 = vmul.f32 0.5, %v1301
  %v1303 = vsub.f32 1.5, %v1302
  %v1304 = vmul.f32 %v1299, %v1303
  %vm1305 = vweird.f32 %v1277
  %vm1306 = vweird.f32 %v1299
  %vm1307 = vmor %vm1305, %vm1306
  %v1308 = vsel %vm1307, %v1299, %v1304
  %v1309 = vrsqrt.pop %v1278
  %v1310 = vmul.f32 %v1309, %v1278
  %v1311 = vmul.f32 %v1310, %v1309
  %v1312 = vmul.f32 0.5, %v1311
  %v1313 = vsub.f32 1.5, %v1312
  %v1314 = vmul.f32 %v1309, %v1313
  %vm1315 = vweird.f32 %v1278
  %vm1316 = vweird.f32 %v1309
  %vm1317 = vmor %vm1315, %vm1316
  %v1318 = vsel %vm1317, %v1309, %v1314
  %v1319 = vmul.f32 %v1251, %v1288
  %v1320 = vmul.f32 %v1252, %v1298
  %v1321 = vmul.f32 %v1253, %v1308
  %v1322 = vmul.f32 %v1254, %v1318
  %v1323 = vperm.slane %v1233, 0
  %v1324 = vmul.f32 %v1319, %v1323
  %v1325 = vmul.f32 %v1320, %v1323
  %v1326 = vmul.f32 %v1321, %v1323
  %v1327 = vmul.f32 %v1322, %v1323
  %v1328 = vperm.slane %v1234, 0
  %v1329 = vadd.f32 %v1324, %v1328
  %v1330 = vadd.f32 %v1325, %v1328
  %v1331 = vadd.f32 %v1326, %v1328
  %v1332 = vadd.f32 %v1327, %v1328
  %v1334 = vsel %vm152, %v1329, 0
  %v1337 = vsel %vm152, %v1330, 0
  %v1340 = vsel %vm152, %v1331, 0
  %v1343 = vsel %vm152, %v1332, 0
  %1345 = vmatpush.msra.mxu0 0.0
  %1346 = vmatpush.msra.mxu0 0.0
  %1347 = vmatpush.msra.mxu0 0.0
  %1348 = vmatpush.msra.mxu0 0.0
  %1349 = vmatpush.msra.mxu0 0.0
  %1350 = vmatpush.msra.mxu0 0.0
  %1351 = vmatpush.msra.mxu0 0.0
  %1352 = vmatpush.msra.mxu0 0.0
  %1353 = vmatpush.msra.mxu0 0.0
  %1354 = vmatpush.msra.mxu0 0.0
  %1355 = vmatpush.msra.mxu0 0.0
  %1356 = vmatpush.msra.mxu0 0.0
  %1357 = vmatpush.msra.mxu0 %v149
  %1358 = vmatpush.msra.mxu0 %v148
  %1359 = vmatpush.msra.mxu0 %v147
  %1360 = vmatpush.msra.mxu0 %v146
  %1361 = vmatmul.f32.gmra.mxu0 %v1334
  %v1362 = vpop.f32.mrf.mxu0
  %v1363 = vadd.f32 0.0, %v1362
  %1364 = vmatmul.f32.gmra.mxu0 %v1337
  %v1365 = vpop.f32.mrf.mxu0
  %v1366 = vadd.f32 0.0, %v1365
  %1367 = vmatmul.f32.gmra.mxu0 %v1340
  %v1368 = vpop.f32.mrf.mxu0
  %v1369 = vadd.f32 0.0, %v1368
  %1370 = vmatmul.f32.gmra.mxu0 %v1343
  %v1371 = vpop.f32.mrf.mxu0
  %v1372 = vadd.f32 0.0, %v1371
  %1373 = vdwg.mxu0
  %v1374 = vld [vmem:[%s5] sm:$0xff]
  %v1375 = vld [vmem:[%s5 + $0x8] sm:$0xff]
  %v1376 = vld [vmem:[%s5 + $0x10] sm:$0xff]
  %v1377 = vld [vmem:[%s5 + $0x18] sm:$0xff]
  %v1378 = vld [vmem:[%s5 + $0x20] sm:$0xff]
  %v1379 = vld [vmem:[%s5 + $0x28] sm:$0xff]
  %vm1380 = vcmask 392192
  %v1382 = vsel %vm1380, %v144, 0
  %v1385 = vsel %vm1380, %v145, 0
  %1387 = vmatpush.msra.mxu0 0.0
  %1388 = vmatpush.msra.mxu0 0.0
  %1389 = vmatpush.msra.mxu0 0.0
  %1390 = vmatpush.msra.mxu0 0.0
  %1391 = vmatpush.msra.mxu0 0.0
  %1392 = vmatpush.msra.mxu0 0.0
  %1393 = vmatpush.msra.mxu0 0.0
  %1394 = vmatpush.msra.mxu0 0.0
  %1395 = vmatpush.msra.mxu0 0.0
  %1396 = vmatpush.msra.mxu0 0.0
  %1397 = vmatpush.msra.mxu0 %v1379
  %1398 = vmatpush.msra.mxu0 %v1378
  %1399 = vmatpush.msra.mxu0 %v1377
  %1400 = vmatpush.msra.mxu0 %v1376
  %1401 = vmatpush.msra.mxu0 %v1375
  %1402 = vmatpush.msra.mxu0 %v1374
  %1403 = vmatmul.f32.gmra.mxu0 %v1382
  %v1404 = vpop.f32.mrf.mxu0
  %v1405 = vadd.f32 0.0, %v1404
  %1406 = vmatmul.f32.gmra.mxu0 %v1385
  %v1407 = vpop.f32.mrf.mxu0
  %v1408 = vadd.f32 0.0, %v1407
  %1409 = vdwg.mxu0
  %s1410 = scalar_lea.vmem %s6, 64
  %v1411 = vld [vmem:[%s1410] sm:$0xff]
  %v1412 = vld [vmem:[%s1410 + $0x8] sm:$0xff]
  %v1413 = vld [vmem:[%s1410 + $0x10] sm:$0xff]
  %v1414 = vld [vmem:[%s1410 + $0x18] sm:$0xff]
  %v1415 = vmul.f32 %v1363, %v1363
  %v1416 = vmul.f32 %v1366, %v1366
  %v1417 = vmul.f32 %v1369, %v1369
  %v1418 = vmul.f32 %v1372, %v1372
  %1423 = vrot.lane.b32.xlu0 %v1415, 32
  %v1424 = vpop.permute.xlu0 %1423
  %1425 = vrot.lane.b32.xlu0 %v1416, 32
  %v1426 = vpop.permute.xlu0 %1425
  %1427 = vrot.lane.b32.xlu0 %v1417, 32
  %v1428 = vpop.permute.xlu0 %1427
  %1429 = vrot.lane.b32.xlu0 %v1418, 32
  %v1430 = vpop.permute.xlu0 %1429
  %v1435 = vsel %vm307, %v1424, 0.0
  %1436 = vadd.xlane.f32.xlu0 %v1435
  %v1437 = vpop.xlane.xlu0 %1436
  %v1438 = vsel %vm307, %v1426, 0.0
  %1439 = vadd.xlane.f32.xlu0 %v1438
  %v1440 = vpop.xlane.xlu0 %1439
  %v1441 = vsel %vm307, %v1428, 0.0
  %1442 = vadd.xlane.f32.xlu0 %v1441
  %v1443 = vpop.xlane.xlu0 %1442
  %v1444 = vsel %vm307, %v1430, 0.0
  %1445 = vadd.xlane.f32.xlu0 %v1444
  %v1446 = vpop.xlane.xlu0 %1445
  %v1447 = vadd.f32 %v1437, 1e-08
  %v1448 = vadd.f32 %v1440, 1e-08
  %v1449 = vadd.f32 %v1443, 1e-08
  %v1450 = vadd.f32 %v1446, 1e-08
  %v1451 = vrsqrt.pop %v1447
  %v1452 = vmul.f32 %v1451, %v1447
  %v1453 = vmul.f32 %v1452, %v1451
  %v1454 = vmul.f32 0.5, %v1453
  %v1455 = vsub.f32 1.5, %v1454
  %v1456 = vmul.f32 %v1451, %v1455
  %vm1457 = vweird.f32 %v1447
  %vm1458 = vweird.f32 %v1451
  %vm1459 = vmor %vm1457, %vm1458
  %v1460 = vsel %vm1459, %v1451, %v1456
  %v1461 = vrsqrt.pop %v1448
  %v1462 = vmul.f32 %v1461, %v1448
  %v1463 = vmul.f32 %v1462, %v1461
  %v1464 = vmul.f32 0.5, %v1463
  %v1465 = vsub.f32 1.5, %v1464
  %v1466 = vmul.f32 %v1461, %v1465
  %vm1467 = vweird.f32 %v1448
  %vm1468 = vweird.f32 %v1461
  %vm1469 = vmor %vm1467, %vm1468
  %v1470 = vsel %vm1469, %v1461, %v1466
  %v1471 = vrsqrt.pop %v1449
  %v1472 = vmul.f32 %v1471, %v1449
  %v1473 = vmul.f32 %v1472, %v1471
  %v1474 = vmul.f32 0.5, %v1473
  %v1475 = vsub.f32 1.5, %v1474
  %v1476 = vmul.f32 %v1471, %v1475
  %vm1477 = vweird.f32 %v1449
  %vm1478 = vweird.f32 %v1471
  %vm1479 = vmor %vm1477, %vm1478
  %v1480 = vsel %vm1479, %v1471, %v1476
  %v1481 = vrsqrt.pop %v1450
  %v1482 = vmul.f32 %v1481, %v1450
  %v1483 = vmul.f32 %v1482, %v1481
  %v1484 = vmul.f32 0.5, %v1483
  %v1485 = vsub.f32 1.5, %v1484
  %v1486 = vmul.f32 %v1481, %v1485
  %vm1487 = vweird.f32 %v1450
  %vm1488 = vweird.f32 %v1481
  %vm1489 = vmor %vm1487, %vm1488
  %v1490 = vsel %vm1489, %v1481, %v1486
  %v1491 = vmul.f32 %v1363, %v1460
  %v1492 = vmul.f32 %v1366, %v1470
  %v1493 = vmul.f32 %v1369, %v1480
  %v1494 = vmul.f32 %v1372, %v1490
  %v1495 = vmul.f32 %v1491, 10.0
  %v1496 = vmul.f32 %v1492, 10.0
  %v1497 = vmul.f32 %v1493, 10.0
  %v1498 = vmul.f32 %v1494, 10.0
  %v1499 = vmul.f32 %v1405, %v1405
  %v1500 = vmul.f32 %v1408, %v1408
  %v1501 = vsel %vm307, %v1499, 0.0
  %1502 = vadd.xlane.f32.xlu0 %v1501
  %v1503 = vpop.xlane.xlu0 %1502
  %v1504 = vsel %vm307, %v1500, 0.0
  %1505 = vadd.xlane.f32.xlu0 %v1504
  %v1506 = vpop.xlane.xlu0 %1505
  %v1507 = vadd.f32 %v1503, 1e-08
  %v1508 = vadd.f32 %v1506, 1e-08
  %v1509 = vrsqrt.pop %v1507
  %v1510 = vmul.f32 %v1509, %v1507
  %v1511 = vmul.f32 %v1510, %v1509
  %v1512 = vmul.f32 0.5, %v1511
  %v1513 = vsub.f32 1.5, %v1512
  %v1514 = vmul.f32 %v1509, %v1513
  %vm1515 = vweird.f32 %v1507
  %vm1516 = vweird.f32 %v1509
  %vm1517 = vmor %vm1515, %vm1516
  %v1518 = vsel %vm1517, %v1509, %v1514
  %v1519 = vrsqrt.pop %v1508
  %v1520 = vmul.f32 %v1519, %v1508
  %v1521 = vmul.f32 %v1520, %v1519
  %v1522 = vmul.f32 0.5, %v1521
  %v1523 = vsub.f32 1.5, %v1522
  %v1524 = vmul.f32 %v1519, %v1523
  %vm1525 = vweird.f32 %v1508
  %vm1526 = vweird.f32 %v1519
  %vm1527 = vmor %vm1525, %vm1526
  %v1528 = vsel %vm1527, %v1519, %v1524
  %v1529 = vmul.f32 %v1405, %v1518
  %v1530 = vmul.f32 %v1408, %v1528
  %s1531 = scalar_lea.vmem %s7, 64
  %v1532 = vld [vmem:[%s1531] sm:$0xff]
  %v1533 = vld [vmem:[%s1531 + $0x8] sm:$0xff]
  %1538 = vrot.lane.b32.xlu0 %v1495, 32
  %v1539 = vpop.permute.xlu0 %1538
  %1540 = vrot.lane.b32.xlu0 %v1496, 32
  %v1541 = vpop.permute.xlu0 %1540
  %1542 = vrot.lane.b32.xlu0 %v1497, 32
  %v1543 = vpop.permute.xlu0 %1542
  %1544 = vrot.lane.b32.xlu0 %v1498, 32
  %v1545 = vpop.permute.xlu0 %1544
  %v1546 = vsel %vm307, %v1539, 0
  %v1548 = vsel %vm307, %v1541, 0
  %v1550 = vsel %vm307, %v1543, 0
  %v1552 = vsel %vm307, %v1545, 0
  %1554 = vmatpush.msra.mxu0 0.0
  %1555 = vmatpush.msra.mxu0 0.0
  %1556 = vmatpush.msra.mxu0 0.0
  %1557 = vmatpush.msra.mxu0 0.0
  %1558 = vmatpush.msra.mxu0 0.0
  %1559 = vmatpush.msra.mxu0 0.0
  %1560 = vmatpush.msra.mxu0 0.0
  %1561 = vmatpush.msra.mxu0 0.0
  %1562 = vmatpush.msra.mxu0 0.0
  %1563 = vmatpush.msra.mxu0 0.0
  %1564 = vmatpush.msra.mxu0 0.0
  %1565 = vmatpush.msra.mxu0 0.0
  %1566 = vmatpush.msra.mxu0 0.0
  %1567 = vmatpush.msra.mxu0 0.0
  %1568 = vmatpush.msra.mxu0 %v1533
  %1569 = vmatpush.msra.mxu0 %v1532
  %1570 = vmatmul.f32.gmra.mxu0 %v1546
  %v1571 = vpop.f32.mrf.mxu0
  %v1572 = vadd.f32 0.0, %v1571
  %1573 = vmatmul.f32.gmra.mxu0 %v1548
  %v1574 = vpop.f32.mrf.mxu0
  %v1575 = vadd.f32 0.0, %v1574
  %1576 = vmatmul.f32.gmra.mxu0 %v1550
  %v1577 = vpop.f32.mrf.mxu0
  %v1578 = vadd.f32 0.0, %v1577
  %1579 = vmatmul.f32.gmra.mxu0 %v1552
  %v1580 = vpop.f32.mrf.mxu0
  %v1581 = vadd.f32 0.0, %v1580
  %1582 = vdwg.mxu0
  %v1584 = vsel %vm307, %v1529, 0
  %v1587 = vsel %vm307, %v1530, 0
  %1589 = vmatpush.xpose.msra.mxu0 0.0
  %1590 = vmatpush.xpose.msra.mxu0 0.0
  %1591 = vmatpush.xpose.msra.mxu0 0.0
  %1592 = vmatpush.xpose.msra.mxu0 0.0
  %1593 = vmatpush.xpose.msra.mxu0 0.0
  %1594 = vmatpush.xpose.msra.mxu0 0.0
  %1595 = vmatpush.xpose.msra.mxu0 0.0
  %1596 = vmatpush.xpose.msra.mxu0 0.0
  %1597 = vmatpush.xpose.msra.mxu0 0.0
  %1598 = vmatpush.xpose.msra.mxu0 0.0
  %1599 = vmatpush.xpose.msra.mxu0 0.0
  %1600 = vmatpush.xpose.msra.mxu0 0.0
  %1601 = vmatpush.xpose.msra.mxu0 0.0
  %1602 = vmatpush.xpose.msra.mxu0 0.0
  %1603 = vmatpush.xpose.msra.mxu0 %v1587
  %1604 = vmatpush.xpose.msra.mxu0 %v1584
  %1605 = vmatmul.f32.gmra.mxu0 %v1546
  %v1606 = vpop.f32.mrf.mxu0
  %v1607 = vadd.f32 %v85, %v1606
  %1608 = vmatmul.f32.gmra.mxu0 %v1548
  %v1609 = vpop.f32.mrf.mxu0
  %v1610 = vadd.f32 %v86, %v1609
  %1611 = vmatmul.f32.gmra.mxu0 %v1550
  %v1612 = vpop.f32.mrf.mxu0
  %v1613 = vadd.f32 %v87, %v1612
  %1614 = vmatmul.f32.gmra.mxu0 %v1552
  %v1615 = vpop.f32.mrf.mxu0
  %v1616 = vadd.f32 %v88, %v1615
  %1617 = vdwg.mxu0
  %v1618 = vsel %vm540, %v1572, -inf
  %1619 = vmax.xlane.f32.xlu0 %v1618
  %v1620 = vpop.xlane.xlu0 %1619
  %v1621 = vsel %vm540, %v1575, -inf
  %1622 = vmax.xlane.f32.xlu0 %v1621
  %v1623 = vpop.xlane.xlu0 %1622
  %v1624 = vsel %vm540, %v1578, -inf
  %1625 = vmax.xlane.f32.xlu0 %v1624
  %v1626 = vpop.xlane.xlu0 %1625
  %v1627 = vsel %vm540, %v1581, -inf
  %1628 = vmax.xlane.f32.xlu0 %v1627
  %v1629 = vpop.xlane.xlu0 %1628
  %v1630 = vsel %vm307, %v1607, -inf
  %1631 = vmax.xlane.f32.xlu0 %v1630
  %v1632 = vpop.xlane.xlu0 %1631
  %v1633 = vsel %vm307, %v1610, -inf
  %1634 = vmax.xlane.f32.xlu0 %v1633
  %v1635 = vpop.xlane.xlu0 %1634
  %v1636 = vsel %vm307, %v1613, -inf
  %1637 = vmax.xlane.f32.xlu0 %v1636
  %v1638 = vpop.xlane.xlu0 %1637
  %v1639 = vsel %vm307, %v1616, -inf
  %1640 = vmax.xlane.f32.xlu0 %v1639
  %v1641 = vpop.xlane.xlu0 %1640
  %v1642 = vmax.f32 %v1620, %v1632
  %v1643 = vmax.f32 %v1623, %v1635
  %v1644 = vmax.f32 %v1626, %v1638
  %v1645 = vmax.f32 %v1629, %v1641
  %v1646 = vsub.f32 %v1572, %v1642
  %v1647 = vsub.f32 %v1575, %v1643
  %v1648 = vsub.f32 %v1578, %v1644
  %v1649 = vsub.f32 %v1581, %v1645
  %v1650 = vmul.f32 %v1646, 1.442695
  %v1651 = vpow.pop %v1650
  %v1652 = vmul.f32 %v1647, 1.442695
  %v1653 = vpow.pop %v1652
  %v1654 = vmul.f32 %v1648, 1.442695
  %v1655 = vpow.pop %v1654
  %v1656 = vmul.f32 %v1649, 1.442695
  %v1657 = vpow.pop %v1656
  %v1658 = vsub.f32 %v1607, %v1642
  %v1659 = vsub.f32 %v1610, %v1643
  %v1660 = vsub.f32 %v1613, %v1644
  %v1661 = vsub.f32 %v1616, %v1645
  %v1662 = vmul.f32 %v1658, 1.442695
  %v1663 = vpow.pop %v1662
  %v1664 = vmul.f32 %v1659, 1.442695
  %v1665 = vpow.pop %v1664
  %v1666 = vmul.f32 %v1660, 1.442695
  %v1667 = vpow.pop %v1666
  %v1668 = vmul.f32 %v1661, 1.442695
  %v1669 = vpow.pop %v1668
  %v1670 = vsel %vm540, %v1651, 0.0
  %1671 = vadd.xlane.f32.xlu0 %v1670
  %v1672 = vpop.xlane.xlu0 %1671
  %v1673 = vsel %vm540, %v1653, 0.0
  %1674 = vadd.xlane.f32.xlu0 %v1673
  %v1675 = vpop.xlane.xlu0 %1674
  %v1676 = vsel %vm540, %v1655, 0.0
  %1677 = vadd.xlane.f32.xlu0 %v1676
  %v1678 = vpop.xlane.xlu0 %1677
  %v1679 = vsel %vm540, %v1657, 0.0
  %1680 = vadd.xlane.f32.xlu0 %v1679
  %v1681 = vpop.xlane.xlu0 %1680
  %v1682 = vsel %vm307, %v1663, 0.0
  %1683 = vadd.xlane.f32.xlu0 %v1682
  %v1684 = vpop.xlane.xlu0 %1683
  %v1685 = vsel %vm307, %v1665, 0.0
  %1686 = vadd.xlane.f32.xlu0 %v1685
  %v1687 = vpop.xlane.xlu0 %1686
  %v1688 = vsel %vm307, %v1667, 0.0
  %1689 = vadd.xlane.f32.xlu0 %v1688
  %v1690 = vpop.xlane.xlu0 %1689
  %v1691 = vsel %vm307, %v1669, 0.0
  %1692 = vadd.xlane.f32.xlu0 %v1691
  %v1693 = vpop.xlane.xlu0 %1692
  %v1694 = vadd.f32 %v1672, %v1684
  %v1695 = vadd.f32 %v1675, %v1687
  %v1696 = vadd.f32 %v1678, %v1690
  %v1697 = vadd.f32 %v1681, %v1693
  %s1698 = scalar_lea.vmem %s8, 16
  %v1699 = vld [vmem:[%s1698] sm:$0xf]
  %1702 = vrot.lane.b32.xlu0 %v1405, 96
  %v1703 = vpop.permute.xlu0 %1702
  %1704 = vrot.lane.b32.xlu0 %v1408, 96
  %v1705 = vpop.permute.xlu0 %1704
  %v1709 = vsel %vm307, %v1663, 0
  %v1712 = vsel %vm307, %v1665, 0
  %v1715 = vsel %vm307, %v1667, 0
  %v1718 = vsel %vm307, %v1669, 0
  %1720 = vmatpush.msra.mxu0 0.0
  %1721 = vmatpush.msra.mxu0 0.0
  %1722 = vmatpush.msra.mxu0 0.0
  %1723 = vmatpush.msra.mxu0 0.0
  %1724 = vmatpush.msra.mxu0 0.0
  %1725 = vmatpush.msra.mxu0 0.0
  %1726 = vmatpush.msra.mxu0 0.0
  %1727 = vmatpush.msra.mxu0 0.0
  %1728 = vmatpush.msra.mxu0 0.0
  %1729 = vmatpush.msra.mxu0 0.0
  %1730 = vmatpush.msra.mxu0 0.0
  %1731 = vmatpush.msra.mxu0 0.0
  %1732 = vmatpush.msra.mxu0 0.0
  %1733 = vmatpush.msra.mxu0 0.0
  %1734 = vmatpush.msra.mxu0 %v1705
  %1735 = vmatpush.msra.mxu0 %v1703
  %1736 = vmatmul.f32.gmra.mxu0 %v1709
  %v1737 = vpop.f32.mrf.mxu0
  %v1738 = vadd.f32 0.0, %v1737
  %1739 = vmatmul.f32.gmra.mxu0 %v1712
  %v1740 = vpop.f32.mrf.mxu0
  %v1741 = vadd.f32 0.0, %v1740
  %1742 = vmatmul.f32.gmra.mxu0 %v1715
  %v1743 = vpop.f32.mrf.mxu0
  %v1744 = vadd.f32 0.0, %v1743
  %1745 = vmatmul.f32.gmra.mxu0 %v1718
  %v1746 = vpop.f32.mrf.mxu0
  %v1747 = vadd.f32 0.0, %v1746
  %1748 = vdwg.mxu0
  %v1750 = vsel %vm540, %v1651, 0
  %v1753 = vsel %vm540, %v1653, 0
  %v1756 = vsel %vm540, %v1655, 0
  %v1759 = vsel %vm540, %v1657, 0
  %v1762 = vsel %vm691, %v1699, 0
  %1764 = vmatpush.msra.mxu0 0.0
  %1765 = vmatpush.msra.mxu0 0.0
  %1766 = vmatpush.msra.mxu0 0.0
  %1767 = vmatpush.msra.mxu0 0.0
  %1768 = vmatpush.msra.mxu0 0.0
  %1769 = vmatpush.msra.mxu0 0.0
  %1770 = vmatpush.msra.mxu0 0.0
  %1771 = vmatpush.msra.mxu0 0.0
  %1772 = vmatpush.msra.mxu0 0.0
  %1773 = vmatpush.msra.mxu0 0.0
  %1774 = vmatpush.msra.mxu0 0.0
  %1775 = vmatpush.msra.mxu0 0.0
  %1776 = vmatpush.msra.mxu0 0.0
  %1777 = vmatpush.msra.mxu0 0.0
  %1778 = vmatpush.msra.mxu0 0.0
  %1779 = vmatpush.msra.mxu0 %v1762
  %1780 = vmatmul.f32.gmra.mxu0 %v1750
  %v1781 = vpop.f32.mrf.mxu0
  %v1782 = vadd.f32 %v1738, %v1781
  %1783 = vmatmul.f32.gmra.mxu0 %v1753
  %v1784 = vpop.f32.mrf.mxu0
  %v1785 = vadd.f32 %v1741, %v1784
  %1786 = vmatmul.f32.gmra.mxu0 %v1756
  %v1787 = vpop.f32.mrf.mxu0
  %v1788 = vadd.f32 %v1744, %v1787
  %1789 = vmatmul.f32.gmra.mxu0 %v1759
  %v1790 = vpop.f32.mrf.mxu0
  %v1791 = vadd.f32 %v1747, %v1790
  %1792 = vdwg.mxu0
  %v1793 = vrcp.pop %v1694
  %v1794 = vrcp.pop %v1695
  %v1795 = vrcp.pop %v1696
  %v1796 = vrcp.pop %v1697
  %v1797 = vmul.f32 %v1782, %v1793
  %v1798 = vmul.f32 %v1785, %v1794
  %v1799 = vmul.f32 %v1788, %v1795
  %v1800 = vmul.f32 %v1791, %v1796
  %1801 = vrot.lane.b32.xlu0 %v1415, 16
  %v1802 = vpop.permute.xlu0 %1801
  %1803 = vrot.lane.b32.xlu0 %v1416, 16
  %v1804 = vpop.permute.xlu0 %1803
  %1805 = vrot.lane.b32.xlu0 %v1417, 16
  %v1806 = vpop.permute.xlu0 %1805
  %1807 = vrot.lane.b32.xlu0 %v1418, 16
  %v1808 = vpop.permute.xlu0 %1807
  %v1813 = vsel %vm307, %v1802, 0.0
  %1814 = vadd.xlane.f32.xlu0 %v1813
  %v1815 = vpop.xlane.xlu0 %1814
  %v1816 = vsel %vm307, %v1804, 0.0
  %1817 = vadd.xlane.f32.xlu0 %v1816
  %v1818 = vpop.xlane.xlu0 %1817
  %v1819 = vsel %vm307, %v1806, 0.0
  %1820 = vadd.xlane.f32.xlu0 %v1819
  %v1821 = vpop.xlane.xlu0 %1820
  %v1822 = vsel %vm307, %v1808, 0.0
  %1823 = vadd.xlane.f32.xlu0 %v1822
  %v1824 = vpop.xlane.xlu0 %1823
  %v1825 = vadd.f32 %v1815, 1e-08
  %v1826 = vadd.f32 %v1818, 1e-08
  %v1827 = vadd.f32 %v1821, 1e-08
  %v1828 = vadd.f32 %v1824, 1e-08
  %v1829 = vrsqrt.pop %v1825
  %v1830 = vmul.f32 %v1829, %v1825
  %v1831 = vmul.f32 %v1830, %v1829
  %v1832 = vmul.f32 0.5, %v1831
  %v1833 = vsub.f32 1.5, %v1832
  %v1834 = vmul.f32 %v1829, %v1833
  %vm1835 = vweird.f32 %v1825
  %vm1836 = vweird.f32 %v1829
  %vm1837 = vmor %vm1835, %vm1836
  %v1838 = vsel %vm1837, %v1829, %v1834
  %v1839 = vrsqrt.pop %v1826
  %v1840 = vmul.f32 %v1839, %v1826
  %v1841 = vmul.f32 %v1840, %v1839
  %v1842 = vmul.f32 0.5, %v1841
  %v1843 = vsub.f32 1.5, %v1842
  %v1844 = vmul.f32 %v1839, %v1843
  %vm1845 = vweird.f32 %v1826
  %vm1846 = vweird.f32 %v1839
  %vm1847 = vmor %vm1845, %vm1846
  %v1848 = vsel %vm1847, %v1839, %v1844
  %v1849 = vrsqrt.pop %v1827
  %v1850 = vmul.f32 %v1849, %v1827
  %v1851 = vmul.f32 %v1850, %v1849
  %v1852 = vmul.f32 0.5, %v1851
  %v1853 = vsub.f32 1.5, %v1852
  %v1854 = vmul.f32 %v1849, %v1853
  %vm1855 = vweird.f32 %v1827
  %vm1856 = vweird.f32 %v1849
  %vm1857 = vmor %vm1855, %vm1856
  %v1858 = vsel %vm1857, %v1849, %v1854
  %v1859 = vrsqrt.pop %v1828
  %v1860 = vmul.f32 %v1859, %v1828
  %v1861 = vmul.f32 %v1860, %v1859
  %v1862 = vmul.f32 0.5, %v1861
  %v1863 = vsub.f32 1.5, %v1862
  %v1864 = vmul.f32 %v1859, %v1863
  %vm1865 = vweird.f32 %v1828
  %vm1866 = vweird.f32 %v1859
  %vm1867 = vmor %vm1865, %vm1866
  %v1868 = vsel %vm1867, %v1859, %v1864
  %v1869 = vmul.f32 %v1363, %v1838
  %v1870 = vmul.f32 %v1366, %v1848
  %v1871 = vmul.f32 %v1369, %v1858
  %v1872 = vmul.f32 %v1372, %v1868
  %v1873 = vmul.f32 %v1869, 10.0
  %v1874 = vmul.f32 %v1870, 10.0
  %v1875 = vmul.f32 %v1871, 10.0
  %v1876 = vmul.f32 %v1872, 10.0
  %1879 = vrot.lane.b32.xlu0 %v1499, 112
  %v1880 = vpop.permute.xlu0 %1879
  %1881 = vrot.lane.b32.xlu0 %v1500, 112
  %v1882 = vpop.permute.xlu0 %1881
  %v1885 = vsel %vm307, %v1880, 0.0
  %1886 = vadd.xlane.f32.xlu0 %v1885
  %v1887 = vpop.xlane.xlu0 %1886
  %v1888 = vsel %vm307, %v1882, 0.0
  %1889 = vadd.xlane.f32.xlu0 %v1888
  %v1890 = vpop.xlane.xlu0 %1889
  %v1891 = vadd.f32 %v1887, 1e-08
  %v1892 = vadd.f32 %v1890, 1e-08
  %v1893 = vrsqrt.pop %v1891
  %v1894 = vmul.f32 %v1893, %v1891
  %v1895 = vmul.f32 %v1894, %v1893
  %v1896 = vmul.f32 0.5, %v1895
  %v1897 = vsub.f32 1.5, %v1896
  %v1898 = vmul.f32 %v1893, %v1897
  %vm1899 = vweird.f32 %v1891
  %vm1900 = vweird.f32 %v1893
  %vm1901 = vmor %vm1899, %vm1900
  %v1902 = vsel %vm1901, %v1893, %v1898
  %v1903 = vrsqrt.pop %v1892
  %v1904 = vmul.f32 %v1903, %v1892
  %v1905 = vmul.f32 %v1904, %v1903
  %v1906 = vmul.f32 0.5, %v1905
  %v1907 = vsub.f32 1.5, %v1906
  %v1908 = vmul.f32 %v1903, %v1907
  %vm1909 = vweird.f32 %v1892
  %vm1910 = vweird.f32 %v1903
  %vm1911 = vmor %vm1909, %vm1910
  %v1912 = vsel %vm1911, %v1903, %v1908
  %v1913 = vmul.f32 %v1405, %v1902
  %v1914 = vmul.f32 %v1408, %v1912
  %s1915 = scalar_lea.vmem %s7, 80
  %v1916 = vld [vmem:[%s1915] sm:$0xff]
  %v1917 = vld [vmem:[%s1915 + $0x8] sm:$0xff]
  %1922 = vrot.lane.b32.xlu0 %v1873, 16
  %v1923 = vpop.permute.xlu0 %1922
  %1924 = vrot.lane.b32.xlu0 %v1874, 16
  %v1925 = vpop.permute.xlu0 %1924
  %1926 = vrot.lane.b32.xlu0 %v1875, 16
  %v1927 = vpop.permute.xlu0 %1926
  %1928 = vrot.lane.b32.xlu0 %v1876, 16
  %v1929 = vpop.permute.xlu0 %1928
  %v1930 = vsel %vm307, %v1923, 0
  %v1932 = vsel %vm307, %v1925, 0
  %v1934 = vsel %vm307, %v1927, 0
  %v1936 = vsel %vm307, %v1929, 0
  %1938 = vmatpush.msra.mxu0 0.0
  %1939 = vmatpush.msra.mxu0 0.0
  %1940 = vmatpush.msra.mxu0 0.0
  %1941 = vmatpush.msra.mxu0 0.0
  %1942 = vmatpush.msra.mxu0 0.0
  %1943 = vmatpush.msra.mxu0 0.0
  %1944 = vmatpush.msra.mxu0 0.0
  %1945 = vmatpush.msra.mxu0 0.0
  %1946 = vmatpush.msra.mxu0 0.0
  %1947 = vmatpush.msra.mxu0 0.0
  %1948 = vmatpush.msra.mxu0 0.0
  %1949 = vmatpush.msra.mxu0 0.0
  %1950 = vmatpush.msra.mxu0 0.0
  %1951 = vmatpush.msra.mxu0 0.0
  %1952 = vmatpush.msra.mxu0 %v1917
  %1953 = vmatpush.msra.mxu0 %v1916
  %1954 = vmatmul.f32.gmra.mxu0 %v1930
  %v1955 = vpop.f32.mrf.mxu0
  %v1956 = vadd.f32 0.0, %v1955
  %1957 = vmatmul.f32.gmra.mxu0 %v1932
  %v1958 = vpop.f32.mrf.mxu0
  %v1959 = vadd.f32 0.0, %v1958
  %1960 = vmatmul.f32.gmra.mxu0 %v1934
  %v1961 = vpop.f32.mrf.mxu0
  %v1962 = vadd.f32 0.0, %v1961
  %1963 = vmatmul.f32.gmra.mxu0 %v1936
  %v1964 = vpop.f32.mrf.mxu0
  %v1965 = vadd.f32 0.0, %v1964
  %1966 = vdwg.mxu0
  %1969 = vrot.lane.b32.xlu0 %v1913, 112
  %v1970 = vpop.permute.xlu0 %1969
  %1971 = vrot.lane.b32.xlu0 %v1914, 112
  %v1972 = vpop.permute.xlu0 %1971
  %v1973 = vsel %vm307, %v1970, 0
  %v1975 = vsel %vm307, %v1972, 0
  %1977 = vmatpush.xpose.msra.mxu0 0.0
  %1978 = vmatpush.xpose.msra.mxu0 0.0
  %1979 = vmatpush.xpose.msra.mxu0 0.0
  %1980 = vmatpush.xpose.msra.mxu0 0.0
  %1981 = vmatpush.xpose.msra.mxu0 0.0
  %1982 = vmatpush.xpose.msra.mxu0 0.0
  %1983 = vmatpush.xpose.msra.mxu0 0.0
  %1984 = vmatpush.xpose.msra.mxu0 0.0
  %1985 = vmatpush.xpose.msra.mxu0 0.0
  %1986 = vmatpush.xpose.msra.mxu0 0.0
  %1987 = vmatpush.xpose.msra.mxu0 0.0
  %1988 = vmatpush.xpose.msra.mxu0 0.0
  %1989 = vmatpush.xpose.msra.mxu0 0.0
  %1990 = vmatpush.xpose.msra.mxu0 0.0
  %1991 = vmatpush.xpose.msra.mxu0 %v1975
  %1992 = vmatpush.xpose.msra.mxu0 %v1973
  %1993 = vmatmul.f32.gmra.mxu0 %v1930
  %v1994 = vpop.f32.mrf.mxu0
  %v1995 = vadd.f32 %v85, %v1994
  %1996 = vmatmul.f32.gmra.mxu0 %v1932
  %v1997 = vpop.f32.mrf.mxu0
  %v1998 = vadd.f32 %v86, %v1997
  %1999 = vmatmul.f32.gmra.mxu0 %v1934
  %v2000 = vpop.f32.mrf.mxu0
  %v2001 = vadd.f32 %v87, %v2000
  %2002 = vmatmul.f32.gmra.mxu0 %v1936
  %v2003 = vpop.f32.mrf.mxu0
  %v2004 = vadd.f32 %v88, %v2003
  %2005 = vdwg.mxu0
  %v2006 = vsel %vm540, %v1956, -inf
  %2007 = vmax.xlane.f32.xlu0 %v2006
  %v2008 = vpop.xlane.xlu0 %2007
  %v2009 = vsel %vm540, %v1959, -inf
  %2010 = vmax.xlane.f32.xlu0 %v2009
  %v2011 = vpop.xlane.xlu0 %2010
  %v2012 = vsel %vm540, %v1962, -inf
  %2013 = vmax.xlane.f32.xlu0 %v2012
  %v2014 = vpop.xlane.xlu0 %2013
  %v2015 = vsel %vm540, %v1965, -inf
  %2016 = vmax.xlane.f32.xlu0 %v2015
  %v2017 = vpop.xlane.xlu0 %2016
  %v2018 = vsel %vm307, %v1995, -inf
  %2019 = vmax.xlane.f32.xlu0 %v2018
  %v2020 = vpop.xlane.xlu0 %2019
  %v2021 = vsel %vm307, %v1998, -inf
  %2022 = vmax.xlane.f32.xlu0 %v2021
  %v2023 = vpop.xlane.xlu0 %2022
  %v2024 = vsel %vm307, %v2001, -inf
  %2025 = vmax.xlane.f32.xlu0 %v2024
  %v2026 = vpop.xlane.xlu0 %2025
  %v2027 = vsel %vm307, %v2004, -inf
  %2028 = vmax.xlane.f32.xlu0 %v2027
  %v2029 = vpop.xlane.xlu0 %2028
  %v2030 = vmax.f32 %v2008, %v2020
  %v2031 = vmax.f32 %v2011, %v2023
  %v2032 = vmax.f32 %v2014, %v2026
  %v2033 = vmax.f32 %v2017, %v2029
  %v2034 = vsub.f32 %v1956, %v2030
  %v2035 = vsub.f32 %v1959, %v2031
  %v2036 = vsub.f32 %v1962, %v2032
  %v2037 = vsub.f32 %v1965, %v2033
  %v2038 = vmul.f32 %v2034, 1.442695
  %v2039 = vpow.pop %v2038
  %v2040 = vmul.f32 %v2035, 1.442695
  %v2041 = vpow.pop %v2040
  %v2042 = vmul.f32 %v2036, 1.442695
  %v2043 = vpow.pop %v2042
  %v2044 = vmul.f32 %v2037, 1.442695
  %v2045 = vpow.pop %v2044
  %v2046 = vsub.f32 %v1995, %v2030
  %v2047 = vsub.f32 %v1998, %v2031
  %v2048 = vsub.f32 %v2001, %v2032
  %v2049 = vsub.f32 %v2004, %v2033
  %v2050 = vmul.f32 %v2046, 1.442695
  %v2051 = vpow.pop %v2050
  %v2052 = vmul.f32 %v2047, 1.442695
  %v2053 = vpow.pop %v2052
  %v2054 = vmul.f32 %v2048, 1.442695
  %v2055 = vpow.pop %v2054
  %v2056 = vmul.f32 %v2049, 1.442695
  %v2057 = vpow.pop %v2056
  %v2058 = vsel %vm540, %v2039, 0.0
  %2059 = vadd.xlane.f32.xlu0 %v2058
  %v2060 = vpop.xlane.xlu0 %2059
  %v2061 = vsel %vm540, %v2041, 0.0
  %2062 = vadd.xlane.f32.xlu0 %v2061
  %v2063 = vpop.xlane.xlu0 %2062
  %v2064 = vsel %vm540, %v2043, 0.0
  %2065 = vadd.xlane.f32.xlu0 %v2064
  %v2066 = vpop.xlane.xlu0 %2065
  %v2067 = vsel %vm540, %v2045, 0.0
  %2068 = vadd.xlane.f32.xlu0 %v2067
  %v2069 = vpop.xlane.xlu0 %2068
  %v2070 = vsel %vm307, %v2051, 0.0
  %2071 = vadd.xlane.f32.xlu0 %v2070
  %v2072 = vpop.xlane.xlu0 %2071
  %v2073 = vsel %vm307, %v2053, 0.0
  %2074 = vadd.xlane.f32.xlu0 %v2073
  %v2075 = vpop.xlane.xlu0 %2074
  %v2076 = vsel %vm307, %v2055, 0.0
  %2077 = vadd.xlane.f32.xlu0 %v2076
  %v2078 = vpop.xlane.xlu0 %2077
  %v2079 = vsel %vm307, %v2057, 0.0
  %2080 = vadd.xlane.f32.xlu0 %v2079
  %v2081 = vpop.xlane.xlu0 %2080
  %v2082 = vadd.f32 %v2060, %v2072
  %v2083 = vadd.f32 %v2063, %v2075
  %v2084 = vadd.f32 %v2066, %v2078
  %v2085 = vadd.f32 %v2069, %v2081
  %s2086 = scalar_lea.vmem %s8, 20
  %v2087 = vld [vmem:[%s2086] sm:$0xf]
  %2088 = vrot.lane.b32.xlu0 %v1405, 80
  %v2089 = vpop.permute.xlu0 %2088
  %2090 = vrot.lane.b32.xlu0 %v1408, 80
  %v2091 = vpop.permute.xlu0 %2090
  %v2095 = vsel %vm307, %v2051, 0
  %v2098 = vsel %vm307, %v2053, 0
  %v2101 = vsel %vm307, %v2055, 0
  %v2104 = vsel %vm307, %v2057, 0
  %2106 = vmatpush.msra.mxu0 0.0
  %2107 = vmatpush.msra.mxu0 0.0
  %2108 = vmatpush.msra.mxu0 0.0
  %2109 = vmatpush.msra.mxu0 0.0
  %2110 = vmatpush.msra.mxu0 0.0
  %2111 = vmatpush.msra.mxu0 0.0
  %2112 = vmatpush.msra.mxu0 0.0
  %2113 = vmatpush.msra.mxu0 0.0
  %2114 = vmatpush.msra.mxu0 0.0
  %2115 = vmatpush.msra.mxu0 0.0
  %2116 = vmatpush.msra.mxu0 0.0
  %2117 = vmatpush.msra.mxu0 0.0
  %2118 = vmatpush.msra.mxu0 0.0
  %2119 = vmatpush.msra.mxu0 0.0
  %2120 = vmatpush.msra.mxu0 %v2091
  %2121 = vmatpush.msra.mxu0 %v2089
  %2122 = vmatmul.f32.gmra.mxu0 %v2095
  %v2123 = vpop.f32.mrf.mxu0
  %v2124 = vadd.f32 0.0, %v2123
  %2125 = vmatmul.f32.gmra.mxu0 %v2098
  %v2126 = vpop.f32.mrf.mxu0
  %v2127 = vadd.f32 0.0, %v2126
  %2128 = vmatmul.f32.gmra.mxu0 %v2101
  %v2129 = vpop.f32.mrf.mxu0
  %v2130 = vadd.f32 0.0, %v2129
  %2131 = vmatmul.f32.gmra.mxu0 %v2104
  %v2132 = vpop.f32.mrf.mxu0
  %v2133 = vadd.f32 0.0, %v2132
  %2134 = vdwg.mxu0
  %v2136 = vsel %vm540, %v2039, 0
  %v2139 = vsel %vm540, %v2041, 0
  %v2142 = vsel %vm540, %v2043, 0
  %v2145 = vsel %vm540, %v2045, 0
  %v2148 = vsel %vm691, %v2087, 0
  %2150 = vmatpush.msra.mxu0 0.0
  %2151 = vmatpush.msra.mxu0 0.0
  %2152 = vmatpush.msra.mxu0 0.0
  %2153 = vmatpush.msra.mxu0 0.0
  %2154 = vmatpush.msra.mxu0 0.0
  %2155 = vmatpush.msra.mxu0 0.0
  %2156 = vmatpush.msra.mxu0 0.0
  %2157 = vmatpush.msra.mxu0 0.0
  %2158 = vmatpush.msra.mxu0 0.0
  %2159 = vmatpush.msra.mxu0 0.0
  %2160 = vmatpush.msra.mxu0 0.0
  %2161 = vmatpush.msra.mxu0 0.0
  %2162 = vmatpush.msra.mxu0 0.0
  %2163 = vmatpush.msra.mxu0 0.0
  %2164 = vmatpush.msra.mxu0 0.0
  %2165 = vmatpush.msra.mxu0 %v2148
  %2166 = vmatmul.f32.gmra.mxu0 %v2136
  %v2167 = vpop.f32.mrf.mxu0
  %v2168 = vadd.f32 %v2124, %v2167
  %2169 = vmatmul.f32.gmra.mxu0 %v2139
  %v2170 = vpop.f32.mrf.mxu0
  %v2171 = vadd.f32 %v2127, %v2170
  %2172 = vmatmul.f32.gmra.mxu0 %v2142
  %v2173 = vpop.f32.mrf.mxu0
  %v2174 = vadd.f32 %v2130, %v2173
  %2175 = vmatmul.f32.gmra.mxu0 %v2145
  %v2176 = vpop.f32.mrf.mxu0
  %v2177 = vadd.f32 %v2133, %v2176
  %2178 = vdwg.mxu0
  %v2179 = vrcp.pop %v2082
  %v2180 = vrcp.pop %v2083
  %v2181 = vrcp.pop %v2084
  %v2182 = vrcp.pop %v2085
  %v2183 = vmul.f32 %v2168, %v2179
  %v2184 = vmul.f32 %v2171, %v2180
  %v2185 = vmul.f32 %v2174, %v2181
  %v2186 = vmul.f32 %v2177, %v2182
  %2191 = vrot.lane.b32.xlu0 %v2183, 16
  %v2192 = vpop.permute.xlu0 %2191
  %2193 = vrot.lane.b32.xlu0 %v2184, 16
  %v2194 = vpop.permute.xlu0 %2193
  %2195 = vrot.lane.b32.xlu0 %v2185, 16
  %v2196 = vpop.permute.xlu0 %2195
  %2197 = vrot.lane.b32.xlu0 %v2186, 16
  %v2198 = vpop.permute.xlu0 %2197
  %v2203 = vsel %vm307, %v1797, %v2192
  %v2204 = vsel %vm307, %v1798, %v2194
  %v2205 = vsel %vm307, %v1799, %v2196
  %v2206 = vsel %vm307, %v1800, %v2198
  %v2208 = vsel %vm152, %v2203, 0
  %v2211 = vsel %vm152, %v2204, 0
  %v2214 = vsel %vm152, %v2205, 0
  %v2217 = vsel %vm152, %v2206, 0
  %2219 = vmatpush.msra.mxu0 0.0
  %2220 = vmatpush.msra.mxu0 0.0
  %2221 = vmatpush.msra.mxu0 0.0
  %2222 = vmatpush.msra.mxu0 0.0
  %2223 = vmatpush.msra.mxu0 0.0
  %2224 = vmatpush.msra.mxu0 0.0
  %2225 = vmatpush.msra.mxu0 0.0
  %2226 = vmatpush.msra.mxu0 0.0
  %2227 = vmatpush.msra.mxu0 0.0
  %2228 = vmatpush.msra.mxu0 0.0
  %2229 = vmatpush.msra.mxu0 0.0
  %2230 = vmatpush.msra.mxu0 0.0
  %2231 = vmatpush.msra.mxu0 %v1414
  %2232 = vmatpush.msra.mxu0 %v1413
  %2233 = vmatpush.msra.mxu0 %v1412
  %2234 = vmatpush.msra.mxu0 %v1411
  %2235 = vmatmul.f32.gmra.mxu0 %v2208
  %v2236 = vpop.f32.mrf.mxu0
  %v2237 = vadd.f32 0.0, %v2236
  %2238 = vmatmul.f32.gmra.mxu0 %v2211
  %v2239 = vpop.f32.mrf.mxu0
  %v2240 = vadd.f32 0.0, %v2239
  %2241 = vmatmul.f32.gmra.mxu0 %v2214
  %v2242 = vpop.f32.mrf.mxu0
  %v2243 = vadd.f32 0.0, %v2242
  %2244 = vmatmul.f32.gmra.mxu0 %v2217
  %v2245 = vpop.f32.mrf.mxu0
  %v2246 = vadd.f32 0.0, %v2245
  %2247 = vdwg.mxu0
  %v2248 = vadd.f32 %v1229, %v2237
  %v2249 = vadd.f32 %v1230, %v2240
  %v2250 = vadd.f32 %v1231, %v2243
  %v2251 = vadd.f32 %v1232, %v2246
  %v2252 = vld [vmem:[%s3 + $0xc] sm:$0x1]
  %v2253 = vld [vmem:[%s3 + $0xd] sm:$0x1]
  %v2254 = vsel %vm152, %v2248, 0.0
  %2255 = vadd.xlane.f32.xlu0 %v2254
  %v2256 = vpop.xlane.xlu0 %2255
  %v2257 = vsel %vm152, %v2249, 0.0
  %2258 = vadd.xlane.f32.xlu0 %v2257
  %v2259 = vpop.xlane.xlu0 %2258
  %v2260 = vsel %vm152, %v2250, 0.0
  %2261 = vadd.xlane.f32.xlu0 %v2260
  %v2262 = vpop.xlane.xlu0 %2261
  %v2263 = vsel %vm152, %v2251, 0.0
  %2264 = vadd.xlane.f32.xlu0 %v2263
  %v2265 = vpop.xlane.xlu0 %2264
  %v2266 = vmul.f32 %v2256, %v171
  %v2267 = vmul.f32 %v2259, %v171
  %v2268 = vmul.f32 %v2262, %v171
  %v2269 = vmul.f32 %v2265, %v171
  %v2270 = vsub.f32 %v2248, %v2266
  %v2271 = vsub.f32 %v2249, %v2267
  %v2272 = vsub.f32 %v2250, %v2268
  %v2273 = vsub.f32 %v2251, %v2269
  %v2274 = vmul.f32 %v2270, %v2270
  %v2275 = vmul.f32 %v2271, %v2271
  %v2276 = vmul.f32 %v2272, %v2272
  %v2277 = vmul.f32 %v2273, %v2273
  %v2278 = vsel %vm152, %v2274, 0.0
  %2279 = vadd.xlane.f32.xlu0 %v2278
  %v2280 = vpop.xlane.xlu0 %2279
  %v2281 = vsel %vm152, %v2275, 0.0
  %2282 = vadd.xlane.f32.xlu0 %v2281
  %v2283 = vpop.xlane.xlu0 %2282
  %v2284 = vsel %vm152, %v2276, 0.0
  %2285 = vadd.xlane.f32.xlu0 %v2284
  %v2286 = vpop.xlane.xlu0 %2285
  %v2287 = vsel %vm152, %v2277, 0.0
  %2288 = vadd.xlane.f32.xlu0 %v2287
  %v2289 = vpop.xlane.xlu0 %2288
  %v2290 = vmul.f32 %v2280, %v171
  %v2291 = vmul.f32 %v2283, %v171
  %v2292 = vmul.f32 %v2286, %v171
  %v2293 = vmul.f32 %v2289, %v171
  %v2294 = vadd.f32 %v2290, 1e-05
  %v2295 = vadd.f32 %v2291, 1e-05
  %v2296 = vadd.f32 %v2292, 1e-05
  %v2297 = vadd.f32 %v2293, 1e-05
  %v2298 = vrsqrt.pop %v2294
  %v2299 = vmul.f32 %v2298, %v2294
  %v2300 = vmul.f32 %v2299, %v2298
  %v2301 = vmul.f32 0.5, %v2300
  %v2302 = vsub.f32 1.5, %v2301
  %v2303 = vmul.f32 %v2298, %v2302
  %vm2304 = vweird.f32 %v2294
  %vm2305 = vweird.f32 %v2298
  %vm2306 = vmor %vm2304, %vm2305
  %v2307 = vsel %vm2306, %v2298, %v2303
  %v2308 = vrsqrt.pop %v2295
  %v2309 = vmul.f32 %v2308, %v2295
  %v2310 = vmul.f32 %v2309, %v2308
  %v2311 = vmul.f32 0.5, %v2310
  %v2312 = vsub.f32 1.5, %v2311
  %v2313 = vmul.f32 %v2308, %v2312
  %vm2314 = vweird.f32 %v2295
  %vm2315 = vweird.f32 %v2308
  %vm2316 = vmor %vm2314, %vm2315
  %v2317 = vsel %vm2316, %v2308, %v2313
  %v2318 = vrsqrt.pop %v2296
  %v2319 = vmul.f32 %v2318, %v2296
  %v2320 = vmul.f32 %v2319, %v2318
  %v2321 = vmul.f32 0.5, %v2320
  %v2322 = vsub.f32 1.5, %v2321
  %v2323 = vmul.f32 %v2318, %v2322
  %vm2324 = vweird.f32 %v2296
  %vm2325 = vweird.f32 %v2318
  %vm2326 = vmor %vm2324, %vm2325
  %v2327 = vsel %vm2326, %v2318, %v2323
  %v2328 = vrsqrt.pop %v2297
  %v2329 = vmul.f32 %v2328, %v2297
  %v2330 = vmul.f32 %v2329, %v2328
  %v2331 = vmul.f32 0.5, %v2330
  %v2332 = vsub.f32 1.5, %v2331
  %v2333 = vmul.f32 %v2328, %v2332
  %vm2334 = vweird.f32 %v2297
  %vm2335 = vweird.f32 %v2328
  %vm2336 = vmor %vm2334, %vm2335
  %v2337 = vsel %vm2336, %v2328, %v2333
  %v2338 = vmul.f32 %v2270, %v2307
  %v2339 = vmul.f32 %v2271, %v2317
  %v2340 = vmul.f32 %v2272, %v2327
  %v2341 = vmul.f32 %v2273, %v2337
  %v2342 = vperm.slane %v2252, 0
  %v2343 = vmul.f32 %v2338, %v2342
  %v2344 = vmul.f32 %v2339, %v2342
  %v2345 = vmul.f32 %v2340, %v2342
  %v2346 = vmul.f32 %v2341, %v2342
  %v2347 = vperm.slane %v2253, 0
  %v2348 = vadd.f32 %v2343, %v2347
  %v2349 = vadd.f32 %v2344, %v2347
  %v2350 = vadd.f32 %v2345, %v2347
  %v2351 = vadd.f32 %v2346, %v2347
  %s2352 = scalar_lea.vmem %s4, 64
  %v2353 = vld [vmem:[%s2352] sm:$0xff]
  %v2354 = vld [vmem:[%s2352 + $0x8] sm:$0xff]
  %v2355 = vld [vmem:[%s2352 + $0x10] sm:$0xff]
  %v2356 = vld [vmem:[%s2352 + $0x18] sm:$0xff]
  %v2357 = vld [vmem:[%s10] sm:$0x1]
  %v2358 = vperm.slane %v2357, 0
  %v2360 = vsel %vm152, %v2348, 0
  %v2363 = vsel %vm152, %v2349, 0
  %v2366 = vsel %vm152, %v2350, 0
  %v2369 = vsel %vm152, %v2351, 0
  %2371 = vmatpush.msra.mxu0 0.0
  %2372 = vmatpush.msra.mxu0 0.0
  %2373 = vmatpush.msra.mxu0 0.0
  %2374 = vmatpush.msra.mxu0 0.0
  %2375 = vmatpush.msra.mxu0 0.0
  %2376 = vmatpush.msra.mxu0 0.0
  %2377 = vmatpush.msra.mxu0 0.0
  %2378 = vmatpush.msra.mxu0 0.0
  %2379 = vmatpush.msra.mxu0 0.0
  %2380 = vmatpush.msra.mxu0 0.0
  %2381 = vmatpush.msra.mxu0 0.0
  %2382 = vmatpush.msra.mxu0 0.0
  %2383 = vmatpush.msra.mxu0 %v2356
  %2384 = vmatpush.msra.mxu0 %v2355
  %2385 = vmatpush.msra.mxu0 %v2354
  %2386 = vmatpush.msra.mxu0 %v2353
  %2387 = vmatmul.f32.gmra.mxu0 %v2360
  %v2388 = vpop.f32.mrf.mxu0
  %v2389 = vadd.f32 %v2358, %v2388
  %2390 = vmatmul.f32.gmra.mxu0 %v2363
  %v2391 = vpop.f32.mrf.mxu0
  %v2392 = vadd.f32 %v2358, %v2391
  %2393 = vmatmul.f32.gmra.mxu0 %v2366
  %v2394 = vpop.f32.mrf.mxu0
  %v2395 = vadd.f32 %v2358, %v2394
  %2396 = vmatmul.f32.gmra.mxu0 %v2369
  %v2397 = vpop.f32.mrf.mxu0
  %v2398 = vadd.f32 %v2358, %v2397
  %2399 = vdwg.mxu0
  %v2400 = vmul.f32 %v2389, 0.5
  %v2401 = vmul.f32 %v2392, 0.5
  %v2402 = vmul.f32 %v2395, 0.5
  %v2403 = vmul.f32 %v2398, 0.5
  %v2404 = vmul.f32 %v2389, 0.70710677
  %v2405 = vmul.f32 %v2392, 0.70710677
  %v2406 = vmul.f32 %v2395, 0.70710677
  %v2407 = vmul.f32 %v2398, 0.70710677
  %vm2408 = vcmp.ge.f32.partialorder %v2404, 0.0
  %vm2409 = vcmp.ge.f32.partialorder %v2405, 0.0
  %vm2410 = vcmp.ge.f32.partialorder %v2406, 0.0
  %vm2411 = vcmp.ge.f32.partialorder %v2407, 0.0
  %v2412 = vsel %vm2408, 1.0, -1.0
  %v2413 = vsel %vm2409, 1.0, -1.0
  %v2414 = vsel %vm2410, 1.0, -1.0
  %v2415 = vsel %vm2411, 1.0, -1.0
  %v2416 = vand.u32 2147483647, %v2404
  %v2417 = vand.u32 2147483647, %v2405
  %v2418 = vand.u32 2147483647, %v2406
  %v2419 = vand.u32 2147483647, %v2407
  %v2420 = vmul.f32 %v2416, 0.3275911
  %v2421 = vmul.f32 %v2417, 0.3275911
  %v2422 = vmul.f32 %v2418, 0.3275911
  %v2423 = vmul.f32 %v2419, 0.3275911
  %v2424 = vadd.f32 %v2420, 1.0
  %v2425 = vadd.f32 %v2421, 1.0
  %v2426 = vadd.f32 %v2422, 1.0
  %v2427 = vadd.f32 %v2423, 1.0
  %v2428 = vrcp.pop %v2424
  %v2429 = vmul.f32 %v2424, %v2428
  %v2430 = vsub.f32 1.0, %v2429
  %v2431 = vmul.f32 %v2428, %v2430
  %v2432 = vadd.f32 %v2428, %v2431
  %vm2433 = vweird.f32 %v2424
  %vm2434 = vweird.f32 %v2428
  %vm2435 = vmor %vm2433, %vm2434
  %v2436 = vsel %vm2435, %v2428, %v2432
  %v2437 = vand.u32 2147483647, %v2424
  %vm2438 = vcmp.eq.f32.partialorder %v2437, 8.507059e+37
  %v2439 = vand.u32 %v2424, 2147483648
  %v2440 = vor.u32 1.1754944e-38, %v2439
  %v2441 = vsel %vm2438, %v2440, %v2436
  %v2442 = vmul.f32 1.0, %v2441
  %v2443 = vrcp.pop %v2425
  %v2444 = vmul.f32 %v2425, %v2443
  %v2445 = vsub.f32 1.0, %v2444
  %v2446 = vmul.f32 %v2443, %v2445
  %v2447 = vadd.f32 %v2443, %v2446
  %vm2448 = vweird.f32 %v2425
  %vm2449 = vweird.f32 %v2443
  %vm2450 = vmor %vm2448, %vm2449
  %v2451 = vsel %vm2450, %v2443, %v2447
  %v2452 = vand.u32 2147483647, %v2425
  %vm2453 = vcmp.eq.f32.partialorder %v2452, 8.507059e+37
  %v2454 = vand.u32 %v2425, 2147483648
  %v2455 = vor.u32 1.1754944e-38, %v2454
  %v2456 = vsel %vm2453, %v2455, %v2451
  %v2457 = vmul.f32 1.0, %v2456
  %v2458 = vrcp.pop %v2426
  %v2459 = vmul.f32 %v2426, %v2458
  %v2460 = vsub.f32 1.0, %v2459
  %v2461 = vmul.f32 %v2458, %v2460
  %v2462 = vadd.f32 %v2458, %v2461
  %vm2463 = vweird.f32 %v2426
  %vm2464 = vweird.f32 %v2458
  %vm2465 = vmor %vm2463, %vm2464
  %v2466 = vsel %vm2465, %v2458, %v2462
  %v2467 = vand.u32 2147483647, %v2426
  %vm2468 = vcmp.eq.f32.partialorder %v2467, 8.507059e+37
  %v2469 = vand.u32 %v2426, 2147483648
  %v2470 = vor.u32 1.1754944e-38, %v2469
  %v2471 = vsel %vm2468, %v2470, %v2466
  %v2472 = vmul.f32 1.0, %v2471
  %v2473 = vrcp.pop %v2427
  %v2474 = vmul.f32 %v2427, %v2473
  %v2475 = vsub.f32 1.0, %v2474
  %v2476 = vmul.f32 %v2473, %v2475
  %v2477 = vadd.f32 %v2473, %v2476
  %vm2478 = vweird.f32 %v2427
  %vm2479 = vweird.f32 %v2473
  %vm2480 = vmor %vm2478, %vm2479
  %v2481 = vsel %vm2480, %v2473, %v2477
  %v2482 = vand.u32 2147483647, %v2427
  %vm2483 = vcmp.eq.f32.partialorder %v2482, 8.507059e+37
  %v2484 = vand.u32 %v2427, 2147483648
  %v2485 = vor.u32 1.1754944e-38, %v2484
  %v2486 = vsel %vm2483, %v2485, %v2481
  %v2487 = vmul.f32 1.0, %v2486
  %v2488 = vmul.f32 %v2442, 1.0614054
  %v2489 = vmul.f32 %v2457, 1.0614054
  %v2490 = vmul.f32 %v2472, 1.0614054
  %v2491 = vmul.f32 %v2487, 1.0614054
  %v2492 = vadd.f32 %v2488, -1.4531521
  %v2493 = vadd.f32 %v2489, -1.4531521
  %v2494 = vadd.f32 %v2490, -1.4531521
  %v2495 = vadd.f32 %v2491, -1.4531521
  %v2496 = vmul.f32 %v2492, %v2442
  %v2497 = vmul.f32 %v2493, %v2457
  %v2498 = vmul.f32 %v2494, %v2472
  %v2499 = vmul.f32 %v2495, %v2487
  %v2500 = vadd.f32 %v2496, 1.4214138
  %v2501 = vadd.f32 %v2497, 1.4214138
  %v2502 = vadd.f32 %v2498, 1.4214138
  %v2503 = vadd.f32 %v2499, 1.4214138
  %v2504 = vmul.f32 %v2500, %v2442
  %v2505 = vmul.f32 %v2501, %v2457
  %v2506 = vmul.f32 %v2502, %v2472
  %v2507 = vmul.f32 %v2503, %v2487
  %v2508 = vadd.f32 %v2504, -0.28449672
  %v2509 = vadd.f32 %v2505, -0.28449672
  %v2510 = vadd.f32 %v2506, -0.28449672
  %v2511 = vadd.f32 %v2507, -0.28449672
  %v2512 = vmul.f32 %v2508, %v2442
  %v2513 = vmul.f32 %v2509, %v2457
  %v2514 = vmul.f32 %v2510, %v2472
  %v2515 = vmul.f32 %v2511, %v2487
  %v2516 = vadd.f32 %v2512, 0.2548296
  %v2517 = vadd.f32 %v2513, 0.2548296
  %v2518 = vadd.f32 %v2514, 0.2548296
  %v2519 = vadd.f32 %v2515, 0.2548296
  %v2520 = vmul.f32 %v2516, %v2442
  %v2521 = vmul.f32 %v2517, %v2457
  %v2522 = vmul.f32 %v2518, %v2472
  %v2523 = vmul.f32 %v2519, %v2487
  %v2524 = vsub.f32 0.0, %v2416
  %v2525 = vsub.f32 0.0, %v2417
  %v2526 = vsub.f32 0.0, %v2418
  %v2527 = vsub.f32 0.0, %v2419
  %v2528 = vmul.f32 %v2524, %v2416
  %v2529 = vmul.f32 %v2525, %v2417
  %v2530 = vmul.f32 %v2526, %v2418
  %v2531 = vmul.f32 %v2527, %v2419
  %v2532 = vmul.f32 %v2528, 1.442695
  %v2533 = vpow.pop %v2532
  %v2534 = vmul.f32 %v2529, 1.442695
  %v2535 = vpow.pop %v2534
  %v2536 = vmul.f32 %v2530, 1.442695
  %v2537 = vpow.pop %v2536
  %v2538 = vmul.f32 %v2531, 1.442695
  %v2539 = vpow.pop %v2538
  %v2540 = vmul.f32 %v2520, %v2533
  %v2541 = vmul.f32 %v2521, %v2535
  %v2542 = vmul.f32 %v2522, %v2537
  %v2543 = vmul.f32 %v2523, %v2539
  %v2544 = vsub.f32 1.0, %v2540
  %v2545 = vsub.f32 1.0, %v2541
  %v2546 = vsub.f32 1.0, %v2542
  %v2547 = vsub.f32 1.0, %v2543
  %v2548 = vmul.f32 %v2412, %v2544
  %v2549 = vmul.f32 %v2413, %v2545
  %v2550 = vmul.f32 %v2414, %v2546
  %v2551 = vmul.f32 %v2415, %v2547
  %v2552 = vadd.f32 %v2548, 1.0
  %v2553 = vadd.f32 %v2549, 1.0
  %v2554 = vadd.f32 %v2550, 1.0
  %v2555 = vadd.f32 %v2551, 1.0
  %v2556 = vmul.f32 %v2400, %v2552
  %v2557 = vmul.f32 %v2401, %v2553
  %v2558 = vmul.f32 %v2402, %v2554
  %v2559 = vmul.f32 %v2403, %v2555
  %2564 = vrot.lane.b32.xlu0 %v2556, 64
  %v2565 = vpop.permute.xlu0 %2564
  %2566 = vrot.lane.b32.xlu0 %v2557, 64
  %v2567 = vpop.permute.xlu0 %2566
  %2568 = vrot.lane.b32.xlu0 %v2558, 64
  %v2569 = vpop.permute.xlu0 %2568
  %2570 = vrot.lane.b32.xlu0 %v2559, 64
  %v2571 = vpop.permute.xlu0 %2570
  %v2576 = vmul.f32 %v2389, %v2565
  %v2577 = vmul.f32 %v2392, %v2567
  %v2578 = vmul.f32 %v2395, %v2569
  %v2579 = vmul.f32 %v2398, %v2571
  %v2580 = vld [vmem:[%s9] sm:$0xff]
  %v2581 = vld [vmem:[%s9 + $0x8] sm:$0xff]
  %v2582 = vld [vmem:[%s9 + $0x10] sm:$0xff]
  %v2583 = vld [vmem:[%s9 + $0x18] sm:$0xff]
  %v2584 = vld [vmem:[%s9 + $0x20] sm:$0xff]
  %v2585 = vld [vmem:[%s9 + $0x28] sm:$0xff]
  %v2586 = vld [vmem:[%s9 + $0x30] sm:$0xff]
  %v2587 = vld [vmem:[%s9 + $0x38] sm:$0xff]
  %v2588 = vld [vmem:[%s10 + $0x1] sm:$0x1]
  %v2589 = vperm.slane %v2588, 0
  %vm2590 = vcmask 523264
  %v2592 = vsel %vm2590, %v2576, 0
  %v2595 = vsel %vm2590, %v2577, 0
  %v2598 = vsel %vm2590, %v2578, 0
  %v2601 = vsel %vm2590, %v2579, 0
  %2603 = vmatpush.msra.mxu0 0.0
  %2604 = vmatpush.msra.mxu0 0.0
  %2605 = vmatpush.msra.mxu0 0.0
  %2606 = vmatpush.msra.mxu0 0.0
  %2607 = vmatpush.msra.mxu0 0.0
  %2608 = vmatpush.msra.mxu0 0.0
  %2609 = vmatpush.msra.mxu0 0.0
  %2610 = vmatpush.msra.mxu0 0.0
  %2611 = vmatpush.msra.mxu0 %v2587
  %2612 = vmatpush.msra.mxu0 %v2586
  %2613 = vmatpush.msra.mxu0 %v2585
  %2614 = vmatpush.msra.mxu0 %v2584
  %2615 = vmatpush.msra.mxu0 %v2583
  %2616 = vmatpush.msra.mxu0 %v2582
  %2617 = vmatpush.msra.mxu0 %v2581
  %2618 = vmatpush.msra.mxu0 %v2580
  %2619 = vmatmul.f32.gmra.mxu0 %v2592
  %v2620 = vpop.f32.mrf.mxu0
  %v2621 = vadd.f32 %v2589, %v2620
  %2622 = vmatmul.f32.gmra.mxu0 %v2595
  %v2623 = vpop.f32.mrf.mxu0
  %v2624 = vadd.f32 %v2589, %v2623
  %2625 = vmatmul.f32.gmra.mxu0 %v2598
  %v2626 = vpop.f32.mrf.mxu0
  %v2627 = vadd.f32 %v2589, %v2626
  %2628 = vmatmul.f32.gmra.mxu0 %v2601
  %v2629 = vpop.f32.mrf.mxu0
  %v2630 = vadd.f32 %v2589, %v2629
  %2631 = vdwg.mxu0
  %v2632 = vadd.f32 %v2248, %v2621
  %v2633 = vadd.f32 %v2249, %v2624
  %v2634 = vadd.f32 %v2250, %v2627
  %v2635 = vadd.f32 %v2251, %v2630
  %s2636 = scalar_lea.vmem %s4, 32
  %v2637 = vld [vmem:[%s2636] sm:$0xff]
  %v2638 = vld [vmem:[%s2636 + $0x8] sm:$0xff]
  %v2639 = vld [vmem:[%s2636 + $0x10] sm:$0xff]
  %v2640 = vld [vmem:[%s2636 + $0x18] sm:$0xff]
  %v2641 = vld [vmem:[%s3 + $0xe] sm:$0x1]
  %v2642 = vld [vmem:[%s3 + $0xf] sm:$0x1]
  %v2643 = vsel %vm152, %v2632, 0.0
  %2644 = vadd.xlane.f32.xlu0 %v2643
  %v2645 = vpop.xlane.xlu0 %2644
  %v2646 = vsel %vm152, %v2633, 0.0
  %2647 = vadd.xlane.f32.xlu0 %v2646
  %v2648 = vpop.xlane.xlu0 %2647
  %v2649 = vsel %vm152, %v2634, 0.0
  %2650 = vadd.xlane.f32.xlu0 %v2649
  %v2651 = vpop.xlane.xlu0 %2650
  %v2652 = vsel %vm152, %v2635, 0.0
  %2653 = vadd.xlane.f32.xlu0 %v2652
  %v2654 = vpop.xlane.xlu0 %2653
  %v2655 = vmul.f32 %v2645, %v171
  %v2656 = vmul.f32 %v2648, %v171
  %v2657 = vmul.f32 %v2651, %v171
  %v2658 = vmul.f32 %v2654, %v171
  %v2659 = vsub.f32 %v2632, %v2655
  %v2660 = vsub.f32 %v2633, %v2656
  %v2661 = vsub.f32 %v2634, %v2657
  %v2662 = vsub.f32 %v2635, %v2658
  %v2663 = vmul.f32 %v2659, %v2659
  %v2664 = vmul.f32 %v2660, %v2660
  %v2665 = vmul.f32 %v2661, %v2661
  %v2666 = vmul.f32 %v2662, %v2662
  %v2667 = vsel %vm152, %v2663, 0.0
  %2668 = vadd.xlane.f32.xlu0 %v2667
  %v2669 = vpop.xlane.xlu0 %2668
  %v2670 = vsel %vm152, %v2664, 0.0
  %2671 = vadd.xlane.f32.xlu0 %v2670
  %v2672 = vpop.xlane.xlu0 %2671
  %v2673 = vsel %vm152, %v2665, 0.0
  %2674 = vadd.xlane.f32.xlu0 %v2673
  %v2675 = vpop.xlane.xlu0 %2674
  %v2676 = vsel %vm152, %v2666, 0.0
  %2677 = vadd.xlane.f32.xlu0 %v2676
  %v2678 = vpop.xlane.xlu0 %2677
  %v2679 = vmul.f32 %v2669, %v171
  %v2680 = vmul.f32 %v2672, %v171
  %v2681 = vmul.f32 %v2675, %v171
  %v2682 = vmul.f32 %v2678, %v171
  %v2683 = vadd.f32 %v2679, 1e-05
  %v2684 = vadd.f32 %v2680, 1e-05
  %v2685 = vadd.f32 %v2681, 1e-05
  %v2686 = vadd.f32 %v2682, 1e-05
  %v2687 = vrsqrt.pop %v2683
  %v2688 = vmul.f32 %v2687, %v2683
  %v2689 = vmul.f32 %v2688, %v2687
  %v2690 = vmul.f32 0.5, %v2689
  %v2691 = vsub.f32 1.5, %v2690
  %v2692 = vmul.f32 %v2687, %v2691
  %vm2693 = vweird.f32 %v2683
  %vm2694 = vweird.f32 %v2687
  %vm2695 = vmor %vm2693, %vm2694
  %v2696 = vsel %vm2695, %v2687, %v2692
  %v2697 = vrsqrt.pop %v2684
  %v2698 = vmul.f32 %v2697, %v2684
  %v2699 = vmul.f32 %v2698, %v2697
  %v2700 = vmul.f32 0.5, %v2699
  %v2701 = vsub.f32 1.5, %v2700
  %v2702 = vmul.f32 %v2697, %v2701
  %vm2703 = vweird.f32 %v2684
  %vm2704 = vweird.f32 %v2697
  %vm2705 = vmor %vm2703, %vm2704
  %v2706 = vsel %vm2705, %v2697, %v2702
  %v2707 = vrsqrt.pop %v2685
  %v2708 = vmul.f32 %v2707, %v2685
  %v2709 = vmul.f32 %v2708, %v2707
  %v2710 = vmul.f32 0.5, %v2709
  %v2711 = vsub.f32 1.5, %v2710
  %v2712 = vmul.f32 %v2707, %v2711
  %vm2713 = vweird.f32 %v2685
  %vm2714 = vweird.f32 %v2707
  %vm2715 = vmor %vm2713, %vm2714
  %v2716 = vsel %vm2715, %v2707, %v2712
  %v2717 = vrsqrt.pop %v2686
  %v2718 = vmul.f32 %v2717, %v2686
  %v2719 = vmul.f32 %v2718, %v2717
  %v2720 = vmul.f32 0.5, %v2719
  %v2721 = vsub.f32 1.5, %v2720
  %v2722 = vmul.f32 %v2717, %v2721
  %vm2723 = vweird.f32 %v2686
  %vm2724 = vweird.f32 %v2717
  %vm2725 = vmor %vm2723, %vm2724
  %v2726 = vsel %vm2725, %v2717, %v2722
  %v2727 = vmul.f32 %v2659, %v2696
  %v2728 = vmul.f32 %v2660, %v2706
  %v2729 = vmul.f32 %v2661, %v2716
  %v2730 = vmul.f32 %v2662, %v2726
  %v2731 = vperm.slane %v2641, 0
  %v2732 = vmul.f32 %v2727, %v2731
  %v2733 = vmul.f32 %v2728, %v2731
  %v2734 = vmul.f32 %v2729, %v2731
  %v2735 = vmul.f32 %v2730, %v2731
  %v2736 = vperm.slane %v2642, 0
  %v2737 = vadd.f32 %v2732, %v2736
  %v2738 = vadd.f32 %v2733, %v2736
  %v2739 = vadd.f32 %v2734, %v2736
  %v2740 = vadd.f32 %v2735, %v2736
  %v2742 = vsel %vm152, %v2737, 0
  %v2745 = vsel %vm152, %v2738, 0
  %v2748 = vsel %vm152, %v2739, 0
  %v2751 = vsel %vm152, %v2740, 0
  %2753 = vmatpush.msra.mxu0 0.0
  %2754 = vmatpush.msra.mxu0 0.0
  %2755 = vmatpush.msra.mxu0 0.0
  %2756 = vmatpush.msra.mxu0 0.0
  %2757 = vmatpush.msra.mxu0 0.0
  %2758 = vmatpush.msra.mxu0 0.0
  %2759 = vmatpush.msra.mxu0 0.0
  %2760 = vmatpush.msra.mxu0 0.0
  %2761 = vmatpush.msra.mxu0 0.0
  %2762 = vmatpush.msra.mxu0 0.0
  %2763 = vmatpush.msra.mxu0 0.0
  %2764 = vmatpush.msra.mxu0 0.0
  %2765 = vmatpush.msra.mxu0 %v2640
  %2766 = vmatpush.msra.mxu0 %v2639
  %2767 = vmatpush.msra.mxu0 %v2638
  %2768 = vmatpush.msra.mxu0 %v2637
  %2769 = vmatmul.f32.gmra.mxu0 %v2742
  %v2770 = vpop.f32.mrf.mxu0
  %v2771 = vadd.f32 0.0, %v2770
  %2772 = vmatmul.f32.gmra.mxu0 %v2745
  %v2773 = vpop.f32.mrf.mxu0
  %v2774 = vadd.f32 0.0, %v2773
  %2775 = vmatmul.f32.gmra.mxu0 %v2748
  %v2776 = vpop.f32.mrf.mxu0
  %v2777 = vadd.f32 0.0, %v2776
  %2778 = vmatmul.f32.gmra.mxu0 %v2751
  %v2779 = vpop.f32.mrf.mxu0
  %v2780 = vadd.f32 0.0, %v2779
  %2781 = vdwg.mxu0
  %s2782 = scalar_lea.vmem %s6, 32
  %v2783 = vld [vmem:[%s2782] sm:$0xff]
  %v2784 = vld [vmem:[%s2782 + $0x8] sm:$0xff]
  %v2785 = vld [vmem:[%s2782 + $0x10] sm:$0xff]
  %v2786 = vld [vmem:[%s2782 + $0x18] sm:$0xff]
  %v2787 = vmul.f32 %v2771, %v2771
  %v2788 = vmul.f32 %v2774, %v2774
  %v2789 = vmul.f32 %v2777, %v2777
  %v2790 = vmul.f32 %v2780, %v2780
  %v2791 = vsel %vm307, %v2787, 0.0
  %2792 = vadd.xlane.f32.xlu0 %v2791
  %v2793 = vpop.xlane.xlu0 %2792
  %v2794 = vsel %vm307, %v2788, 0.0
  %2795 = vadd.xlane.f32.xlu0 %v2794
  %v2796 = vpop.xlane.xlu0 %2795
  %v2797 = vsel %vm307, %v2789, 0.0
  %2798 = vadd.xlane.f32.xlu0 %v2797
  %v2799 = vpop.xlane.xlu0 %2798
  %v2800 = vsel %vm307, %v2790, 0.0
  %2801 = vadd.xlane.f32.xlu0 %v2800
  %v2802 = vpop.xlane.xlu0 %2801
  %v2803 = vadd.f32 %v2793, 1e-08
  %v2804 = vadd.f32 %v2796, 1e-08
  %v2805 = vadd.f32 %v2799, 1e-08
  %v2806 = vadd.f32 %v2802, 1e-08
  %v2807 = vrsqrt.pop %v2803
  %v2808 = vmul.f32 %v2807, %v2803
  %v2809 = vmul.f32 %v2808, %v2807
  %v2810 = vmul.f32 0.5, %v2809
  %v2811 = vsub.f32 1.5, %v2810
  %v2812 = vmul.f32 %v2807, %v2811
  %vm2813 = vweird.f32 %v2803
  %vm2814 = vweird.f32 %v2807
  %vm2815 = vmor %vm2813, %vm2814
  %v2816 = vsel %vm2815, %v2807, %v2812
  %v2817 = vrsqrt.pop %v2804
  %v2818 = vmul.f32 %v2817, %v2804
  %v2819 = vmul.f32 %v2818, %v2817
  %v2820 = vmul.f32 0.5, %v2819
  %v2821 = vsub.f32 1.5, %v2820
  %v2822 = vmul.f32 %v2817, %v2821
  %vm2823 = vweird.f32 %v2804
  %vm2824 = vweird.f32 %v2817
  %vm2825 = vmor %vm2823, %vm2824
  %v2826 = vsel %vm2825, %v2817, %v2822
  %v2827 = vrsqrt.pop %v2805
  %v2828 = vmul.f32 %v2827, %v2805
  %v2829 = vmul.f32 %v2828, %v2827
  %v2830 = vmul.f32 0.5, %v2829
  %v2831 = vsub.f32 1.5, %v2830
  %v2832 = vmul.f32 %v2827, %v2831
  %vm2833 = vweird.f32 %v2805
  %vm2834 = vweird.f32 %v2827
  %vm2835 = vmor %vm2833, %vm2834
  %v2836 = vsel %vm2835, %v2827, %v2832
  %v2837 = vrsqrt.pop %v2806
  %v2838 = vmul.f32 %v2837, %v2806
  %v2839 = vmul.f32 %v2838, %v2837
  %v2840 = vmul.f32 0.5, %v2839
  %v2841 = vsub.f32 1.5, %v2840
  %v2842 = vmul.f32 %v2837, %v2841
  %vm2843 = vweird.f32 %v2806
  %vm2844 = vweird.f32 %v2837
  %vm2845 = vmor %vm2843, %vm2844
  %v2846 = vsel %vm2845, %v2837, %v2842
  %v2847 = vmul.f32 %v2771, %v2816
  %v2848 = vmul.f32 %v2774, %v2826
  %v2849 = vmul.f32 %v2777, %v2836
  %v2850 = vmul.f32 %v2780, %v2846
  %v2851 = vmul.f32 %v2847, 10.0
  %v2852 = vmul.f32 %v2848, 10.0
  %v2853 = vmul.f32 %v2849, 10.0
  %v2854 = vmul.f32 %v2850, 10.0
  %2859 = vrot.lane.b32.xlu0 %v2787, 96
  %v2860 = vpop.permute.xlu0 %2859
  %2861 = vrot.lane.b32.xlu0 %v2788, 96
  %v2862 = vpop.permute.xlu0 %2861
  %2863 = vrot.lane.b32.xlu0 %v2789, 96
  %v2864 = vpop.permute.xlu0 %2863
  %2865 = vrot.lane.b32.xlu0 %v2790, 96
  %v2866 = vpop.permute.xlu0 %2865
  %v2871 = vsel %vm307, %v2860, 0.0
  %2872 = vadd.xlane.f32.xlu0 %v2871
  %v2873 = vpop.xlane.xlu0 %2872
  %v2874 = vsel %vm307, %v2862, 0.0
  %2875 = vadd.xlane.f32.xlu0 %v2874
  %v2876 = vpop.xlane.xlu0 %2875
  %v2877 = vsel %vm307, %v2864, 0.0
  %2878 = vadd.xlane.f32.xlu0 %v2877
  %v2879 = vpop.xlane.xlu0 %2878
  %v2880 = vsel %vm307, %v2866, 0.0
  %2881 = vadd.xlane.f32.xlu0 %v2880
  %v2882 = vpop.xlane.xlu0 %2881
  %v2883 = vadd.f32 %v2873, 1e-08
  %v2884 = vadd.f32 %v2876, 1e-08
  %v2885 = vadd.f32 %v2879, 1e-08
  %v2886 = vadd.f32 %v2882, 1e-08
  %v2887 = vrsqrt.pop %v2883
  %v2888 = vmul.f32 %v2887, %v2883
  %v2889 = vmul.f32 %v2888, %v2887
  %v2890 = vmul.f32 0.5, %v2889
  %v2891 = vsub.f32 1.5, %v2890
  %v2892 = vmul.f32 %v2887, %v2891
  %vm2893 = vweird.f32 %v2883
  %vm2894 = vweird.f32 %v2887
  %vm2895 = vmor %vm2893, %vm2894
  %v2896 = vsel %vm2895, %v2887, %v2892
  %v2897 = vrsqrt.pop %v2884
  %v2898 = vmul.f32 %v2897, %v2884
  %v2899 = vmul.f32 %v2898, %v2897
  %v2900 = vmul.f32 0.5, %v2899
  %v2901 = vsub.f32 1.5, %v2900
  %v2902 = vmul.f32 %v2897, %v2901
  %vm2903 = vweird.f32 %v2884
  %vm2904 = vweird.f32 %v2897
  %vm2905 = vmor %vm2903, %vm2904
  %v2906 = vsel %vm2905, %v2897, %v2902
  %v2907 = vrsqrt.pop %v2885
  %v2908 = vmul.f32 %v2907, %v2885
  %v2909 = vmul.f32 %v2908, %v2907
  %v2910 = vmul.f32 0.5, %v2909
  %v2911 = vsub.f32 1.5, %v2910
  %v2912 = vmul.f32 %v2907, %v2911
  %vm2913 = vweird.f32 %v2885
  %vm2914 = vweird.f32 %v2907
  %vm2915 = vmor %vm2913, %vm2914
  %v2916 = vsel %vm2915, %v2907, %v2912
  %v2917 = vrsqrt.pop %v2886
  %v2918 = vmul.f32 %v2917, %v2886
  %v2919 = vmul.f32 %v2918, %v2917
  %v2920 = vmul.f32 0.5, %v2919
  %v2921 = vsub.f32 1.5, %v2920
  %v2922 = vmul.f32 %v2917, %v2921
  %vm2923 = vweird.f32 %v2886
  %vm2924 = vweird.f32 %v2917
  %vm2925 = vmor %vm2923, %vm2924
  %v2926 = vsel %vm2925, %v2917, %v2922
  %v2927 = vmul.f32 %v2771, %v2896
  %v2928 = vmul.f32 %v2774, %v2906
  %v2929 = vmul.f32 %v2777, %v2916
  %v2930 = vmul.f32 %v2780, %v2926
  %s2931 = scalar_lea.vmem %s7, 32
  %v2932 = vld [vmem:[%s2931] sm:$0xff]
  %v2933 = vld [vmem:[%s2931 + $0x8] sm:$0xff]
  %v2935 = vsel %vm307, %v2851, 0
  %v2938 = vsel %vm307, %v2852, 0
  %v2941 = vsel %vm307, %v2853, 0
  %v2944 = vsel %vm307, %v2854, 0
  %2946 = vmatpush.msra.mxu0 0.0
  %2947 = vmatpush.msra.mxu0 0.0
  %2948 = vmatpush.msra.mxu0 0.0
  %2949 = vmatpush.msra.mxu0 0.0
  %2950 = vmatpush.msra.mxu0 0.0
  %2951 = vmatpush.msra.mxu0 0.0
  %2952 = vmatpush.msra.mxu0 0.0
  %2953 = vmatpush.msra.mxu0 0.0
  %2954 = vmatpush.msra.mxu0 0.0
  %2955 = vmatpush.msra.mxu0 0.0
  %2956 = vmatpush.msra.mxu0 0.0
  %2957 = vmatpush.msra.mxu0 0.0
  %2958 = vmatpush.msra.mxu0 0.0
  %2959 = vmatpush.msra.mxu0 0.0
  %2960 = vmatpush.msra.mxu0 %v2933
  %2961 = vmatpush.msra.mxu0 %v2932
  %2962 = vmatmul.f32.gmra.mxu0 %v2935
  %v2963 = vpop.f32.mrf.mxu0
  %v2964 = vadd.f32 0.0, %v2963
  %2965 = vmatmul.f32.gmra.mxu0 %v2938
  %v2966 = vpop.f32.mrf.mxu0
  %v2967 = vadd.f32 0.0, %v2966
  %2968 = vmatmul.f32.gmra.mxu0 %v2941
  %v2969 = vpop.f32.mrf.mxu0
  %v2970 = vadd.f32 0.0, %v2969
  %2971 = vmatmul.f32.gmra.mxu0 %v2944
  %v2972 = vpop.f32.mrf.mxu0
  %v2973 = vadd.f32 0.0, %v2972
  %2974 = vdwg.mxu0
  %2979 = vrot.lane.b32.xlu0 %v2927, 96
  %v2980 = vpop.permute.xlu0 %2979
  %2981 = vrot.lane.b32.xlu0 %v2928, 96
  %v2982 = vpop.permute.xlu0 %2981
  %2983 = vrot.lane.b32.xlu0 %v2929, 96
  %v2984 = vpop.permute.xlu0 %2983
  %2985 = vrot.lane.b32.xlu0 %v2930, 96
  %v2986 = vpop.permute.xlu0 %2985
  %v2987 = vsel %vm307, %v2980, 0
  %v2989 = vsel %vm307, %v2982, 0
  %v2991 = vsel %vm307, %v2984, 0
  %v2993 = vsel %vm307, %v2986, 0
  %2995 = vmatpush.xpose.msra.mxu0 0.0
  %2996 = vmatpush.xpose.msra.mxu0 0.0
  %2997 = vmatpush.xpose.msra.mxu0 0.0
  %2998 = vmatpush.xpose.msra.mxu0 0.0
  %2999 = vmatpush.xpose.msra.mxu0 0.0
  %3000 = vmatpush.xpose.msra.mxu0 0.0
  %3001 = vmatpush.xpose.msra.mxu0 0.0
  %3002 = vmatpush.xpose.msra.mxu0 0.0
  %3003 = vmatpush.xpose.msra.mxu0 0.0
  %3004 = vmatpush.xpose.msra.mxu0 0.0
  %3005 = vmatpush.xpose.msra.mxu0 0.0
  %3006 = vmatpush.xpose.msra.mxu0 0.0
  %3007 = vmatpush.xpose.msra.mxu0 %v2993
  %3008 = vmatpush.xpose.msra.mxu0 %v2991
  %3009 = vmatpush.xpose.msra.mxu0 %v2989
  %3010 = vmatpush.xpose.msra.mxu0 %v2987
  %3011 = vmatmul.f32.gmra.mxu0 %v2935
  %v3012 = vpop.f32.mrf.mxu0
  %v3013 = vadd.f32 %v70, %v3012
  %3014 = vmatmul.f32.gmra.mxu0 %v2938
  %v3015 = vpop.f32.mrf.mxu0
  %v3016 = vadd.f32 %v71, %v3015
  %3017 = vmatmul.f32.gmra.mxu0 %v2941
  %v3018 = vpop.f32.mrf.mxu0
  %v3019 = vadd.f32 %v72, %v3018
  %3020 = vmatmul.f32.gmra.mxu0 %v2944
  %v3021 = vpop.f32.mrf.mxu0
  %v3022 = vadd.f32 %v73, %v3021
  %3023 = vdwg.mxu0
  %v3024 = vsel %vm540, %v2964, -inf
  %3025 = vmax.xlane.f32.xlu0 %v3024
  %v3026 = vpop.xlane.xlu0 %3025
  %v3027 = vsel %vm540, %v2967, -inf
  %3028 = vmax.xlane.f32.xlu0 %v3027
  %v3029 = vpop.xlane.xlu0 %3028
  %v3030 = vsel %vm540, %v2970, -inf
  %3031 = vmax.xlane.f32.xlu0 %v3030
  %v3032 = vpop.xlane.xlu0 %3031
  %v3033 = vsel %vm540, %v2973, -inf
  %3034 = vmax.xlane.f32.xlu0 %v3033
  %v3035 = vpop.xlane.xlu0 %3034
  %v3036 = vsel %vm152, %v3013, -inf
  %3037 = vmax.xlane.f32.xlu0 %v3036
  %v3038 = vpop.xlane.xlu0 %3037
  %v3039 = vsel %vm152, %v3016, -inf
  %3040 = vmax.xlane.f32.xlu0 %v3039
  %v3041 = vpop.xlane.xlu0 %3040
  %v3042 = vsel %vm152, %v3019, -inf
  %3043 = vmax.xlane.f32.xlu0 %v3042
  %v3044 = vpop.xlane.xlu0 %3043
  %v3045 = vsel %vm152, %v3022, -inf
  %3046 = vmax.xlane.f32.xlu0 %v3045
  %v3047 = vpop.xlane.xlu0 %3046
  %v3048 = vmax.f32 %v3026, %v3038
  %v3049 = vmax.f32 %v3029, %v3041
  %v3050 = vmax.f32 %v3032, %v3044
  %v3051 = vmax.f32 %v3035, %v3047
  %v3052 = vsub.f32 %v2964, %v3048
  %v3053 = vsub.f32 %v2967, %v3049
  %v3054 = vsub.f32 %v2970, %v3050
  %v3055 = vsub.f32 %v2973, %v3051
  %v3056 = vmul.f32 %v3052, 1.442695
  %v3057 = vpow.pop %v3056
  %v3058 = vmul.f32 %v3053, 1.442695
  %v3059 = vpow.pop %v3058
  %v3060 = vmul.f32 %v3054, 1.442695
  %v3061 = vpow.pop %v3060
  %v3062 = vmul.f32 %v3055, 1.442695
  %v3063 = vpow.pop %v3062
  %v3064 = vsub.f32 %v3013, %v3048
  %v3065 = vsub.f32 %v3016, %v3049
  %v3066 = vsub.f32 %v3019, %v3050
  %v3067 = vsub.f32 %v3022, %v3051
  %v3068 = vmul.f32 %v3064, 1.442695
  %v3069 = vpow.pop %v3068
  %v3070 = vmul.f32 %v3065, 1.442695
  %v3071 = vpow.pop %v3070
  %v3072 = vmul.f32 %v3066, 1.442695
  %v3073 = vpow.pop %v3072
  %v3074 = vmul.f32 %v3067, 1.442695
  %v3075 = vpow.pop %v3074
  %v3076 = vsel %vm540, %v3057, 0.0
  %3077 = vadd.xlane.f32.xlu0 %v3076
  %v3078 = vpop.xlane.xlu0 %3077
  %v3079 = vsel %vm540, %v3059, 0.0
  %3080 = vadd.xlane.f32.xlu0 %v3079
  %v3081 = vpop.xlane.xlu0 %3080
  %v3082 = vsel %vm540, %v3061, 0.0
  %3083 = vadd.xlane.f32.xlu0 %v3082
  %v3084 = vpop.xlane.xlu0 %3083
  %v3085 = vsel %vm540, %v3063, 0.0
  %3086 = vadd.xlane.f32.xlu0 %v3085
  %v3087 = vpop.xlane.xlu0 %3086
  %v3088 = vsel %vm152, %v3069, 0.0
  %3089 = vadd.xlane.f32.xlu0 %v3088
  %v3090 = vpop.xlane.xlu0 %3089
  %v3091 = vsel %vm152, %v3071, 0.0
  %3092 = vadd.xlane.f32.xlu0 %v3091
  %v3093 = vpop.xlane.xlu0 %3092
  %v3094 = vsel %vm152, %v3073, 0.0
  %3095 = vadd.xlane.f32.xlu0 %v3094
  %v3096 = vpop.xlane.xlu0 %3095
  %v3097 = vsel %vm152, %v3075, 0.0
  %3098 = vadd.xlane.f32.xlu0 %v3097
  %v3099 = vpop.xlane.xlu0 %3098
  %v3100 = vadd.f32 %v3078, %v3090
  %v3101 = vadd.f32 %v3081, %v3093
  %v3102 = vadd.f32 %v3084, %v3096
  %v3103 = vadd.f32 %v3087, %v3099
  %s3104 = scalar_lea.vmem %s8, 8
  %v3105 = vld [vmem:[%s3104] sm:$0xf]
  %3110 = vrot.lane.b32.xlu0 %v2771, 64
  %v3111 = vpop.permute.xlu0 %3110
  %3112 = vrot.lane.b32.xlu0 %v2774, 64
  %v3113 = vpop.permute.xlu0 %3112
  %3114 = vrot.lane.b32.xlu0 %v2777, 64
  %v3115 = vpop.permute.xlu0 %3114
  %3116 = vrot.lane.b32.xlu0 %v2780, 64
  %v3117 = vpop.permute.xlu0 %3116
  %v3123 = vsel %vm152, %v3069, 0
  %v3126 = vsel %vm152, %v3071, 0
  %v3129 = vsel %vm152, %v3073, 0
  %v3132 = vsel %vm152, %v3075, 0
  %3134 = vmatpush.msra.mxu0 0.0
  %3135 = vmatpush.msra.mxu0 0.0
  %3136 = vmatpush.msra.mxu0 0.0
  %3137 = vmatpush.msra.mxu0 0.0
  %3138 = vmatpush.msra.mxu0 0.0
  %3139 = vmatpush.msra.mxu0 0.0
  %3140 = vmatpush.msra.mxu0 0.0
  %3141 = vmatpush.msra.mxu0 0.0
  %3142 = vmatpush.msra.mxu0 0.0
  %3143 = vmatpush.msra.mxu0 0.0
  %3144 = vmatpush.msra.mxu0 0.0
  %3145 = vmatpush.msra.mxu0 0.0
  %3146 = vmatpush.msra.mxu0 %v3117
  %3147 = vmatpush.msra.mxu0 %v3115
  %3148 = vmatpush.msra.mxu0 %v3113
  %3149 = vmatpush.msra.mxu0 %v3111
  %3150 = vmatmul.f32.gmra.mxu0 %v3123
  %v3151 = vpop.f32.mrf.mxu0
  %v3152 = vadd.f32 0.0, %v3151
  %3153 = vmatmul.f32.gmra.mxu0 %v3126
  %v3154 = vpop.f32.mrf.mxu0
  %v3155 = vadd.f32 0.0, %v3154
  %3156 = vmatmul.f32.gmra.mxu0 %v3129
  %v3157 = vpop.f32.mrf.mxu0
  %v3158 = vadd.f32 0.0, %v3157
  %3159 = vmatmul.f32.gmra.mxu0 %v3132
  %v3160 = vpop.f32.mrf.mxu0
  %v3161 = vadd.f32 0.0, %v3160
  %3162 = vdwg.mxu0
  %v3164 = vsel %vm540, %v3057, 0
  %v3167 = vsel %vm540, %v3059, 0
  %v3170 = vsel %vm540, %v3061, 0
  %v3173 = vsel %vm540, %v3063, 0
  %v3176 = vsel %vm691, %v3105, 0
  %3178 = vmatpush.msra.mxu0 0.0
  %3179 = vmatpush.msra.mxu0 0.0
  %3180 = vmatpush.msra.mxu0 0.0
  %3181 = vmatpush.msra.mxu0 0.0
  %3182 = vmatpush.msra.mxu0 0.0
  %3183 = vmatpush.msra.mxu0 0.0
  %3184 = vmatpush.msra.mxu0 0.0
  %3185 = vmatpush.msra.mxu0 0.0
  %3186 = vmatpush.msra.mxu0 0.0
  %3187 = vmatpush.msra.mxu0 0.0
  %3188 = vmatpush.msra.mxu0 0.0
  %3189 = vmatpush.msra.mxu0 0.0
  %3190 = vmatpush.msra.mxu0 0.0
  %3191 = vmatpush.msra.mxu0 0.0
  %3192 = vmatpush.msra.mxu0 0.0
  %3193 = vmatpush.msra.mxu0 %v3176
  %3194 = vmatmul.f32.gmra.mxu0 %v3164
  %v3195 = vpop.f32.mrf.mxu0
  %v3196 = vadd.f32 %v3152, %v3195
  %3197 = vmatmul.f32.gmra.mxu0 %v3167
  %v3198 = vpop.f32.mrf.mxu0
  %v3199 = vadd.f32 %v3155, %v3198
  %3200 = vmatmul.f32.gmra.mxu0 %v3170
  %v3201 = vpop.f32.mrf.mxu0
  %v3202 = vadd.f32 %v3158, %v3201
  %3203 = vmatmul.f32.gmra.mxu0 %v3173
  %v3204 = vpop.f32.mrf.mxu0
  %v3205 = vadd.f32 %v3161, %v3204
  %3206 = vdwg.mxu0
  %v3207 = vrcp.pop %v3100
  %v3208 = vrcp.pop %v3101
  %v3209 = vrcp.pop %v3102
  %v3210 = vrcp.pop %v3103
  %v3211 = vmul.f32 %v3196, %v3207
  %v3212 = vmul.f32 %v3199, %v3208
  %v3213 = vmul.f32 %v3202, %v3209
  %v3214 = vmul.f32 %v3205, %v3210
  %3215 = vrot.lane.b32.xlu0 %v2787, 112
  %v3216 = vpop.permute.xlu0 %3215
  %3217 = vrot.lane.b32.xlu0 %v2788, 112
  %v3218 = vpop.permute.xlu0 %3217
  %3219 = vrot.lane.b32.xlu0 %v2789, 112
  %v3220 = vpop.permute.xlu0 %3219
  %3221 = vrot.lane.b32.xlu0 %v2790, 112
  %v3222 = vpop.permute.xlu0 %3221
  %v3227 = vsel %vm307, %v3216, 0.0
  %3228 = vadd.xlane.f32.xlu0 %v3227
  %v3229 = vpop.xlane.xlu0 %3228
  %v3230 = vsel %vm307, %v3218, 0.0
  %3231 = vadd.xlane.f32.xlu0 %v3230
  %v3232 = vpop.xlane.xlu0 %3231
  %v3233 = vsel %vm307, %v3220, 0.0
  %3234 = vadd.xlane.f32.xlu0 %v3233
  %v3235 = vpop.xlane.xlu0 %3234
  %v3236 = vsel %vm307, %v3222, 0.0
  %3237 = vadd.xlane.f32.xlu0 %v3236
  %v3238 = vpop.xlane.xlu0 %3237
  %v3239 = vadd.f32 %v3229, 1e-08
  %v3240 = vadd.f32 %v3232, 1e-08
  %v3241 = vadd.f32 %v3235, 1e-08
  %v3242 = vadd.f32 %v3238, 1e-08
  %v3243 = vrsqrt.pop %v3239
  %v3244 = vmul.f32 %v3243, %v3239
  %v3245 = vmul.f32 %v3244, %v3243
  %v3246 = vmul.f32 0.5, %v3245
  %v3247 = vsub.f32 1.5, %v3246
  %v3248 = vmul.f32 %v3243, %v3247
  %vm3249 = vweird.f32 %v3239
  %vm3250 = vweird.f32 %v3243
  %vm3251 = vmor %vm3249, %vm3250
  %v3252 = vsel %vm3251, %v3243, %v3248
  %v3253 = vrsqrt.pop %v3240
  %v3254 = vmul.f32 %v3253, %v3240
  %v3255 = vmul.f32 %v3254, %v3253
  %v3256 = vmul.f32 0.5, %v3255
  %v3257 = vsub.f32 1.5, %v3256
  %v3258 = vmul.f32 %v3253, %v3257
  %vm3259 = vweird.f32 %v3240
  %vm3260 = vweird.f32 %v3253
  %vm3261 = vmor %vm3259, %vm3260
  %v3262 = vsel %vm3261, %v3253, %v3258
  %v3263 = vrsqrt.pop %v3241
  %v3264 = vmul.f32 %v3263, %v3241
  %v3265 = vmul.f32 %v3264, %v3263
  %v3266 = vmul.f32 0.5, %v3265
  %v3267 = vsub.f32 1.5, %v3266
  %v3268 = vmul.f32 %v3263, %v3267
  %vm3269 = vweird.f32 %v3241
  %vm3270 = vweird.f32 %v3263
  %vm3271 = vmor %vm3269, %vm3270
  %v3272 = vsel %vm3271, %v3263, %v3268
  %v3273 = vrsqrt.pop %v3242
  %v3274 = vmul.f32 %v3273, %v3242
  %v3275 = vmul.f32 %v3274, %v3273
  %v3276 = vmul.f32 0.5, %v3275
  %v3277 = vsub.f32 1.5, %v3276
  %v3278 = vmul.f32 %v3273, %v3277
  %vm3279 = vweird.f32 %v3242
  %vm3280 = vweird.f32 %v3273
  %vm3281 = vmor %vm3279, %vm3280
  %v3282 = vsel %vm3281, %v3273, %v3278
  %v3283 = vmul.f32 %v2771, %v3252
  %v3284 = vmul.f32 %v2774, %v3262
  %v3285 = vmul.f32 %v2777, %v3272
  %v3286 = vmul.f32 %v2780, %v3282
  %v3287 = vmul.f32 %v3283, 10.0
  %v3288 = vmul.f32 %v3284, 10.0
  %v3289 = vmul.f32 %v3285, 10.0
  %v3290 = vmul.f32 %v3286, 10.0
  %3291 = vrot.lane.b32.xlu0 %v2787, 80
  %v3292 = vpop.permute.xlu0 %3291
  %3293 = vrot.lane.b32.xlu0 %v2788, 80
  %v3294 = vpop.permute.xlu0 %3293
  %3295 = vrot.lane.b32.xlu0 %v2789, 80
  %v3296 = vpop.permute.xlu0 %3295
  %3297 = vrot.lane.b32.xlu0 %v2790, 80
  %v3298 = vpop.permute.xlu0 %3297
  %v3303 = vsel %vm307, %v3292, 0.0
  %3304 = vadd.xlane.f32.xlu0 %v3303
  %v3305 = vpop.xlane.xlu0 %3304
  %v3306 = vsel %vm307, %v3294, 0.0
  %3307 = vadd.xlane.f32.xlu0 %v3306
  %v3308 = vpop.xlane.xlu0 %3307
  %v3309 = vsel %vm307, %v3296, 0.0
  %3310 = vadd.xlane.f32.xlu0 %v3309
  %v3311 = vpop.xlane.xlu0 %3310
  %v3312 = vsel %vm307, %v3298, 0.0
  %3313 = vadd.xlane.f32.xlu0 %v3312
  %v3314 = vpop.xlane.xlu0 %3313
  %v3315 = vadd.f32 %v3305, 1e-08
  %v3316 = vadd.f32 %v3308, 1e-08
  %v3317 = vadd.f32 %v3311, 1e-08
  %v3318 = vadd.f32 %v3314, 1e-08
  %v3319 = vrsqrt.pop %v3315
  %v3320 = vmul.f32 %v3319, %v3315
  %v3321 = vmul.f32 %v3320, %v3319
  %v3322 = vmul.f32 0.5, %v3321
  %v3323 = vsub.f32 1.5, %v3322
  %v3324 = vmul.f32 %v3319, %v3323
  %vm3325 = vweird.f32 %v3315
  %vm3326 = vweird.f32 %v3319
  %vm3327 = vmor %vm3325, %vm3326
  %v3328 = vsel %vm3327, %v3319, %v3324
  %v3329 = vrsqrt.pop %v3316
  %v3330 = vmul.f32 %v3329, %v3316
  %v3331 = vmul.f32 %v3330, %v3329
  %v3332 = vmul.f32 0.5, %v3331
  %v3333 = vsub.f32 1.5, %v3332
  %v3334 = vmul.f32 %v3329, %v3333
  %vm3335 = vweird.f32 %v3316
  %vm3336 = vweird.f32 %v3329
  %vm3337 = vmor %vm3335, %vm3336
  %v3338 = vsel %vm3337, %v3329, %v3334
  %v3339 = vrsqrt.pop %v3317
  %v3340 = vmul.f32 %v3339, %v3317
  %v3341 = vmul.f32 %v3340, %v3339
  %v3342 = vmul.f32 0.5, %v3341
  %v3343 = vsub.f32 1.5, %v3342
  %v3344 = vmul.f32 %v3339, %v3343
  %vm3345 = vweird.f32 %v3317
  %vm3346 = vweird.f32 %v3339
  %vm3347 = vmor %vm3345, %vm3346
  %v3348 = vsel %vm3347, %v3339, %v3344
  %v3349 = vrsqrt.pop %v3318
  %v3350 = vmul.f32 %v3349, %v3318
  %v3351 = vmul.f32 %v3350, %v3349
  %v3352 = vmul.f32 0.5, %v3351
  %v3353 = vsub.f32 1.5, %v3352
  %v3354 = vmul.f32 %v3349, %v3353
  %vm3355 = vweird.f32 %v3318
  %vm3356 = vweird.f32 %v3349
  %vm3357 = vmor %vm3355, %vm3356
  %v3358 = vsel %vm3357, %v3349, %v3354
  %v3359 = vmul.f32 %v2771, %v3328
  %v3360 = vmul.f32 %v2774, %v3338
  %v3361 = vmul.f32 %v2777, %v3348
  %v3362 = vmul.f32 %v2780, %v3358
  %s3363 = scalar_lea.vmem %s7, 48
  %v3364 = vld [vmem:[%s3363] sm:$0xff]
  %v3365 = vld [vmem:[%s3363 + $0x8] sm:$0xff]
  %3370 = vrot.lane.b32.xlu0 %v3287, 112
  %v3371 = vpop.permute.xlu0 %3370
  %3372 = vrot.lane.b32.xlu0 %v3288, 112
  %v3373 = vpop.permute.xlu0 %3372
  %3374 = vrot.lane.b32.xlu0 %v3289, 112
  %v3375 = vpop.permute.xlu0 %3374
  %3376 = vrot.lane.b32.xlu0 %v3290, 112
  %v3377 = vpop.permute.xlu0 %3376
  %v3378 = vsel %vm307, %v3371, 0
  %v3380 = vsel %vm307, %v3373, 0
  %v3382 = vsel %vm307, %v3375, 0
  %v3384 = vsel %vm307, %v3377, 0
  %3386 = vmatpush.msra.mxu0 0.0
  %3387 = vmatpush.msra.mxu0 0.0
  %3388 = vmatpush.msra.mxu0 0.0
  %3389 = vmatpush.msra.mxu0 0.0
  %3390 = vmatpush.msra.mxu0 0.0
  %3391 = vmatpush.msra.mxu0 0.0
  %3392 = vmatpush.msra.mxu0 0.0
  %3393 = vmatpush.msra.mxu0 0.0
  %3394 = vmatpush.msra.mxu0 0.0
  %3395 = vmatpush.msra.mxu0 0.0
  %3396 = vmatpush.msra.mxu0 0.0
  %3397 = vmatpush.msra.mxu0 0.0
  %3398 = vmatpush.msra.mxu0 0.0
  %3399 = vmatpush.msra.mxu0 0.0
  %3400 = vmatpush.msra.mxu0 %v3365
  %3401 = vmatpush.msra.mxu0 %v3364
  %3402 = vmatmul.f32.gmra.mxu0 %v3378
  %v3403 = vpop.f32.mrf.mxu0
  %v3404 = vadd.f32 0.0, %v3403
  %3405 = vmatmul.f32.gmra.mxu0 %v3380
  %v3406 = vpop.f32.mrf.mxu0
  %v3407 = vadd.f32 0.0, %v3406
  %3408 = vmatmul.f32.gmra.mxu0 %v3382
  %v3409 = vpop.f32.mrf.mxu0
  %v3410 = vadd.f32 0.0, %v3409
  %3411 = vmatmul.f32.gmra.mxu0 %v3384
  %v3412 = vpop.f32.mrf.mxu0
  %v3413 = vadd.f32 0.0, %v3412
  %3414 = vdwg.mxu0
  %3419 = vrot.lane.b32.xlu0 %v3359, 80
  %v3420 = vpop.permute.xlu0 %3419
  %3421 = vrot.lane.b32.xlu0 %v3360, 80
  %v3422 = vpop.permute.xlu0 %3421
  %3423 = vrot.lane.b32.xlu0 %v3361, 80
  %v3424 = vpop.permute.xlu0 %3423
  %3425 = vrot.lane.b32.xlu0 %v3362, 80
  %v3426 = vpop.permute.xlu0 %3425
  %v3427 = vsel %vm307, %v3420, 0
  %v3429 = vsel %vm307, %v3422, 0
  %v3431 = vsel %vm307, %v3424, 0
  %v3433 = vsel %vm307, %v3426, 0
  %3435 = vmatpush.xpose.msra.mxu0 0.0
  %3436 = vmatpush.xpose.msra.mxu0 0.0
  %3437 = vmatpush.xpose.msra.mxu0 0.0
  %3438 = vmatpush.xpose.msra.mxu0 0.0
  %3439 = vmatpush.xpose.msra.mxu0 0.0
  %3440 = vmatpush.xpose.msra.mxu0 0.0
  %3441 = vmatpush.xpose.msra.mxu0 0.0
  %3442 = vmatpush.xpose.msra.mxu0 0.0
  %3443 = vmatpush.xpose.msra.mxu0 0.0
  %3444 = vmatpush.xpose.msra.mxu0 0.0
  %3445 = vmatpush.xpose.msra.mxu0 0.0
  %3446 = vmatpush.xpose.msra.mxu0 0.0
  %3447 = vmatpush.xpose.msra.mxu0 %v3433
  %3448 = vmatpush.xpose.msra.mxu0 %v3431
  %3449 = vmatpush.xpose.msra.mxu0 %v3429
  %3450 = vmatpush.xpose.msra.mxu0 %v3427
  %3451 = vmatmul.f32.gmra.mxu0 %v3378
  %v3452 = vpop.f32.mrf.mxu0
  %v3453 = vadd.f32 %v70, %v3452
  %3454 = vmatmul.f32.gmra.mxu0 %v3380
  %v3455 = vpop.f32.mrf.mxu0
  %v3456 = vadd.f32 %v71, %v3455
  %3457 = vmatmul.f32.gmra.mxu0 %v3382
  %v3458 = vpop.f32.mrf.mxu0
  %v3459 = vadd.f32 %v72, %v3458
  %3460 = vmatmul.f32.gmra.mxu0 %v3384
  %v3461 = vpop.f32.mrf.mxu0
  %v3462 = vadd.f32 %v73, %v3461
  %3463 = vdwg.mxu0
  %v3464 = vsel %vm540, %v3404, -inf
  %3465 = vmax.xlane.f32.xlu0 %v3464
  %v3466 = vpop.xlane.xlu0 %3465
  %v3467 = vsel %vm540, %v3407, -inf
  %3468 = vmax.xlane.f32.xlu0 %v3467
  %v3469 = vpop.xlane.xlu0 %3468
  %v3470 = vsel %vm540, %v3410, -inf
  %3471 = vmax.xlane.f32.xlu0 %v3470
  %v3472 = vpop.xlane.xlu0 %3471
  %v3473 = vsel %vm540, %v3413, -inf
  %3474 = vmax.xlane.f32.xlu0 %v3473
  %v3475 = vpop.xlane.xlu0 %3474
  %v3476 = vsel %vm152, %v3453, -inf
  %3477 = vmax.xlane.f32.xlu0 %v3476
  %v3478 = vpop.xlane.xlu0 %3477
  %v3479 = vsel %vm152, %v3456, -inf
  %3480 = vmax.xlane.f32.xlu0 %v3479
  %v3481 = vpop.xlane.xlu0 %3480
  %v3482 = vsel %vm152, %v3459, -inf
  %3483 = vmax.xlane.f32.xlu0 %v3482
  %v3484 = vpop.xlane.xlu0 %3483
  %v3485 = vsel %vm152, %v3462, -inf
  %3486 = vmax.xlane.f32.xlu0 %v3485
  %v3487 = vpop.xlane.xlu0 %3486
  %v3488 = vmax.f32 %v3466, %v3478
  %v3489 = vmax.f32 %v3469, %v3481
  %v3490 = vmax.f32 %v3472, %v3484
  %v3491 = vmax.f32 %v3475, %v3487
  %v3492 = vsub.f32 %v3404, %v3488
  %v3493 = vsub.f32 %v3407, %v3489
  %v3494 = vsub.f32 %v3410, %v3490
  %v3495 = vsub.f32 %v3413, %v3491
  %v3496 = vmul.f32 %v3492, 1.442695
  %v3497 = vpow.pop %v3496
  %v3498 = vmul.f32 %v3493, 1.442695
  %v3499 = vpow.pop %v3498
  %v3500 = vmul.f32 %v3494, 1.442695
  %v3501 = vpow.pop %v3500
  %v3502 = vmul.f32 %v3495, 1.442695
  %v3503 = vpow.pop %v3502
  %v3504 = vsub.f32 %v3453, %v3488
  %v3505 = vsub.f32 %v3456, %v3489
  %v3506 = vsub.f32 %v3459, %v3490
  %v3507 = vsub.f32 %v3462, %v3491
  %v3508 = vmul.f32 %v3504, 1.442695
  %v3509 = vpow.pop %v3508
  %v3510 = vmul.f32 %v3505, 1.442695
  %v3511 = vpow.pop %v3510
  %v3512 = vmul.f32 %v3506, 1.442695
  %v3513 = vpow.pop %v3512
  %v3514 = vmul.f32 %v3507, 1.442695
  %v3515 = vpow.pop %v3514
  %v3516 = vsel %vm540, %v3497, 0.0
  %3517 = vadd.xlane.f32.xlu0 %v3516
  %v3518 = vpop.xlane.xlu0 %3517
  %v3519 = vsel %vm540, %v3499, 0.0
  %3520 = vadd.xlane.f32.xlu0 %v3519
  %v3521 = vpop.xlane.xlu0 %3520
  %v3522 = vsel %vm540, %v3501, 0.0
  %3523 = vadd.xlane.f32.xlu0 %v3522
  %v3524 = vpop.xlane.xlu0 %3523
  %v3525 = vsel %vm540, %v3503, 0.0
  %3526 = vadd.xlane.f32.xlu0 %v3525
  %v3527 = vpop.xlane.xlu0 %3526
  %v3528 = vsel %vm152, %v3509, 0.0
  %3529 = vadd.xlane.f32.xlu0 %v3528
  %v3530 = vpop.xlane.xlu0 %3529
  %v3531 = vsel %vm152, %v3511, 0.0
  %3532 = vadd.xlane.f32.xlu0 %v3531
  %v3533 = vpop.xlane.xlu0 %3532
  %v3534 = vsel %vm152, %v3513, 0.0
  %3535 = vadd.xlane.f32.xlu0 %v3534
  %v3536 = vpop.xlane.xlu0 %3535
  %v3537 = vsel %vm152, %v3515, 0.0
  %3538 = vadd.xlane.f32.xlu0 %v3537
  %v3539 = vpop.xlane.xlu0 %3538
  %v3540 = vadd.f32 %v3518, %v3530
  %v3541 = vadd.f32 %v3521, %v3533
  %v3542 = vadd.f32 %v3524, %v3536
  %v3543 = vadd.f32 %v3527, %v3539
  %s3544 = scalar_lea.vmem %s8, 12
  %v3545 = vld [vmem:[%s3544] sm:$0xf]
  %3546 = vrot.lane.b32.xlu0 %v2771, 48
  %v3547 = vpop.permute.xlu0 %3546
  %3548 = vrot.lane.b32.xlu0 %v2774, 48
  %v3549 = vpop.permute.xlu0 %3548
  %3550 = vrot.lane.b32.xlu0 %v2777, 48
  %v3551 = vpop.permute.xlu0 %3550
  %3552 = vrot.lane.b32.xlu0 %v2780, 48
  %v3553 = vpop.permute.xlu0 %3552
  %v3559 = vsel %vm152, %v3509, 0
  %v3562 = vsel %vm152, %v3511, 0
  %v3565 = vsel %vm152, %v3513, 0
  %v3568 = vsel %vm152, %v3515, 0
  %3570 = vmatpush.msra.mxu0 0.0
  %3571 = vmatpush.msra.mxu0 0.0
  %3572 = vmatpush.msra.mxu0 0.0
  %3573 = vmatpush.msra.mxu0 0.0
  %3574 = vmatpush.msra.mxu0 0.0
  %3575 = vmatpush.msra.mxu0 0.0
  %3576 = vmatpush.msra.mxu0 0.0
  %3577 = vmatpush.msra.mxu0 0.0
  %3578 = vmatpush.msra.mxu0 0.0
  %3579 = vmatpush.msra.mxu0 0.0
  %3580 = vmatpush.msra.mxu0 0.0
  %3581 = vmatpush.msra.mxu0 0.0
  %3582 = vmatpush.msra.mxu0 %v3553
  %3583 = vmatpush.msra.mxu0 %v3551
  %3584 = vmatpush.msra.mxu0 %v3549
  %3585 = vmatpush.msra.mxu0 %v3547
  %3586 = vmatmul.f32.gmra.mxu0 %v3559
  %v3587 = vpop.f32.mrf.mxu0
  %v3588 = vadd.f32 0.0, %v3587
  %3589 = vmatmul.f32.gmra.mxu0 %v3562
  %v3590 = vpop.f32.mrf.mxu0
  %v3591 = vadd.f32 0.0, %v3590
  %3592 = vmatmul.f32.gmra.mxu0 %v3565
  %v3593 = vpop.f32.mrf.mxu0
  %v3594 = vadd.f32 0.0, %v3593
  %3595 = vmatmul.f32.gmra.mxu0 %v3568
  %v3596 = vpop.f32.mrf.mxu0
  %v3597 = vadd.f32 0.0, %v3596
  %3598 = vdwg.mxu0
  %v3600 = vsel %vm540, %v3497, 0
  %v3603 = vsel %vm540, %v3499, 0
  %v3606 = vsel %vm540, %v3501, 0
  %v3609 = vsel %vm540, %v3503, 0
  %v3612 = vsel %vm691, %v3545, 0
  %3614 = vmatpush.msra.mxu0 0.0
  %3615 = vmatpush.msra.mxu0 0.0
  %3616 = vmatpush.msra.mxu0 0.0
  %3617 = vmatpush.msra.mxu0 0.0
  %3618 = vmatpush.msra.mxu0 0.0
  %3619 = vmatpush.msra.mxu0 0.0
  %3620 = vmatpush.msra.mxu0 0.0
  %3621 = vmatpush.msra.mxu0 0.0
  %3622 = vmatpush.msra.mxu0 0.0
  %3623 = vmatpush.msra.mxu0 0.0
  %3624 = vmatpush.msra.mxu0 0.0
  %3625 = vmatpush.msra.mxu0 0.0
  %3626 = vmatpush.msra.mxu0 0.0
  %3627 = vmatpush.msra.mxu0 0.0
  %3628 = vmatpush.msra.mxu0 0.0
  %3629 = vmatpush.msra.mxu0 %v3612
  %3630 = vmatmul.f32.gmra.mxu0 %v3600
  %v3631 = vpop.f32.mrf.mxu0
  %v3632 = vadd.f32 %v3588, %v3631
  %3633 = vmatmul.f32.gmra.mxu0 %v3603
  %v3634 = vpop.f32.mrf.mxu0
  %v3635 = vadd.f32 %v3591, %v3634
  %3636 = vmatmul.f32.gmra.mxu0 %v3606
  %v3637 = vpop.f32.mrf.mxu0
  %v3638 = vadd.f32 %v3594, %v3637
  %3639 = vmatmul.f32.gmra.mxu0 %v3609
  %v3640 = vpop.f32.mrf.mxu0
  %v3641 = vadd.f32 %v3597, %v3640
  %3642 = vdwg.mxu0
  %v3643 = vrcp.pop %v3540
  %v3644 = vrcp.pop %v3541
  %v3645 = vrcp.pop %v3542
  %v3646 = vrcp.pop %v3543
  %v3647 = vmul.f32 %v3632, %v3643
  %v3648 = vmul.f32 %v3635, %v3644
  %v3649 = vmul.f32 %v3638, %v3645
  %v3650 = vmul.f32 %v3641, %v3646
  %3655 = vrot.lane.b32.xlu0 %v3647, 16
  %v3656 = vpop.permute.xlu0 %3655
  %3657 = vrot.lane.b32.xlu0 %v3648, 16
  %v3658 = vpop.permute.xlu0 %3657
  %3659 = vrot.lane.b32.xlu0 %v3649, 16
  %v3660 = vpop.permute.xlu0 %3659
  %3661 = vrot.lane.b32.xlu0 %v3650, 16
  %v3662 = vpop.permute.xlu0 %3661
  %v3667 = vsel %vm307, %v3211, %v3656
  %v3668 = vsel %vm307, %v3212, %v3658
  %v3669 = vsel %vm307, %v3213, %v3660
  %v3670 = vsel %vm307, %v3214, %v3662
  %v3672 = vsel %vm152, %v3667, 0
  %v3675 = vsel %vm152, %v3668, 0
  %v3678 = vsel %vm152, %v3669, 0
  %v3681 = vsel %vm152, %v3670, 0
  %3683 = vmatpush.msra.mxu0 0.0
  %3684 = vmatpush.msra.mxu0 0.0
  %3685 = vmatpush.msra.mxu0 0.0
  %3686 = vmatpush.msra.mxu0 0.0
  %3687 = vmatpush.msra.mxu0 0.0
  %3688 = vmatpush.msra.mxu0 0.0
  %3689 = vmatpush.msra.mxu0 0.0
  %3690 = vmatpush.msra.mxu0 0.0
  %3691 = vmatpush.msra.mxu0 0.0
  %3692 = vmatpush.msra.mxu0 0.0
  %3693 = vmatpush.msra.mxu0 0.0
  %3694 = vmatpush.msra.mxu0 0.0
  %3695 = vmatpush.msra.mxu0 %v2786
  %3696 = vmatpush.msra.mxu0 %v2785
  %3697 = vmatpush.msra.mxu0 %v2784
  %3698 = vmatpush.msra.mxu0 %v2783
  %3699 = vmatmul.f32.gmra.mxu0 %v3672
  %v3700 = vpop.f32.mrf.mxu0
  %v3701 = vadd.f32 0.0, %v3700
  %3702 = vmatmul.f32.gmra.mxu0 %v3675
  %v3703 = vpop.f32.mrf.mxu0
  %v3704 = vadd.f32 0.0, %v3703
  %3705 = vmatmul.f32.gmra.mxu0 %v3678
  %v3706 = vpop.f32.mrf.mxu0
  %v3707 = vadd.f32 0.0, %v3706
  %3708 = vmatmul.f32.gmra.mxu0 %v3681
  %v3709 = vpop.f32.mrf.mxu0
  %v3710 = vadd.f32 0.0, %v3709
  %3711 = vdwg.mxu0
  %v3712 = vadd.f32 %v2632, %v3701
  %v3713 = vadd.f32 %v2633, %v3704
  %v3714 = vadd.f32 %v2634, %v3707
  %v3715 = vadd.f32 %v2635, %v3710
  %v3716 = vld [vmem:[%s3 + $0x10] sm:$0x1]
  %v3717 = vld [vmem:[%s3 + $0x11] sm:$0x1]
  %v3718 = vsel %vm152, %v3712, 0.0
  %3719 = vadd.xlane.f32.xlu0 %v3718
  %v3720 = vpop.xlane.xlu0 %3719
  %v3721 = vsel %vm152, %v3713, 0.0
  %3722 = vadd.xlane.f32.xlu0 %v3721
  %v3723 = vpop.xlane.xlu0 %3722
  %v3724 = vsel %vm152, %v3714, 0.0
  %3725 = vadd.xlane.f32.xlu0 %v3724
  %v3726 = vpop.xlane.xlu0 %3725
  %v3727 = vsel %vm152, %v3715, 0.0
  %3728 = vadd.xlane.f32.xlu0 %v3727
  %v3729 = vpop.xlane.xlu0 %3728
  %v3730 = vmul.f32 %v3720, %v171
  %v3731 = vmul.f32 %v3723, %v171
  %v3732 = vmul.f32 %v3726, %v171
  %v3733 = vmul.f32 %v3729, %v171
  %v3734 = vsub.f32 %v3712, %v3730
  %v3735 = vsub.f32 %v3713, %v3731
  %v3736 = vsub.f32 %v3714, %v3732
  %v3737 = vsub.f32 %v3715, %v3733
  %v3738 = vmul.f32 %v3734, %v3734
  %v3739 = vmul.f32 %v3735, %v3735
  %v3740 = vmul.f32 %v3736, %v3736
  %v3741 = vmul.f32 %v3737, %v3737
  %v3742 = vsel %vm152, %v3738, 0.0
  %3743 = vadd.xlane.f32.xlu0 %v3742
  %v3744 = vpop.xlane.xlu0 %3743
  %v3745 = vsel %vm152, %v3739, 0.0
  %3746 = vadd.xlane.f32.xlu0 %v3745
  %v3747 = vpop.xlane.xlu0 %3746
  %v3748 = vsel %vm152, %v3740, 0.0
  %3749 = vadd.xlane.f32.xlu0 %v3748
  %v3750 = vpop.xlane.xlu0 %3749
  %v3751 = vsel %vm152, %v3741, 0.0
  %3752 = vadd.xlane.f32.xlu0 %v3751
  %v3753 = vpop.xlane.xlu0 %3752
  %v3754 = vmul.f32 %v3744, %v171
  %v3755 = vmul.f32 %v3747, %v171
  %v3756 = vmul.f32 %v3750, %v171
  %v3757 = vmul.f32 %v3753, %v171
  %v3758 = vadd.f32 %v3754, 1e-05
  %v3759 = vadd.f32 %v3755, 1e-05
  %v3760 = vadd.f32 %v3756, 1e-05
  %v3761 = vadd.f32 %v3757, 1e-05
  %v3762 = vrsqrt.pop %v3758
  %v3763 = vmul.f32 %v3762, %v3758
  %v3764 = vmul.f32 %v3763, %v3762
  %v3765 = vmul.f32 0.5, %v3764
  %v3766 = vsub.f32 1.5, %v3765
  %v3767 = vmul.f32 %v3762, %v3766
  %vm3768 = vweird.f32 %v3758
  %vm3769 = vweird.f32 %v3762
  %vm3770 = vmor %vm3768, %vm3769
  %v3771 = vsel %vm3770, %v3762, %v3767
  %v3772 = vrsqrt.pop %v3759
  %v3773 = vmul.f32 %v3772, %v3759
  %v3774 = vmul.f32 %v3773, %v3772
  %v3775 = vmul.f32 0.5, %v3774
  %v3776 = vsub.f32 1.5, %v3775
  %v3777 = vmul.f32 %v3772, %v3776
  %vm3778 = vweird.f32 %v3759
  %vm3779 = vweird.f32 %v3772
  %vm3780 = vmor %vm3778, %vm3779
  %v3781 = vsel %vm3780, %v3772, %v3777
  %v3782 = vrsqrt.pop %v3760
  %v3783 = vmul.f32 %v3782, %v3760
  %v3784 = vmul.f32 %v3783, %v3782
  %v3785 = vmul.f32 0.5, %v3784
  %v3786 = vsub.f32 1.5, %v3785
  %v3787 = vmul.f32 %v3782, %v3786
  %vm3788 = vweird.f32 %v3760
  %vm3789 = vweird.f32 %v3782
  %vm3790 = vmor %vm3788, %vm3789
  %v3791 = vsel %vm3790, %v3782, %v3787
  %v3792 = vrsqrt.pop %v3761
  %v3793 = vmul.f32 %v3792, %v3761
  %v3794 = vmul.f32 %v3793, %v3792
  %v3795 = vmul.f32 0.5, %v3794
  %v3796 = vsub.f32 1.5, %v3795
  %v3797 = vmul.f32 %v3792, %v3796
  %vm3798 = vweird.f32 %v3761
  %vm3799 = vweird.f32 %v3792
  %vm3800 = vmor %vm3798, %vm3799
  %v3801 = vsel %vm3800, %v3792, %v3797
  %v3802 = vmul.f32 %v3734, %v3771
  %v3803 = vmul.f32 %v3735, %v3781
  %v3804 = vmul.f32 %v3736, %v3791
  %v3805 = vmul.f32 %v3737, %v3801
  %v3806 = vperm.slane %v3716, 0
  %v3807 = vmul.f32 %v3802, %v3806
  %v3808 = vmul.f32 %v3803, %v3806
  %v3809 = vmul.f32 %v3804, %v3806
  %v3810 = vmul.f32 %v3805, %v3806
  %v3811 = vperm.slane %v3717, 0
  %v3812 = vadd.f32 %v3807, %v3811
  %v3813 = vadd.f32 %v3808, %v3811
  %v3814 = vadd.f32 %v3809, %v3811
  %v3815 = vadd.f32 %v3810, %v3811
  %v3817 = vsel %vm152, %v3812, 0
  %v3820 = vsel %vm152, %v3813, 0
  %v3823 = vsel %vm152, %v3814, 0
  %v3826 = vsel %vm152, %v3815, 0
  %3828 = vmatpush.msra.mxu0 0.0
  %3829 = vmatpush.msra.mxu0 0.0
  %3830 = vmatpush.msra.mxu0 0.0
  %3831 = vmatpush.msra.mxu0 0.0
  %3832 = vmatpush.msra.mxu0 0.0
  %3833 = vmatpush.msra.mxu0 0.0
  %3834 = vmatpush.msra.mxu0 0.0
  %3835 = vmatpush.msra.mxu0 0.0
  %3836 = vmatpush.msra.mxu0 0.0
  %3837 = vmatpush.msra.mxu0 0.0
  %3838 = vmatpush.msra.mxu0 0.0
  %3839 = vmatpush.msra.mxu0 0.0
  %3840 = vmatpush.msra.mxu0 %v2640
  %3841 = vmatpush.msra.mxu0 %v2639
  %3842 = vmatpush.msra.mxu0 %v2638
  %3843 = vmatpush.msra.mxu0 %v2637
  %3844 = vmatmul.f32.gmra.mxu0 %v3817
  %v3845 = vpop.f32.mrf.mxu0
  %v3846 = vadd.f32 0.0, %v3845
  %3847 = vmatmul.f32.gmra.mxu0 %v3820
  %v3848 = vpop.f32.mrf.mxu0
  %v3849 = vadd.f32 0.0, %v3848
  %3850 = vmatmul.f32.gmra.mxu0 %v3823
  %v3851 = vpop.f32.mrf.mxu0
  %v3852 = vadd.f32 0.0, %v3851
  %3853 = vmatmul.f32.gmra.mxu0 %v3826
  %v3854 = vpop.f32.mrf.mxu0
  %v3855 = vadd.f32 0.0, %v3854
  %3856 = vdwg.mxu0
  %s3857 = scalar_lea.vmem %s5, 48
  %v3858 = vld [vmem:[%s3857] sm:$0xff]
  %v3859 = vld [vmem:[%s3857 + $0x8] sm:$0xff]
  %v3860 = vld [vmem:[%s3857 + $0x10] sm:$0xff]
  %v3861 = vld [vmem:[%s3857 + $0x18] sm:$0xff]
  %v3862 = vld [vmem:[%s3857 + $0x20] sm:$0xff]
  %v3863 = vld [vmem:[%s3857 + $0x28] sm:$0xff]
  %3864 = vmatpush.msra.mxu0 0.0
  %3865 = vmatpush.msra.mxu0 0.0
  %3866 = vmatpush.msra.mxu0 0.0
  %3867 = vmatpush.msra.mxu0 0.0
  %3868 = vmatpush.msra.mxu0 0.0
  %3869 = vmatpush.msra.mxu0 0.0
  %3870 = vmatpush.msra.mxu0 0.0
  %3871 = vmatpush.msra.mxu0 0.0
  %3872 = vmatpush.msra.mxu0 0.0
  %3873 = vmatpush.msra.mxu0 0.0
  %3874 = vmatpush.msra.mxu0 %v3863
  %3875 = vmatpush.msra.mxu0 %v3862
  %3876 = vmatpush.msra.mxu0 %v3861
  %3877 = vmatpush.msra.mxu0 %v3860
  %3878 = vmatpush.msra.mxu0 %v3859
  %3879 = vmatpush.msra.mxu0 %v3858
  %3880 = vmatmul.f32.gmra.mxu0 %v1382
  %v3881 = vpop.f32.mrf.mxu0
  %v3882 = vadd.f32 0.0, %v3881
  %3883 = vmatmul.f32.gmra.mxu0 %v1385
  %v3884 = vpop.f32.mrf.mxu0
  %v3885 = vadd.f32 0.0, %v3884
  %3886 = vdwg.mxu0
  %s3887 = scalar_lea.vmem %s6, 96
  %v3888 = vld [vmem:[%s3887] sm:$0xff]
  %v3889 = vld [vmem:[%s3887 + $0x8] sm:$0xff]
  %v3890 = vld [vmem:[%s3887 + $0x10] sm:$0xff]
  %v3891 = vld [vmem:[%s3887 + $0x18] sm:$0xff]
  %v3892 = vmul.f32 %v3846, %v3846
  %v3893 = vmul.f32 %v3849, %v3849
  %v3894 = vmul.f32 %v3852, %v3852
  %v3895 = vmul.f32 %v3855, %v3855
  %3900 = vrot.lane.b32.xlu0 %v3892, 32
  %v3901 = vpop.permute.xlu0 %3900
  %3902 = vrot.lane.b32.xlu0 %v3893, 32
  %v3903 = vpop.permute.xlu0 %3902
  %3904 = vrot.lane.b32.xlu0 %v3894, 32
  %v3905 = vpop.permute.xlu0 %3904
  %3906 = vrot.lane.b32.xlu0 %v3895, 32
  %v3907 = vpop.permute.xlu0 %3906
  %v3912 = vsel %vm307, %v3901, 0.0
  %3913 = vadd.xlane.f32.xlu0 %v3912
  %v3914 = vpop.xlane.xlu0 %3913
  %v3915 = vsel %vm307, %v3903, 0.0
  %3916 = vadd.xlane.f32.xlu0 %v3915
  %v3917 = vpop.xlane.xlu0 %3916
  %v3918 = vsel %vm307, %v3905, 0.0
  %3919 = vadd.xlane.f32.xlu0 %v3918
  %v3920 = vpop.xlane.xlu0 %3919
  %v3921 = vsel %vm307, %v3907, 0.0
  %3922 = vadd.xlane.f32.xlu0 %v3921
  %v3923 = vpop.xlane.xlu0 %3922
  %v3924 = vadd.f32 %v3914, 1e-08
  %v3925 = vadd.f32 %v3917, 1e-08
  %v3926 = vadd.f32 %v3920, 1e-08
  %v3927 = vadd.f32 %v3923, 1e-08
  %v3928 = vrsqrt.pop %v3924
  %v3929 = vmul.f32 %v3928, %v3924
  %v3930 = vmul.f32 %v3929, %v3928
  %v3931 = vmul.f32 0.5, %v3930
  %v3932 = vsub.f32 1.5, %v3931
  %v3933 = vmul.f32 %v3928, %v3932
  %vm3934 = vweird.f32 %v3924
  %vm3935 = vweird.f32 %v3928
  %vm3936 = vmor %vm3934, %vm3935
  %v3937 = vsel %vm3936, %v3928, %v3933
  %v3938 = vrsqrt.pop %v3925
  %v3939 = vmul.f32 %v3938, %v3925
  %v3940 = vmul.f32 %v3939, %v3938
  %v3941 = vmul.f32 0.5, %v3940
  %v3942 = vsub.f32 1.5, %v3941
  %v3943 = vmul.f32 %v3938, %v3942
  %vm3944 = vweird.f32 %v3925
  %vm3945 = vweird.f32 %v3938
  %vm3946 = vmor %vm3944, %vm3945
  %v3947 = vsel %vm3946, %v3938, %v3943
  %v3948 = vrsqrt.pop %v3926
  %v3949 = vmul.f32 %v3948, %v3926
  %v3950 = vmul.f32 %v3949, %v3948
  %v3951 = vmul.f32 0.5, %v3950
  %v3952 = vsub.f32 1.5, %v3951
  %v3953 = vmul.f32 %v3948, %v3952
  %vm3954 = vweird.f32 %v3926
  %vm3955 = vweird.f32 %v3948
  %vm3956 = vmor %vm3954, %vm3955
  %v3957 = vsel %vm3956, %v3948, %v3953
  %v3958 = vrsqrt.pop %v3927
  %v3959 = vmul.f32 %v3958, %v3927
  %v3960 = vmul.f32 %v3959, %v3958
  %v3961 = vmul.f32 0.5, %v3960
  %v3962 = vsub.f32 1.5, %v3961
  %v3963 = vmul.f32 %v3958, %v3962
  %vm3964 = vweird.f32 %v3927
  %vm3965 = vweird.f32 %v3958
  %vm3966 = vmor %vm3964, %vm3965
  %v3967 = vsel %vm3966, %v3958, %v3963
  %v3968 = vmul.f32 %v3846, %v3937
  %v3969 = vmul.f32 %v3849, %v3947
  %v3970 = vmul.f32 %v3852, %v3957
  %v3971 = vmul.f32 %v3855, %v3967
  %v3972 = vmul.f32 %v3968, 10.0
  %v3973 = vmul.f32 %v3969, 10.0
  %v3974 = vmul.f32 %v3970, 10.0
  %v3975 = vmul.f32 %v3971, 10.0
  %v3976 = vmul.f32 %v3882, %v3882
  %v3977 = vmul.f32 %v3885, %v3885
  %v3978 = vsel %vm307, %v3976, 0.0
  %3979 = vadd.xlane.f32.xlu0 %v3978
  %v3980 = vpop.xlane.xlu0 %3979
  %v3981 = vsel %vm307, %v3977, 0.0
  %3982 = vadd.xlane.f32.xlu0 %v3981
  %v3983 = vpop.xlane.xlu0 %3982
  %v3984 = vadd.f32 %v3980, 1e-08
  %v3985 = vadd.f32 %v3983, 1e-08
  %v3986 = vrsqrt.pop %v3984
  %v3987 = vmul.f32 %v3986, %v3984
  %v3988 = vmul.f32 %v3987, %v3986
  %v3989 = vmul.f32 0.5, %v3988
  %v3990 = vsub.f32 1.5, %v3989
  %v3991 = vmul.f32 %v3986, %v3990
  %vm3992 = vweird.f32 %v3984
  %vm3993 = vweird.f32 %v3986
  %vm3994 = vmor %vm3992, %vm3993
  %v3995 = vsel %vm3994, %v3986, %v3991
  %v3996 = vrsqrt.pop %v3985
  %v3997 = vmul.f32 %v3996, %v3985
  %v3998 = vmul.f32 %v3997, %v3996
  %v3999 = vmul.f32 0.5, %v3998
  %v4000 = vsub.f32 1.5, %v3999
  %v4001 = vmul.f32 %v3996, %v4000
  %vm4002 = vweird.f32 %v3985
  %vm4003 = vweird.f32 %v3996
  %vm4004 = vmor %vm4002, %vm4003
  %v4005 = vsel %vm4004, %v3996, %v4001
  %v4006 = vmul.f32 %v3882, %v3995
  %v4007 = vmul.f32 %v3885, %v4005
  %s4008 = scalar_lea.vmem %s7, 96
  %v4009 = vld [vmem:[%s4008] sm:$0xff]
  %v4010 = vld [vmem:[%s4008 + $0x8] sm:$0xff]
  %4015 = vrot.lane.b32.xlu0 %v3972, 32
  %v4016 = vpop.permute.xlu0 %4015
  %4017 = vrot.lane.b32.xlu0 %v3973, 32
  %v4018 = vpop.permute.xlu0 %4017
  %4019 = vrot.lane.b32.xlu0 %v3974, 32
  %v4020 = vpop.permute.xlu0 %4019
  %4021 = vrot.lane.b32.xlu0 %v3975, 32
  %v4022 = vpop.permute.xlu0 %4021
  %v4023 = vsel %vm307, %v4016, 0
  %v4025 = vsel %vm307, %v4018, 0
  %v4027 = vsel %vm307, %v4020, 0
  %v4029 = vsel %vm307, %v4022, 0
  %4031 = vmatpush.msra.mxu0 0.0
  %4032 = vmatpush.msra.mxu0 0.0
  %4033 = vmatpush.msra.mxu0 0.0
  %4034 = vmatpush.msra.mxu0 0.0
  %4035 = vmatpush.msra.mxu0 0.0
  %4036 = vmatpush.msra.mxu0 0.0
  %4037 = vmatpush.msra.mxu0 0.0
  %4038 = vmatpush.msra.mxu0 0.0
  %4039 = vmatpush.msra.mxu0 0.0
  %4040 = vmatpush.msra.mxu0 0.0
  %4041 = vmatpush.msra.mxu0 0.0
  %4042 = vmatpush.msra.mxu0 0.0
  %4043 = vmatpush.msra.mxu0 0.0
  %4044 = vmatpush.msra.mxu0 0.0
  %4045 = vmatpush.msra.mxu0 %v4010
  %4046 = vmatpush.msra.mxu0 %v4009
  %4047 = vmatmul.f32.gmra.mxu0 %v4023
  %v4048 = vpop.f32.mrf.mxu0
  %v4049 = vadd.f32 0.0, %v4048
  %4050 = vmatmul.f32.gmra.mxu0 %v4025
  %v4051 = vpop.f32.mrf.mxu0
  %v4052 = vadd.f32 0.0, %v4051
  %4053 = vmatmul.f32.gmra.mxu0 %v4027
  %v4054 = vpop.f32.mrf.mxu0
  %v4055 = vadd.f32 0.0, %v4054
  %4056 = vmatmul.f32.gmra.mxu0 %v4029
  %v4057 = vpop.f32.mrf.mxu0
  %v4058 = vadd.f32 0.0, %v4057
  %4059 = vdwg.mxu0
  %v4061 = vsel %vm307, %v4006, 0
  %v4064 = vsel %vm307, %v4007, 0
  %4066 = vmatpush.xpose.msra.mxu0 0.0
  %4067 = vmatpush.xpose.msra.mxu0 0.0
  %4068 = vmatpush.xpose.msra.mxu0 0.0
  %4069 = vmatpush.xpose.msra.mxu0 0.0
  %4070 = vmatpush.xpose.msra.mxu0 0.0
  %4071 = vmatpush.xpose.msra.mxu0 0.0
  %4072 = vmatpush.xpose.msra.mxu0 0.0
  %4073 = vmatpush.xpose.msra.mxu0 0.0
  %4074 = vmatpush.xpose.msra.mxu0 0.0
  %4075 = vmatpush.xpose.msra.mxu0 0.0
  %4076 = vmatpush.xpose.msra.mxu0 0.0
  %4077 = vmatpush.xpose.msra.mxu0 0.0
  %4078 = vmatpush.xpose.msra.mxu0 0.0
  %4079 = vmatpush.xpose.msra.mxu0 0.0
  %4080 = vmatpush.xpose.msra.mxu0 %v4064
  %4081 = vmatpush.xpose.msra.mxu0 %v4061
  %4082 = vmatmul.f32.gmra.mxu0 %v4023
  %v4083 = vpop.f32.mrf.mxu0
  %v4084 = vadd.f32 %v85, %v4083
  %4085 = vmatmul.f32.gmra.mxu0 %v4025
  %v4086 = vpop.f32.mrf.mxu0
  %v4087 = vadd.f32 %v86, %v4086
  %4088 = vmatmul.f32.gmra.mxu0 %v4027
  %v4089 = vpop.f32.mrf.mxu0
  %v4090 = vadd.f32 %v87, %v4089
  %4091 = vmatmul.f32.gmra.mxu0 %v4029
  %v4092 = vpop.f32.mrf.mxu0
  %v4093 = vadd.f32 %v88, %v4092
  %4094 = vdwg.mxu0
  %v4095 = vsel %vm540, %v4049, -inf
  %4096 = vmax.xlane.f32.xlu0 %v4095
  %v4097 = vpop.xlane.xlu0 %4096
  %v4098 = vsel %vm540, %v4052, -inf
  %4099 = vmax.xlane.f32.xlu0 %v4098
  %v4100 = vpop.xlane.xlu0 %4099
  %v4101 = vsel %vm540, %v4055, -inf
  %4102 = vmax.xlane.f32.xlu0 %v4101
  %v4103 = vpop.xlane.xlu0 %4102
  %v4104 = vsel %vm540, %v4058, -inf
  %4105 = vmax.xlane.f32.xlu0 %v4104
  %v4106 = vpop.xlane.xlu0 %4105
  %v4107 = vsel %vm307, %v4084, -inf
  %4108 = vmax.xlane.f32.xlu0 %v4107
  %v4109 = vpop.xlane.xlu0 %4108
  %v4110 = vsel %vm307, %v4087, -inf
  %4111 = vmax.xlane.f32.xlu0 %v4110
  %v4112 = vpop.xlane.xlu0 %4111
  %v4113 = vsel %vm307, %v4090, -inf
  %4114 = vmax.xlane.f32.xlu0 %v4113
  %v4115 = vpop.xlane.xlu0 %4114
  %v4116 = vsel %vm307, %v4093, -inf
  %4117 = vmax.xlane.f32.xlu0 %v4116
  %v4118 = vpop.xlane.xlu0 %4117
  %v4119 = vmax.f32 %v4097, %v4109
  %v4120 = vmax.f32 %v4100, %v4112
  %v4121 = vmax.f32 %v4103, %v4115
  %v4122 = vmax.f32 %v4106, %v4118
  %v4123 = vsub.f32 %v4049, %v4119
  %v4124 = vsub.f32 %v4052, %v4120
  %v4125 = vsub.f32 %v4055, %v4121
  %v4126 = vsub.f32 %v4058, %v4122
  %v4127 = vmul.f32 %v4123, 1.442695
  %v4128 = vpow.pop %v4127
  %v4129 = vmul.f32 %v4124, 1.442695
  %v4130 = vpow.pop %v4129
  %v4131 = vmul.f32 %v4125, 1.442695
  %v4132 = vpow.pop %v4131
  %v4133 = vmul.f32 %v4126, 1.442695
  %v4134 = vpow.pop %v4133
  %v4135 = vsub.f32 %v4084, %v4119
  %v4136 = vsub.f32 %v4087, %v4120
  %v4137 = vsub.f32 %v4090, %v4121
  %v4138 = vsub.f32 %v4093, %v4122
  %v4139 = vmul.f32 %v4135, 1.442695
  %v4140 = vpow.pop %v4139
  %v4141 = vmul.f32 %v4136, 1.442695
  %v4142 = vpow.pop %v4141
  %v4143 = vmul.f32 %v4137, 1.442695
  %v4144 = vpow.pop %v4143
  %v4145 = vmul.f32 %v4138, 1.442695
  %v4146 = vpow.pop %v4145
  %v4147 = vsel %vm540, %v4128, 0.0
  %4148 = vadd.xlane.f32.xlu0 %v4147
  %v4149 = vpop.xlane.xlu0 %4148
  %v4150 = vsel %vm540, %v4130, 0.0
  %4151 = vadd.xlane.f32.xlu0 %v4150
  %v4152 = vpop.xlane.xlu0 %4151
  %v4153 = vsel %vm540, %v4132, 0.0
  %4154 = vadd.xlane.f32.xlu0 %v4153
  %v4155 = vpop.xlane.xlu0 %4154
  %v4156 = vsel %vm540, %v4134, 0.0
  %4157 = vadd.xlane.f32.xlu0 %v4156
  %v4158 = vpop.xlane.xlu0 %4157
  %v4159 = vsel %vm307, %v4140, 0.0
  %4160 = vadd.xlane.f32.xlu0 %v4159
  %v4161 = vpop.xlane.xlu0 %4160
  %v4162 = vsel %vm307, %v4142, 0.0
  %4163 = vadd.xlane.f32.xlu0 %v4162
  %v4164 = vpop.xlane.xlu0 %4163
  %v4165 = vsel %vm307, %v4144, 0.0
  %4166 = vadd.xlane.f32.xlu0 %v4165
  %v4167 = vpop.xlane.xlu0 %4166
  %v4168 = vsel %vm307, %v4146, 0.0
  %4169 = vadd.xlane.f32.xlu0 %v4168
  %v4170 = vpop.xlane.xlu0 %4169
  %v4171 = vadd.f32 %v4149, %v4161
  %v4172 = vadd.f32 %v4152, %v4164
  %v4173 = vadd.f32 %v4155, %v4167
  %v4174 = vadd.f32 %v4158, %v4170
  %s4175 = scalar_lea.vmem %s8, 24
  %v4176 = vld [vmem:[%s4175] sm:$0xf]
  %4179 = vrot.lane.b32.xlu0 %v3882, 96
  %v4180 = vpop.permute.xlu0 %4179
  %4181 = vrot.lane.b32.xlu0 %v3885, 96
  %v4182 = vpop.permute.xlu0 %4181
  %v4186 = vsel %vm307, %v4140, 0
  %v4189 = vsel %vm307, %v4142, 0
  %v4192 = vsel %vm307, %v4144, 0
  %v4195 = vsel %vm307, %v4146, 0
  %4197 = vmatpush.msra.mxu0 0.0
  %4198 = vmatpush.msra.mxu0 0.0
  %4199 = vmatpush.msra.mxu0 0.0
  %4200 = vmatpush.msra.mxu0 0.0
  %4201 = vmatpush.msra.mxu0 0.0
  %4202 = vmatpush.msra.mxu0 0.0
  %4203 = vmatpush.msra.mxu0 0.0
  %4204 = vmatpush.msra.mxu0 0.0
  %4205 = vmatpush.msra.mxu0 0.0
  %4206 = vmatpush.msra.mxu0 0.0
  %4207 = vmatpush.msra.mxu0 0.0
  %4208 = vmatpush.msra.mxu0 0.0
  %4209 = vmatpush.msra.mxu0 0.0
  %4210 = vmatpush.msra.mxu0 0.0
  %4211 = vmatpush.msra.mxu0 %v4182
  %4212 = vmatpush.msra.mxu0 %v4180
  %4213 = vmatmul.f32.gmra.mxu0 %v4186
  %v4214 = vpop.f32.mrf.mxu0
  %v4215 = vadd.f32 0.0, %v4214
  %4216 = vmatmul.f32.gmra.mxu0 %v4189
  %v4217 = vpop.f32.mrf.mxu0
  %v4218 = vadd.f32 0.0, %v4217
  %4219 = vmatmul.f32.gmra.mxu0 %v4192
  %v4220 = vpop.f32.mrf.mxu0
  %v4221 = vadd.f32 0.0, %v4220
  %4222 = vmatmul.f32.gmra.mxu0 %v4195
  %v4223 = vpop.f32.mrf.mxu0
  %v4224 = vadd.f32 0.0, %v4223
  %4225 = vdwg.mxu0
  %v4227 = vsel %vm540, %v4128, 0
  %v4230 = vsel %vm540, %v4130, 0
  %v4233 = vsel %vm540, %v4132, 0
  %v4236 = vsel %vm540, %v4134, 0
  %v4239 = vsel %vm691, %v4176, 0
  %4241 = vmatpush.msra.mxu0 0.0
  %4242 = vmatpush.msra.mxu0 0.0
  %4243 = vmatpush.msra.mxu0 0.0
  %4244 = vmatpush.msra.mxu0 0.0
  %4245 = vmatpush.msra.mxu0 0.0
  %4246 = vmatpush.msra.mxu0 0.0
  %4247 = vmatpush.msra.mxu0 0.0
  %4248 = vmatpush.msra.mxu0 0.0
  %4249 = vmatpush.msra.mxu0 0.0
  %4250 = vmatpush.msra.mxu0 0.0
  %4251 = vmatpush.msra.mxu0 0.0
  %4252 = vmatpush.msra.mxu0 0.0
  %4253 = vmatpush.msra.mxu0 0.0
  %4254 = vmatpush.msra.mxu0 0.0
  %4255 = vmatpush.msra.mxu0 0.0
  %4256 = vmatpush.msra.mxu0 %v4239
  %4257 = vmatmul.f32.gmra.mxu0 %v4227
  %v4258 = vpop.f32.mrf.mxu0
  %v4259 = vadd.f32 %v4215, %v4258
  %4260 = vmatmul.f32.gmra.mxu0 %v4230
  %v4261 = vpop.f32.mrf.mxu0
  %v4262 = vadd.f32 %v4218, %v4261
  %4263 = vmatmul.f32.gmra.mxu0 %v4233
  %v4264 = vpop.f32.mrf.mxu0
  %v4265 = vadd.f32 %v4221, %v4264
  %4266 = vmatmul.f32.gmra.mxu0 %v4236
  %v4267 = vpop.f32.mrf.mxu0
  %v4268 = vadd.f32 %v4224, %v4267
  %4269 = vdwg.mxu0
  %v4270 = vrcp.pop %v4171
  %v4271 = vrcp.pop %v4172
  %v4272 = vrcp.pop %v4173
  %v4273 = vrcp.pop %v4174
  %v4274 = vmul.f32 %v4259, %v4270
  %v4275 = vmul.f32 %v4262, %v4271
  %v4276 = vmul.f32 %v4265, %v4272
  %v4277 = vmul.f32 %v4268, %v4273
  %4278 = vrot.lane.b32.xlu0 %v3892, 16
  %v4279 = vpop.permute.xlu0 %4278
  %4280 = vrot.lane.b32.xlu0 %v3893, 16
  %v4281 = vpop.permute.xlu0 %4280
  %4282 = vrot.lane.b32.xlu0 %v3894, 16
  %v4283 = vpop.permute.xlu0 %4282
  %4284 = vrot.lane.b32.xlu0 %v3895, 16
  %v4285 = vpop.permute.xlu0 %4284
  %v4290 = vsel %vm307, %v4279, 0.0
  %4291 = vadd.xlane.f32.xlu0 %v4290
  %v4292 = vpop.xlane.xlu0 %4291
  %v4293 = vsel %vm307, %v4281, 0.0
  %4294 = vadd.xlane.f32.xlu0 %v4293
  %v4295 = vpop.xlane.xlu0 %4294
  %v4296 = vsel %vm307, %v4283, 0.0
  %4297 = vadd.xlane.f32.xlu0 %v4296
  %v4298 = vpop.xlane.xlu0 %4297
  %v4299 = vsel %vm307, %v4285, 0.0
  %4300 = vadd.xlane.f32.xlu0 %v4299
  %v4301 = vpop.xlane.xlu0 %4300
  %v4302 = vadd.f32 %v4292, 1e-08
  %v4303 = vadd.f32 %v4295, 1e-08
  %v4304 = vadd.f32 %v4298, 1e-08
  %v4305 = vadd.f32 %v4301, 1e-08
  %v4306 = vrsqrt.pop %v4302
  %v4307 = vmul.f32 %v4306, %v4302
  %v4308 = vmul.f32 %v4307, %v4306
  %v4309 = vmul.f32 0.5, %v4308
  %v4310 = vsub.f32 1.5, %v4309
  %v4311 = vmul.f32 %v4306, %v4310
  %vm4312 = vweird.f32 %v4302
  %vm4313 = vweird.f32 %v4306
  %vm4314 = vmor %vm4312, %vm4313
  %v4315 = vsel %vm4314, %v4306, %v4311
  %v4316 = vrsqrt.pop %v4303
  %v4317 = vmul.f32 %v4316, %v4303
  %v4318 = vmul.f32 %v4317, %v4316
  %v4319 = vmul.f32 0.5, %v4318
  %v4320 = vsub.f32 1.5, %v4319
  %v4321 = vmul.f32 %v4316, %v4320
  %vm4322 = vweird.f32 %v4303
  %vm4323 = vweird.f32 %v4316
  %vm4324 = vmor %vm4322, %vm4323
  %v4325 = vsel %vm4324, %v4316, %v4321
  %v4326 = vrsqrt.pop %v4304
  %v4327 = vmul.f32 %v4326, %v4304
  %v4328 = vmul.f32 %v4327, %v4326
  %v4329 = vmul.f32 0.5, %v4328
  %v4330 = vsub.f32 1.5, %v4329
  %v4331 = vmul.f32 %v4326, %v4330
  %vm4332 = vweird.f32 %v4304
  %vm4333 = vweird.f32 %v4326
  %vm4334 = vmor %vm4332, %vm4333
  %v4335 = vsel %vm4334, %v4326, %v4331
  %v4336 = vrsqrt.pop %v4305
  %v4337 = vmul.f32 %v4336, %v4305
  %v4338 = vmul.f32 %v4337, %v4336
  %v4339 = vmul.f32 0.5, %v4338
  %v4340 = vsub.f32 1.5, %v4339
  %v4341 = vmul.f32 %v4336, %v4340
  %vm4342 = vweird.f32 %v4305
  %vm4343 = vweird.f32 %v4336
  %vm4344 = vmor %vm4342, %vm4343
  %v4345 = vsel %vm4344, %v4336, %v4341
  %v4346 = vmul.f32 %v3846, %v4315
  %v4347 = vmul.f32 %v3849, %v4325
  %v4348 = vmul.f32 %v3852, %v4335
  %v4349 = vmul.f32 %v3855, %v4345
  %v4350 = vmul.f32 %v4346, 10.0
  %v4351 = vmul.f32 %v4347, 10.0
  %v4352 = vmul.f32 %v4348, 10.0
  %v4353 = vmul.f32 %v4349, 10.0
  %4356 = vrot.lane.b32.xlu0 %v3976, 112
  %v4357 = vpop.permute.xlu0 %4356
  %4358 = vrot.lane.b32.xlu0 %v3977, 112
  %v4359 = vpop.permute.xlu0 %4358
  %v4362 = vsel %vm307, %v4357, 0.0
  %4363 = vadd.xlane.f32.xlu0 %v4362
  %v4364 = vpop.xlane.xlu0 %4363
  %v4365 = vsel %vm307, %v4359, 0.0
  %4366 = vadd.xlane.f32.xlu0 %v4365
  %v4367 = vpop.xlane.xlu0 %4366
  %v4368 = vadd.f32 %v4364, 1e-08
  %v4369 = vadd.f32 %v4367, 1e-08
  %v4370 = vrsqrt.pop %v4368
  %v4371 = vmul.f32 %v4370, %v4368
  %v4372 = vmul.f32 %v4371, %v4370
  %v4373 = vmul.f32 0.5, %v4372
  %v4374 = vsub.f32 1.5, %v4373
  %v4375 = vmul.f32 %v4370, %v4374
  %vm4376 = vweird.f32 %v4368
  %vm4377 = vweird.f32 %v4370
  %vm4378 = vmor %vm4376, %vm4377
  %v4379 = vsel %vm4378, %v4370, %v4375
  %v4380 = vrsqrt.pop %v4369
  %v4381 = vmul.f32 %v4380, %v4369
  %v4382 = vmul.f32 %v4381, %v4380
  %v4383 = vmul.f32 0.5, %v4382
  %v4384 = vsub.f32 1.5, %v4383
  %v4385 = vmul.f32 %v4380, %v4384
  %vm4386 = vweird.f32 %v4369
  %vm4387 = vweird.f32 %v4380
  %vm4388 = vmor %vm4386, %vm4387
  %v4389 = vsel %vm4388, %v4380, %v4385
  %v4390 = vmul.f32 %v3882, %v4379
  %v4391 = vmul.f32 %v3885, %v4389
  %s4392 = scalar_lea.vmem %s7, 112
  %v4393 = vld [vmem:[%s4392] sm:$0xff]
  %v4394 = vld [vmem:[%s4392 + $0x8] sm:$0xff]
  %4399 = vrot.lane.b32.xlu0 %v4350, 16
  %v4400 = vpop.permute.xlu0 %4399
  %4401 = vrot.lane.b32.xlu0 %v4351, 16
  %v4402 = vpop.permute.xlu0 %4401
  %4403 = vrot.lane.b32.xlu0 %v4352, 16
  %v4404 = vpop.permute.xlu0 %4403
  %4405 = vrot.lane.b32.xlu0 %v4353, 16
  %v4406 = vpop.permute.xlu0 %4405
  %v4407 = vsel %vm307, %v4400, 0
  %v4409 = vsel %vm307, %v4402, 0
  %v4411 = vsel %vm307, %v4404, 0
  %v4413 = vsel %vm307, %v4406, 0
  %4415 = vmatpush.msra.mxu0 0.0
  %4416 = vmatpush.msra.mxu0 0.0
  %4417 = vmatpush.msra.mxu0 0.0
  %4418 = vmatpush.msra.mxu0 0.0
  %4419 = vmatpush.msra.mxu0 0.0
  %4420 = vmatpush.msra.mxu0 0.0
  %4421 = vmatpush.msra.mxu0 0.0
  %4422 = vmatpush.msra.mxu0 0.0
  %4423 = vmatpush.msra.mxu0 0.0
  %4424 = vmatpush.msra.mxu0 0.0
  %4425 = vmatpush.msra.mxu0 0.0
  %4426 = vmatpush.msra.mxu0 0.0
  %4427 = vmatpush.msra.mxu0 0.0
  %4428 = vmatpush.msra.mxu0 0.0
  %4429 = vmatpush.msra.mxu0 %v4394
  %4430 = vmatpush.msra.mxu0 %v4393
  %4431 = vmatmul.f32.gmra.mxu0 %v4407
  %v4432 = vpop.f32.mrf.mxu0
  %v4433 = vadd.f32 0.0, %v4432
  %4434 = vmatmul.f32.gmra.mxu0 %v4409
  %v4435 = vpop.f32.mrf.mxu0
  %v4436 = vadd.f32 0.0, %v4435
  %4437 = vmatmul.f32.gmra.mxu0 %v4411
  %v4438 = vpop.f32.mrf.mxu0
  %v4439 = vadd.f32 0.0, %v4438
  %4440 = vmatmul.f32.gmra.mxu0 %v4413
  %v4441 = vpop.f32.mrf.mxu0
  %v4442 = vadd.f32 0.0, %v4441
  %4443 = vdwg.mxu0
  %4446 = vrot.lane.b32.xlu0 %v4390, 112
  %v4447 = vpop.permute.xlu0 %4446
  %4448 = vrot.lane.b32.xlu0 %v4391, 112
  %v4449 = vpop.permute.xlu0 %4448
  %v4450 = vsel %vm307, %v4447, 0
  %v4452 = vsel %vm307, %v4449, 0
  %4454 = vmatpush.xpose.msra.mxu0 0.0
  %4455 = vmatpush.xpose.msra.mxu0 0.0
  %4456 = vmatpush.xpose.msra.mxu0 0.0
  %4457 = vmatpush.xpose.msra.mxu0 0.0
  %4458 = vmatpush.xpose.msra.mxu0 0.0
  %4459 = vmatpush.xpose.msra.mxu0 0.0
  %4460 = vmatpush.xpose.msra.mxu0 0.0
  %4461 = vmatpush.xpose.msra.mxu0 0.0
  %4462 = vmatpush.xpose.msra.mxu0 0.0
  %4463 = vmatpush.xpose.msra.mxu0 0.0
  %4464 = vmatpush.xpose.msra.mxu0 0.0
  %4465 = vmatpush.xpose.msra.mxu0 0.0
  %4466 = vmatpush.xpose.msra.mxu0 0.0
  %4467 = vmatpush.xpose.msra.mxu0 0.0
  %4468 = vmatpush.xpose.msra.mxu0 %v4452
  %4469 = vmatpush.xpose.msra.mxu0 %v4450
  %4470 = vmatmul.f32.gmra.mxu0 %v4407
  %v4471 = vpop.f32.mrf.mxu0
  %v4472 = vadd.f32 %v85, %v4471
  %4473 = vmatmul.f32.gmra.mxu0 %v4409
  %v4474 = vpop.f32.mrf.mxu0
  %v4475 = vadd.f32 %v86, %v4474
  %4476 = vmatmul.f32.gmra.mxu0 %v4411
  %v4477 = vpop.f32.mrf.mxu0
  %v4478 = vadd.f32 %v87, %v4477
  %4479 = vmatmul.f32.gmra.mxu0 %v4413
  %v4480 = vpop.f32.mrf.mxu0
  %v4481 = vadd.f32 %v88, %v4480
  %4482 = vdwg.mxu0
  %v4483 = vsel %vm540, %v4433, -inf
  %4484 = vmax.xlane.f32.xlu0 %v4483
  %v4485 = vpop.xlane.xlu0 %4484
  %v4486 = vsel %vm540, %v4436, -inf
  %4487 = vmax.xlane.f32.xlu0 %v4486
  %v4488 = vpop.xlane.xlu0 %4487
  %v4489 = vsel %vm540, %v4439, -inf
  %4490 = vmax.xlane.f32.xlu0 %v4489
  %v4491 = vpop.xlane.xlu0 %4490
  %v4492 = vsel %vm540, %v4442, -inf
  %4493 = vmax.xlane.f32.xlu0 %v4492
  %v4494 = vpop.xlane.xlu0 %4493
  %v4495 = vsel %vm307, %v4472, -inf
  %4496 = vmax.xlane.f32.xlu0 %v4495
  %v4497 = vpop.xlane.xlu0 %4496
  %v4498 = vsel %vm307, %v4475, -inf
  %4499 = vmax.xlane.f32.xlu0 %v4498
  %v4500 = vpop.xlane.xlu0 %4499
  %v4501 = vsel %vm307, %v4478, -inf
  %4502 = vmax.xlane.f32.xlu0 %v4501
  %v4503 = vpop.xlane.xlu0 %4502
  %v4504 = vsel %vm307, %v4481, -inf
  %4505 = vmax.xlane.f32.xlu0 %v4504
  %v4506 = vpop.xlane.xlu0 %4505
  %v4507 = vmax.f32 %v4485, %v4497
  %v4508 = vmax.f32 %v4488, %v4500
  %v4509 = vmax.f32 %v4491, %v4503
  %v4510 = vmax.f32 %v4494, %v4506
  %v4511 = vsub.f32 %v4433, %v4507
  %v4512 = vsub.f32 %v4436, %v4508
  %v4513 = vsub.f32 %v4439, %v4509
  %v4514 = vsub.f32 %v4442, %v4510
  %v4515 = vmul.f32 %v4511, 1.442695
  %v4516 = vpow.pop %v4515
  %v4517 = vmul.f32 %v4512, 1.442695
  %v4518 = vpow.pop %v4517
  %v4519 = vmul.f32 %v4513, 1.442695
  %v4520 = vpow.pop %v4519
  %v4521 = vmul.f32 %v4514, 1.442695
  %v4522 = vpow.pop %v4521
  %v4523 = vsub.f32 %v4472, %v4507
  %v4524 = vsub.f32 %v4475, %v4508
  %v4525 = vsub.f32 %v4478, %v4509
  %v4526 = vsub.f32 %v4481, %v4510
  %v4527 = vmul.f32 %v4523, 1.442695
  %v4528 = vpow.pop %v4527
  %v4529 = vmul.f32 %v4524, 1.442695
  %v4530 = vpow.pop %v4529
  %v4531 = vmul.f32 %v4525, 1.442695
  %v4532 = vpow.pop %v4531
  %v4533 = vmul.f32 %v4526, 1.442695
  %v4534 = vpow.pop %v4533
  %v4535 = vsel %vm540, %v4516, 0.0
  %4536 = vadd.xlane.f32.xlu0 %v4535
  %v4537 = vpop.xlane.xlu0 %4536
  %v4538 = vsel %vm540, %v4518, 0.0
  %4539 = vadd.xlane.f32.xlu0 %v4538
  %v4540 = vpop.xlane.xlu0 %4539
  %v4541 = vsel %vm540, %v4520, 0.0
  %4542 = vadd.xlane.f32.xlu0 %v4541
  %v4543 = vpop.xlane.xlu0 %4542
  %v4544 = vsel %vm540, %v4522, 0.0
  %4545 = vadd.xlane.f32.xlu0 %v4544
  %v4546 = vpop.xlane.xlu0 %4545
  %v4547 = vsel %vm307, %v4528, 0.0
  %4548 = vadd.xlane.f32.xlu0 %v4547
  %v4549 = vpop.xlane.xlu0 %4548
  %v4550 = vsel %vm307, %v4530, 0.0
  %4551 = vadd.xlane.f32.xlu0 %v4550
  %v4552 = vpop.xlane.xlu0 %4551
  %v4553 = vsel %vm307, %v4532, 0.0
  %4554 = vadd.xlane.f32.xlu0 %v4553
  %v4555 = vpop.xlane.xlu0 %4554
  %v4556 = vsel %vm307, %v4534, 0.0
  %4557 = vadd.xlane.f32.xlu0 %v4556
  %v4558 = vpop.xlane.xlu0 %4557
  %v4559 = vadd.f32 %v4537, %v4549
  %v4560 = vadd.f32 %v4540, %v4552
  %v4561 = vadd.f32 %v4543, %v4555
  %v4562 = vadd.f32 %v4546, %v4558
  %s4563 = scalar_lea.vmem %s8, 28
  %v4564 = vld [vmem:[%s4563] sm:$0xf]
  %4565 = vrot.lane.b32.xlu0 %v3882, 80
  %v4566 = vpop.permute.xlu0 %4565
  %4567 = vrot.lane.b32.xlu0 %v3885, 80
  %v4568 = vpop.permute.xlu0 %4567
  %v4572 = vsel %vm307, %v4528, 0
  %v4575 = vsel %vm307, %v4530, 0
  %v4578 = vsel %vm307, %v4532, 0
  %v4581 = vsel %vm307, %v4534, 0
  %4583 = vmatpush.msra.mxu0 0.0
  %4584 = vmatpush.msra.mxu0 0.0
  %4585 = vmatpush.msra.mxu0 0.0
  %4586 = vmatpush.msra.mxu0 0.0
  %4587 = vmatpush.msra.mxu0 0.0
  %4588 = vmatpush.msra.mxu0 0.0
  %4589 = vmatpush.msra.mxu0 0.0
  %4590 = vmatpush.msra.mxu0 0.0
  %4591 = vmatpush.msra.mxu0 0.0
  %4592 = vmatpush.msra.mxu0 0.0
  %4593 = vmatpush.msra.mxu0 0.0
  %4594 = vmatpush.msra.mxu0 0.0
  %4595 = vmatpush.msra.mxu0 0.0
  %4596 = vmatpush.msra.mxu0 0.0
  %4597 = vmatpush.msra.mxu0 %v4568
  %4598 = vmatpush.msra.mxu0 %v4566
  %4599 = vmatmul.f32.gmra.mxu0 %v4572
  %v4600 = vpop.f32.mrf.mxu0
  %v4601 = vadd.f32 0.0, %v4600
  %4602 = vmatmul.f32.gmra.mxu0 %v4575
  %v4603 = vpop.f32.mrf.mxu0
  %v4604 = vadd.f32 0.0, %v4603
  %4605 = vmatmul.f32.gmra.mxu0 %v4578
  %v4606 = vpop.f32.mrf.mxu0
  %v4607 = vadd.f32 0.0, %v4606
  %4608 = vmatmul.f32.gmra.mxu0 %v4581
  %v4609 = vpop.f32.mrf.mxu0
  %v4610 = vadd.f32 0.0, %v4609
  %4611 = vdwg.mxu0
  %v4613 = vsel %vm540, %v4516, 0
  %v4616 = vsel %vm540, %v4518, 0
  %v4619 = vsel %vm540, %v4520, 0
  %v4622 = vsel %vm540, %v4522, 0
  %v4625 = vsel %vm691, %v4564, 0
  %4627 = vmatpush.msra.mxu0 0.0
  %4628 = vmatpush.msra.mxu0 0.0
  %4629 = vmatpush.msra.mxu0 0.0
  %4630 = vmatpush.msra.mxu0 0.0
  %4631 = vmatpush.msra.mxu0 0.0
  %4632 = vmatpush.msra.mxu0 0.0
  %4633 = vmatpush.msra.mxu0 0.0
  %4634 = vmatpush.msra.mxu0 0.0
  %4635 = vmatpush.msra.mxu0 0.0
  %4636 = vmatpush.msra.mxu0 0.0
  %4637 = vmatpush.msra.mxu0 0.0
  %4638 = vmatpush.msra.mxu0 0.0
  %4639 = vmatpush.msra.mxu0 0.0
  %4640 = vmatpush.msra.mxu0 0.0
  %4641 = vmatpush.msra.mxu0 0.0
  %4642 = vmatpush.msra.mxu0 %v4625
  %4643 = vmatmul.f32.gmra.mxu0 %v4613
  %v4644 = vpop.f32.mrf.mxu0
  %v4645 = vadd.f32 %v4601, %v4644
  %4646 = vmatmul.f32.gmra.mxu0 %v4616
  %v4647 = vpop.f32.mrf.mxu0
  %v4648 = vadd.f32 %v4604, %v4647
  %4649 = vmatmul.f32.gmra.mxu0 %v4619
  %v4650 = vpop.f32.mrf.mxu0
  %v4651 = vadd.f32 %v4607, %v4650
  %4652 = vmatmul.f32.gmra.mxu0 %v4622
  %v4653 = vpop.f32.mrf.mxu0
  %v4654 = vadd.f32 %v4610, %v4653
  %4655 = vdwg.mxu0
  %v4656 = vrcp.pop %v4559
  %v4657 = vrcp.pop %v4560
  %v4658 = vrcp.pop %v4561
  %v4659 = vrcp.pop %v4562
  %v4660 = vmul.f32 %v4645, %v4656
  %v4661 = vmul.f32 %v4648, %v4657
  %v4662 = vmul.f32 %v4651, %v4658
  %v4663 = vmul.f32 %v4654, %v4659
  %4668 = vrot.lane.b32.xlu0 %v4660, 16
  %v4669 = vpop.permute.xlu0 %4668
  %4670 = vrot.lane.b32.xlu0 %v4661, 16
  %v4671 = vpop.permute.xlu0 %4670
  %4672 = vrot.lane.b32.xlu0 %v4662, 16
  %v4673 = vpop.permute.xlu0 %4672
  %4674 = vrot.lane.b32.xlu0 %v4663, 16
  %v4675 = vpop.permute.xlu0 %4674
  %v4680 = vsel %vm307, %v4274, %v4669
  %v4681 = vsel %vm307, %v4275, %v4671
  %v4682 = vsel %vm307, %v4276, %v4673
  %v4683 = vsel %vm307, %v4277, %v4675
  %v4685 = vsel %vm152, %v4680, 0
  %v4688 = vsel %vm152, %v4681, 0
  %v4691 = vsel %vm152, %v4682, 0
  %v4694 = vsel %vm152, %v4683, 0
  %4696 = vmatpush.msra.mxu0 0.0
  %4697 = vmatpush.msra.mxu0 0.0
  %4698 = vmatpush.msra.mxu0 0.0
  %4699 = vmatpush.msra.mxu0 0.0
  %4700 = vmatpush.msra.mxu0 0.0
  %4701 = vmatpush.msra.mxu0 0.0
  %4702 = vmatpush.msra.mxu0 0.0
  %4703 = vmatpush.msra.mxu0 0.0
  %4704 = vmatpush.msra.mxu0 0.0
  %4705 = vmatpush.msra.mxu0 0.0
  %4706 = vmatpush.msra.mxu0 0.0
  %4707 = vmatpush.msra.mxu0 0.0
  %4708 = vmatpush.msra.mxu0 %v3891
  %4709 = vmatpush.msra.mxu0 %v3890
  %4710 = vmatpush.msra.mxu0 %v3889
  %4711 = vmatpush.msra.mxu0 %v3888
  %4712 = vmatmul.f32.gmra.mxu0 %v4685
  %v4713 = vpop.f32.mrf.mxu0
  %v4714 = vadd.f32 0.0, %v4713
  %4715 = vmatmul.f32.gmra.mxu0 %v4688
  %v4716 = vpop.f32.mrf.mxu0
  %v4717 = vadd.f32 0.0, %v4716
  %4718 = vmatmul.f32.gmra.mxu0 %v4691
  %v4719 = vpop.f32.mrf.mxu0
  %v4720 = vadd.f32 0.0, %v4719
  %4721 = vmatmul.f32.gmra.mxu0 %v4694
  %v4722 = vpop.f32.mrf.mxu0
  %v4723 = vadd.f32 0.0, %v4722
  %4724 = vdwg.mxu0
  %v4725 = vadd.f32 %v3712, %v4714
  %v4726 = vadd.f32 %v3713, %v4717
  %v4727 = vadd.f32 %v3714, %v4720
  %v4728 = vadd.f32 %v3715, %v4723
  %v4729 = vld [vmem:[%s3 + $0x12] sm:$0x1]
  %v4730 = vld [vmem:[%s3 + $0x13] sm:$0x1]
  %v4731 = vsel %vm152, %v4725, 0.0
  %4732 = vadd.xlane.f32.xlu0 %v4731
  %v4733 = vpop.xlane.xlu0 %4732
  %v4734 = vsel %vm152, %v4726, 0.0
  %4735 = vadd.xlane.f32.xlu0 %v4734
  %v4736 = vpop.xlane.xlu0 %4735
  %v4737 = vsel %vm152, %v4727, 0.0
  %4738 = vadd.xlane.f32.xlu0 %v4737
  %v4739 = vpop.xlane.xlu0 %4738
  %v4740 = vsel %vm152, %v4728, 0.0
  %4741 = vadd.xlane.f32.xlu0 %v4740
  %v4742 = vpop.xlane.xlu0 %4741
  %v4743 = vmul.f32 %v4733, %v171
  %v4744 = vmul.f32 %v4736, %v171
  %v4745 = vmul.f32 %v4739, %v171
  %v4746 = vmul.f32 %v4742, %v171
  %v4747 = vsub.f32 %v4725, %v4743
  %v4748 = vsub.f32 %v4726, %v4744
  %v4749 = vsub.f32 %v4727, %v4745
  %v4750 = vsub.f32 %v4728, %v4746
  %v4751 = vmul.f32 %v4747, %v4747
  %v4752 = vmul.f32 %v4748, %v4748
  %v4753 = vmul.f32 %v4749, %v4749
  %v4754 = vmul.f32 %v4750, %v4750
  %v4755 = vsel %vm152, %v4751, 0.0
  %4756 = vadd.xlane.f32.xlu0 %v4755
  %v4757 = vpop.xlane.xlu0 %4756
  %v4758 = vsel %vm152, %v4752, 0.0
  %4759 = vadd.xlane.f32.xlu0 %v4758
  %v4760 = vpop.xlane.xlu0 %4759
  %v4761 = vsel %vm152, %v4753, 0.0
  %4762 = vadd.xlane.f32.xlu0 %v4761
  %v4763 = vpop.xlane.xlu0 %4762
  %v4764 = vsel %vm152, %v4754, 0.0
  %4765 = vadd.xlane.f32.xlu0 %v4764
  %v4766 = vpop.xlane.xlu0 %4765
  %v4767 = vmul.f32 %v4757, %v171
  %v4768 = vmul.f32 %v4760, %v171
  %v4769 = vmul.f32 %v4763, %v171
  %v4770 = vmul.f32 %v4766, %v171
  %v4771 = vadd.f32 %v4767, 1e-05
  %v4772 = vadd.f32 %v4768, 1e-05
  %v4773 = vadd.f32 %v4769, 1e-05
  %v4774 = vadd.f32 %v4770, 1e-05
  %v4775 = vrsqrt.pop %v4771
  %v4776 = vmul.f32 %v4775, %v4771
  %v4777 = vmul.f32 %v4776, %v4775
  %v4778 = vmul.f32 0.5, %v4777
  %v4779 = vsub.f32 1.5, %v4778
  %v4780 = vmul.f32 %v4775, %v4779
  %vm4781 = vweird.f32 %v4771
  %vm4782 = vweird.f32 %v4775
  %vm4783 = vmor %vm4781, %vm4782
  %v4784 = vsel %vm4783, %v4775, %v4780
  %v4785 = vrsqrt.pop %v4772
  %v4786 = vmul.f32 %v4785, %v4772
  %v4787 = vmul.f32 %v4786, %v4785
  %v4788 = vmul.f32 0.5, %v4787
  %v4789 = vsub.f32 1.5, %v4788
  %v4790 = vmul.f32 %v4785, %v4789
  %vm4791 = vweird.f32 %v4772
  %vm4792 = vweird.f32 %v4785
  %vm4793 = vmor %vm4791, %vm4792
  %v4794 = vsel %vm4793, %v4785, %v4790
  %v4795 = vrsqrt.pop %v4773
  %v4796 = vmul.f32 %v4795, %v4773
  %v4797 = vmul.f32 %v4796, %v4795
  %v4798 = vmul.f32 0.5, %v4797
  %v4799 = vsub.f32 1.5, %v4798
  %v4800 = vmul.f32 %v4795, %v4799
  %vm4801 = vweird.f32 %v4773
  %vm4802 = vweird.f32 %v4795
  %vm4803 = vmor %vm4801, %vm4802
  %v4804 = vsel %vm4803, %v4795, %v4800
  %v4805 = vrsqrt.pop %v4774
  %v4806 = vmul.f32 %v4805, %v4774
  %v4807 = vmul.f32 %v4806, %v4805
  %v4808 = vmul.f32 0.5, %v4807
  %v4809 = vsub.f32 1.5, %v4808
  %v4810 = vmul.f32 %v4805, %v4809
  %vm4811 = vweird.f32 %v4774
  %vm4812 = vweird.f32 %v4805
  %vm4813 = vmor %vm4811, %vm4812
  %v4814 = vsel %vm4813, %v4805, %v4810
  %v4815 = vmul.f32 %v4747, %v4784
  %v4816 = vmul.f32 %v4748, %v4794
  %v4817 = vmul.f32 %v4749, %v4804
  %v4818 = vmul.f32 %v4750, %v4814
  %v4819 = vperm.slane %v4729, 0
  %v4820 = vmul.f32 %v4815, %v4819
  %v4821 = vmul.f32 %v4816, %v4819
  %v4822 = vmul.f32 %v4817, %v4819
  %v4823 = vmul.f32 %v4818, %v4819
  %v4824 = vperm.slane %v4730, 0
  %v4825 = vadd.f32 %v4820, %v4824
  %v4826 = vadd.f32 %v4821, %v4824
  %v4827 = vadd.f32 %v4822, %v4824
  %v4828 = vadd.f32 %v4823, %v4824
  %s4829 = scalar_lea.vmem %s4, 96
  %v4830 = vld [vmem:[%s4829] sm:$0xff]
  %v4831 = vld [vmem:[%s4829 + $0x8] sm:$0xff]
  %v4832 = vld [vmem:[%s4829 + $0x10] sm:$0xff]
  %v4833 = vld [vmem:[%s4829 + $0x18] sm:$0xff]
  %v4834 = vld [vmem:[%s10 + $0x2] sm:$0x1]
  %v4835 = vperm.slane %v4834, 0
  %v4837 = vsel %vm152, %v4825, 0
  %v4840 = vsel %vm152, %v4826, 0
  %v4843 = vsel %vm152, %v4827, 0
  %v4846 = vsel %vm152, %v4828, 0
  %4848 = vmatpush.msra.mxu0 0.0
  %4849 = vmatpush.msra.mxu0 0.0
  %4850 = vmatpush.msra.mxu0 0.0
  %4851 = vmatpush.msra.mxu0 0.0
  %4852 = vmatpush.msra.mxu0 0.0
  %4853 = vmatpush.msra.mxu0 0.0
  %4854 = vmatpush.msra.mxu0 0.0
  %4855 = vmatpush.msra.mxu0 0.0
  %4856 = vmatpush.msra.mxu0 0.0
  %4857 = vmatpush.msra.mxu0 0.0
  %4858 = vmatpush.msra.mxu0 0.0
  %4859 = vmatpush.msra.mxu0 0.0
  %4860 = vmatpush.msra.mxu0 %v4833
  %4861 = vmatpush.msra.mxu0 %v4832
  %4862 = vmatpush.msra.mxu0 %v4831
  %4863 = vmatpush.msra.mxu0 %v4830
  %4864 = vmatmul.f32.gmra.mxu0 %v4837
  %v4865 = vpop.f32.mrf.mxu0
  %v4866 = vadd.f32 %v4835, %v4865
  %4867 = vmatmul.f32.gmra.mxu0 %v4840
  %v4868 = vpop.f32.mrf.mxu0
  %v4869 = vadd.f32 %v4835, %v4868
  %4870 = vmatmul.f32.gmra.mxu0 %v4843
  %v4871 = vpop.f32.mrf.mxu0
  %v4872 = vadd.f32 %v4835, %v4871
  %4873 = vmatmul.f32.gmra.mxu0 %v4846
  %v4874 = vpop.f32.mrf.mxu0
  %v4875 = vadd.f32 %v4835, %v4874
  %4876 = vdwg.mxu0
  %v4877 = vmul.f32 %v4866, 0.5
  %v4878 = vmul.f32 %v4869, 0.5
  %v4879 = vmul.f32 %v4872, 0.5
  %v4880 = vmul.f32 %v4875, 0.5
  %v4881 = vmul.f32 %v4866, 0.70710677
  %v4882 = vmul.f32 %v4869, 0.70710677
  %v4883 = vmul.f32 %v4872, 0.70710677
  %v4884 = vmul.f32 %v4875, 0.70710677
  %vm4885 = vcmp.ge.f32.partialorder %v4881, 0.0
  %vm4886 = vcmp.ge.f32.partialorder %v4882, 0.0
  %vm4887 = vcmp.ge.f32.partialorder %v4883, 0.0
  %vm4888 = vcmp.ge.f32.partialorder %v4884, 0.0
  %v4889 = vsel %vm4885, 1.0, -1.0
  %v4890 = vsel %vm4886, 1.0, -1.0
  %v4891 = vsel %vm4887, 1.0, -1.0
  %v4892 = vsel %vm4888, 1.0, -1.0
  %v4893 = vand.u32 2147483647, %v4881
  %v4894 = vand.u32 2147483647, %v4882
  %v4895 = vand.u32 2147483647, %v4883
  %v4896 = vand.u32 2147483647, %v4884
  %v4897 = vmul.f32 %v4893, 0.3275911
  %v4898 = vmul.f32 %v4894, 0.3275911
  %v4899 = vmul.f32 %v4895, 0.3275911
  %v4900 = vmul.f32 %v4896, 0.3275911
  %v4901 = vadd.f32 %v4897, 1.0
  %v4902 = vadd.f32 %v4898, 1.0
  %v4903 = vadd.f32 %v4899, 1.0
  %v4904 = vadd.f32 %v4900, 1.0
  %v4905 = vrcp.pop %v4901
  %v4906 = vmul.f32 %v4901, %v4905
  %v4907 = vsub.f32 1.0, %v4906
  %v4908 = vmul.f32 %v4905, %v4907
  %v4909 = vadd.f32 %v4905, %v4908
  %vm4910 = vweird.f32 %v4901
  %vm4911 = vweird.f32 %v4905
  %vm4912 = vmor %vm4910, %vm4911
  %v4913 = vsel %vm4912, %v4905, %v4909
  %v4914 = vand.u32 2147483647, %v4901
  %vm4915 = vcmp.eq.f32.partialorder %v4914, 8.507059e+37
  %v4916 = vand.u32 %v4901, 2147483648
  %v4917 = vor.u32 1.1754944e-38, %v4916
  %v4918 = vsel %vm4915, %v4917, %v4913
  %v4919 = vmul.f32 1.0, %v4918
  %v4920 = vrcp.pop %v4902
  %v4921 = vmul.f32 %v4902, %v4920
  %v4922 = vsub.f32 1.0, %v4921
  %v4923 = vmul.f32 %v4920, %v4922
  %v4924 = vadd.f32 %v4920, %v4923
  %vm4925 = vweird.f32 %v4902
  %vm4926 = vweird.f32 %v4920
  %vm4927 = vmor %vm4925, %vm4926
  %v4928 = vsel %vm4927, %v4920, %v4924
  %v4929 = vand.u32 2147483647, %v4902
  %vm4930 = vcmp.eq.f32.partialorder %v4929, 8.507059e+37
  %v4931 = vand.u32 %v4902, 2147483648
  %v4932 = vor.u32 1.1754944e-38, %v4931
  %v4933 = vsel %vm4930, %v4932, %v4928
  %v4934 = vmul.f32 1.0, %v4933
  %v4935 = vrcp.pop %v4903
  %v4936 = vmul.f32 %v4903, %v4935
  %v4937 = vsub.f32 1.0, %v4936
  %v4938 = vmul.f32 %v4935, %v4937
  %v4939 = vadd.f32 %v4935, %v4938
  %vm4940 = vweird.f32 %v4903
  %vm4941 = vweird.f32 %v4935
  %vm4942 = vmor %vm4940, %vm4941
  %v4943 = vsel %vm4942, %v4935, %v4939
  %v4944 = vand.u32 2147483647, %v4903
  %vm4945 = vcmp.eq.f32.partialorder %v4944, 8.507059e+37
  %v4946 = vand.u32 %v4903, 2147483648
  %v4947 = vor.u32 1.1754944e-38, %v4946
  %v4948 = vsel %vm4945, %v4947, %v4943
  %v4949 = vmul.f32 1.0, %v4948
  %v4950 = vrcp.pop %v4904
  %v4951 = vmul.f32 %v4904, %v4950
  %v4952 = vsub.f32 1.0, %v4951
  %v4953 = vmul.f32 %v4950, %v4952
  %v4954 = vadd.f32 %v4950, %v4953
  %vm4955 = vweird.f32 %v4904
  %vm4956 = vweird.f32 %v4950
  %vm4957 = vmor %vm4955, %vm4956
  %v4958 = vsel %vm4957, %v4950, %v4954
  %v4959 = vand.u32 2147483647, %v4904
  %vm4960 = vcmp.eq.f32.partialorder %v4959, 8.507059e+37
  %v4961 = vand.u32 %v4904, 2147483648
  %v4962 = vor.u32 1.1754944e-38, %v4961
  %v4963 = vsel %vm4960, %v4962, %v4958
  %v4964 = vmul.f32 1.0, %v4963
  %v4965 = vmul.f32 %v4919, 1.0614054
  %v4966 = vmul.f32 %v4934, 1.0614054
  %v4967 = vmul.f32 %v4949, 1.0614054
  %v4968 = vmul.f32 %v4964, 1.0614054
  %v4969 = vadd.f32 %v4965, -1.4531521
  %v4970 = vadd.f32 %v4966, -1.4531521
  %v4971 = vadd.f32 %v4967, -1.4531521
  %v4972 = vadd.f32 %v4968, -1.4531521
  %v4973 = vmul.f32 %v4969, %v4919
  %v4974 = vmul.f32 %v4970, %v4934
  %v4975 = vmul.f32 %v4971, %v4949
  %v4976 = vmul.f32 %v4972, %v4964
  %v4977 = vadd.f32 %v4973, 1.4214138
  %v4978 = vadd.f32 %v4974, 1.4214138
  %v4979 = vadd.f32 %v4975, 1.4214138
  %v4980 = vadd.f32 %v4976, 1.4214138
  %v4981 = vmul.f32 %v4977, %v4919
  %v4982 = vmul.f32 %v4978, %v4934
  %v4983 = vmul.f32 %v4979, %v4949
  %v4984 = vmul.f32 %v4980, %v4964
  %v4985 = vadd.f32 %v4981, -0.28449672
  %v4986 = vadd.f32 %v4982, -0.28449672
  %v4987 = vadd.f32 %v4983, -0.28449672
  %v4988 = vadd.f32 %v4984, -0.28449672
  %v4989 = vmul.f32 %v4985, %v4919
  %v4990 = vmul.f32 %v4986, %v4934
  %v4991 = vmul.f32 %v4987, %v4949
  %v4992 = vmul.f32 %v4988, %v4964
  %v4993 = vadd.f32 %v4989, 0.2548296
  %v4994 = vadd.f32 %v4990, 0.2548296
  %v4995 = vadd.f32 %v4991, 0.2548296
  %v4996 = vadd.f32 %v4992, 0.2548296
  %v4997 = vmul.f32 %v4993, %v4919
  %v4998 = vmul.f32 %v4994, %v4934
  %v4999 = vmul.f32 %v4995, %v4949
  %v5000 = vmul.f32 %v4996, %v4964
  %v5001 = vsub.f32 0.0, %v4893
  %v5002 = vsub.f32 0.0, %v4894
  %v5003 = vsub.f32 0.0, %v4895
  %v5004 = vsub.f32 0.0, %v4896
  %v5005 = vmul.f32 %v5001, %v4893
  %v5006 = vmul.f32 %v5002, %v4894
  %v5007 = vmul.f32 %v5003, %v4895
  %v5008 = vmul.f32 %v5004, %v4896
  %v5009 = vmul.f32 %v5005, 1.442695
  %v5010 = vpow.pop %v5009
  %v5011 = vmul.f32 %v5006, 1.442695
  %v5012 = vpow.pop %v5011
  %v5013 = vmul.f32 %v5007, 1.442695
  %v5014 = vpow.pop %v5013
  %v5015 = vmul.f32 %v5008, 1.442695
  %v5016 = vpow.pop %v5015
  %v5017 = vmul.f32 %v4997, %v5010
  %v5018 = vmul.f32 %v4998, %v5012
  %v5019 = vmul.f32 %v4999, %v5014
  %v5020 = vmul.f32 %v5000, %v5016
  %v5021 = vsub.f32 1.0, %v5017
  %v5022 = vsub.f32 1.0, %v5018
  %v5023 = vsub.f32 1.0, %v5019
  %v5024 = vsub.f32 1.0, %v5020
  %v5025 = vmul.f32 %v4889, %v5021
  %v5026 = vmul.f32 %v4890, %v5022
  %v5027 = vmul.f32 %v4891, %v5023
  %v5028 = vmul.f32 %v4892, %v5024
  %v5029 = vadd.f32 %v5025, 1.0
  %v5030 = vadd.f32 %v5026, 1.0
  %v5031 = vadd.f32 %v5027, 1.0
  %v5032 = vadd.f32 %v5028, 1.0
  %v5033 = vmul.f32 %v4877, %v5029
  %v5034 = vmul.f32 %v4878, %v5030
  %v5035 = vmul.f32 %v4879, %v5031
  %v5036 = vmul.f32 %v4880, %v5032
  %5041 = vrot.lane.b32.xlu0 %v5033, 64
  %v5042 = vpop.permute.xlu0 %5041
  %5043 = vrot.lane.b32.xlu0 %v5034, 64
  %v5044 = vpop.permute.xlu0 %5043
  %5045 = vrot.lane.b32.xlu0 %v5035, 64
  %v5046 = vpop.permute.xlu0 %5045
  %5047 = vrot.lane.b32.xlu0 %v5036, 64
  %v5048 = vpop.permute.xlu0 %5047
  %v5053 = vmul.f32 %v4866, %v5042
  %v5054 = vmul.f32 %v4869, %v5044
  %v5055 = vmul.f32 %v4872, %v5046
  %v5056 = vmul.f32 %v4875, %v5048
  %s5057 = scalar_lea.vmem %s9, 64
  %v5058 = vld [vmem:[%s5057] sm:$0xff]
  %v5059 = vld [vmem:[%s5057 + $0x8] sm:$0xff]
  %v5060 = vld [vmem:[%s5057 + $0x10] sm:$0xff]
  %v5061 = vld [vmem:[%s5057 + $0x18] sm:$0xff]
  %v5062 = vld [vmem:[%s5057 + $0x20] sm:$0xff]
  %v5063 = vld [vmem:[%s5057 + $0x28] sm:$0xff]
  %v5064 = vld [vmem:[%s5057 + $0x30] sm:$0xff]
  %v5065 = vld [vmem:[%s5057 + $0x38] sm:$0xff]
  %v5066 = vld [vmem:[%s10 + $0x3] sm:$0x1]
  %v5067 = vperm.slane %v5066, 0
  %v5069 = vsel %vm2590, %v5053, 0
  %v5072 = vsel %vm2590, %v5054, 0
  %v5075 = vsel %vm2590, %v5055, 0
  %v5078 = vsel %vm2590, %v5056, 0
  %5080 = vmatpush.msra.mxu0 0.0
  %5081 = vmatpush.msra.mxu0 0.0
  %5082 = vmatpush.msra.mxu0 0.0
  %5083 = vmatpush.msra.mxu0 0.0
  %5084 = vmatpush.msra.mxu0 0.0
  %5085 = vmatpush.msra.mxu0 0.0
  %5086 = vmatpush.msra.mxu0 0.0
  %5087 = vmatpush.msra.mxu0 0.0
  %5088 = vmatpush.msra.mxu0 %v5065
  %5089 = vmatpush.msra.mxu0 %v5064
  %5090 = vmatpush.msra.mxu0 %v5063
  %5091 = vmatpush.msra.mxu0 %v5062
  %5092 = vmatpush.msra.mxu0 %v5061
  %5093 = vmatpush.msra.mxu0 %v5060
  %5094 = vmatpush.msra.mxu0 %v5059
  %5095 = vmatpush.msra.mxu0 %v5058
  %5096 = vmatmul.f32.gmra.mxu0 %v5069
  %v5097 = vpop.f32.mrf.mxu0
  %v5098 = vadd.f32 %v5067, %v5097
  %5099 = vmatmul.f32.gmra.mxu0 %v5072
  %v5100 = vpop.f32.mrf.mxu0
  %v5101 = vadd.f32 %v5067, %v5100
  %5102 = vmatmul.f32.gmra.mxu0 %v5075
  %v5103 = vpop.f32.mrf.mxu0
  %v5104 = vadd.f32 %v5067, %v5103
  %5105 = vmatmul.f32.gmra.mxu0 %v5078
  %v5106 = vpop.f32.mrf.mxu0
  %v5107 = vadd.f32 %v5067, %v5106
  %5108 = vdwg.mxu0
  %v5109 = vadd.f32 %v4725, %v5098
  %v5110 = vadd.f32 %v4726, %v5101
  %v5111 = vadd.f32 %v4727, %v5104
  %v5112 = vadd.f32 %v4728, %v5107
  %v5113 = vld [vmem:[%s3 + $0x14] sm:$0x1]
  %v5114 = vld [vmem:[%s3 + $0x15] sm:$0x1]
  %v5115 = vsel %vm152, %v5109, 0.0
  %5116 = vadd.xlane.f32.xlu0 %v5115
  %v5117 = vpop.xlane.xlu0 %5116
  %v5118 = vsel %vm152, %v5110, 0.0
  %5119 = vadd.xlane.f32.xlu0 %v5118
  %v5120 = vpop.xlane.xlu0 %5119
  %v5121 = vsel %vm152, %v5111, 0.0
  %5122 = vadd.xlane.f32.xlu0 %v5121
  %v5123 = vpop.xlane.xlu0 %5122
  %v5124 = vsel %vm152, %v5112, 0.0
  %5125 = vadd.xlane.f32.xlu0 %v5124
  %v5126 = vpop.xlane.xlu0 %5125
  %v5127 = vmul.f32 %v5117, %v171
  %v5128 = vmul.f32 %v5120, %v171
  %v5129 = vmul.f32 %v5123, %v171
  %v5130 = vmul.f32 %v5126, %v171
  %v5131 = vsub.f32 %v5109, %v5127
  %v5132 = vsub.f32 %v5110, %v5128
  %v5133 = vsub.f32 %v5111, %v5129
  %v5134 = vsub.f32 %v5112, %v5130
  %v5135 = vmul.f32 %v5131, %v5131
  %v5136 = vmul.f32 %v5132, %v5132
  %v5137 = vmul.f32 %v5133, %v5133
  %v5138 = vmul.f32 %v5134, %v5134
  %v5139 = vsel %vm152, %v5135, 0.0
  %5140 = vadd.xlane.f32.xlu0 %v5139
  %v5141 = vpop.xlane.xlu0 %5140
  %v5142 = vsel %vm152, %v5136, 0.0
  %5143 = vadd.xlane.f32.xlu0 %v5142
  %v5144 = vpop.xlane.xlu0 %5143
  %v5145 = vsel %vm152, %v5137, 0.0
  %5146 = vadd.xlane.f32.xlu0 %v5145
  %v5147 = vpop.xlane.xlu0 %5146
  %v5148 = vsel %vm152, %v5138, 0.0
  %5149 = vadd.xlane.f32.xlu0 %v5148
  %v5150 = vpop.xlane.xlu0 %5149
  %v5151 = vmul.f32 %v5141, %v171
  %v5152 = vmul.f32 %v5144, %v171
  %v5153 = vmul.f32 %v5147, %v171
  %v5154 = vmul.f32 %v5150, %v171
  %v5155 = vadd.f32 %v5151, 1e-05
  %v5156 = vadd.f32 %v5152, 1e-05
  %v5157 = vadd.f32 %v5153, 1e-05
  %v5158 = vadd.f32 %v5154, 1e-05
  %v5159 = vrsqrt.pop %v5155
  %v5160 = vmul.f32 %v5159, %v5155
  %v5161 = vmul.f32 %v5160, %v5159
  %v5162 = vmul.f32 0.5, %v5161
  %v5163 = vsub.f32 1.5, %v5162
  %v5164 = vmul.f32 %v5159, %v5163
  %vm5165 = vweird.f32 %v5155
  %vm5166 = vweird.f32 %v5159
  %vm5167 = vmor %vm5165, %vm5166
  %v5168 = vsel %vm5167, %v5159, %v5164
  %v5169 = vrsqrt.pop %v5156
  %v5170 = vmul.f32 %v5169, %v5156
  %v5171 = vmul.f32 %v5170, %v5169
  %v5172 = vmul.f32 0.5, %v5171
  %v5173 = vsub.f32 1.5, %v5172
  %v5174 = vmul.f32 %v5169, %v5173
  %vm5175 = vweird.f32 %v5156
  %vm5176 = vweird.f32 %v5169
  %vm5177 = vmor %vm5175, %vm5176
  %v5178 = vsel %vm5177, %v5169, %v5174
  %v5179 = vrsqrt.pop %v5157
  %v5180 = vmul.f32 %v5179, %v5157
  %v5181 = vmul.f32 %v5180, %v5179
  %v5182 = vmul.f32 0.5, %v5181
  %v5183 = vsub.f32 1.5, %v5182
  %v5184 = vmul.f32 %v5179, %v5183
  %vm5185 = vweird.f32 %v5157
  %vm5186 = vweird.f32 %v5179
  %vm5187 = vmor %vm5185, %vm5186
  %v5188 = vsel %vm5187, %v5179, %v5184
  %v5189 = vrsqrt.pop %v5158
  %v5190 = vmul.f32 %v5189, %v5158
  %v5191 = vmul.f32 %v5190, %v5189
  %v5192 = vmul.f32 0.5, %v5191
  %v5193 = vsub.f32 1.5, %v5192
  %v5194 = vmul.f32 %v5189, %v5193
  %vm5195 = vweird.f32 %v5158
  %vm5196 = vweird.f32 %v5189
  %vm5197 = vmor %vm5195, %vm5196
  %v5198 = vsel %vm5197, %v5189, %v5194
  %v5199 = vmul.f32 %v5131, %v5168
  %v5200 = vmul.f32 %v5132, %v5178
  %v5201 = vmul.f32 %v5133, %v5188
  %v5202 = vmul.f32 %v5134, %v5198
  %v5203 = vperm.slane %v5113, 0
  %v5204 = vmul.f32 %v5199, %v5203
  %v5205 = vmul.f32 %v5200, %v5203
  %v5206 = vmul.f32 %v5201, %v5203
  %v5207 = vmul.f32 %v5202, %v5203
  %v5208 = vperm.slane %v5114, 0
  %v5209 = vadd.f32 %v5204, %v5208
  %v5210 = vadd.f32 %v5205, %v5208
  %v5211 = vadd.f32 %v5206, %v5208
  %v5212 = vadd.f32 %v5207, %v5208
  %v5213 = vld [vmem:[%s11] sm:$0xff]
  %v5214 = vld [vmem:[%s11 + $0x8] sm:$0xff]
  %v5215 = vld [vmem:[%s11 + $0x10] sm:$0xff]
  %v5216 = vld [vmem:[%s11 + $0x18] sm:$0xff]
  %v5217 = vld [vmem:[%s10 + $0x4] sm:$0x1]
  %v5218 = vperm.slane %v5217, 0
  %v5220 = vsel %vm152, %v5209, 0
  %v5223 = vsel %vm152, %v5210, 0
  %v5226 = vsel %vm152, %v5211, 0
  %v5229 = vsel %vm152, %v5212, 0
  %5231 = vmatpush.msra.mxu0 0.0
  %5232 = vmatpush.msra.mxu0 0.0
  %5233 = vmatpush.msra.mxu0 0.0
  %5234 = vmatpush.msra.mxu0 0.0
  %5235 = vmatpush.msra.mxu0 0.0
  %5236 = vmatpush.msra.mxu0 0.0
  %5237 = vmatpush.msra.mxu0 0.0
  %5238 = vmatpush.msra.mxu0 0.0
  %5239 = vmatpush.msra.mxu0 0.0
  %5240 = vmatpush.msra.mxu0 0.0
  %5241 = vmatpush.msra.mxu0 0.0
  %5242 = vmatpush.msra.mxu0 0.0
  %5243 = vmatpush.msra.mxu0 %v5216
  %5244 = vmatpush.msra.mxu0 %v5215
  %5245 = vmatpush.msra.mxu0 %v5214
  %5246 = vmatpush.msra.mxu0 %v5213
  %5247 = vmatmul.f32.gmra.mxu0 %v5220
  %v5248 = vpop.f32.mrf.mxu0
  %v5249 = vadd.f32 %v5218, %v5248
  %5250 = vmatmul.f32.gmra.mxu0 %v5223
  %v5251 = vpop.f32.mrf.mxu0
  %v5252 = vadd.f32 %v5218, %v5251
  %5253 = vmatmul.f32.gmra.mxu0 %v5226
  %v5254 = vpop.f32.mrf.mxu0
  %v5255 = vadd.f32 %v5218, %v5254
  %5256 = vmatmul.f32.gmra.mxu0 %v5229
  %v5257 = vpop.f32.mrf.mxu0
  %v5258 = vadd.f32 %v5218, %v5257
  %5259 = vdwg.mxu0
  %vm5260 = vcmp.lt.s32.totalorder %v47, 32
  %v5261 = vsel %vm5260, %v5249, -1e+09
  %v5262 = vsel %vm5260, %v5252, -1e+09
  %v5263 = vsel %vm5260, %v5255, -1e+09
  %v5264 = vsel %vm5260, %v5258, -1e+09
  %5265 = vmax.xlane.f32.xlu0 %v5261
  %v5266 = vpop.xlane.xlu0 %5265
  %5267 = vmax.xlane.f32.xlu0 %v5262
  %v5268 = vpop.xlane.xlu0 %5267
  %5269 = vmax.xlane.f32.xlu0 %v5263
  %v5270 = vpop.xlane.xlu0 %5269
  %5271 = vmax.xlane.f32.xlu0 %v5264
  %v5272 = vpop.xlane.xlu0 %5271
  %v5273 = vsub.f32 %v5261, %v5266
  %v5274 = vsub.f32 %v5262, %v5268
  %v5275 = vsub.f32 %v5263, %v5270
  %v5276 = vsub.f32 %v5264, %v5272
  %v5277 = vmul.f32 %v5273, 1.442695
  %v5278 = vpow.pop %v5277
  %v5279 = vmul.f32 %v5274, 1.442695
  %v5280 = vpow.pop %v5279
  %v5281 = vmul.f32 %v5275, 1.442695
  %v5282 = vpow.pop %v5281
  %v5283 = vmul.f32 %v5276, 1.442695
  %v5284 = vpow.pop %v5283
  %5285 = vadd.xlane.f32.xlu0 %v5278
  %v5286 = vpop.xlane.xlu0 %5285
  %5287 = vadd.xlane.f32.xlu0 %v5280
  %v5288 = vpop.xlane.xlu0 %5287
  %5289 = vadd.xlane.f32.xlu0 %v5282
  %v5290 = vpop.xlane.xlu0 %5289
  %5291 = vadd.xlane.f32.xlu0 %v5284
  %v5292 = vpop.xlane.xlu0 %5291
  %v5293 = vlog2.pop %v5286
  %v5294 = vmul.f32 %v5293, 0.6931472
  %v5295 = vlog2.pop %v5288
  %v5296 = vmul.f32 %v5295, 0.6931472
  %v5297 = vlog2.pop %v5290
  %v5298 = vmul.f32 %v5297, 0.6931472
  %v5299 = vlog2.pop %v5292
  %v5300 = vmul.f32 %v5299, 0.6931472
  %v5301 = vadd.f32 %v5266, %v5294
  %v5302 = vadd.f32 %v5268, %v5296
  %v5303 = vadd.f32 %v5270, %v5298
  %v5304 = vadd.f32 %v5272, %v5300
  %v5305 = vcvt.f32.s32.to.zero.pseudo %v89
  %v5306 = vcvt.f32.s32.to.zero.pseudo %v90
  %v5307 = vcvt.f32.s32.to.zero.pseudo %v91
  %v5308 = vcvt.f32.s32.to.zero.pseudo %v92
  %5309 = vset.pattern.permute.xlu0 7
  %5310 = vperm.xlu0 %5309, %v5305
  %v5311 = vpop.permute.xlu0 %5310
  %5312 = vset.pattern.permute.xlu0 7
  %5313 = vperm.xlu0 %5312, %v5306
  %v5314 = vpop.permute.xlu0 %5313
  %5315 = vset.pattern.permute.xlu0 7
  %5316 = vperm.xlu0 %5315, %v5307
  %v5317 = vpop.permute.xlu0 %5316
  %5318 = vset.pattern.permute.xlu0 7
  %5319 = vperm.xlu0 %5318, %v5308
  %v5320 = vpop.permute.xlu0 %5319
  %vm5321 = vcmp.eq.s32.totalorder %v47, %v5311
  %vm5322 = vcmp.eq.s32.totalorder %v47, %v5314
  %vm5323 = vcmp.eq.s32.totalorder %v47, %v5317
  %vm5324 = vcmp.eq.s32.totalorder %v47, %v5320
  %v5325 = vsel %vm5321, %v5261, 0.0
  %v5326 = vsel %vm5322, %v5262, 0.0
  %v5327 = vsel %vm5323, %v5263, 0.0
  %v5328 = vsel %vm5324, %v5264, 0.0
  %5329 = vadd.xlane.f32.xlu0 %v5325
  %v5330 = vpop.xlane.xlu0 %5329
  %5331 = vadd.xlane.f32.xlu0 %v5326
  %v5332 = vpop.xlane.xlu0 %5331
  %5333 = vadd.xlane.f32.xlu0 %v5327
  %v5334 = vpop.xlane.xlu0 %5333
  %5335 = vadd.xlane.f32.xlu0 %v5328
  %v5336 = vpop.xlane.xlu0 %5335
  %vm5337 = vcmp.ne.s32.totalorder %v5305, 4294967295
  %vm5338 = vcmp.ne.s32.totalorder %v5306, 4294967295
  %vm5339 = vcmp.ne.s32.totalorder %v5307, 4294967295
  %vm5340 = vcmp.ne.s32.totalorder %v5308, 4294967295
  %v5341 = vsub.f32 %v5301, %v5330
  %v5342 = vsub.f32 %v5302, %v5332
  %v5343 = vsub.f32 %v5303, %v5334
  %v5344 = vsub.f32 %v5304, %v5336
  %v5345 = vsel %vm5337, %v5341, 0.0
  %v5346 = vsel %vm5338, %v5342, 0.0
  %v5347 = vsel %vm5339, %v5343, 0.0
  %v5348 = vsel %vm5340, %v5344, 0.0
  %vm5349 = vcmp.eq.s32.totalorder %v47, 127
  %5351 = vset.pattern.permute.xlu0 7
  %5352 = vperm.xlu0 %5351, %v5345
  %v5353 = vpop.permute.xlu0 %5352
  %5356 = vset.pattern.permute.xlu0 7
  %5357 = vperm.xlu0 %5356, %v5346
  %v5358 = vpop.permute.xlu0 %5357
  %5361 = vset.pattern.permute.xlu0 7
  %5362 = vperm.xlu0 %5361, %v5347
  %v5363 = vpop.permute.xlu0 %5362
  %5366 = vset.pattern.permute.xlu0 7
  %5367 = vperm.xlu0 %5366, %v5348
  %v5368 = vpop.permute.xlu0 %5367
  %v5370 = vsel %vm5349, %v5353, %v5249
  %v5371 = vsel %vm5349, %v5358, %v5252
  %v5372 = vsel %vm5349, %v5363, %v5255
  %v5373 = vsel %vm5349, %v5368, %v5258
  %5374 = vst [vmem:[%s12] sm:$0xff] %v5370
  %5375 = vst [vmem:[%s12 + $0x8] sm:$0xff] %v5371
  %5376 = vst [vmem:[%s12 + $0x10] sm:$0xff] %v5372
  %5377 = vst [vmem:[%s12 + $0x18] sm:$0xff] %v5373
  // Predicated region
  $region50: #{forward_on_codes.1} parent=0 // pred_check
    _
  $region51: #{forward_on_codes.1} parent=0 // pred_check_branch
    %5379 = sbr.rel (0) target = $region53
  $region52: #{forward_on_codes.1} parent=0 // pred_region
    _
  $region53: #{forward_on_codes.1} parent=0 // pred_fallthru
    _
  // Predicated region
  $region54: #{forward_on_codes.1} parent=0 // pred_check
    _
  $region55: #{forward_on_codes.1} parent=0 // pred_check_branch
    %5381 = sbr.rel (0) target = $region57
  $region56: #{forward_on_codes.1} parent=0 // pred_region
    _
  $region57: #{forward_on_codes.1} parent=0 // pred_fallthru
    _

</llo_original>
